<compile_context>
chip_gen: v6e
topology: v6e:2x2x1
jax: 0.10.0
libtpu: 0.0.40
codegen_flags: <defaults>
</compile_context>

<pallas_src>
import functools

import jax
import jax.numpy as jnp
from jax.experimental import pallas as pl
from jax.experimental.pallas import tpu as pltpu


def _round_up(n, m):
    return (n + m - 1) // m * m


def _pick_th(Cp, Hp, tm, budget_bytes):
    """Largest 128-multiple divisor of Hp whose working set fits the budget."""
    th = Hp
    while th >= 128:
        if Hp % th == 0:
            need = (2 * tm * Cp * 2        # x tile (double-buffered, bf16)
                    + 2 * Cp * th * 2      # W1 chunk (db, bf16)
                    + 2 * th * Cp * 2      # W2 chunk (db, bf16)
                    + 2 * th * 4           # b1 chunk (db, f32)
                    + 2 * Cp * 4           # b2       (db, f32)
                    + 2 * tm * Cp * 4      # out block (db, f32) == accumulator
                    + tm * th * 4)         # hidden intermediate (f32)
            if need <= budget_bytes:
                return th
        th -= 128
    return 128


def ffwd_kernel(x_ref, w1_ref, b1_ref, w2_ref, b2_ref, o_ref):
    # x_ref:  (tm, Cp)  bf16
    # w1_ref: (Cp, th)  bf16    b1_ref: (1, th) f32
    # w2_ref: (th, Cp)  bf16    b2_ref: (1, Cp) f32
    # o_ref:  (tm, Cp)  f32     (resident accumulator across the k axis)
    k = pl.program_id(1)

    @pl.when(k == 0)
    def _():
        # Initialize the resident f32 output block with the second bias.
        o_ref[...] = jnp.broadcast_to(b2_ref[...], o_ref.shape)

    # First matmul chunk on the MXU (bf16 in, f32 accumulate); bias+ReLU in f32.
    h = jnp.dot(x_ref[...], w1_ref[...], preferred_element_type=jnp.float32)
    h = jnp.maximum(h + b1_ref[...], 0.0)

    # Second matmul chunk, accumulate into the resident output block.
    o_ref[...] += jnp.dot(h.astype(w2_ref.dtype), w2_ref[...],
                          preferred_element_type=jnp.float32)


@functools.partial(jax.jit, static_argnames=("tm",))
def feedforward(x, w1, b1, w2, b2, *, tm=256):
    """x: (B, T, C) float32. Weights stored as (in, out). Returns (B, T, C) f32."""
    B, T, C = x.shape
    H = w1.shape[1]
    M = B * T

    # Pad to lane-dense / tile-dense shapes (C=384 and H=1536 are already
    # 128-multiples, so typically only M padding, if any).
    Cp = _round_up(C, 128)
    Hp = _round_up(H, 128)
    Mp = _round_up(M, tm)

    x2d = x.reshape(M, C)
    if (Mp, Cp) != (M, C):
        x2d = jnp.pad(x2d, ((0, Mp - M), (0, Cp - C)))
    w1p = jnp.pad(w1, ((0, Cp - C), (0, Hp - H))) if (Cp, Hp) != (C, H) else w1
    b1p = jnp.pad(b1, ((0, Hp - H),)) if Hp != H else b1
    w2p = jnp.pad(w2, ((0, Hp - H), (0, Cp - C))) if (Hp, Cp) != (H, C) else w2
    b2p = jnp.pad(b2, ((0, Cp - C),)) if Cp != C else b2

    # bf16 operands for the MXU; biases stay f32 (f32 elementwise path).
    x_bf = x2d.astype(jnp.bfloat16)
    w1_bf = w1p.astype(jnp.bfloat16)
    w2_bf = w2p.astype(jnp.bfloat16)
    b1r = b1p.reshape(1, Hp).astype(jnp.float32)
    b2r = b2p.reshape(1, Cp).astype(jnp.float32)

    # Hidden-dim chunk: as large as the VMEM budget allows (best case th == Hp,
    # which makes the weight block indices grid-constant -> weights DMA'd once).
    th = _pick_th(Cp, Hp, tm, budget_bytes=20 * 1024 * 1024)
    grid = (Mp // tm, Hp // th)

    cost = pl.CostEstimate(
        flops=4 * M * C * H,
        transcendentals=0,
        bytes_accessed=(x_bf.size * 2
                        + (Mp // tm) * (w1_bf.size * 2 + w2_bf.size * 2)
                        + b1r.size * 4 + b2r.size * 4 + Mp * Cp * 4),
    )

    out2d = pl.pallas_call(
        ffwd_kernel,
        out_shape=jax.ShapeDtypeStruct((Mp, Cp), jnp.float32),
        grid_spec=pltpu.PrefetchScalarGridSpec(
            num_scalar_prefetch=0,
            grid=grid,
            in_specs=[
                pl.BlockSpec((tm, Cp), lambda i, k: (i, 0)),   # x rows (resident over k)
                pl.BlockSpec((Cp, th), lambda i, k: (0, k)),   # W1 H-chunk
                pl.BlockSpec((1, th), lambda i, k: (0, k)),    # b1 H-chunk
                pl.BlockSpec((th, Cp), lambda i, k: (k, 0)),   # W2 H-chunk
                pl.BlockSpec((1, Cp), lambda i, k: (0, 0)),    # b2
            ],
            out_specs=pl.BlockSpec((tm, Cp), lambda i, k: (i, 0)),
        ),
        compiler_params=pltpu.CompilerParams(
            dimension_semantics=("parallel", "arbitrary"),
            vmem_limit_bytes=32 * 1024 * 1024,
        ),
        cost_estimate=cost,
    )(x_bf, w1_bf, b1r, w2_bf, b2r)

    return out2d[:M, :C].reshape(B, T, C)


def init_params(key, n_embd):
    """Deterministic init mimicking nn.Linear defaults (U(-1/sqrt(in), +1/sqrt(in)))."""
    h = 4 * n_embd
    k1, k2, k3, k4 = jax.random.split(key, 4)
    bound1 = 1.0 / (n_embd ** 0.5)
    bound2 = 1.0 / (h ** 0.5)
    # stored as (in, out) — transpose of PyTorch's (out, in) weight layout
    w1 = jax.random.uniform(k1, (n_embd, h), jnp.float32, -bound1, bound1)
    b1 = jax.random.uniform(k2, (h,), jnp.float32, -bound1, bound1)
    w2 = jax.random.uniform(k3, (h, n_embd), jnp.float32, -bound2, bound2)
    b2 = jax.random.uniform(k4, (n_embd,), jnp.float32, -bound2, bound2)
    return w1, b1, w2, b2


if __name__ == "__main__":
    # Shapes consistent with the module: n_embd=384, seq = block_size=256, batch=2.
    B, T, n_embd = 2, 256, 384
    key = jax.random.PRNGKey(0)
    kx, kp = jax.random.split(key)
    x = jax.random.normal(kx, (B, T, n_embd), jnp.float32)
    w1, b1, w2, b2 = init_params(kp, n_embd)

    out = feedforward(x, w1, b1, w2, b2)
    out = jax.block_until_ready(out)

    # Reference (eval-mode: dropout is identity), with the same bf16 matmul
    # inputs / f32 accumulation as the kernel.
    xb = x.reshape(-1, n_embd).astype(jnp.bfloat16)
    w1b = w1.astype(jnp.bfloat16)
    w2b = w2.astype(jnp.bfloat16)
    h_ref = jnp.maximum(
        jnp.dot(xb, w1b, preferred_element_type=jnp.float32) + b1, 0.0)
    ref = jnp.dot(h_ref.astype(jnp.bfloat16), w2b,
                  preferred_element_type=jnp.float32) + b2
    ref = ref.reshape(B, T, n_embd)

    assert out.shape == (B, T, n_embd)
    assert jnp.allclose(out, ref, atol=2e-2, rtol=2e-2), "mismatch vs reference"

    print("KERNEL_OK")
</pallas_src>

<mosaic_0001>
module attributes {stable_mosaic.version = 11 : i64} {
  func.func @ffwd_kernel(%arg0: i32, %arg1: i32, %arg2: memref<256x384xbf16, #tpu.memory_space<vmem>>, %arg3: memref<384x1536xbf16, #tpu.memory_space<vmem>>, %arg4: memref<1x1536xf32, #tpu.memory_space<vmem>>, %arg5: memref<1536x384xbf16, #tpu.memory_space<vmem>>, %arg6: memref<1x384xf32, #tpu.memory_space<vmem>>, %arg7: memref<256x384xf32, #tpu.memory_space<vmem>>) attributes {dimension_semantics = [#tpu.dimension_semantics<parallel>, #tpu.dimension_semantics<arbitrary>], iteration_bounds = array<i64: 2, 1>, scalar_prefetch = 0 : i64, scratch_operands = 0 : i64, tpu.core_type = #tpu.core_type<tc>, window_params = [{transform_indices = @transform_0, window_bounds = array<i64: 256, 384>}, {transform_indices = @transform_1, window_bounds = array<i64: 384, 1536>}, {transform_indices = @transform_2, window_bounds = array<i64: 1, 1536>}, {transform_indices = @transform_3, window_bounds = array<i64: 1536, 384>}, {pipeline_mode = #tpu.pipeline_mode<synchronous>, transform_indices = @transform_4, window_bounds = array<i64: 1, 384>}, {transform_indices = @transform_5, window_bounds = array<i64: 256, 384>}]} {
    %c0_i32 = arith.constant 0 : i32
    %0 = arith.cmpi eq, %arg1, %c0_i32 : i32
    %1 = arith.extui %0 : i1 to i32
    %c0_i32_0 = arith.constant 0 : i32
    %2 = arith.cmpi ne, %1, %c0_i32_0 : i32
    scf.if %2 {
      %c0_14 = arith.constant 0 : index
      %c0_15 = arith.constant 0 : index
      %17 = vector.load %arg6[%c0_14, %c0_15] : memref<1x384xf32, #tpu.memory_space<vmem>>, vector<1x384xf32>
      %18 = vector.shape_cast %17 : vector<1x384xf32> to vector<1x384xf32>
      %19 = vector.broadcast %18 : vector<1x384xf32> to vector<256x384xf32>
      %c0_16 = arith.constant 0 : index
      %c0_17 = arith.constant 0 : index
      %20 = vector.load %arg7[%c0_16, %c0_17] : memref<256x384xf32, #tpu.memory_space<vmem>>, vector<256x384xf32>
      tpu.vector_store %arg7[%c0_16, %c0_17], %19 {strides = array<i32>} : memref<256x384xf32, #tpu.memory_space<vmem>>, vector<256x384xf32>,
    } else {
    }
    %c0 = arith.constant 0 : index
    %c0_1 = arith.constant 0 : index
    %3 = vector.load %arg2[%c0, %c0_1] : memref<256x384xbf16, #tpu.memory_space<vmem>>, vector<256x384xbf16>
    %c0_2 = arith.constant 0 : index
    %c0_3 = arith.constant 0 : index
    %4 = vector.load %arg3[%c0_2, %c0_3] : memref<384x1536xbf16, #tpu.memory_space<vmem>>, vector<384x1536xbf16>
    %cst = arith.constant dense<0.000000e+00> : vector<256x1536xf32>
    %5 = tpu.matmul %3, %4, %cst {dimension_numbers = #tpu.dot_dimension_numbers<[1], [0], [0], [1], [0, 0, 1, 1], [], []>} : vector<256x384xbf16>, vector<384x1536xbf16>, vector<256x1536xf32> -> vector<256x1536xf32>
    %c0_4 = arith.constant 0 : index
    %c0_5 = arith.constant 0 : index
    %6 = vector.load %arg4[%c0_4, %c0_5] : memref<1x1536xf32, #tpu.memory_space<vmem>>, vector<1x1536xf32>
    %7 = vector.broadcast %6 : vector<1x1536xf32> to vector<256x1536xf32>
    %8 = arith.addf %5, %7 : vector<256x1536xf32>
    %cst_6 = arith.constant 0.000000e+00 : f32
    %9 = vector.broadcast %cst_6 : f32 to vector<256x1536xf32>
    %10 = arith.maximumf %8, %9 : vector<256x1536xf32>
    %c0_7 = arith.constant 0 : index
    %c0_8 = arith.constant 0 : index
    %11 = vector.load %arg7[%c0_7, %c0_8] : memref<256x384xf32, #tpu.memory_space<vmem>>, vector<256x384xf32>
    %12 = arith.truncf %10 : vector<256x1536xf32> to vector<256x1536xbf16>
    %c0_9 = arith.constant 0 : index
    %c0_10 = arith.constant 0 : index
    %13 = vector.load %arg5[%c0_9, %c0_10] : memref<1536x384xbf16, #tpu.memory_space<vmem>>, vector<1536x384xbf16>
    %cst_11 = arith.constant dense<0.000000e+00> : vector<256x384xf32>
    %14 = tpu.matmul %12, %13, %cst_11 {dimension_numbers = #tpu.dot_dimension_numbers<[1], [0], [0], [1], [0, 0, 1, 1], [], []>} : vector<256x1536xbf16>, vector<1536x384xbf16>, vector<256x384xf32> -> vector<256x384xf32>
    %15 = arith.addf %11, %14 : vector<256x384xf32>
    %c0_12 = arith.constant 0 : index
    %c0_13 = arith.constant 0 : index
    %16 = vector.load %arg7[%c0_12, %c0_13] : memref<256x384xf32, #tpu.memory_space<vmem>>, vector<256x384xf32>
    tpu.vector_store %arg7[%c0_12, %c0_13], %15 {strides = array<i32>} : memref<256x384xf32, #tpu.memory_space<vmem>>, vector<256x384xf32>,
    return
  }
  func.func @transform_0(%arg0: i32, %arg1: i32) -> (i32, i32) {
    %c0_i32 = arith.constant 0 : i32
    %c0_i32_0 = arith.constant 0 : i32
    return %arg0, %c0_i32 : i32, i32
  }
  func.func @transform_1(%arg0: i32, %arg1: i32) -> (i32, i32) {
    %c0_i32 = arith.constant 0 : i32
    %c0_i32_0 = arith.constant 0 : i32
    return %c0_i32, %arg1 : i32, i32
  }
  func.func @transform_2(%arg0: i32, %arg1: i32) -> (i32, i32) {
    %c0_i32 = arith.constant 0 : i32
    %c0_i32_0 = arith.constant 0 : i32
    return %c0_i32, %arg1 : i32, i32
  }
  func.func @transform_3(%arg0: i32, %arg1: i32) -> (i32, i32) {
    %c0_i32 = arith.constant 0 : i32
    %c0_i32_0 = arith.constant 0 : i32
    return %arg1, %c0_i32 : i32, i32
  }
  func.func @transform_4(%arg0: i32, %arg1: i32) -> (i32, i32) {
    %c0_i32 = arith.constant 0 : i32
    %c0_i32_0 = arith.constant 0 : i32
    %c0_i32_1 = arith.constant 0 : i32
    return %c0_i32, %c0_i32_0 : i32, i32
  }
  func.func @transform_5(%arg0: i32, %arg1: i32) -> (i32, i32) {
    %c0_i32 = arith.constant 0 : i32
    %c0_i32_0 = arith.constant 0 : i32
    return %arg0, %c0_i32 : i32, i32
  }
}

</mosaic_0001>

<llo_original>
// kernel: feedforward.1
$region0: #{feedforward.1}
  #allocation0 [shape = 'u32[]', space=smem, size = 0x4, offset = 0x4, fixed_abs, tag = 'smem constant byte address 0x4 - core index']
  #allocation1 [shape = 'u32[144,128]{1,0:T(1,128)}', space=vmem, size = 0x12000, scoped, tag = 'internal scratch']
  %s0 = inlined_call_operand.vmem [shape: bf16[512,384], index: 0, kind: input, shape index: {}]
  %s1 = inlined_call_operand.vmem [shape: bf16[384,1536], index: 1, kind: input, shape index: {}]
  %s2 = inlined_call_operand.vmem [shape: f32[1,1536], index: 2, kind: input, shape index: {}]
  %s3 = inlined_call_operand.vmem [shape: bf16[1536,384], index: 3, kind: input, shape index: {}]
  %s4 = inlined_call_operand.vmem [shape: f32[1,384], index: 4, kind: input, shape index: {}]
  %s5 = inlined_call_operand.hbm [shape: f32[512,384], index: 5, kind: output, shape index: {}]
  %s6 = sld [smem:[#allocation0]]
  $region57: #{feedforward.1} parent=0
    _
  %s8 = ssub.s32 1, %s6
  %s9 = scalar_select 0, %s8, %s6
  $region1: #{feedforward.1} parent=0
    #allocation2 [shape = 'u8[786432]{0}', space=vmem, size = 0xc0000, scoped, tag = 'output window, operand 0']
    #allocation3 [shape = 's32[2]{0}', space=sflag, size = 0x8, scoped, tag = 'scoped memory for feedforward.1']
    %10 = vsyncpa [#allocation3], 0
    %s11 = scalar_lea.sflag [#allocation3], 1
    %12 = vsyncpa %s11, 0
    loop: start=0, step=1, limit=4
    $region2: #{feedforward.1} parent=1 // loop_pre_header
      _
    $region3: #{feedforward.1} parent=1 // loop_header
      %s14 = sphi 0, %s18
      %p15 = scmp.ge.s32.totalorder %s14, 4
      %s21 = sphi 0, %s33
      %s22 = sphi 0, %s29
      %s23 = sphi 0, %s21
      %s24 = sphi 0, %s22
      %s25 = sphi 0, %s23
      %s26 = sphi 0, %s24
      %s36 = sphi 0, %s38
      %s39 = sphi 0, %s36
      %s40 = sphi 0, %s39
      %s56 = sphi 0, %s40
      %s62 = sphi 0, %s64
      %s65 = sphi 0, %s62
      %s66 = sphi 0, %s65
      %s82 = sphi 0, %s66
      %s88 = sphi 0, %s90
      %s91 = sphi 0, %s88
      %s92 = sphi 0, %s91
      %s108 = sphi 0, %s92
      %s114 = sphi 0, %s116
      %s117 = sphi 0, %s114
      %s118 = sphi 0, %s117
      %s134 = sphi 0, %s118
      %s138 = sphi 0, %s138
      %s140 = sphi 0, %s138
      %s141 = sphi 0, %s140
      %s155 = sphi 0, %s141
      %s161 = sphi 0, %s163
      %s164 = sphi 0, %s161
      %s165 = sphi 0, %s164
      %s181 = sphi 0, %s165
    $region4: #{feedforward.1} parent=1 // loop_header_branch
      %17 = sbr.rel (%p15) target = $region8
    $region5: #{feedforward.1} parent=1 // loop_body
      %s19 = ssub.s32 %s14, 1
      %s20 = ssub.s32 %s14, 2
      %s27 = sadd.s32 1, %s22
      %p28 = scmp.ge.s32.totalorder %s27, 1
      %s29 = scalar_select %p28, 0, %s27
      %s30 = sadd.s32 1, %s21
      %s31 = scalar_select %p28, %s30, %s21
      %p32 = scmp.ge.s32.totalorder %s31, 2
      %s33 = scalar_select %p32, 0, %s31
      %s34 = ssub.s32 %s21, %s33
      %p35 = scmp.eq.s32.totalorder %s34, 0
      %s37 = sadd.s32 %s36, 1
      %s38 = scalar_select %p35, %s36, %s37
      %p41 = pneg %p35
      %p42 = scmp.eq.s32.totalorder %s14, 1
      %p43 = por %p41, %p42
      %p44 = scmp.ne.s32.totalorder %s36, %s39
      %p45 = scmp.eq.s32.totalorder %s14, 0
      %p46 = por %p44, %p45
      %p47 = scmp.ne.s32.totalorder %s36, %s39
      %p48 = scmp.eq.s32.totalorder %s19, 1
      %p49 = por %p47, %p48
      %p50 = scmp.ne.s32.totalorder %s39, %s40
      %p51 = scmp.eq.s32.totalorder %s19, 0
      %p52 = por %p50, %p51
      %p53 = scmp.ne.s32.totalorder %s39, %s40
      %p54 = scmp.eq.s32.totalorder %s20, 1
      %p55 = por %p53, %p54
      %p57 = scmp.ne.s32.totalorder %s40, %s56
      %p58 = scmp.eq.s32.totalorder %s20, 0
      %p59 = por %p57, %p58
      %s60 = ssub.s32 %s22, %s29
      %p61 = scmp.eq.s32.totalorder %s60, 0
      %s63 = sadd.s32 %s62, 1
      %s64 = scalar_select %p61, %s62, %s63
      %p67 = pneg %p61
      %p68 = scmp.eq.s32.totalorder %s14, 1
      %p69 = por %p67, %p68
      %p70 = scmp.ne.s32.totalorder %s62, %s65
      %p71 = scmp.eq.s32.totalorder %s14, 0
      %p72 = por %p70, %p71
      %p73 = scmp.ne.s32.totalorder %s62, %s65
      %p74 = scmp.eq.s32.totalorder %s19, 1
      %p75 = por %p73, %p74
      %p76 = scmp.ne.s32.totalorder %s65, %s66
      %p77 = scmp.eq.s32.totalorder %s19, 0
      %p78 = por %p76, %p77
      %p79 = scmp.ne.s32.totalorder %s65, %s66
      %p80 = scmp.eq.s32.totalorder %s20, 1
      %p81 = por %p79, %p80
      %p83 = scmp.ne.s32.totalorder %s66, %s82
      %p84 = scmp.eq.s32.totalorder %s20, 0
      %p85 = por %p83, %p84
      %s86 = ssub.s32 %s22, %s29
      %p87 = scmp.eq.s32.totalorder %s86, 0
      %s89 = sadd.s32 %s88, 1
      %s90 = scalar_select %p87, %s88, %s89
      %p93 = pneg %p87
      %p94 = scmp.eq.s32.totalorder %s14, 1
      %p95 = por %p93, %p94
      %p96 = scmp.ne.s32.totalorder %s88, %s91
      %p97 = scmp.eq.s32.totalorder %s14, 0
      %p98 = por %p96, %p97
      %p99 = scmp.ne.s32.totalorder %s88, %s91
      %p100 = scmp.eq.s32.totalorder %s19, 1
      %p101 = por %p99, %p100
      %p102 = scmp.ne.s32.totalorder %s91, %s92
      %p103 = scmp.eq.s32.totalorder %s19, 0
      %p104 = por %p102, %p103
      %p105 = scmp.ne.s32.totalorder %s91, %s92
      %p106 = scmp.eq.s32.totalorder %s20, 1
      %p107 = por %p105, %p106
      %p109 = scmp.ne.s32.totalorder %s92, %s108
      %p110 = scmp.eq.s32.totalorder %s20, 0
      %p111 = por %p109, %p110
      %s112 = ssub.s32 %s22, %s29
      %p113 = scmp.eq.s32.totalorder %s112, 0
      %s115 = sadd.s32 %s114, 1
      %s116 = scalar_select %p113, %s114, %s115
      %p119 = pneg %p113
      %p120 = scmp.eq.s32.totalorder %s14, 1
      %p121 = por %p119, %p120
      %p122 = scmp.ne.s32.totalorder %s114, %s117
      %p123 = scmp.eq.s32.totalorder %s14, 0
      %p124 = por %p122, %p123
      %p125 = scmp.ne.s32.totalorder %s114, %s117
      %p126 = scmp.eq.s32.totalorder %s19, 1
      %p127 = por %p125, %p126
      %p128 = scmp.ne.s32.totalorder %s117, %s118
      %p129 = scmp.eq.s32.totalorder %s19, 0
      %p130 = por %p128, %p129
      %p131 = scmp.ne.s32.totalorder %s117, %s118
      %p132 = scmp.eq.s32.totalorder %s20, 1
      %p133 = por %p131, %p132
      %p135 = scmp.ne.s32.totalorder %s118, %s134
      %p136 = scmp.eq.s32.totalorder %s20, 0
      %p137 = por %p135, %p136
      %s139 = sadd.s32 %s138, 1
      %p142 = scmp.eq.s32.totalorder %s14, 1
      %p143 = scmp.ne.s32.totalorder %s138, %s140
      %p144 = scmp.eq.s32.totalorder %s14, 0
      %p145 = por %p143, %p144
      %p146 = scmp.ne.s32.totalorder %s138, %s140
      %p147 = scmp.eq.s32.totalorder %s19, 1
      %p148 = por %p146, %p147
      %p149 = scmp.ne.s32.totalorder %s140, %s141
      %p150 = scmp.eq.s32.totalorder %s19, 0
      %p151 = por %p149, %p150
      %p152 = scmp.ne.s32.totalorder %s140, %s141
      %p153 = scmp.eq.s32.totalorder %s20, 1
      %p154 = por %p152, %p153
      %p156 = scmp.ne.s32.totalorder %s141, %s155
      %p157 = scmp.eq.s32.totalorder %s20, 0
      %p158 = por %p156, %p157
      %s159 = ssub.s32 %s21, %s33
      %p160 = scmp.eq.s32.totalorder %s159, 0
      %s162 = sadd.s32 %s161, 1
      %s163 = scalar_select %p160, %s161, %s162
      %p166 = pneg %p160
      %p167 = scmp.eq.s32.totalorder %s14, 1
      %p168 = por %p166, %p167
      %p169 = scmp.ne.s32.totalorder %s161, %s164
      %p170 = scmp.eq.s32.totalorder %s14, 0
      %p171 = por %p169, %p170
      %p172 = scmp.ne.s32.totalorder %s161, %s164
      %p173 = scmp.eq.s32.totalorder %s19, 1
      %p174 = por %p172, %p173
      %p175 = scmp.ne.s32.totalorder %s164, %s165
      %p176 = scmp.eq.s32.totalorder %s19, 0
      %p177 = por %p175, %p176
      %p178 = scmp.ne.s32.totalorder %s164, %s165
      %p179 = scmp.eq.s32.totalorder %s20, 1
      %p180 = por %p178, %p179
      %p182 = scmp.ne.s32.totalorder %s165, %s181
      %p183 = scmp.eq.s32.totalorder %s20, 0
      %p184 = por %p182, %p183
      %p185 = scmp.le.s32.totalorder 1, %s14
      %p186 = scmp.lt.s32.totalorder %s14, 3
      %p187 = pnand %p185, %p186
      %p188 = pneg %p187
      // Predicated region
      $region9: #{feedforward.1} parent=5 // pred_check
        _
      $region10: #{feedforward.1} parent=5 // pred_check_branch
        %190 = sbr.rel (%p187) target = $region12
      $region11: #{feedforward.1} parent=5 // pred_region
        %s191 = ssub.s32 %s14, 1
        // Predicated region
        $region13: #{feedforward.1} parent=11 // pred_check
          %p192 = pneg %p78
        $region14: #{feedforward.1} parent=11 // pred_check_branch
          %194 = sbr.rel (%p192) target = $region16
        $region15: #{feedforward.1} parent=11 // pred_region
          %s195 = smul.u32 12, %s24
          %p196 = scmp.lt.s32.totalorder %s195, 11
          %s197 = scalar_select %p196, %s195, 11
          %s198 = smul.addr %s197, 4
          %s199 = scalar_lea.vmem %s1, %s198
          %s200 = smul.u32 12, %s24
        $region16: #{feedforward.1} parent=11 // pred_fallthru
          _
        // Predicated region
        $region17: #{feedforward.1} parent=11 // pred_check
          %p201 = pneg %p104
        $region18: #{feedforward.1} parent=11 // pred_check_branch
          %203 = sbr.rel (%p201) target = $region20
        $region19: #{feedforward.1} parent=11 // pred_region
          %s204 = smul.u32 12, %s24
          %p205 = scmp.lt.s32.totalorder %s204, 11
          %s206 = scalar_select %p205, %s204, 11
          %s207 = scalar_lea.vmem %s2, %s206
          %s208 = smul.u32 12, %s24
        $region20: #{feedforward.1} parent=11 // pred_fallthru
          _
        // Predicated region
        $region21: #{feedforward.1} parent=11 // pred_check
          %p209 = pneg %p130
        $region22: #{feedforward.1} parent=11 // pred_check_branch
          %211 = sbr.rel (%p209) target = $region24
        $region23: #{feedforward.1} parent=11 // pred_region
          %s212 = smul.u32 192, %s24
          %p213 = scmp.lt.s32.totalorder %s212, 191
          %s214 = scalar_select %p213, %s212, 191
          %s215 = smul.addr %s214, 3
          %s216 = smul.addr %s215, 4
          %s217 = scalar_lea.vmem %s3, %s216
          %s218 = smul.u32 192, %s24
        $region24: #{feedforward.1} parent=11 // pred_fallthru
          _
        // Predicated region
        $region25: #{feedforward.1} parent=11 // pred_check
          %p219 = pneg %p151
        $region26: #{feedforward.1} parent=11 // pred_check_branch
          %221 = sbr.rel (%p219) target = $region28
        $region27: #{feedforward.1} parent=11 // pred_region
          _
        $region28: #{feedforward.1} parent=11 // pred_fallthru
          _
      $region12: #{feedforward.1} parent=5 // pred_fallthru
        _
      %p222 = scmp.lt.s32.totalorder %s14, 2
      // Predicated region
      $region29: #{feedforward.1} parent=5 // pred_check
        %p223 = pneg %p222
      $region30: #{feedforward.1} parent=5 // pred_check_branch
        %225 = sbr.rel (%p223) target = $region32
      $region31: #{feedforward.1} parent=5 // pred_region
        // Predicated region
        $region33: #{feedforward.1} parent=31 // pred_check
          %p226 = pneg %p46
        $region34: #{feedforward.1} parent=31 // pred_check_branch
          %228 = sbr.rel (%p226) target = $region36
        $region35: #{feedforward.1} parent=31 // pred_region
          %s229 = smul.u32 32, %s21
          %p230 = scmp.lt.s32.totalorder %s229, 63
          %s231 = scalar_select %p230, %s229, 63
          %s232 = smul.addr %s231, 3
          %s233 = smul.addr %s232, 4
          %s234 = scalar_lea.vmem %s0, %s233
          %s235 = smul.u32 32, %s21
        $region36: #{feedforward.1} parent=31 // pred_fallthru
          _
      $region32: #{feedforward.1} parent=5 // pred_fallthru
        _
      %p236 = scmp.le.s32.totalorder 1, %s14
      %p237 = scmp.lt.s32.totalorder %s14, 3
      %p238 = pnand %p236, %p237
      %p239 = pneg %p238
      // Predicated region
      $region37: #{feedforward.1} parent=5 // pred_check
        _
      $region38: #{feedforward.1} parent=5 // pred_check_branch
        %241 = sbr.rel (%p238) target = $region40
      $region39: #{feedforward.1} parent=5 // pred_region
        %s242 = ssub.s32 %s14, 1
        %s243 = smul.u32 32, %s23
        %p244 = scmp.lt.s32.totalorder %s243, 63
        %s245 = scalar_select %p244, %s243, 63
        %s246 = smul.addr %s245, 3
        %s247 = smul.addr %s246, 4
        %s248 = scalar_lea.vmem %s0, %s247
        %p249 = pneg %p52
        %p250 = pneg %p49
        %s251 = smul.u32 12, %s24
        %p252 = scmp.lt.s32.totalorder %s251, 11
        %s253 = scalar_select %p252, %s251, 11
        %s254 = smul.addr %s253, 4
        %s255 = scalar_lea.vmem %s1, %s254
        %p256 = pneg %p78
        %p257 = pneg %p75
        %s258 = smul.u32 12, %s24
        %p259 = scmp.lt.s32.totalorder %s258, 11
        %s260 = scalar_select %p259, %s258, 11
        %s261 = scalar_lea.vmem %s2, %s260
        %p262 = pneg %p104
        %p263 = pneg %p101
        %s264 = smul.u32 192, %s24
        %p265 = scmp.lt.s32.totalorder %s264, 191
        %s266 = scalar_select %p265, %s264, 191
        %s267 = smul.addr %s266, 3
        %s268 = smul.addr %s267, 4
        %s269 = scalar_lea.vmem %s3, %s268
        %p270 = pneg %p130
        %p271 = pneg %p127
        %p272 = pneg %p151
        %p273 = pneg %p148
        %p274 = pneg %p177
        %p275 = pneg %p174
        %s276 = sand.u32 %s164, 1
        %s277 = scalar_lea.sflag [#allocation3], %s276
        %s278 = sand.u32 %s164, 1
        %s279 = smul.addr %s278, 768
        %s280 = scalar_lea.vmem [#allocation2], %s279
        %s281 = smul.u32 32, %s23
        %p282 = scmp.lt.s32.totalorder %s281, 63
        %s283 = scalar_select %p282, %s281, 63
        %s284 = smul.addr %s283, 3
        %s285 = smul.addr %s284, 4
        %s286 = scalar_lea.vmem %s0, %s285
        %s287 = smul.u32 32, %s23
        %s288 = smul.u32 12, %s24
        %p289 = scmp.lt.s32.totalorder %s288, 11
        %s290 = scalar_select %p289, %s288, 11
        %s291 = smul.addr %s290, 4
        %s292 = scalar_lea.vmem %s1, %s291
        %s293 = smul.u32 12, %s24
        %s294 = smul.u32 12, %s24
        %p295 = scmp.lt.s32.totalorder %s294, 11
        %s296 = scalar_select %p295, %s294, 11
        %s297 = scalar_lea.vmem %s2, %s296
        %s298 = smul.u32 12, %s24
        %s299 = smul.u32 192, %s24
        %p300 = scmp.lt.s32.totalorder %s299, 191
        %s301 = scalar_select %p300, %s299, 191
        %s302 = smul.addr %s301, 3
        %s303 = smul.addr %s302, 4
        %s304 = scalar_lea.vmem %s3, %s303
        %s305 = smul.u32 192, %s24
        %s306 = smul.u32 32, %s23
        %p308 = scmp.eq.s32.totalorder %s24, 0
        // Predicated region
        $region41: #{feedforward.1} parent=39 // pred_check
          %p309 = pneg %p308
        $region42: #{feedforward.1} parent=39 // pred_check_branch
          %311 = sbr.rel (%p309) target = $region44
        $region43: #{feedforward.1} parent=39 // pred_region
          %v312 = vld [vmem:[%s4] sm:$0x7]
          %v314 = vlaneseq
          %v315 = vshrl.u32 %v314, 7
          %v316 = vsub.s32 0, %v315
          %v317 = vrot.slane %v312, %v316
          %v318 = vlaneseq
          %v319 = vshrl.u32 %v318, 7
          %v320 = vsub.s32 1, %v319
          %v321 = vrot.slane %v312, %v320
          %v322 = vlaneseq
          %v323 = vshrl.u32 %v322, 7
          %v324 = vsub.s32 2, %v323
          %v325 = vrot.slane %v312, %v324
          %329 = vst [vmem:[%s280] sm:$0xff] %v317
          %330 = vst [vmem:[%s280 + $0x8] sm:$0xff] %v321
          %331 = vst [vmem:[%s280 + $0x10] sm:$0xff] %v325
          %332 = vst [vmem:[%s280 + $0x18] sm:$0xff] %v317
          %333 = vst [vmem:[%s280 + $0x20] sm:$0xff] %v321
          %334 = vst [vmem:[%s280 + $0x28] sm:$0xff] %v325
          %335 = vst [vmem:[%s280 + $0x30] sm:$0xff] %v317
          %336 = vst [vmem:[%s280 + $0x38] sm:$0xff] %v321
          %337 = vst [vmem:[%s280 + $0x40] sm:$0xff] %v325
          %338 = vst [vmem:[%s280 + $0x48] sm:$0xff] %v317
          %339 = vst [vmem:[%s280 + $0x50] sm:$0xff] %v321
          %340 = vst [vmem:[%s280 + $0x58] sm:$0xff] %v325
          %341 = vst [vmem:[%s280 + $0x60] sm:$0xff] %v317
          %342 = vst [vmem:[%s280 + $0x68] sm:$0xff] %v321
          %343 = vst [vmem:[%s280 + $0x70] sm:$0xff] %v325
          %344 = vst [vmem:[%s280 + $0x78] sm:$0xff] %v317
          %345 = vst [vmem:[%s280 + $0x80] sm:$0xff] %v321
          %346 = vst [vmem:[%s280 + $0x88] sm:$0xff] %v325
          %347 = vst [vmem:[%s280 + $0x90] sm:$0xff] %v317
          %348 = vst [vmem:[%s280 + $0x98] sm:$0xff] %v321
          %349 = vst [vmem:[%s280 + $0xa0] sm:$0xff] %v325
          %350 = vst [vmem:[%s280 + $0xa8] sm:$0xff] %v317
          %351 = vst [vmem:[%s280 + $0xb0] sm:$0xff] %v321
          %352 = vst [vmem:[%s280 + $0xb8] sm:$0xff] %v325
          %353 = vst [vmem:[%s280 + $0xc0] sm:$0xff] %v317
          %354 = vst [vmem:[%s280 + $0xc8] sm:$0xff] %v321
          %355 = vst [vmem:[%s280 + $0xd0] sm:$0xff] %v325
          %356 = vst [vmem:[%s280 + $0xd8] sm:$0xff] %v317
          %357 = vst [vmem:[%s280 + $0xe0] sm:$0xff] %v321
          %358 = vst [vmem:[%s280 + $0xe8] sm:$0xff] %v325
          %359 = vst [vmem:[%s280 + $0xf0] sm:$0xff] %v317
          %360 = vst [vmem:[%s280 + $0xf8] sm:$0xff] %v321
          %361 = vst [vmem:[%s280 + $0x100] sm:$0xff] %v325
          %362 = vst [vmem:[%s280 + $0x108] sm:$0xff] %v317
          %363 = vst [vmem:[%s280 + $0x110] sm:$0xff] %v321
          %364 = vst [vmem:[%s280 + $0x118] sm:$0xff] %v325
          %365 = vst [vmem:[%s280 + $0x120] sm:$0xff] %v317
          %366 = vst [vmem:[%s280 + $0x128] sm:$0xff] %v321
          %367 = vst [vmem:[%s280 + $0x130] sm:$0xff] %v325
          %368 = vst [vmem:[%s280 + $0x138] sm:$0xff] %v317
          %369 = vst [vmem:[%s280 + $0x140] sm:$0xff] %v321
          %370 = vst [vmem:[%s280 + $0x148] sm:$0xff] %v325
          %371 = vst [vmem:[%s280 + $0x150] sm:$0xff] %v317
          %372 = vst [vmem:[%s280 + $0x158] sm:$0xff] %v321
          %373 = vst [vmem:[%s280 + $0x160] sm:$0xff] %v325
          %374 = vst [vmem:[%s280 + $0x168] sm:$0xff] %v317
          %375 = vst [vmem:[%s280 + $0x170] sm:$0xff] %v321
          %376 = vst [vmem:[%s280 + $0x178] sm:$0xff] %v325
          %377 = vst [vmem:[%s280 + $0x180] sm:$0xff] %v317
          %378 = vst [vmem:[%s280 + $0x188] sm:$0xff] %v321
          %379 = vst [vmem:[%s280 + $0x190] sm:$0xff] %v325
          %380 = vst [vmem:[%s280 + $0x198] sm:$0xff] %v317
          %381 = vst [vmem:[%s280 + $0x1a0] sm:$0xff] %v321
          %382 = vst [vmem:[%s280 + $0x1a8] sm:$0xff] %v325
          %383 = vst [vmem:[%s280 + $0x1b0] sm:$0xff] %v317
          %384 = vst [vmem:[%s280 + $0x1b8] sm:$0xff] %v321
          %385 = vst [vmem:[%s280 + $0x1c0] sm:$0xff] %v325
          %386 = vst [vmem:[%s280 + $0x1c8] sm:$0xff] %v317
          %387 = vst [vmem:[%s280 + $0x1d0] sm:$0xff] %v321
          %388 = vst [vmem:[%s280 + $0x1d8] sm:$0xff] %v325
          %389 = vst [vmem:[%s280 + $0x1e0] sm:$0xff] %v317
          %390 = vst [vmem:[%s280 + $0x1e8] sm:$0xff] %v321
          %391 = vst [vmem:[%s280 + $0x1f0] sm:$0xff] %v325
          %392 = vst [vmem:[%s280 + $0x1f8] sm:$0xff] %v317
          %393 = vst [vmem:[%s280 + $0x200] sm:$0xff] %v321
          %394 = vst [vmem:[%s280 + $0x208] sm:$0xff] %v325
          %395 = vst [vmem:[%s280 + $0x210] sm:$0xff] %v317
          %396 = vst [vmem:[%s280 + $0x218] sm:$0xff] %v321
          %397 = vst [vmem:[%s280 + $0x220] sm:$0xff] %v325
          %398 = vst [vmem:[%s280 + $0x228] sm:$0xff] %v317
          %399 = vst [vmem:[%s280 + $0x230] sm:$0xff] %v321
          %400 = vst [vmem:[%s280 + $0x238] sm:$0xff] %v325
          %401 = vst [vmem:[%s280 + $0x240] sm:$0xff] %v317
          %402 = vst [vmem:[%s280 + $0x248] sm:$0xff] %v321
          %403 = vst [vmem:[%s280 + $0x250] sm:$0xff] %v325
          %404 = vst [vmem:[%s280 + $0x258] sm:$0xff] %v317
          %405 = vst [vmem:[%s280 + $0x260] sm:$0xff] %v321
          %406 = vst [vmem:[%s280 + $0x268] sm:$0xff] %v325
          %407 = vst [vmem:[%s280 + $0x270] sm:$0xff] %v317
          %408 = vst [vmem:[%s280 + $0x278] sm:$0xff] %v321
          %409 = vst [vmem:[%s280 + $0x280] sm:$0xff] %v325
          %410 = vst [vmem:[%s280 + $0x288] sm:$0xff] %v317
          %411 = vst [vmem:[%s280 + $0x290] sm:$0xff] %v321
          %412 = vst [vmem:[%s280 + $0x298] sm:$0xff] %v325
          %413 = vst [vmem:[%s280 + $0x2a0] sm:$0xff] %v317
          %414 = vst [vmem:[%s280 + $0x2a8] sm:$0xff] %v321
          %415 = vst [vmem:[%s280 + $0x2b0] sm:$0xff] %v325
          %416 = vst [vmem:[%s280 + $0x2b8] sm:$0xff] %v317
          %417 = vst [vmem:[%s280 + $0x2c0] sm:$0xff] %v321
          %418 = vst [vmem:[%s280 + $0x2c8] sm:$0xff] %v325
          %419 = vst [vmem:[%s280 + $0x2d0] sm:$0xff] %v317
          %420 = vst [vmem:[%s280 + $0x2d8] sm:$0xff] %v321
          %421 = vst [vmem:[%s280 + $0x2e0] sm:$0xff] %v325
          %422 = vst [vmem:[%s280 + $0x2e8] sm:$0xff] %v317
          %423 = vst [vmem:[%s280 + $0x2f0] sm:$0xff] %v321
          %424 = vst [vmem:[%s280 + $0x2f8] sm:$0xff] %v325
        $region44: #{feedforward.1} parent=39 // pred_fallthru
          _
        %v425 = vld [vmem:[%s286] sm:$0xff]
        %v426 = vld [vmem:[%s286 + $0x8] sm:$0xf]
        %v427 = vld [vmem:[%s286 + $0xc] sm:$0xff]
        %v428 = vld [vmem:[%s286 + $0x14] sm:$0xf]
        %v429 = vld [vmem:[%s286 + $0x18] sm:$0xff]
        %v430 = vld [vmem:[%s286 + $0x20] sm:$0xf]
        %v431 = vld [vmem:[%s286 + $0x24] sm:$0xff]
        %v432 = vld [vmem:[%s286 + $0x2c] sm:$0xf]
        %v433 = vld [vmem:[%s286 + $0x30] sm:$0xff]
        %v434 = vld [vmem:[%s286 + $0x38] sm:$0xf]
        %v435 = vld [vmem:[%s286 + $0x3c] sm:$0xff]
        %v436 = vld [vmem:[%s286 + $0x44] sm:$0xf]
        %v437 = vld [vmem:[%s286 + $0x48] sm:$0xff]
        %v438 = vld [vmem:[%s286 + $0x50] sm:$0xf]
        %v439 = vld [vmem:[%s286 + $0x54] sm:$0xff]
        %v440 = vld [vmem:[%s286 + $0x5c] sm:$0xf]
        %v441 = vld [vmem:[%s286 + $0x60] sm:$0xff]
        %v442 = vld [vmem:[%s286 + $0x68] sm:$0xf]
        %v443 = vld [vmem:[%s286 + $0x6c] sm:$0xff]
        %v444 = vld [vmem:[%s286 + $0x74] sm:$0xf]
        %v445 = vld [vmem:[%s286 + $0x78] sm:$0xff]
        %v446 = vld [vmem:[%s286 + $0x80] sm:$0xf]
        %v447 = vld [vmem:[%s286 + $0x84] sm:$0xff]
        %v448 = vld [vmem:[%s286 + $0x8c] sm:$0xf]
        %v449 = vld [vmem:[%s286 + $0x90] sm:$0xff]
        %v450 = vld [vmem:[%s286 + $0x98] sm:$0xf]
        %v451 = vld [vmem:[%s286 + $0x9c] sm:$0xff]
        %v452 = vld [vmem:[%s286 + $0xa4] sm:$0xf]
        %v453 = vld [vmem:[%s286 + $0xa8] sm:$0xff]
        %v454 = vld [vmem:[%s286 + $0xb0] sm:$0xf]
        %v455 = vld [vmem:[%s286 + $0xb4] sm:$0xff]
        %v456 = vld [vmem:[%s286 + $0xbc] sm:$0xf]
        %v457 = vld [vmem:[%s286 + $0xc0] sm:$0xff]
        %v458 = vld [vmem:[%s286 + $0xc8] sm:$0xf]
        %v459 = vld [vmem:[%s286 + $0xcc] sm:$0xff]
        %v460 = vld [vmem:[%s286 + $0xd4] sm:$0xf]
        %v461 = vld [vmem:[%s286 + $0xd8] sm:$0xff]
        %v462 = vld [vmem:[%s286 + $0xe0] sm:$0xf]
        %v463 = vld [vmem:[%s286 + $0xe4] sm:$0xff]
        %v464 = vld [vmem:[%s286 + $0xec] sm:$0xf]
        %v465 = vld [vmem:[%s286 + $0xf0] sm:$0xff]
        %v466 = vld [vmem:[%s286 + $0xf8] sm:$0xf]
        %v467 = vld [vmem:[%s286 + $0xfc] sm:$0xff]
        %v468 = vld [vmem:[%s286 + $0x104] sm:$0xf]
        %v469 = vld [vmem:[%s286 + $0x108] sm:$0xff]
        %v470 = vld [vmem:[%s286 + $0x110] sm:$0xf]
        %v471 = vld [vmem:[%s286 + $0x114] sm:$0xff]
        %v472 = vld [vmem:[%s286 + $0x11c] sm:$0xf]
        %v473 = vld [vmem:[%s286 + $0x120] sm:$0xff]
        %v474 = vld [vmem:[%s286 + $0x128] sm:$0xf]
        %v475 = vld [vmem:[%s286 + $0x12c] sm:$0xff]
        %v476 = vld [vmem:[%s286 + $0x134] sm:$0xf]
        %v477 = vld [vmem:[%s286 + $0x138] sm:$0xff]
        %v478 = vld [vmem:[%s286 + $0x140] sm:$0xf]
        %v479 = vld [vmem:[%s286 + $0x144] sm:$0xff]
        %v480 = vld [vmem:[%s286 + $0x14c] sm:$0xf]
        %v481 = vld [vmem:[%s286 + $0x150] sm:$0xff]
        %v482 = vld [vmem:[%s286 + $0x158] sm:$0xf]
        %v483 = vld [vmem:[%s286 + $0x15c] sm:$0xff]
        %v484 = vld [vmem:[%s286 + $0x164] sm:$0xf]
        %v485 = vld [vmem:[%s286 + $0x168] sm:$0xff]
        %v486 = vld [vmem:[%s286 + $0x170] sm:$0xf]
        %v487 = vld [vmem:[%s286 + $0x174] sm:$0xff]
        %v488 = vld [vmem:[%s286 + $0x17c] sm:$0xf]
        %v489 = vld [vmem:[%s292] sm:$0xff]
        %v490 = vld [vmem:[%s292 + $0x8] sm:$0xff]
        %v491 = vld [vmem:[%s292 + $0x10] sm:$0xff]
        %v492 = vld [vmem:[%s292 + $0x18] sm:$0xff]
        %v493 = vld [vmem:[%s292 + $0x20] sm:$0xff]
        %v494 = vld [vmem:[%s292 + $0x28] sm:$0xff]
        %v495 = vld [vmem:[%s292 + $0x30] sm:$0xff]
        %v496 = vld [vmem:[%s292 + $0x38] sm:$0xff]
        %v497 = vld [vmem:[%s292 + $0x40] sm:$0xff]
        %v498 = vld [vmem:[%s292 + $0x48] sm:$0xff]
        %v499 = vld [vmem:[%s292 + $0x50] sm:$0xff]
        %v500 = vld [vmem:[%s292 + $0x58] sm:$0xff]
        %v501 = vld [vmem:[%s292 + $0x60] sm:$0xff]
        %v502 = vld [vmem:[%s292 + $0x68] sm:$0xff]
        %v503 = vld [vmem:[%s292 + $0x70] sm:$0xff]
        %v504 = vld [vmem:[%s292 + $0x78] sm:$0xff]
        %v505 = vld [vmem:[%s292 + $0x80] sm:$0xff]
        %v506 = vld [vmem:[%s292 + $0x88] sm:$0xff]
        %v507 = vld [vmem:[%s292 + $0x90] sm:$0xff]
        %v508 = vld [vmem:[%s292 + $0x98] sm:$0xff]
        %v509 = vld [vmem:[%s292 + $0xa0] sm:$0xff]
        %v510 = vld [vmem:[%s292 + $0xa8] sm:$0xff]
        %v511 = vld [vmem:[%s292 + $0xb0] sm:$0xff]
        %v512 = vld [vmem:[%s292 + $0xb8] sm:$0xff]
        %v513 = vld [vmem:[%s292 + $0xc0] sm:$0xff]
        %v514 = vld [vmem:[%s292 + $0xc8] sm:$0xff]
        %v515 = vld [vmem:[%s292 + $0xd0] sm:$0xff]
        %v516 = vld [vmem:[%s292 + $0xd8] sm:$0xff]
        %v517 = vld [vmem:[%s292 + $0xe0] sm:$0xff]
        %v518 = vld [vmem:[%s292 + $0xe8] sm:$0xff]
        %v519 = vld [vmem:[%s292 + $0xf0] sm:$0xff]
        %v520 = vld [vmem:[%s292 + $0xf8] sm:$0xff]
        %v521 = vld [vmem:[%s292 + $0x100] sm:$0xff]
        %v522 = vld [vmem:[%s292 + $0x108] sm:$0xff]
        %v523 = vld [vmem:[%s292 + $0x110] sm:$0xff]
        %v524 = vld [vmem:[%s292 + $0x118] sm:$0xff]
        %v525 = vld [vmem:[%s292 + $0x120] sm:$0xff]
        %v526 = vld [vmem:[%s292 + $0x128] sm:$0xff]
        %v527 = vld [vmem:[%s292 + $0x130] sm:$0xff]
        %v528 = vld [vmem:[%s292 + $0x138] sm:$0xff]
        %v529 = vld [vmem:[%s292 + $0x140] sm:$0xff]
        %v530 = vld [vmem:[%s292 + $0x148] sm:$0xff]
        %v531 = vld [vmem:[%s292 + $0x150] sm:$0xff]
        %v532 = vld [vmem:[%s292 + $0x158] sm:$0xff]
        %v533 = vld [vmem:[%s292 + $0x160] sm:$0xff]
        %v534 = vld [vmem:[%s292 + $0x168] sm:$0xff]
        %v535 = vld [vmem:[%s292 + $0x170] sm:$0xff]
        %v536 = vld [vmem:[%s292 + $0x178] sm:$0xff]
        %v537 = vld [vmem:[%s292 + $0x180] sm:$0xff]
        %v538 = vld [vmem:[%s292 + $0x188] sm:$0xff]
        %v539 = vld [vmem:[%s292 + $0x190] sm:$0xff]
        %v540 = vld [vmem:[%s292 + $0x198] sm:$0xff]
        %v541 = vld [vmem:[%s292 + $0x1a0] sm:$0xff]
        %v542 = vld [vmem:[%s292 + $0x1a8] sm:$0xff]
        %v543 = vld [vmem:[%s292 + $0x1b0] sm:$0xff]
        %v544 = vld [vmem:[%s292 + $0x1b8] sm:$0xff]
        %v545 = vld [vmem:[%s292 + $0x1c0] sm:$0xff]
        %v546 = vld [vmem:[%s292 + $0x1c8] sm:$0xff]
        %v547 = vld [vmem:[%s292 + $0x1d0] sm:$0xff]
        %v548 = vld [vmem:[%s292 + $0x1d8] sm:$0xff]
        %v549 = vld [vmem:[%s292 + $0x1e0] sm:$0xff]
        %v550 = vld [vmem:[%s292 + $0x1e8] sm:$0xff]
        %v551 = vld [vmem:[%s292 + $0x1f0] sm:$0xff]
        %v552 = vld [vmem:[%s292 + $0x1f8] sm:$0xff]
        %v553 = vld [vmem:[%s292 + $0x200] sm:$0xff]
        %v554 = vld [vmem:[%s292 + $0x208] sm:$0xff]
        %v555 = vld [vmem:[%s292 + $0x210] sm:$0xff]
        %v556 = vld [vmem:[%s292 + $0x218] sm:$0xff]
        %v557 = vld [vmem:[%s292 + $0x220] sm:$0xff]
        %v558 = vld [vmem:[%s292 + $0x228] sm:$0xff]
        %v559 = vld [vmem:[%s292 + $0x230] sm:$0xff]
        %v560 = vld [vmem:[%s292 + $0x238] sm:$0xff]
        %v561 = vld [vmem:[%s292 + $0x240] sm:$0xff]
        %v562 = vld [vmem:[%s292 + $0x248] sm:$0xff]
        %v563 = vld [vmem:[%s292 + $0x250] sm:$0xff]
        %v564 = vld [vmem:[%s292 + $0x258] sm:$0xff]
        %v565 = vld [vmem:[%s292 + $0x260] sm:$0xff]
        %v566 = vld [vmem:[%s292 + $0x268] sm:$0xff]
        %v567 = vld [vmem:[%s292 + $0x270] sm:$0xff]
        %v568 = vld [vmem:[%s292 + $0x278] sm:$0xff]
        %v569 = vld [vmem:[%s292 + $0x280] sm:$0xff]
        %v570 = vld [vmem:[%s292 + $0x288] sm:$0xff]
        %v571 = vld [vmem:[%s292 + $0x290] sm:$0xff]
        %v572 = vld [vmem:[%s292 + $0x298] sm:$0xff]
        %v573 = vld [vmem:[%s292 + $0x2a0] sm:$0xff]
        %v574 = vld [vmem:[%s292 + $0x2a8] sm:$0xff]
        %v575 = vld [vmem:[%s292 + $0x2b0] sm:$0xff]
        %v576 = vld [vmem:[%s292 + $0x2b8] sm:$0xff]
        %v577 = vld [vmem:[%s292 + $0x2c0] sm:$0xff]
        %v578 = vld [vmem:[%s292 + $0x2c8] sm:$0xff]
        %v579 = vld [vmem:[%s292 + $0x2d0] sm:$0xff]
        %v580 = vld [vmem:[%s292 + $0x2d8] sm:$0xff]
        %v581 = vld [vmem:[%s292 + $0x2e0] sm:$0xff]
        %v582 = vld [vmem:[%s292 + $0x2e8] sm:$0xff]
        %v583 = vld [vmem:[%s292 + $0x2f0] sm:$0xff]
        %v584 = vld [vmem:[%s292 + $0x2f8] sm:$0xff]
        %v585 = vld [vmem:[%s292 + $0x300] sm:$0xff]
        %v586 = vld [vmem:[%s292 + $0x308] sm:$0xff]
        %v587 = vld [vmem:[%s292 + $0x310] sm:$0xff]
        %v588 = vld [vmem:[%s292 + $0x318] sm:$0xff]
        %v589 = vld [vmem:[%s292 + $0x320] sm:$0xff]
        %v590 = vld [vmem:[%s292 + $0x328] sm:$0xff]
        %v591 = vld [vmem:[%s292 + $0x330] sm:$0xff]
        %v592 = vld [vmem:[%s292 + $0x338] sm:$0xff]
        %v593 = vld [vmem:[%s292 + $0x340] sm:$0xff]
        %v594 = vld [vmem:[%s292 + $0x348] sm:$0xff]
        %v595 = vld [vmem:[%s292 + $0x350] sm:$0xff]
        %v596 = vld [vmem:[%s292 + $0x358] sm:$0xff]
        %v597 = vld [vmem:[%s292 + $0x360] sm:$0xff]
        %v598 = vld [vmem:[%s292 + $0x368] sm:$0xff]
        %v599 = vld [vmem:[%s292 + $0x370] sm:$0xff]
        %v600 = vld [vmem:[%s292 + $0x378] sm:$0xff]
        %v601 = vld [vmem:[%s292 + $0x380] sm:$0xff]
        %v602 = vld [vmem:[%s292 + $0x388] sm:$0xff]
        %v603 = vld [vmem:[%s292 + $0x390] sm:$0xff]
        %v604 = vld [vmem:[%s292 + $0x398] sm:$0xff]
        %v605 = vld [vmem:[%s292 + $0x3a0] sm:$0xff]
        %v606 = vld [vmem:[%s292 + $0x3a8] sm:$0xff]
        %v607 = vld [vmem:[%s292 + $0x3b0] sm:$0xff]
        %v608 = vld [vmem:[%s292 + $0x3b8] sm:$0xff]
        %v609 = vld [vmem:[%s292 + $0x3c0] sm:$0xff]
        %v610 = vld [vmem:[%s292 + $0x3c8] sm:$0xff]
        %v611 = vld [vmem:[%s292 + $0x3d0] sm:$0xff]
        %v612 = vld [vmem:[%s292 + $0x3d8] sm:$0xff]
        %v613 = vld [vmem:[%s292 + $0x3e0] sm:$0xff]
        %v614 = vld [vmem:[%s292 + $0x3e8] sm:$0xff]
        %v615 = vld [vmem:[%s292 + $0x3f0] sm:$0xff]
        %v616 = vld [vmem:[%s292 + $0x3f8] sm:$0xff]
        %v617 = vld [vmem:[%s292 + $0x400] sm:$0xff]
        %v618 = vld [vmem:[%s292 + $0x408] sm:$0xff]
        %v619 = vld [vmem:[%s292 + $0x410] sm:$0xff]
        %v620 = vld [vmem:[%s292 + $0x418] sm:$0xff]
        %v621 = vld [vmem:[%s292 + $0x420] sm:$0xff]
        %v622 = vld [vmem:[%s292 + $0x428] sm:$0xff]
        %v623 = vld [vmem:[%s292 + $0x430] sm:$0xff]
        %v624 = vld [vmem:[%s292 + $0x438] sm:$0xff]
        %v625 = vld [vmem:[%s292 + $0x440] sm:$0xff]
        %v626 = vld [vmem:[%s292 + $0x448] sm:$0xff]
        %v627 = vld [vmem:[%s292 + $0x450] sm:$0xff]
        %v628 = vld [vmem:[%s292 + $0x458] sm:$0xff]
        %v629 = vld [vmem:[%s292 + $0x460] sm:$0xff]
        %v630 = vld [vmem:[%s292 + $0x468] sm:$0xff]
        %v631 = vld [vmem:[%s292 + $0x470] sm:$0xff]
        %v632 = vld [vmem:[%s292 + $0x478] sm:$0xff]
        %v633 = vld [vmem:[%s292 + $0x480] sm:$0xff]
        %v634 = vld [vmem:[%s292 + $0x488] sm:$0xff]
        %v635 = vld [vmem:[%s292 + $0x490] sm:$0xff]
        %v636 = vld [vmem:[%s292 + $0x498] sm:$0xff]
        %v637 = vld [vmem:[%s292 + $0x4a0] sm:$0xff]
        %v638 = vld [vmem:[%s292 + $0x4a8] sm:$0xff]
        %v639 = vld [vmem:[%s292 + $0x4b0] sm:$0xff]
        %v640 = vld [vmem:[%s292 + $0x4b8] sm:$0xff]
        %v641 = vld [vmem:[%s292 + $0x4c0] sm:$0xff]
        %v642 = vld [vmem:[%s292 + $0x4c8] sm:$0xff]
        %v643 = vld [vmem:[%s292 + $0x4d0] sm:$0xff]
        %v644 = vld [vmem:[%s292 + $0x4d8] sm:$0xff]
        %v645 = vld [vmem:[%s292 + $0x4e0] sm:$0xff]
        %v646 = vld [vmem:[%s292 + $0x4e8] sm:$0xff]
        %v647 = vld [vmem:[%s292 + $0x4f0] sm:$0xff]
        %v648 = vld [vmem:[%s292 + $0x4f8] sm:$0xff]
        %v649 = vld [vmem:[%s292 + $0x500] sm:$0xff]
        %v650 = vld [vmem:[%s292 + $0x508] sm:$0xff]
        %v651 = vld [vmem:[%s292 + $0x510] sm:$0xff]
        %v652 = vld [vmem:[%s292 + $0x518] sm:$0xff]
        %v653 = vld [vmem:[%s292 + $0x520] sm:$0xff]
        %v654 = vld [vmem:[%s292 + $0x528] sm:$0xff]
        %v655 = vld [vmem:[%s292 + $0x530] sm:$0xff]
        %v656 = vld [vmem:[%s292 + $0x538] sm:$0xff]
        %v657 = vld [vmem:[%s292 + $0x540] sm:$0xff]
        %v658 = vld [vmem:[%s292 + $0x548] sm:$0xff]
        %v659 = vld [vmem:[%s292 + $0x550] sm:$0xff]
        %v660 = vld [vmem:[%s292 + $0x558] sm:$0xff]
        %v661 = vld [vmem:[%s292 + $0x560] sm:$0xff]
        %v662 = vld [vmem:[%s292 + $0x568] sm:$0xff]
        %v663 = vld [vmem:[%s292 + $0x570] sm:$0xff]
        %v664 = vld [vmem:[%s292 + $0x578] sm:$0xff]
        %v665 = vld [vmem:[%s292 + $0x580] sm:$0xff]
        %v666 = vld [vmem:[%s292 + $0x588] sm:$0xff]
        %v667 = vld [vmem:[%s292 + $0x590] sm:$0xff]
        %v668 = vld [vmem:[%s292 + $0x598] sm:$0xff]
        %v669 = vld [vmem:[%s292 + $0x5a0] sm:$0xff]
        %v670 = vld [vmem:[%s292 + $0x5a8] sm:$0xff]
        %v671 = vld [vmem:[%s292 + $0x5b0] sm:$0xff]
        %v672 = vld [vmem:[%s292 + $0x5b8] sm:$0xff]
        %v673 = vld [vmem:[%s292 + $0x5c0] sm:$0xff]
        %v674 = vld [vmem:[%s292 + $0x5c8] sm:$0xff]
        %v675 = vld [vmem:[%s292 + $0x5d0] sm:$0xff]
        %v676 = vld [vmem:[%s292 + $0x5d8] sm:$0xff]
        %v677 = vld [vmem:[%s292 + $0x5e0] sm:$0xff]
        %v678 = vld [vmem:[%s292 + $0x5e8] sm:$0xff]
        %v679 = vld [vmem:[%s292 + $0x5f0] sm:$0xff]
        %v680 = vld [vmem:[%s292 + $0x5f8] sm:$0xff]
        %v681 = vld [vmem:[%s292 + $0x600] sm:$0xff]
        %v682 = vld [vmem:[%s292 + $0x608] sm:$0xff]
        %v683 = vld [vmem:[%s292 + $0x610] sm:$0xff]
        %v684 = vld [vmem:[%s292 + $0x618] sm:$0xff]
        %v685 = vld [vmem:[%s292 + $0x620] sm:$0xff]
        %v686 = vld [vmem:[%s292 + $0x628] sm:$0xff]
        %v687 = vld [vmem:[%s292 + $0x630] sm:$0xff]
        %v688 = vld [vmem:[%s292 + $0x638] sm:$0xff]
        %v689 = vld [vmem:[%s292 + $0x640] sm:$0xff]
        %v690 = vld [vmem:[%s292 + $0x648] sm:$0xff]
        %v691 = vld [vmem:[%s292 + $0x650] sm:$0xff]
        %v692 = vld [vmem:[%s292 + $0x658] sm:$0xff]
        %v693 = vld [vmem:[%s292 + $0x660] sm:$0xff]
        %v694 = vld [vmem:[%s292 + $0x668] sm:$0xff]
        %v695 = vld [vmem:[%s292 + $0x670] sm:$0xff]
        %v696 = vld [vmem:[%s292 + $0x678] sm:$0xff]
        %v697 = vld [vmem:[%s292 + $0x680] sm:$0xff]
        %v698 = vld [vmem:[%s292 + $0x688] sm:$0xff]
        %v699 = vld [vmem:[%s292 + $0x690] sm:$0xff]
        %v700 = vld [vmem:[%s292 + $0x698] sm:$0xff]
        %v701 = vld [vmem:[%s292 + $0x6a0] sm:$0xff]
        %v702 = vld [vmem:[%s292 + $0x6a8] sm:$0xff]
        %v703 = vld [vmem:[%s292 + $0x6b0] sm:$0xff]
        %v704 = vld [vmem:[%s292 + $0x6b8] sm:$0xff]
        %v705 = vld [vmem:[%s292 + $0x6c0] sm:$0xff]
        %v706 = vld [vmem:[%s292 + $0x6c8] sm:$0xff]
        %v707 = vld [vmem:[%s292 + $0x6d0] sm:$0xff]
        %v708 = vld [vmem:[%s292 + $0x6d8] sm:$0xff]
        %v709 = vld [vmem:[%s292 + $0x6e0] sm:$0xff]
        %v710 = vld [vmem:[%s292 + $0x6e8] sm:$0xff]
        %v711 = vld [vmem:[%s292 + $0x6f0] sm:$0xff]
        %v712 = vld [vmem:[%s292 + $0x6f8] sm:$0xff]
        %v713 = vld [vmem:[%s292 + $0x700] sm:$0xff]
        %v714 = vld [vmem:[%s292 + $0x708] sm:$0xff]
        %v715 = vld [vmem:[%s292 + $0x710] sm:$0xff]
        %v716 = vld [vmem:[%s292 + $0x718] sm:$0xff]
        %v717 = vld [vmem:[%s292 + $0x720] sm:$0xff]
        %v718 = vld [vmem:[%s292 + $0x728] sm:$0xff]
        %v719 = vld [vmem:[%s292 + $0x730] sm:$0xff]
        %v720 = vld [vmem:[%s292 + $0x738] sm:$0xff]
        %v721 = vld [vmem:[%s292 + $0x740] sm:$0xff]
        %v722 = vld [vmem:[%s292 + $0x748] sm:$0xff]
        %v723 = vld [vmem:[%s292 + $0x750] sm:$0xff]
        %v724 = vld [vmem:[%s292 + $0x758] sm:$0xff]
        %v725 = vld [vmem:[%s292 + $0x760] sm:$0xff]
        %v726 = vld [vmem:[%s292 + $0x768] sm:$0xff]
        %v727 = vld [vmem:[%s292 + $0x770] sm:$0xff]
        %v728 = vld [vmem:[%s292 + $0x778] sm:$0xff]
        %v729 = vld [vmem:[%s292 + $0x780] sm:$0xff]
        %v730 = vld [vmem:[%s292 + $0x788] sm:$0xff]
        %v731 = vld [vmem:[%s292 + $0x790] sm:$0xff]
        %v732 = vld [vmem:[%s292 + $0x798] sm:$0xff]
        %v733 = vld [vmem:[%s292 + $0x7a0] sm:$0xff]
        %v734 = vld [vmem:[%s292 + $0x7a8] sm:$0xff]
        %v735 = vld [vmem:[%s292 + $0x7b0] sm:$0xff]
        %v736 = vld [vmem:[%s292 + $0x7b8] sm:$0xff]
        %v737 = vld [vmem:[%s292 + $0x7c0] sm:$0xff]
        %v738 = vld [vmem:[%s292 + $0x7c8] sm:$0xff]
        %v739 = vld [vmem:[%s292 + $0x7d0] sm:$0xff]
        %v740 = vld [vmem:[%s292 + $0x7d8] sm:$0xff]
        %v741 = vld [vmem:[%s292 + $0x7e0] sm:$0xff]
        %v742 = vld [vmem:[%s292 + $0x7e8] sm:$0xff]
        %v743 = vld [vmem:[%s292 + $0x7f0] sm:$0xff]
        %v744 = vld [vmem:[%s292 + $0x7f8] sm:$0xff]
        %v745 = vld [vmem:[%s292 + $0x800] sm:$0xff]
        %v746 = vld [vmem:[%s292 + $0x808] sm:$0xff]
        %v747 = vld [vmem:[%s292 + $0x810] sm:$0xff]
        %v748 = vld [vmem:[%s292 + $0x818] sm:$0xff]
        %v749 = vld [vmem:[%s292 + $0x820] sm:$0xff]
        %v750 = vld [vmem:[%s292 + $0x828] sm:$0xff]
        %v751 = vld [vmem:[%s292 + $0x830] sm:$0xff]
        %v752 = vld [vmem:[%s292 + $0x838] sm:$0xff]
        %v753 = vld [vmem:[%s292 + $0x840] sm:$0xff]
        %v754 = vld [vmem:[%s292 + $0x848] sm:$0xff]
        %v755 = vld [vmem:[%s292 + $0x850] sm:$0xff]
        %v756 = vld [vmem:[%s292 + $0x858] sm:$0xff]
        %v757 = vld [vmem:[%s292 + $0x860] sm:$0xff]
        %v758 = vld [vmem:[%s292 + $0x868] sm:$0xff]
        %v759 = vld [vmem:[%s292 + $0x870] sm:$0xff]
        %v760 = vld [vmem:[%s292 + $0x878] sm:$0xff]
        %v761 = vld [vmem:[%s292 + $0x880] sm:$0xff]
        %v762 = vld [vmem:[%s292 + $0x888] sm:$0xff]
        %v763 = vld [vmem:[%s292 + $0x890] sm:$0xff]
        %v764 = vld [vmem:[%s292 + $0x898] sm:$0xff]
        %v765 = vld [vmem:[%s292 + $0x8a0] sm:$0xff]
        %v766 = vld [vmem:[%s292 + $0x8a8] sm:$0xff]
        %v767 = vld [vmem:[%s292 + $0x8b0] sm:$0xff]
        %v768 = vld [vmem:[%s292 + $0x8b8] sm:$0xff]
        %v769 = vld [vmem:[%s292 + $0x8c0] sm:$0xff]
        %v770 = vld [vmem:[%s292 + $0x8c8] sm:$0xff]
        %v771 = vld [vmem:[%s292 + $0x8d0] sm:$0xff]
        %v772 = vld [vmem:[%s292 + $0x8d8] sm:$0xff]
        %v773 = vld [vmem:[%s292 + $0x8e0] sm:$0xff]
        %v774 = vld [vmem:[%s292 + $0x8e8] sm:$0xff]
        %v775 = vld [vmem:[%s292 + $0x8f0] sm:$0xff]
        %v776 = vld [vmem:[%s292 + $0x8f8] sm:$0xff]
        %v777 = vld [vmem:[%s297] sm:$0xff]
        %v778 = vld [vmem:[%s297 + $0x8] sm:$0xf]
        %v781 = vlaneseq
        %v782 = vshrl.u32 %v781, 7
        %v783 = vsub.s32 0, %v782
        %v784 = vrot.slane %v777, %v783
        %v785 = vlaneseq
        %v786 = vshrl.u32 %v785, 7
        %v787 = vsub.s32 1, %v786
        %v788 = vrot.slane %v777, %v787
        %v789 = vlaneseq
        %v790 = vshrl.u32 %v789, 7
        %v791 = vsub.s32 2, %v790
        %v792 = vrot.slane %v777, %v791
        %v793 = vlaneseq
        %v794 = vshrl.u32 %v793, 7
        %v795 = vsub.s32 3, %v794
        %v796 = vrot.slane %v777, %v795
        %v797 = vlaneseq
        %v798 = vshrl.u32 %v797, 7
        %v799 = vsub.s32 4, %v798
        %v800 = vrot.slane %v777, %v799
        %v801 = vlaneseq
        %v802 = vshrl.u32 %v801, 7
        %v803 = vsub.s32 5, %v802
        %v804 = vrot.slane %v777, %v803
        %v805 = vlaneseq
        %v806 = vshrl.u32 %v805, 7
        %v807 = vsub.s32 6, %v806
        %v808 = vrot.slane %v777, %v807
        %v809 = vlaneseq
        %v810 = vshrl.u32 %v809, 7
        %v811 = vsub.s32 7, %v810
        %v812 = vrot.slane %v777, %v811
        %v813 = vlaneseq
        %v814 = vshrl.u32 %v813, 7
        %v815 = vsub.s32 0, %v814
        %v816 = vrot.slane %v778, %v815
        %v817 = vlaneseq
        %v818 = vshrl.u32 %v817, 7
        %v819 = vsub.s32 1, %v818
        %v820 = vrot.slane %v778, %v819
        %v821 = vlaneseq
        %v822 = vshrl.u32 %v821, 7
        %v823 = vsub.s32 2, %v822
        %v824 = vrot.slane %v778, %v823
        %v825 = vlaneseq
        %v826 = vshrl.u32 %v825, 7
        %v827 = vsub.s32 3, %v826
        %v828 = vrot.slane %v778, %v827
        %v905 = vunpack.c.l.b16 %v425
        %v906 = vunpack.c.h.b16 %v425
        %v907 = vunpack.c.l.b16 %v426
        %v908 = vunpack.c.l.b16 %v427
        %v909 = vunpack.c.h.b16 %v427
        %v910 = vunpack.c.l.b16 %v428
        %v911 = vunpack.c.l.b16 %v429
        %v912 = vunpack.c.h.b16 %v429
        %v913 = vunpack.c.l.b16 %v430
        %v914 = vunpack.c.l.b16 %v431
        %v915 = vunpack.c.h.b16 %v431
        %v916 = vunpack.c.l.b16 %v432
        %v917 = vunpack.c.l.b16 %v433
        %v918 = vunpack.c.h.b16 %v433
        %v919 = vunpack.c.l.b16 %v434
        %v920 = vunpack.c.l.b16 %v435
        %v921 = vunpack.c.h.b16 %v435
        %v922 = vunpack.c.l.b16 %v436
        %v923 = vunpack.c.l.b16 %v437
        %v924 = vunpack.c.h.b16 %v437
        %v925 = vunpack.c.l.b16 %v438
        %v926 = vunpack.c.l.b16 %v439
        %v927 = vunpack.c.h.b16 %v439
        %v928 = vunpack.c.l.b16 %v440
        %v929 = vunpack.c.l.b16 %v441
        %v930 = vunpack.c.h.b16 %v441
        %v931 = vunpack.c.l.b16 %v442
        %v932 = vunpack.c.l.b16 %v443
        %v933 = vunpack.c.h.b16 %v443
        %v934 = vunpack.c.l.b16 %v444
        %v935 = vunpack.c.l.b16 %v445
        %v936 = vunpack.c.h.b16 %v445
        %v937 = vunpack.c.l.b16 %v446
        %v938 = vunpack.c.l.b16 %v447
        %v939 = vunpack.c.h.b16 %v447
        %v940 = vunpack.c.l.b16 %v448
        %v941 = vunpack.c.l.b16 %v449
        %v942 = vunpack.c.h.b16 %v449
        %v943 = vunpack.c.l.b16 %v450
        %v944 = vunpack.c.l.b16 %v451
        %v945 = vunpack.c.h.b16 %v451
        %v946 = vunpack.c.l.b16 %v452
        %v947 = vunpack.c.l.b16 %v453
        %v948 = vunpack.c.h.b16 %v453
        %v949 = vunpack.c.l.b16 %v454
        %v950 = vunpack.c.l.b16 %v455
        %v951 = vunpack.c.h.b16 %v455
        %v952 = vunpack.c.l.b16 %v456
        %v953 = vunpack.c.l.b16 %v457
        %v954 = vunpack.c.h.b16 %v457
        %v955 = vunpack.c.l.b16 %v458
        %v956 = vunpack.c.l.b16 %v459
        %v957 = vunpack.c.h.b16 %v459
        %v958 = vunpack.c.l.b16 %v460
        %v959 = vunpack.c.l.b16 %v461
        %v960 = vunpack.c.h.b16 %v461
        %v961 = vunpack.c.l.b16 %v462
        %v962 = vunpack.c.l.b16 %v463
        %v963 = vunpack.c.h.b16 %v463
        %v964 = vunpack.c.l.b16 %v464
        %v965 = vunpack.c.l.b16 %v465
        %v966 = vunpack.c.h.b16 %v465
        %v967 = vunpack.c.l.b16 %v466
        %v968 = vunpack.c.l.b16 %v467
        %v969 = vunpack.c.h.b16 %v467
        %v970 = vunpack.c.l.b16 %v468
        %v971 = vunpack.c.l.b16 %v469
        %v972 = vunpack.c.h.b16 %v469
        %v973 = vunpack.c.l.b16 %v470
        %v974 = vunpack.c.l.b16 %v471
        %v975 = vunpack.c.h.b16 %v471
        %v976 = vunpack.c.l.b16 %v472
        %v977 = vunpack.c.l.b16 %v473
        %v978 = vunpack.c.h.b16 %v473
        %v979 = vunpack.c.l.b16 %v474
        %v980 = vunpack.c.l.b16 %v475
        %v981 = vunpack.c.h.b16 %v475
        %v982 = vunpack.c.l.b16 %v476
        %v983 = vunpack.c.l.b16 %v477
        %v984 = vunpack.c.h.b16 %v477
        %v985 = vunpack.c.l.b16 %v478
        %v986 = vunpack.c.l.b16 %v479
        %v987 = vunpack.c.h.b16 %v479
        %v988 = vunpack.c.l.b16 %v480
        %v989 = vunpack.c.l.b16 %v481
        %v990 = vunpack.c.h.b16 %v481
        %v991 = vunpack.c.l.b16 %v482
        %v992 = vunpack.c.l.b16 %v483
        %v993 = vunpack.c.h.b16 %v483
        %v994 = vunpack.c.l.b16 %v484
        %v995 = vunpack.c.l.b16 %v485
        %v996 = vunpack.c.h.b16 %v485
        %v997 = vunpack.c.l.b16 %v486
        %v998 = vunpack.c.l.b16 %v487
        %v999 = vunpack.c.h.b16 %v487
        %v1000 = vunpack.c.l.b16 %v488
        %v1001 = vpack.c.b16 %v908, %v905
        %v1002 = vpack.c.b16 %v909, %v906
        %v1003 = vpack.c.b16 %v910, %v907
        %v1004 = vpack.c.b16 %v914, %v911
        %v1005 = vpack.c.b16 %v915, %v912
        %v1006 = vpack.c.b16 %v916, %v913
        %v1007 = vpack.c.b16 %v920, %v917
        %v1008 = vpack.c.b16 %v921, %v918
        %v1009 = vpack.c.b16 %v922, %v919
        %v1010 = vpack.c.b16 %v926, %v923
        %v1011 = vpack.c.b16 %v927, %v924
        %v1012 = vpack.c.b16 %v928, %v925
        %v1013 = vpack.c.b16 %v932, %v929
        %v1014 = vpack.c.b16 %v933, %v930
        %v1015 = vpack.c.b16 %v934, %v931
        %v1016 = vpack.c.b16 %v938, %v935
        %v1017 = vpack.c.b16 %v939, %v936
        %v1018 = vpack.c.b16 %v940, %v937
        %v1019 = vpack.c.b16 %v944, %v941
        %v1020 = vpack.c.b16 %v945, %v942
        %v1021 = vpack.c.b16 %v946, %v943
        %v1022 = vpack.c.b16 %v950, %v947
        %v1023 = vpack.c.b16 %v951, %v948
        %v1024 = vpack.c.b16 %v952, %v949
        %v1025 = vpack.c.b16 %v956, %v953
        %v1026 = vpack.c.b16 %v957, %v954
        %v1027 = vpack.c.b16 %v958, %v955
        %v1028 = vpack.c.b16 %v962, %v959
        %v1029 = vpack.c.b16 %v963, %v960
        %v1030 = vpack.c.b16 %v964, %v961
        %v1031 = vpack.c.b16 %v968, %v965
        %v1032 = vpack.c.b16 %v969, %v966
        %v1033 = vpack.c.b16 %v970, %v967
        %v1034 = vpack.c.b16 %v974, %v971
        %v1035 = vpack.c.b16 %v975, %v972
        %v1036 = vpack.c.b16 %v976, %v973
        %v1037 = vpack.c.b16 %v980, %v977
        %v1038 = vpack.c.b16 %v981, %v978
        %v1039 = vpack.c.b16 %v982, %v979
        %v1040 = vpack.c.b16 %v986, %v983
        %v1041 = vpack.c.b16 %v987, %v984
        %v1042 = vpack.c.b16 %v988, %v985
        %v1043 = vpack.c.b16 %v992, %v989
        %v1044 = vpack.c.b16 %v993, %v990
        %v1045 = vpack.c.b16 %v994, %v991
        %v1046 = vpack.c.b16 %v998, %v995
        %v1047 = vpack.c.b16 %v999, %v996
        %v1048 = vpack.c.b16 %v1000, %v997
        %v1385 = vunpack.c.l.b16 %v489
        %v1386 = vunpack.c.h.b16 %v489
        %v1387 = vunpack.c.l.b16 %v490
        %v1388 = vunpack.c.h.b16 %v490
        %v1389 = vunpack.c.l.b16 %v491
        %v1390 = vunpack.c.h.b16 %v491
        %v1391 = vunpack.c.l.b16 %v492
        %v1392 = vunpack.c.h.b16 %v492
        %v1393 = vunpack.c.l.b16 %v493
        %v1394 = vunpack.c.h.b16 %v493
        %v1395 = vunpack.c.l.b16 %v494
        %v1396 = vunpack.c.h.b16 %v494
        %v1397 = vunpack.c.l.b16 %v495
        %v1398 = vunpack.c.h.b16 %v495
        %v1399 = vunpack.c.l.b16 %v496
        %v1400 = vunpack.c.h.b16 %v496
        %v1401 = vunpack.c.l.b16 %v497
        %v1402 = vunpack.c.h.b16 %v497
        %v1403 = vunpack.c.l.b16 %v498
        %v1404 = vunpack.c.h.b16 %v498
        %v1405 = vunpack.c.l.b16 %v499
        %v1406 = vunpack.c.h.b16 %v499
        %v1407 = vunpack.c.l.b16 %v500
        %v1408 = vunpack.c.h.b16 %v500
        %v1409 = vunpack.c.l.b16 %v501
        %v1410 = vunpack.c.h.b16 %v501
        %v1411 = vunpack.c.l.b16 %v502
        %v1412 = vunpack.c.h.b16 %v502
        %v1413 = vunpack.c.l.b16 %v503
        %v1414 = vunpack.c.h.b16 %v503
        %v1415 = vunpack.c.l.b16 %v504
        %v1416 = vunpack.c.h.b16 %v504
        %v1417 = vunpack.c.l.b16 %v505
        %v1418 = vunpack.c.h.b16 %v505
        %v1419 = vunpack.c.l.b16 %v506
        %v1420 = vunpack.c.h.b16 %v506
        %v1421 = vunpack.c.l.b16 %v507
        %v1422 = vunpack.c.h.b16 %v507
        %v1423 = vunpack.c.l.b16 %v508
        %v1424 = vunpack.c.h.b16 %v508
        %v1425 = vunpack.c.l.b16 %v509
        %v1426 = vunpack.c.h.b16 %v509
        %v1427 = vunpack.c.l.b16 %v510
        %v1428 = vunpack.c.h.b16 %v510
        %v1429 = vunpack.c.l.b16 %v511
        %v1430 = vunpack.c.h.b16 %v511
        %v1431 = vunpack.c.l.b16 %v512
        %v1432 = vunpack.c.h.b16 %v512
        %v1433 = vunpack.c.l.b16 %v513
        %v1434 = vunpack.c.h.b16 %v513
        %v1435 = vunpack.c.l.b16 %v514
        %v1436 = vunpack.c.h.b16 %v514
        %v1437 = vunpack.c.l.b16 %v515
        %v1438 = vunpack.c.h.b16 %v515
        %v1439 = vunpack.c.l.b16 %v516
        %v1440 = vunpack.c.h.b16 %v516
        %v1441 = vunpack.c.l.b16 %v517
        %v1442 = vunpack.c.h.b16 %v517
        %v1443 = vunpack.c.l.b16 %v518
        %v1444 = vunpack.c.h.b16 %v518
        %v1445 = vunpack.c.l.b16 %v519
        %v1446 = vunpack.c.h.b16 %v519
        %v1447 = vunpack.c.l.b16 %v520
        %v1448 = vunpack.c.h.b16 %v520
        %v1449 = vunpack.c.l.b16 %v521
        %v1450 = vunpack.c.h.b16 %v521
        %v1451 = vunpack.c.l.b16 %v522
        %v1452 = vunpack.c.h.b16 %v522
        %v1453 = vunpack.c.l.b16 %v523
        %v1454 = vunpack.c.h.b16 %v523
        %v1455 = vunpack.c.l.b16 %v524
        %v1456 = vunpack.c.h.b16 %v524
        %v1457 = vunpack.c.l.b16 %v525
        %v1458 = vunpack.c.h.b16 %v525
        %v1459 = vunpack.c.l.b16 %v526
        %v1460 = vunpack.c.h.b16 %v526
        %v1461 = vunpack.c.l.b16 %v527
        %v1462 = vunpack.c.h.b16 %v527
        %v1463 = vunpack.c.l.b16 %v528
        %v1464 = vunpack.c.h.b16 %v528
        %v1465 = vunpack.c.l.b16 %v529
        %v1466 = vunpack.c.h.b16 %v529
        %v1467 = vunpack.c.l.b16 %v530
        %v1468 = vunpack.c.h.b16 %v530
        %v1469 = vunpack.c.l.b16 %v531
        %v1470 = vunpack.c.h.b16 %v531
        %v1471 = vunpack.c.l.b16 %v532
        %v1472 = vunpack.c.h.b16 %v532
        %v1473 = vunpack.c.l.b16 %v533
        %v1474 = vunpack.c.h.b16 %v533
        %v1475 = vunpack.c.l.b16 %v534
        %v1476 = vunpack.c.h.b16 %v534
        %v1477 = vunpack.c.l.b16 %v535
        %v1478 = vunpack.c.h.b16 %v535
        %v1479 = vunpack.c.l.b16 %v536
        %v1480 = vunpack.c.h.b16 %v536
        %v1481 = vunpack.c.l.b16 %v537
        %v1482 = vunpack.c.h.b16 %v537
        %v1483 = vunpack.c.l.b16 %v538
        %v1484 = vunpack.c.h.b16 %v538
        %v1485 = vunpack.c.l.b16 %v539
        %v1486 = vunpack.c.h.b16 %v539
        %v1487 = vunpack.c.l.b16 %v540
        %v1488 = vunpack.c.h.b16 %v540
        %v1489 = vunpack.c.l.b16 %v541
        %v1490 = vunpack.c.h.b16 %v541
        %v1491 = vunpack.c.l.b16 %v542
        %v1492 = vunpack.c.h.b16 %v542
        %v1493 = vunpack.c.l.b16 %v543
        %v1494 = vunpack.c.h.b16 %v543
        %v1495 = vunpack.c.l.b16 %v544
        %v1496 = vunpack.c.h.b16 %v544
        %v1497 = vunpack.c.l.b16 %v545
        %v1498 = vunpack.c.h.b16 %v545
        %v1499 = vunpack.c.l.b16 %v546
        %v1500 = vunpack.c.h.b16 %v546
        %v1501 = vunpack.c.l.b16 %v547
        %v1502 = vunpack.c.h.b16 %v547
        %v1503 = vunpack.c.l.b16 %v548
        %v1504 = vunpack.c.h.b16 %v548
        %v1505 = vunpack.c.l.b16 %v549
        %v1506 = vunpack.c.h.b16 %v549
        %v1507 = vunpack.c.l.b16 %v550
        %v1508 = vunpack.c.h.b16 %v550
        %v1509 = vunpack.c.l.b16 %v551
        %v1510 = vunpack.c.h.b16 %v551
        %v1511 = vunpack.c.l.b16 %v552
        %v1512 = vunpack.c.h.b16 %v552
        %v1513 = vunpack.c.l.b16 %v553
        %v1514 = vunpack.c.h.b16 %v553
        %v1515 = vunpack.c.l.b16 %v554
        %v1516 = vunpack.c.h.b16 %v554
        %v1517 = vunpack.c.l.b16 %v555
        %v1518 = vunpack.c.h.b16 %v555
        %v1519 = vunpack.c.l.b16 %v556
        %v1520 = vunpack.c.h.b16 %v556
        %v1521 = vunpack.c.l.b16 %v557
        %v1522 = vunpack.c.h.b16 %v557
        %v1523 = vunpack.c.l.b16 %v558
        %v1524 = vunpack.c.h.b16 %v558
        %v1525 = vunpack.c.l.b16 %v559
        %v1526 = vunpack.c.h.b16 %v559
        %v1527 = vunpack.c.l.b16 %v560
        %v1528 = vunpack.c.h.b16 %v560
        %v1529 = vunpack.c.l.b16 %v561
        %v1530 = vunpack.c.h.b16 %v561
        %v1531 = vunpack.c.l.b16 %v562
        %v1532 = vunpack.c.h.b16 %v562
        %v1533 = vunpack.c.l.b16 %v563
        %v1534 = vunpack.c.h.b16 %v563
        %v1535 = vunpack.c.l.b16 %v564
        %v1536 = vunpack.c.h.b16 %v564
        %v1537 = vunpack.c.l.b16 %v565
        %v1538 = vunpack.c.h.b16 %v565
        %v1539 = vunpack.c.l.b16 %v566
        %v1540 = vunpack.c.h.b16 %v566
        %v1541 = vunpack.c.l.b16 %v567
        %v1542 = vunpack.c.h.b16 %v567
        %v1543 = vunpack.c.l.b16 %v568
        %v1544 = vunpack.c.h.b16 %v568
        %v1545 = vunpack.c.l.b16 %v569
        %v1546 = vunpack.c.h.b16 %v569
        %v1547 = vunpack.c.l.b16 %v570
        %v1548 = vunpack.c.h.b16 %v570
        %v1549 = vunpack.c.l.b16 %v571
        %v1550 = vunpack.c.h.b16 %v571
        %v1551 = vunpack.c.l.b16 %v572
        %v1552 = vunpack.c.h.b16 %v572
        %v1553 = vunpack.c.l.b16 %v573
        %v1554 = vunpack.c.h.b16 %v573
        %v1555 = vunpack.c.l.b16 %v574
        %v1556 = vunpack.c.h.b16 %v574
        %v1557 = vunpack.c.l.b16 %v575
        %v1558 = vunpack.c.h.b16 %v575
        %v1559 = vunpack.c.l.b16 %v576
        %v1560 = vunpack.c.h.b16 %v576
        %v1561 = vunpack.c.l.b16 %v577
        %v1562 = vunpack.c.h.b16 %v577
        %v1563 = vunpack.c.l.b16 %v578
        %v1564 = vunpack.c.h.b16 %v578
        %v1565 = vunpack.c.l.b16 %v579
        %v1566 = vunpack.c.h.b16 %v579
        %v1567 = vunpack.c.l.b16 %v580
        %v1568 = vunpack.c.h.b16 %v580
        %v1569 = vunpack.c.l.b16 %v581
        %v1570 = vunpack.c.h.b16 %v581
        %v1571 = vunpack.c.l.b16 %v582
        %v1572 = vunpack.c.h.b16 %v582
        %v1573 = vunpack.c.l.b16 %v583
        %v1574 = vunpack.c.h.b16 %v583
        %v1575 = vunpack.c.l.b16 %v584
        %v1576 = vunpack.c.h.b16 %v584
        %v1577 = vunpack.c.l.b16 %v585
        %v1578 = vunpack.c.h.b16 %v585
        %v1579 = vunpack.c.l.b16 %v586
        %v1580 = vunpack.c.h.b16 %v586
        %v1581 = vunpack.c.l.b16 %v587
        %v1582 = vunpack.c.h.b16 %v587
        %v1583 = vunpack.c.l.b16 %v588
        %v1584 = vunpack.c.h.b16 %v588
        %v1585 = vunpack.c.l.b16 %v589
        %v1586 = vunpack.c.h.b16 %v589
        %v1587 = vunpack.c.l.b16 %v590
        %v1588 = vunpack.c.h.b16 %v590
        %v1589 = vunpack.c.l.b16 %v591
        %v1590 = vunpack.c.h.b16 %v591
        %v1591 = vunpack.c.l.b16 %v592
        %v1592 = vunpack.c.h.b16 %v592
        %v1593 = vunpack.c.l.b16 %v593
        %v1594 = vunpack.c.h.b16 %v593
        %v1595 = vunpack.c.l.b16 %v594
        %v1596 = vunpack.c.h.b16 %v594
        %v1597 = vunpack.c.l.b16 %v595
        %v1598 = vunpack.c.h.b16 %v595
        %v1599 = vunpack.c.l.b16 %v596
        %v1600 = vunpack.c.h.b16 %v596
        %v1601 = vunpack.c.l.b16 %v597
        %v1602 = vunpack.c.h.b16 %v597
        %v1603 = vunpack.c.l.b16 %v598
        %v1604 = vunpack.c.h.b16 %v598
        %v1605 = vunpack.c.l.b16 %v599
        %v1606 = vunpack.c.h.b16 %v599
        %v1607 = vunpack.c.l.b16 %v600
        %v1608 = vunpack.c.h.b16 %v600
        %v1609 = vunpack.c.l.b16 %v601
        %v1610 = vunpack.c.h.b16 %v601
        %v1611 = vunpack.c.l.b16 %v602
        %v1612 = vunpack.c.h.b16 %v602
        %v1613 = vunpack.c.l.b16 %v603
        %v1614 = vunpack.c.h.b16 %v603
        %v1615 = vunpack.c.l.b16 %v604
        %v1616 = vunpack.c.h.b16 %v604
        %v1617 = vunpack.c.l.b16 %v605
        %v1618 = vunpack.c.h.b16 %v605
        %v1619 = vunpack.c.l.b16 %v606
        %v1620 = vunpack.c.h.b16 %v606
        %v1621 = vunpack.c.l.b16 %v607
        %v1622 = vunpack.c.h.b16 %v607
        %v1623 = vunpack.c.l.b16 %v608
        %v1624 = vunpack.c.h.b16 %v608
        %v1625 = vunpack.c.l.b16 %v609
        %v1626 = vunpack.c.h.b16 %v609
        %v1627 = vunpack.c.l.b16 %v610
        %v1628 = vunpack.c.h.b16 %v610
        %v1629 = vunpack.c.l.b16 %v611
        %v1630 = vunpack.c.h.b16 %v611
        %v1631 = vunpack.c.l.b16 %v612
        %v1632 = vunpack.c.h.b16 %v612
        %v1633 = vunpack.c.l.b16 %v613
        %v1634 = vunpack.c.h.b16 %v613
        %v1635 = vunpack.c.l.b16 %v614
        %v1636 = vunpack.c.h.b16 %v614
        %v1637 = vunpack.c.l.b16 %v615
        %v1638 = vunpack.c.h.b16 %v615
        %v1639 = vunpack.c.l.b16 %v616
        %v1640 = vunpack.c.h.b16 %v616
        %v1641 = vunpack.c.l.b16 %v617
        %v1642 = vunpack.c.h.b16 %v617
        %v1643 = vunpack.c.l.b16 %v618
        %v1644 = vunpack.c.h.b16 %v618
        %v1645 = vunpack.c.l.b16 %v619
        %v1646 = vunpack.c.h.b16 %v619
        %v1647 = vunpack.c.l.b16 %v620
        %v1648 = vunpack.c.h.b16 %v620
        %v1649 = vunpack.c.l.b16 %v621
        %v1650 = vunpack.c.h.b16 %v621
        %v1651 = vunpack.c.l.b16 %v622
        %v1652 = vunpack.c.h.b16 %v622
        %v1653 = vunpack.c.l.b16 %v623
        %v1654 = vunpack.c.h.b16 %v623
        %v1655 = vunpack.c.l.b16 %v624
        %v1656 = vunpack.c.h.b16 %v624
        %v1657 = vunpack.c.l.b16 %v625
        %v1658 = vunpack.c.h.b16 %v625
        %v1659 = vunpack.c.l.b16 %v626
        %v1660 = vunpack.c.h.b16 %v626
        %v1661 = vunpack.c.l.b16 %v627
        %v1662 = vunpack.c.h.b16 %v627
        %v1663 = vunpack.c.l.b16 %v628
        %v1664 = vunpack.c.h.b16 %v628
        %v1665 = vunpack.c.l.b16 %v629
        %v1666 = vunpack.c.h.b16 %v629
        %v1667 = vunpack.c.l.b16 %v630
        %v1668 = vunpack.c.h.b16 %v630
        %v1669 = vunpack.c.l.b16 %v631
        %v1670 = vunpack.c.h.b16 %v631
        %v1671 = vunpack.c.l.b16 %v632
        %v1672 = vunpack.c.h.b16 %v632
        %v1673 = vunpack.c.l.b16 %v633
        %v1674 = vunpack.c.h.b16 %v633
        %v1675 = vunpack.c.l.b16 %v634
        %v1676 = vunpack.c.h.b16 %v634
        %v1677 = vunpack.c.l.b16 %v635
        %v1678 = vunpack.c.h.b16 %v635
        %v1679 = vunpack.c.l.b16 %v636
        %v1680 = vunpack.c.h.b16 %v636
        %v1681 = vunpack.c.l.b16 %v637
        %v1682 = vunpack.c.h.b16 %v637
        %v1683 = vunpack.c.l.b16 %v638
        %v1684 = vunpack.c.h.b16 %v638
        %v1685 = vunpack.c.l.b16 %v639
        %v1686 = vunpack.c.h.b16 %v639
        %v1687 = vunpack.c.l.b16 %v640
        %v1688 = vunpack.c.h.b16 %v640
        %v1689 = vunpack.c.l.b16 %v641
        %v1690 = vunpack.c.h.b16 %v641
        %v1691 = vunpack.c.l.b16 %v642
        %v1692 = vunpack.c.h.b16 %v642
        %v1693 = vunpack.c.l.b16 %v643
        %v1694 = vunpack.c.h.b16 %v643
        %v1695 = vunpack.c.l.b16 %v644
        %v1696 = vunpack.c.h.b16 %v644
        %v1697 = vunpack.c.l.b16 %v645
        %v1698 = vunpack.c.h.b16 %v645
        %v1699 = vunpack.c.l.b16 %v646
        %v1700 = vunpack.c.h.b16 %v646
        %v1701 = vunpack.c.l.b16 %v647
        %v1702 = vunpack.c.h.b16 %v647
        %v1703 = vunpack.c.l.b16 %v648
        %v1704 = vunpack.c.h.b16 %v648
        %v1705 = vunpack.c.l.b16 %v649
        %v1706 = vunpack.c.h.b16 %v649
        %v1707 = vunpack.c.l.b16 %v650
        %v1708 = vunpack.c.h.b16 %v650
        %v1709 = vunpack.c.l.b16 %v651
        %v1710 = vunpack.c.h.b16 %v651
        %v1711 = vunpack.c.l.b16 %v652
        %v1712 = vunpack.c.h.b16 %v652
        %v1713 = vunpack.c.l.b16 %v653
        %v1714 = vunpack.c.h.b16 %v653
        %v1715 = vunpack.c.l.b16 %v654
        %v1716 = vunpack.c.h.b16 %v654
        %v1717 = vunpack.c.l.b16 %v655
        %v1718 = vunpack.c.h.b16 %v655
        %v1719 = vunpack.c.l.b16 %v656
        %v1720 = vunpack.c.h.b16 %v656
        %v1721 = vunpack.c.l.b16 %v657
        %v1722 = vunpack.c.h.b16 %v657
        %v1723 = vunpack.c.l.b16 %v658
        %v1724 = vunpack.c.h.b16 %v658
        %v1725 = vunpack.c.l.b16 %v659
        %v1726 = vunpack.c.h.b16 %v659
        %v1727 = vunpack.c.l.b16 %v660
        %v1728 = vunpack.c.h.b16 %v660
        %v1729 = vunpack.c.l.b16 %v661
        %v1730 = vunpack.c.h.b16 %v661
        %v1731 = vunpack.c.l.b16 %v662
        %v1732 = vunpack.c.h.b16 %v662
        %v1733 = vunpack.c.l.b16 %v663
        %v1734 = vunpack.c.h.b16 %v663
        %v1735 = vunpack.c.l.b16 %v664
        %v1736 = vunpack.c.h.b16 %v664
        %v1737 = vunpack.c.l.b16 %v665
        %v1738 = vunpack.c.h.b16 %v665
        %v1739 = vunpack.c.l.b16 %v666
        %v1740 = vunpack.c.h.b16 %v666
        %v1741 = vunpack.c.l.b16 %v667
        %v1742 = vunpack.c.h.b16 %v667
        %v1743 = vunpack.c.l.b16 %v668
        %v1744 = vunpack.c.h.b16 %v668
        %v1745 = vunpack.c.l.b16 %v669
        %v1746 = vunpack.c.h.b16 %v669
        %v1747 = vunpack.c.l.b16 %v670
        %v1748 = vunpack.c.h.b16 %v670
        %v1749 = vunpack.c.l.b16 %v671
        %v1750 = vunpack.c.h.b16 %v671
        %v1751 = vunpack.c.l.b16 %v672
        %v1752 = vunpack.c.h.b16 %v672
        %v1753 = vunpack.c.l.b16 %v673
        %v1754 = vunpack.c.h.b16 %v673
        %v1755 = vunpack.c.l.b16 %v674
        %v1756 = vunpack.c.h.b16 %v674
        %v1757 = vunpack.c.l.b16 %v675
        %v1758 = vunpack.c.h.b16 %v675
        %v1759 = vunpack.c.l.b16 %v676
        %v1760 = vunpack.c.h.b16 %v676
        %v1761 = vunpack.c.l.b16 %v677
        %v1762 = vunpack.c.h.b16 %v677
        %v1763 = vunpack.c.l.b16 %v678
        %v1764 = vunpack.c.h.b16 %v678
        %v1765 = vunpack.c.l.b16 %v679
        %v1766 = vunpack.c.h.b16 %v679
        %v1767 = vunpack.c.l.b16 %v680
        %v1768 = vunpack.c.h.b16 %v680
        %v1769 = vunpack.c.l.b16 %v681
        %v1770 = vunpack.c.h.b16 %v681
        %v1771 = vunpack.c.l.b16 %v682
        %v1772 = vunpack.c.h.b16 %v682
        %v1773 = vunpack.c.l.b16 %v683
        %v1774 = vunpack.c.h.b16 %v683
        %v1775 = vunpack.c.l.b16 %v684
        %v1776 = vunpack.c.h.b16 %v684
        %v1777 = vunpack.c.l.b16 %v685
        %v1778 = vunpack.c.h.b16 %v685
        %v1779 = vunpack.c.l.b16 %v686
        %v1780 = vunpack.c.h.b16 %v686
        %v1781 = vunpack.c.l.b16 %v687
        %v1782 = vunpack.c.h.b16 %v687
        %v1783 = vunpack.c.l.b16 %v688
        %v1784 = vunpack.c.h.b16 %v688
        %v1785 = vunpack.c.l.b16 %v689
        %v1786 = vunpack.c.h.b16 %v689
        %v1787 = vunpack.c.l.b16 %v690
        %v1788 = vunpack.c.h.b16 %v690
        %v1789 = vunpack.c.l.b16 %v691
        %v1790 = vunpack.c.h.b16 %v691
        %v1791 = vunpack.c.l.b16 %v692
        %v1792 = vunpack.c.h.b16 %v692
        %v1793 = vunpack.c.l.b16 %v693
        %v1794 = vunpack.c.h.b16 %v693
        %v1795 = vunpack.c.l.b16 %v694
        %v1796 = vunpack.c.h.b16 %v694
        %v1797 = vunpack.c.l.b16 %v695
        %v1798 = vunpack.c.h.b16 %v695
        %v1799 = vunpack.c.l.b16 %v696
        %v1800 = vunpack.c.h.b16 %v696
        %v1801 = vunpack.c.l.b16 %v697
        %v1802 = vunpack.c.h.b16 %v697
        %v1803 = vunpack.c.l.b16 %v698
        %v1804 = vunpack.c.h.b16 %v698
        %v1805 = vunpack.c.l.b16 %v699
        %v1806 = vunpack.c.h.b16 %v699
        %v1807 = vunpack.c.l.b16 %v700
        %v1808 = vunpack.c.h.b16 %v700
        %v1809 = vunpack.c.l.b16 %v701
        %v1810 = vunpack.c.h.b16 %v701
        %v1811 = vunpack.c.l.b16 %v702
        %v1812 = vunpack.c.h.b16 %v702
        %v1813 = vunpack.c.l.b16 %v703
        %v1814 = vunpack.c.h.b16 %v703
        %v1815 = vunpack.c.l.b16 %v704
        %v1816 = vunpack.c.h.b16 %v704
        %v1817 = vunpack.c.l.b16 %v705
        %v1818 = vunpack.c.h.b16 %v705
        %v1819 = vunpack.c.l.b16 %v706
        %v1820 = vunpack.c.h.b16 %v706
        %v1821 = vunpack.c.l.b16 %v707
        %v1822 = vunpack.c.h.b16 %v707
        %v1823 = vunpack.c.l.b16 %v708
        %v1824 = vunpack.c.h.b16 %v708
        %v1825 = vunpack.c.l.b16 %v709
        %v1826 = vunpack.c.h.b16 %v709
        %v1827 = vunpack.c.l.b16 %v710
        %v1828 = vunpack.c.h.b16 %v710
        %v1829 = vunpack.c.l.b16 %v711
        %v1830 = vunpack.c.h.b16 %v711
        %v1831 = vunpack.c.l.b16 %v712
        %v1832 = vunpack.c.h.b16 %v712
        %v1833 = vunpack.c.l.b16 %v713
        %v1834 = vunpack.c.h.b16 %v713
        %v1835 = vunpack.c.l.b16 %v714
        %v1836 = vunpack.c.h.b16 %v714
        %v1837 = vunpack.c.l.b16 %v715
        %v1838 = vunpack.c.h.b16 %v715
        %v1839 = vunpack.c.l.b16 %v716
        %v1840 = vunpack.c.h.b16 %v716
        %v1841 = vunpack.c.l.b16 %v717
        %v1842 = vunpack.c.h.b16 %v717
        %v1843 = vunpack.c.l.b16 %v718
        %v1844 = vunpack.c.h.b16 %v718
        %v1845 = vunpack.c.l.b16 %v719
        %v1846 = vunpack.c.h.b16 %v719
        %v1847 = vunpack.c.l.b16 %v720
        %v1848 = vunpack.c.h.b16 %v720
        %v1849 = vunpack.c.l.b16 %v721
        %v1850 = vunpack.c.h.b16 %v721
        %v1851 = vunpack.c.l.b16 %v722
        %v1852 = vunpack.c.h.b16 %v722
        %v1853 = vunpack.c.l.b16 %v723
        %v1854 = vunpack.c.h.b16 %v723
        %v1855 = vunpack.c.l.b16 %v724
        %v1856 = vunpack.c.h.b16 %v724
        %v1857 = vunpack.c.l.b16 %v725
        %v1858 = vunpack.c.h.b16 %v725
        %v1859 = vunpack.c.l.b16 %v726
        %v1860 = vunpack.c.h.b16 %v726
        %v1861 = vunpack.c.l.b16 %v727
        %v1862 = vunpack.c.h.b16 %v727
        %v1863 = vunpack.c.l.b16 %v728
        %v1864 = vunpack.c.h.b16 %v728
        %v1865 = vunpack.c.l.b16 %v729
        %v1866 = vunpack.c.h.b16 %v729
        %v1867 = vunpack.c.l.b16 %v730
        %v1868 = vunpack.c.h.b16 %v730
        %v1869 = vunpack.c.l.b16 %v731
        %v1870 = vunpack.c.h.b16 %v731
        %v1871 = vunpack.c.l.b16 %v732
        %v1872 = vunpack.c.h.b16 %v732
        %v1873 = vunpack.c.l.b16 %v733
        %v1874 = vunpack.c.h.b16 %v733
        %v1875 = vunpack.c.l.b16 %v734
        %v1876 = vunpack.c.h.b16 %v734
        %v1877 = vunpack.c.l.b16 %v735
        %v1878 = vunpack.c.h.b16 %v735
        %v1879 = vunpack.c.l.b16 %v736
        %v1880 = vunpack.c.h.b16 %v736
        %v1881 = vunpack.c.l.b16 %v737
        %v1882 = vunpack.c.h.b16 %v737
        %v1883 = vunpack.c.l.b16 %v738
        %v1884 = vunpack.c.h.b16 %v738
        %v1885 = vunpack.c.l.b16 %v739
        %v1886 = vunpack.c.h.b16 %v739
        %v1887 = vunpack.c.l.b16 %v740
        %v1888 = vunpack.c.h.b16 %v740
        %v1889 = vunpack.c.l.b16 %v741
        %v1890 = vunpack.c.h.b16 %v741
        %v1891 = vunpack.c.l.b16 %v742
        %v1892 = vunpack.c.h.b16 %v742
        %v1893 = vunpack.c.l.b16 %v743
        %v1894 = vunpack.c.h.b16 %v743
        %v1895 = vunpack.c.l.b16 %v744
        %v1896 = vunpack.c.h.b16 %v744
        %v1897 = vunpack.c.l.b16 %v745
        %v1898 = vunpack.c.h.b16 %v745
        %v1899 = vunpack.c.l.b16 %v746
        %v1900 = vunpack.c.h.b16 %v746
        %v1901 = vunpack.c.l.b16 %v747
        %v1902 = vunpack.c.h.b16 %v747
        %v1903 = vunpack.c.l.b16 %v748
        %v1904 = vunpack.c.h.b16 %v748
        %v1905 = vunpack.c.l.b16 %v749
        %v1906 = vunpack.c.h.b16 %v749
        %v1907 = vunpack.c.l.b16 %v750
        %v1908 = vunpack.c.h.b16 %v750
        %v1909 = vunpack.c.l.b16 %v751
        %v1910 = vunpack.c.h.b16 %v751
        %v1911 = vunpack.c.l.b16 %v752
        %v1912 = vunpack.c.h.b16 %v752
        %v1913 = vunpack.c.l.b16 %v753
        %v1914 = vunpack.c.h.b16 %v753
        %v1915 = vunpack.c.l.b16 %v754
        %v1916 = vunpack.c.h.b16 %v754
        %v1917 = vunpack.c.l.b16 %v755
        %v1918 = vunpack.c.h.b16 %v755
        %v1919 = vunpack.c.l.b16 %v756
        %v1920 = vunpack.c.h.b16 %v756
        %v1921 = vunpack.c.l.b16 %v757
        %v1922 = vunpack.c.h.b16 %v757
        %v1923 = vunpack.c.l.b16 %v758
        %v1924 = vunpack.c.h.b16 %v758
        %v1925 = vunpack.c.l.b16 %v759
        %v1926 = vunpack.c.h.b16 %v759
        %v1927 = vunpack.c.l.b16 %v760
        %v1928 = vunpack.c.h.b16 %v760
        %v1929 = vunpack.c.l.b16 %v761
        %v1930 = vunpack.c.h.b16 %v761
        %v1931 = vunpack.c.l.b16 %v762
        %v1932 = vunpack.c.h.b16 %v762
        %v1933 = vunpack.c.l.b16 %v763
        %v1934 = vunpack.c.h.b16 %v763
        %v1935 = vunpack.c.l.b16 %v764
        %v1936 = vunpack.c.h.b16 %v764
        %v1937 = vunpack.c.l.b16 %v765
        %v1938 = vunpack.c.h.b16 %v765
        %v1939 = vunpack.c.l.b16 %v766
        %v1940 = vunpack.c.h.b16 %v766
        %v1941 = vunpack.c.l.b16 %v767
        %v1942 = vunpack.c.h.b16 %v767
        %v1943 = vunpack.c.l.b16 %v768
        %v1944 = vunpack.c.h.b16 %v768
        %v1945 = vunpack.c.l.b16 %v769
        %v1946 = vunpack.c.h.b16 %v769
        %v1947 = vunpack.c.l.b16 %v770
        %v1948 = vunpack.c.h.b16 %v770
        %v1949 = vunpack.c.l.b16 %v771
        %v1950 = vunpack.c.h.b16 %v771
        %v1951 = vunpack.c.l.b16 %v772
        %v1952 = vunpack.c.h.b16 %v772
        %v1953 = vunpack.c.l.b16 %v773
        %v1954 = vunpack.c.h.b16 %v773
        %v1955 = vunpack.c.l.b16 %v774
        %v1956 = vunpack.c.h.b16 %v774
        %v1957 = vunpack.c.l.b16 %v775
        %v1958 = vunpack.c.h.b16 %v775
        %v1959 = vunpack.c.l.b16 %v776
        %v1960 = vunpack.c.h.b16 %v776
        %v1961 = vpack.c.b16 %v1397, %v1385
        %v1962 = vpack.c.b16 %v1398, %v1386
        %v1963 = vpack.c.b16 %v1399, %v1387
        %v1964 = vpack.c.b16 %v1400, %v1388
        %v1965 = vpack.c.b16 %v1401, %v1389
        %v1966 = vpack.c.b16 %v1402, %v1390
        %v1967 = vpack.c.b16 %v1403, %v1391
        %v1968 = vpack.c.b16 %v1404, %v1392
        %v1969 = vpack.c.b16 %v1405, %v1393
        %v1970 = vpack.c.b16 %v1406, %v1394
        %v1971 = vpack.c.b16 %v1407, %v1395
        %v1972 = vpack.c.b16 %v1408, %v1396
        %v1973 = vpack.c.b16 %v1421, %v1409
        %v1974 = vpack.c.b16 %v1422, %v1410
        %v1975 = vpack.c.b16 %v1423, %v1411
        %v1976 = vpack.c.b16 %v1424, %v1412
        %v1977 = vpack.c.b16 %v1425, %v1413
        %v1978 = vpack.c.b16 %v1426, %v1414
        %v1979 = vpack.c.b16 %v1427, %v1415
        %v1980 = vpack.c.b16 %v1428, %v1416
        %v1981 = vpack.c.b16 %v1429, %v1417
        %v1982 = vpack.c.b16 %v1430, %v1418
        %v1983 = vpack.c.b16 %v1431, %v1419
        %v1984 = vpack.c.b16 %v1432, %v1420
        %v1985 = vpack.c.b16 %v1445, %v1433
        %v1986 = vpack.c.b16 %v1446, %v1434
        %v1987 = vpack.c.b16 %v1447, %v1435
        %v1988 = vpack.c.b16 %v1448, %v1436
        %v1989 = vpack.c.b16 %v1449, %v1437
        %v1990 = vpack.c.b16 %v1450, %v1438
        %v1991 = vpack.c.b16 %v1451, %v1439
        %v1992 = vpack.c.b16 %v1452, %v1440
        %v1993 = vpack.c.b16 %v1453, %v1441
        %v1994 = vpack.c.b16 %v1454, %v1442
        %v1995 = vpack.c.b16 %v1455, %v1443
        %v1996 = vpack.c.b16 %v1456, %v1444
        %v1997 = vpack.c.b16 %v1469, %v1457
        %v1998 = vpack.c.b16 %v1470, %v1458
        %v1999 = vpack.c.b16 %v1471, %v1459
        %v2000 = vpack.c.b16 %v1472, %v1460
        %v2001 = vpack.c.b16 %v1473, %v1461
        %v2002 = vpack.c.b16 %v1474, %v1462
        %v2003 = vpack.c.b16 %v1475, %v1463
        %v2004 = vpack.c.b16 %v1476, %v1464
        %v2005 = vpack.c.b16 %v1477, %v1465
        %v2006 = vpack.c.b16 %v1478, %v1466
        %v2007 = vpack.c.b16 %v1479, %v1467
        %v2008 = vpack.c.b16 %v1480, %v1468
        %v2009 = vpack.c.b16 %v1493, %v1481
        %v2010 = vpack.c.b16 %v1494, %v1482
        %v2011 = vpack.c.b16 %v1495, %v1483
        %v2012 = vpack.c.b16 %v1496, %v1484
        %v2013 = vpack.c.b16 %v1497, %v1485
        %v2014 = vpack.c.b16 %v1498, %v1486
        %v2015 = vpack.c.b16 %v1499, %v1487
        %v2016 = vpack.c.b16 %v1500, %v1488
        %v2017 = vpack.c.b16 %v1501, %v1489
        %v2018 = vpack.c.b16 %v1502, %v1490
        %v2019 = vpack.c.b16 %v1503, %v1491
        %v2020 = vpack.c.b16 %v1504, %v1492
        %v2021 = vpack.c.b16 %v1517, %v1505
        %v2022 = vpack.c.b16 %v1518, %v1506
        %v2023 = vpack.c.b16 %v1519, %v1507
        %v2024 = vpack.c.b16 %v1520, %v1508
        %v2025 = vpack.c.b16 %v1521, %v1509
        %v2026 = vpack.c.b16 %v1522, %v1510
        %v2027 = vpack.c.b16 %v1523, %v1511
        %v2028 = vpack.c.b16 %v1524, %v1512
        %v2029 = vpack.c.b16 %v1525, %v1513
        %v2030 = vpack.c.b16 %v1526, %v1514
        %v2031 = vpack.c.b16 %v1527, %v1515
        %v2032 = vpack.c.b16 %v1528, %v1516
        %v2033 = vpack.c.b16 %v1541, %v1529
        %v2034 = vpack.c.b16 %v1542, %v1530
        %v2035 = vpack.c.b16 %v1543, %v1531
        %v2036 = vpack.c.b16 %v1544, %v1532
        %v2037 = vpack.c.b16 %v1545, %v1533
        %v2038 = vpack.c.b16 %v1546, %v1534
        %v2039 = vpack.c.b16 %v1547, %v1535
        %v2040 = vpack.c.b16 %v1548, %v1536
        %v2041 = vpack.c.b16 %v1549, %v1537
        %v2042 = vpack.c.b16 %v1550, %v1538
        %v2043 = vpack.c.b16 %v1551, %v1539
        %v2044 = vpack.c.b16 %v1552, %v1540
        %v2045 = vpack.c.b16 %v1565, %v1553
        %v2046 = vpack.c.b16 %v1566, %v1554
        %v2047 = vpack.c.b16 %v1567, %v1555
        %v2048 = vpack.c.b16 %v1568, %v1556
        %v2049 = vpack.c.b16 %v1569, %v1557
        %v2050 = vpack.c.b16 %v1570, %v1558
        %v2051 = vpack.c.b16 %v1571, %v1559
        %v2052 = vpack.c.b16 %v1572, %v1560
        %v2053 = vpack.c.b16 %v1573, %v1561
        %v2054 = vpack.c.b16 %v1574, %v1562
        %v2055 = vpack.c.b16 %v1575, %v1563
        %v2056 = vpack.c.b16 %v1576, %v1564
        %v2057 = vpack.c.b16 %v1589, %v1577
        %v2058 = vpack.c.b16 %v1590, %v1578
        %v2059 = vpack.c.b16 %v1591, %v1579
        %v2060 = vpack.c.b16 %v1592, %v1580
        %v2061 = vpack.c.b16 %v1593, %v1581
        %v2062 = vpack.c.b16 %v1594, %v1582
        %v2063 = vpack.c.b16 %v1595, %v1583
        %v2064 = vpack.c.b16 %v1596, %v1584
        %v2065 = vpack.c.b16 %v1597, %v1585
        %v2066 = vpack.c.b16 %v1598, %v1586
        %v2067 = vpack.c.b16 %v1599, %v1587
        %v2068 = vpack.c.b16 %v1600, %v1588
        %v2069 = vpack.c.b16 %v1613, %v1601
        %v2070 = vpack.c.b16 %v1614, %v1602
        %v2071 = vpack.c.b16 %v1615, %v1603
        %v2072 = vpack.c.b16 %v1616, %v1604
        %v2073 = vpack.c.b16 %v1617, %v1605
        %v2074 = vpack.c.b16 %v1618, %v1606
        %v2075 = vpack.c.b16 %v1619, %v1607
        %v2076 = vpack.c.b16 %v1620, %v1608
        %v2077 = vpack.c.b16 %v1621, %v1609
        %v2078 = vpack.c.b16 %v1622, %v1610
        %v2079 = vpack.c.b16 %v1623, %v1611
        %v2080 = vpack.c.b16 %v1624, %v1612
        %v2081 = vpack.c.b16 %v1637, %v1625
        %v2082 = vpack.c.b16 %v1638, %v1626
        %v2083 = vpack.c.b16 %v1639, %v1627
        %v2084 = vpack.c.b16 %v1640, %v1628
        %v2085 = vpack.c.b16 %v1641, %v1629
        %v2086 = vpack.c.b16 %v1642, %v1630
        %v2087 = vpack.c.b16 %v1643, %v1631
        %v2088 = vpack.c.b16 %v1644, %v1632
        %v2089 = vpack.c.b16 %v1645, %v1633
        %v2090 = vpack.c.b16 %v1646, %v1634
        %v2091 = vpack.c.b16 %v1647, %v1635
        %v2092 = vpack.c.b16 %v1648, %v1636
        %v2093 = vpack.c.b16 %v1661, %v1649
        %v2094 = vpack.c.b16 %v1662, %v1650
        %v2095 = vpack.c.b16 %v1663, %v1651
        %v2096 = vpack.c.b16 %v1664, %v1652
        %v2097 = vpack.c.b16 %v1665, %v1653
        %v2098 = vpack.c.b16 %v1666, %v1654
        %v2099 = vpack.c.b16 %v1667, %v1655
        %v2100 = vpack.c.b16 %v1668, %v1656
        %v2101 = vpack.c.b16 %v1669, %v1657
        %v2102 = vpack.c.b16 %v1670, %v1658
        %v2103 = vpack.c.b16 %v1671, %v1659
        %v2104 = vpack.c.b16 %v1672, %v1660
        %v2105 = vpack.c.b16 %v1685, %v1673
        %v2106 = vpack.c.b16 %v1686, %v1674
        %v2107 = vpack.c.b16 %v1687, %v1675
        %v2108 = vpack.c.b16 %v1688, %v1676
        %v2109 = vpack.c.b16 %v1689, %v1677
        %v2110 = vpack.c.b16 %v1690, %v1678
        %v2111 = vpack.c.b16 %v1691, %v1679
        %v2112 = vpack.c.b16 %v1692, %v1680
        %v2113 = vpack.c.b16 %v1693, %v1681
        %v2114 = vpack.c.b16 %v1694, %v1682
        %v2115 = vpack.c.b16 %v1695, %v1683
        %v2116 = vpack.c.b16 %v1696, %v1684
        %v2117 = vpack.c.b16 %v1709, %v1697
        %v2118 = vpack.c.b16 %v1710, %v1698
        %v2119 = vpack.c.b16 %v1711, %v1699
        %v2120 = vpack.c.b16 %v1712, %v1700
        %v2121 = vpack.c.b16 %v1713, %v1701
        %v2122 = vpack.c.b16 %v1714, %v1702
        %v2123 = vpack.c.b16 %v1715, %v1703
        %v2124 = vpack.c.b16 %v1716, %v1704
        %v2125 = vpack.c.b16 %v1717, %v1705
        %v2126 = vpack.c.b16 %v1718, %v1706
        %v2127 = vpack.c.b16 %v1719, %v1707
        %v2128 = vpack.c.b16 %v1720, %v1708
        %v2129 = vpack.c.b16 %v1733, %v1721
        %v2130 = vpack.c.b16 %v1734, %v1722
        %v2131 = vpack.c.b16 %v1735, %v1723
        %v2132 = vpack.c.b16 %v1736, %v1724
        %v2133 = vpack.c.b16 %v1737, %v1725
        %v2134 = vpack.c.b16 %v1738, %v1726
        %v2135 = vpack.c.b16 %v1739, %v1727
        %v2136 = vpack.c.b16 %v1740, %v1728
        %v2137 = vpack.c.b16 %v1741, %v1729
        %v2138 = vpack.c.b16 %v1742, %v1730
        %v2139 = vpack.c.b16 %v1743, %v1731
        %v2140 = vpack.c.b16 %v1744, %v1732
        %v2141 = vpack.c.b16 %v1757, %v1745
        %v2142 = vpack.c.b16 %v1758, %v1746
        %v2143 = vpack.c.b16 %v1759, %v1747
        %v2144 = vpack.c.b16 %v1760, %v1748
        %v2145 = vpack.c.b16 %v1761, %v1749
        %v2146 = vpack.c.b16 %v1762, %v1750
        %v2147 = vpack.c.b16 %v1763, %v1751
        %v2148 = vpack.c.b16 %v1764, %v1752
        %v2149 = vpack.c.b16 %v1765, %v1753
        %v2150 = vpack.c.b16 %v1766, %v1754
        %v2151 = vpack.c.b16 %v1767, %v1755
        %v2152 = vpack.c.b16 %v1768, %v1756
        %v2153 = vpack.c.b16 %v1781, %v1769
        %v2154 = vpack.c.b16 %v1782, %v1770
        %v2155 = vpack.c.b16 %v1783, %v1771
        %v2156 = vpack.c.b16 %v1784, %v1772
        %v2157 = vpack.c.b16 %v1785, %v1773
        %v2158 = vpack.c.b16 %v1786, %v1774
        %v2159 = vpack.c.b16 %v1787, %v1775
        %v2160 = vpack.c.b16 %v1788, %v1776
        %v2161 = vpack.c.b16 %v1789, %v1777
        %v2162 = vpack.c.b16 %v1790, %v1778
        %v2163 = vpack.c.b16 %v1791, %v1779
        %v2164 = vpack.c.b16 %v1792, %v1780
        %v2165 = vpack.c.b16 %v1805, %v1793
        %v2166 = vpack.c.b16 %v1806, %v1794
        %v2167 = vpack.c.b16 %v1807, %v1795
        %v2168 = vpack.c.b16 %v1808, %v1796
        %v2169 = vpack.c.b16 %v1809, %v1797
        %v2170 = vpack.c.b16 %v1810, %v1798
        %v2171 = vpack.c.b16 %v1811, %v1799
        %v2172 = vpack.c.b16 %v1812, %v1800
        %v2173 = vpack.c.b16 %v1813, %v1801
        %v2174 = vpack.c.b16 %v1814, %v1802
        %v2175 = vpack.c.b16 %v1815, %v1803
        %v2176 = vpack.c.b16 %v1816, %v1804
        %v2177 = vpack.c.b16 %v1829, %v1817
        %v2178 = vpack.c.b16 %v1830, %v1818
        %v2179 = vpack.c.b16 %v1831, %v1819
        %v2180 = vpack.c.b16 %v1832, %v1820
        %v2181 = vpack.c.b16 %v1833, %v1821
        %v2182 = vpack.c.b16 %v1834, %v1822
        %v2183 = vpack.c.b16 %v1835, %v1823
        %v2184 = vpack.c.b16 %v1836, %v1824
        %v2185 = vpack.c.b16 %v1837, %v1825
        %v2186 = vpack.c.b16 %v1838, %v1826
        %v2187 = vpack.c.b16 %v1839, %v1827
        %v2188 = vpack.c.b16 %v1840, %v1828
        %v2189 = vpack.c.b16 %v1853, %v1841
        %v2190 = vpack.c.b16 %v1854, %v1842
        %v2191 = vpack.c.b16 %v1855, %v1843
        %v2192 = vpack.c.b16 %v1856, %v1844
        %v2193 = vpack.c.b16 %v1857, %v1845
        %v2194 = vpack.c.b16 %v1858, %v1846
        %v2195 = vpack.c.b16 %v1859, %v1847
        %v2196 = vpack.c.b16 %v1860, %v1848
        %v2197 = vpack.c.b16 %v1861, %v1849
        %v2198 = vpack.c.b16 %v1862, %v1850
        %v2199 = vpack.c.b16 %v1863, %v1851
        %v2200 = vpack.c.b16 %v1864, %v1852
        %v2201 = vpack.c.b16 %v1877, %v1865
        %v2202 = vpack.c.b16 %v1878, %v1866
        %v2203 = vpack.c.b16 %v1879, %v1867
        %v2204 = vpack.c.b16 %v1880, %v1868
        %v2205 = vpack.c.b16 %v1881, %v1869
        %v2206 = vpack.c.b16 %v1882, %v1870
        %v2207 = vpack.c.b16 %v1883, %v1871
        %v2208 = vpack.c.b16 %v1884, %v1872
        %v2209 = vpack.c.b16 %v1885, %v1873
        %v2210 = vpack.c.b16 %v1886, %v1874
        %v2211 = vpack.c.b16 %v1887, %v1875
        %v2212 = vpack.c.b16 %v1888, %v1876
        %v2213 = vpack.c.b16 %v1901, %v1889
        %v2214 = vpack.c.b16 %v1902, %v1890
        %v2215 = vpack.c.b16 %v1903, %v1891
        %v2216 = vpack.c.b16 %v1904, %v1892
        %v2217 = vpack.c.b16 %v1905, %v1893
        %v2218 = vpack.c.b16 %v1906, %v1894
        %v2219 = vpack.c.b16 %v1907, %v1895
        %v2220 = vpack.c.b16 %v1908, %v1896
        %v2221 = vpack.c.b16 %v1909, %v1897
        %v2222 = vpack.c.b16 %v1910, %v1898
        %v2223 = vpack.c.b16 %v1911, %v1899
        %v2224 = vpack.c.b16 %v1912, %v1900
        %v2225 = vpack.c.b16 %v1925, %v1913
        %v2226 = vpack.c.b16 %v1926, %v1914
        %v2227 = vpack.c.b16 %v1927, %v1915
        %v2228 = vpack.c.b16 %v1928, %v1916
        %v2229 = vpack.c.b16 %v1929, %v1917
        %v2230 = vpack.c.b16 %v1930, %v1918
        %v2231 = vpack.c.b16 %v1931, %v1919
        %v2232 = vpack.c.b16 %v1932, %v1920
        %v2233 = vpack.c.b16 %v1933, %v1921
        %v2234 = vpack.c.b16 %v1934, %v1922
        %v2235 = vpack.c.b16 %v1935, %v1923
        %v2236 = vpack.c.b16 %v1936, %v1924
        %v2237 = vpack.c.b16 %v1949, %v1937
        %v2238 = vpack.c.b16 %v1950, %v1938
        %v2239 = vpack.c.b16 %v1951, %v1939
        %v2240 = vpack.c.b16 %v1952, %v1940
        %v2241 = vpack.c.b16 %v1953, %v1941
        %v2242 = vpack.c.b16 %v1954, %v1942
        %v2243 = vpack.c.b16 %v1955, %v1943
        %v2244 = vpack.c.b16 %v1956, %v1944
        %v2245 = vpack.c.b16 %v1957, %v1945
        %v2246 = vpack.c.b16 %v1958, %v1946
        %v2247 = vpack.c.b16 %v1959, %v1947
        %v2248 = vpack.c.b16 %v1960, %v1948
        %2537 = vmatprep.subr.bf16.mxu0 %v2046
        %2538 = vmatpush1.bf16.msra.mxu0 %v2045
        %2539 = vmatprep.subr.bf16.mxu0 %v2034
        %2540 = vmatpush1.bf16.msra.mxu0 %v2033
        %2541 = vmatprep.subr.bf16.mxu0 %v2022
        %2542 = vmatpush1.bf16.msra.mxu0 %v2021
        %2543 = vmatprep.subr.bf16.mxu0 %v2010
        %2544 = vmatpush1.bf16.msra.mxu0 %v2009
        %2545 = vmatprep.subr.bf16.mxu0 %v1998
        %2546 = vmatpush1.bf16.msra.mxu0 %v1997
        %2547 = vmatprep.subr.bf16.mxu0 %v1986
        %2548 = vmatpush1.bf16.msra.mxu0 %v1985
        %2549 = vmatprep.subr.bf16.mxu0 %v1974
        %2550 = vmatpush1.bf16.msra.mxu0 %v1973
        %2551 = vmatprep.subr.bf16.mxu0 %v1962
        %2552 = vmatpush1.bf16.msra.mxu0 %v1961
        %2553 = vmatprep.subr.bf16.mxu0 %v2142
        %2554 = vmatpush2.bf16.msra.mxu0 %v2141
        %2555 = vmatprep.subr.bf16.mxu0 %v2130
        %2556 = vmatpush2.bf16.msra.mxu0 %v2129
        %2557 = vmatprep.subr.bf16.mxu0 %v2118
        %2558 = vmatpush2.bf16.msra.mxu0 %v2117
        %2559 = vmatprep.subr.bf16.mxu0 %v2106
        %2560 = vmatpush2.bf16.msra.mxu0 %v2105
        %2561 = vmatprep.subr.bf16.mxu0 %v2094
        %2562 = vmatpush2.bf16.msra.mxu0 %v2093
        %2563 = vmatprep.subr.bf16.mxu0 %v2082
        %2564 = vmatpush2.bf16.msra.mxu0 %v2081
        %2565 = vmatprep.subr.bf16.mxu0 %v2070
        %2566 = vmatpush2.bf16.msra.mxu0 %v2069
        %2567 = vmatprep.subr.bf16.mxu0 %v2058
        %2568 = vmatpush2.bf16.msra.mxu0 %v2057
        %2569 = vmatprep.mubr.bf16.mxu0 %v1002
        %2570 = vmatmul.mubr.bf16.gmra.mxu0 %v1001
        %v2571 = vpop.f32.mrf.mxu0
        %v2572 = vadd.f32 %v784, %v2571
        %v2573 = vpop.f32.mrf.mxu0
        %v2574 = vadd.f32 %v788, %v2573
        %v2575 = vpop.f32.mrf.mxu0
        %v2576 = vadd.f32 %v784, %v2575
        %v2577 = vpop.f32.mrf.mxu0
        %v2578 = vadd.f32 %v788, %v2577
        %2579 = vmatprep.mubr.bf16.mxu0 %v1005
        %2580 = vmatmul.mubr.bf16.gmra.mxu0 %v1004
        %v2581 = vpop.f32.mrf.mxu0
        %v2582 = vadd.f32 %v784, %v2581
        %v2583 = vpop.f32.mrf.mxu0
        %v2584 = vadd.f32 %v788, %v2583
        %v2585 = vpop.f32.mrf.mxu0
        %v2586 = vadd.f32 %v784, %v2585
        %v2587 = vpop.f32.mrf.mxu0
        %v2588 = vadd.f32 %v788, %v2587
        %2589 = vmatprep.mubr.bf16.mxu0 %v1008
        %2590 = vmatmul.mubr.bf16.gmra.mxu0 %v1007
        %v2591 = vpop.f32.mrf.mxu0
        %v2592 = vadd.f32 %v784, %v2591
        %v2593 = vpop.f32.mrf.mxu0
        %v2594 = vadd.f32 %v788, %v2593
        %v2595 = vpop.f32.mrf.mxu0
        %v2596 = vadd.f32 %v784, %v2595
        %v2597 = vpop.f32.mrf.mxu0
        %v2598 = vadd.f32 %v788, %v2597
        %2599 = vmatprep.mubr.bf16.mxu0 %v1011
        %2600 = vmatmul.mubr.bf16.gmra.mxu0 %v1010
        %v2601 = vpop.f32.mrf.mxu0
        %v2602 = vadd.f32 %v784, %v2601
        %v2603 = vpop.f32.mrf.mxu0
        %v2604 = vadd.f32 %v788, %v2603
        %v2605 = vpop.f32.mrf.mxu0
        %v2606 = vadd.f32 %v784, %v2605
        %v2607 = vpop.f32.mrf.mxu0
        %v2608 = vadd.f32 %v788, %v2607
        %2609 = vmatprep.mubr.bf16.mxu0 %v1014
        %2610 = vmatmul.mubr.bf16.gmra.mxu0 %v1013
        %v2611 = vpop.f32.mrf.mxu0
        %v2612 = vadd.f32 %v784, %v2611
        %v2613 = vpop.f32.mrf.mxu0
        %v2614 = vadd.f32 %v788, %v2613
        %v2615 = vpop.f32.mrf.mxu0
        %v2616 = vadd.f32 %v784, %v2615
        %v2617 = vpop.f32.mrf.mxu0
        %v2618 = vadd.f32 %v788, %v2617
        %2619 = vmatprep.mubr.bf16.mxu0 %v1017
        %2620 = vmatmul.mubr.bf16.gmra.mxu0 %v1016
        %v2621 = vpop.f32.mrf.mxu0
        %v2622 = vadd.f32 %v784, %v2621
        %v2623 = vpop.f32.mrf.mxu0
        %v2624 = vadd.f32 %v788, %v2623
        %v2625 = vpop.f32.mrf.mxu0
        %v2626 = vadd.f32 %v784, %v2625
        %v2627 = vpop.f32.mrf.mxu0
        %v2628 = vadd.f32 %v788, %v2627
        %2629 = vmatprep.mubr.bf16.mxu0 %v1020
        %2630 = vmatmul.mubr.bf16.gmra.mxu0 %v1019
        %v2631 = vpop.f32.mrf.mxu0
        %v2632 = vadd.f32 %v784, %v2631
        %v2633 = vpop.f32.mrf.mxu0
        %v2634 = vadd.f32 %v788, %v2633
        %v2635 = vpop.f32.mrf.mxu0
        %v2636 = vadd.f32 %v784, %v2635
        %v2637 = vpop.f32.mrf.mxu0
        %v2638 = vadd.f32 %v788, %v2637
        %2639 = vmatprep.mubr.bf16.mxu0 %v1023
        %2640 = vmatmul.mubr.bf16.gmra.mxu0 %v1022
        %v2641 = vpop.f32.mrf.mxu0
        %v2642 = vadd.f32 %v784, %v2641
        %v2643 = vpop.f32.mrf.mxu0
        %v2644 = vadd.f32 %v788, %v2643
        %v2645 = vpop.f32.mrf.mxu0
        %v2646 = vadd.f32 %v784, %v2645
        %v2647 = vpop.f32.mrf.mxu0
        %v2648 = vadd.f32 %v788, %v2647
        %2649 = vmatprep.mubr.bf16.mxu0 %v1026
        %2650 = vmatmul.mubr.bf16.gmra.mxu0 %v1025
        %v2651 = vpop.f32.mrf.mxu0
        %v2652 = vadd.f32 %v784, %v2651
        %v2653 = vpop.f32.mrf.mxu0
        %v2654 = vadd.f32 %v788, %v2653
        %v2655 = vpop.f32.mrf.mxu0
        %v2656 = vadd.f32 %v784, %v2655
        %v2657 = vpop.f32.mrf.mxu0
        %v2658 = vadd.f32 %v788, %v2657
        %2659 = vmatprep.mubr.bf16.mxu0 %v1029
        %2660 = vmatmul.mubr.bf16.gmra.mxu0 %v1028
        %v2661 = vpop.f32.mrf.mxu0
        %v2662 = vadd.f32 %v784, %v2661
        %v2663 = vpop.f32.mrf.mxu0
        %v2664 = vadd.f32 %v788, %v2663
        %v2665 = vpop.f32.mrf.mxu0
        %v2666 = vadd.f32 %v784, %v2665
        %v2667 = vpop.f32.mrf.mxu0
        %v2668 = vadd.f32 %v788, %v2667
        %2669 = vmatprep.mubr.bf16.mxu0 %v1032
        %2670 = vmatmul.mubr.bf16.gmra.mxu0 %v1031
        %v2671 = vpop.f32.mrf.mxu0
        %v2672 = vadd.f32 %v784, %v2671
        %v2673 = vpop.f32.mrf.mxu0
        %v2674 = vadd.f32 %v788, %v2673
        %v2675 = vpop.f32.mrf.mxu0
        %v2676 = vadd.f32 %v784, %v2675
        %v2677 = vpop.f32.mrf.mxu0
        %v2678 = vadd.f32 %v788, %v2677
        %2679 = vmatprep.mubr.bf16.mxu0 %v1035
        %2680 = vmatmul.mubr.bf16.gmra.mxu0 %v1034
        %v2681 = vpop.f32.mrf.mxu0
        %v2682 = vadd.f32 %v784, %v2681
        %v2683 = vpop.f32.mrf.mxu0
        %v2684 = vadd.f32 %v788, %v2683
        %v2685 = vpop.f32.mrf.mxu0
        %v2686 = vadd.f32 %v784, %v2685
        %v2687 = vpop.f32.mrf.mxu0
        %v2688 = vadd.f32 %v788, %v2687
        %2689 = vmatprep.mubr.bf16.mxu0 %v1038
        %2690 = vmatmul.mubr.bf16.gmra.mxu0 %v1037
        %v2691 = vpop.f32.mrf.mxu0
        %v2692 = vadd.f32 %v784, %v2691
        %v2693 = vpop.f32.mrf.mxu0
        %v2694 = vadd.f32 %v788, %v2693
        %v2695 = vpop.f32.mrf.mxu0
        %v2696 = vadd.f32 %v784, %v2695
        %v2697 = vpop.f32.mrf.mxu0
        %v2698 = vadd.f32 %v788, %v2697
        %2699 = vmatprep.mubr.bf16.mxu0 %v1041
        %2700 = vmatmul.mubr.bf16.gmra.mxu0 %v1040
        %v2701 = vpop.f32.mrf.mxu0
        %v2702 = vadd.f32 %v784, %v2701
        %v2703 = vpop.f32.mrf.mxu0
        %v2704 = vadd.f32 %v788, %v2703
        %v2705 = vpop.f32.mrf.mxu0
        %v2706 = vadd.f32 %v784, %v2705
        %v2707 = vpop.f32.mrf.mxu0
        %v2708 = vadd.f32 %v788, %v2707
        %2709 = vmatprep.mubr.bf16.mxu0 %v1044
        %2710 = vmatmul.mubr.bf16.gmra.mxu0 %v1043
        %v2711 = vpop.f32.mrf.mxu0
        %v2712 = vadd.f32 %v784, %v2711
        %v2713 = vpop.f32.mrf.mxu0
        %v2714 = vadd.f32 %v788, %v2713
        %v2715 = vpop.f32.mrf.mxu0
        %v2716 = vadd.f32 %v784, %v2715
        %v2717 = vpop.f32.mrf.mxu0
        %v2718 = vadd.f32 %v788, %v2717
        %2719 = vmatprep.mubr.bf16.mxu0 %v1047
        %2720 = vmatmul.mubr.bf16.gmra.mxu0 %v1046
        %v2721 = vpop.f32.mrf.mxu0
        %v2722 = vadd.f32 %v784, %v2721
        %v2723 = vpop.f32.mrf.mxu0
        %v2724 = vadd.f32 %v788, %v2723
        %v2725 = vpop.f32.mrf.mxu0
        %v2726 = vadd.f32 %v784, %v2725
        %v2727 = vpop.f32.mrf.mxu0
        %v2728 = vadd.f32 %v788, %v2727
        %2729 = vdwg.mxu0
        %2730 = vmatprep.subr.bf16.mxu0 %v2238
        %2731 = vmatpush1.bf16.msra.mxu0 %v2237
        %2732 = vmatprep.subr.bf16.mxu0 %v2226
        %2733 = vmatpush1.bf16.msra.mxu0 %v2225
        %2734 = vmatprep.subr.bf16.mxu0 %v2214
        %2735 = vmatpush1.bf16.msra.mxu0 %v2213
        %2736 = vmatprep.subr.bf16.mxu0 %v2202
        %2737 = vmatpush1.bf16.msra.mxu0 %v2201
        %2738 = vmatprep.subr.bf16.mxu0 %v2190
        %2739 = vmatpush1.bf16.msra.mxu0 %v2189
        %2740 = vmatprep.subr.bf16.mxu0 %v2178
        %2741 = vmatpush1.bf16.msra.mxu0 %v2177
        %2742 = vmatprep.subr.bf16.mxu0 %v2166
        %2743 = vmatpush1.bf16.msra.mxu0 %v2165
        %2744 = vmatprep.subr.bf16.mxu0 %v2154
        %2745 = vmatpush1.bf16.msra.mxu0 %v2153
        %2746 = vmatprep.subr.bf16.mxu0 0
        %2747 = vmatpush2.bf16.msra.mxu0 0
        %2748 = vmatprep.subr.bf16.mxu0 0
        %2749 = vmatpush2.bf16.msra.mxu0 0
        %2750 = vmatprep.subr.bf16.mxu0 0
        %2751 = vmatpush2.bf16.msra.mxu0 0
        %2752 = vmatprep.subr.bf16.mxu0 0
        %2753 = vmatpush2.bf16.msra.mxu0 0
        %2754 = vmatprep.subr.bf16.mxu0 0
        %2755 = vmatpush2.bf16.msra.mxu0 0
        %2756 = vmatprep.subr.bf16.mxu0 0
        %2757 = vmatpush2.bf16.msra.mxu0 0
        %2758 = vmatprep.subr.bf16.mxu0 0
        %2759 = vmatpush2.bf16.msra.mxu0 0
        %2760 = vmatprep.subr.bf16.mxu0 0
        %2761 = vmatpush2.bf16.msra.mxu0 0
        %2762 = vmatprep.mubr.bf16.mxu0 0
        %2763 = vmatmul.mubr.bf16.gmra.mxu0 %v1003
        %v2764 = vpop.f32.mrf.mxu0
        %v2765 = vadd.f32 %v2572, %v2764
        %v2766 = vpop.f32.mrf.mxu0
        %v2767 = vadd.f32 %v2574, %v2766
        %v2768 = vpop.f32.mrf.mxu0
        %v2769 = vadd.f32 %v2576, %v2768
        %v2770 = vpop.f32.mrf.mxu0
        %v2771 = vadd.f32 %v2578, %v2770
        %2772 = vmatprep.mubr.bf16.mxu0 0
        %2773 = vmatmul.mubr.bf16.gmra.mxu0 %v1006
        %v2774 = vpop.f32.mrf.mxu0
        %v2775 = vadd.f32 %v2582, %v2774
        %v2776 = vpop.f32.mrf.mxu0
        %v2777 = vadd.f32 %v2584, %v2776
        %v2778 = vpop.f32.mrf.mxu0
        %v2779 = vadd.f32 %v2586, %v2778
        %v2780 = vpop.f32.mrf.mxu0
        %v2781 = vadd.f32 %v2588, %v2780
        %2782 = vmatprep.mubr.bf16.mxu0 0
        %2783 = vmatmul.mubr.bf16.gmra.mxu0 %v1009
        %v2784 = vpop.f32.mrf.mxu0
        %v2785 = vadd.f32 %v2592, %v2784
        %v2786 = vpop.f32.mrf.mxu0
        %v2787 = vadd.f32 %v2594, %v2786
        %v2788 = vpop.f32.mrf.mxu0
        %v2789 = vadd.f32 %v2596, %v2788
        %v2790 = vpop.f32.mrf.mxu0
        %v2791 = vadd.f32 %v2598, %v2790
        %2792 = vmatprep.mubr.bf16.mxu0 0
        %2793 = vmatmul.mubr.bf16.gmra.mxu0 %v1012
        %v2794 = vpop.f32.mrf.mxu0
        %v2795 = vadd.f32 %v2602, %v2794
        %v2796 = vpop.f32.mrf.mxu0
        %v2797 = vadd.f32 %v2604, %v2796
        %v2798 = vpop.f32.mrf.mxu0
        %v2799 = vadd.f32 %v2606, %v2798
        %v2800 = vpop.f32.mrf.mxu0
        %v2801 = vadd.f32 %v2608, %v2800
        %2802 = vmatprep.mubr.bf16.mxu0 0
        %2803 = vmatmul.mubr.bf16.gmra.mxu0 %v1015
        %v2804 = vpop.f32.mrf.mxu0
        %v2805 = vadd.f32 %v2612, %v2804
        %v2806 = vpop.f32.mrf.mxu0
        %v2807 = vadd.f32 %v2614, %v2806
        %v2808 = vpop.f32.mrf.mxu0
        %v2809 = vadd.f32 %v2616, %v2808
        %v2810 = vpop.f32.mrf.mxu0
        %v2811 = vadd.f32 %v2618, %v2810
        %2812 = vmatprep.mubr.bf16.mxu0 0
        %2813 = vmatmul.mubr.bf16.gmra.mxu0 %v1018
        %v2814 = vpop.f32.mrf.mxu0
        %v2815 = vadd.f32 %v2622, %v2814
        %v2816 = vpop.f32.mrf.mxu0
        %v2817 = vadd.f32 %v2624, %v2816
        %v2818 = vpop.f32.mrf.mxu0
        %v2819 = vadd.f32 %v2626, %v2818
        %v2820 = vpop.f32.mrf.mxu0
        %v2821 = vadd.f32 %v2628, %v2820
        %2822 = vmatprep.mubr.bf16.mxu0 0
        %2823 = vmatmul.mubr.bf16.gmra.mxu0 %v1021
        %v2824 = vpop.f32.mrf.mxu0
        %v2825 = vadd.f32 %v2632, %v2824
        %v2826 = vpop.f32.mrf.mxu0
        %v2827 = vadd.f32 %v2634, %v2826
        %v2828 = vpop.f32.mrf.mxu0
        %v2829 = vadd.f32 %v2636, %v2828
        %v2830 = vpop.f32.mrf.mxu0
        %v2831 = vadd.f32 %v2638, %v2830
        %2832 = vmatprep.mubr.bf16.mxu0 0
        %2833 = vmatmul.mubr.bf16.gmra.mxu0 %v1024
        %v2834 = vpop.f32.mrf.mxu0
        %v2835 = vadd.f32 %v2642, %v2834
        %v2836 = vpop.f32.mrf.mxu0
        %v2837 = vadd.f32 %v2644, %v2836
        %v2838 = vpop.f32.mrf.mxu0
        %v2839 = vadd.f32 %v2646, %v2838
        %v2840 = vpop.f32.mrf.mxu0
        %v2841 = vadd.f32 %v2648, %v2840
        %2842 = vmatprep.mubr.bf16.mxu0 0
        %2843 = vmatmul.mubr.bf16.gmra.mxu0 %v1027
        %v2844 = vpop.f32.mrf.mxu0
        %v2845 = vadd.f32 %v2652, %v2844
        %v2846 = vpop.f32.mrf.mxu0
        %v2847 = vadd.f32 %v2654, %v2846
        %v2848 = vpop.f32.mrf.mxu0
        %v2849 = vadd.f32 %v2656, %v2848
        %v2850 = vpop.f32.mrf.mxu0
        %v2851 = vadd.f32 %v2658, %v2850
        %2852 = vmatprep.mubr.bf16.mxu0 0
        %2853 = vmatmul.mubr.bf16.gmra.mxu0 %v1030
        %v2854 = vpop.f32.mrf.mxu0
        %v2855 = vadd.f32 %v2662, %v2854
        %v2856 = vpop.f32.mrf.mxu0
        %v2857 = vadd.f32 %v2664, %v2856
        %v2858 = vpop.f32.mrf.mxu0
        %v2859 = vadd.f32 %v2666, %v2858
        %v2860 = vpop.f32.mrf.mxu0
        %v2861 = vadd.f32 %v2668, %v2860
        %2862 = vmatprep.mubr.bf16.mxu0 0
        %2863 = vmatmul.mubr.bf16.gmra.mxu0 %v1033
        %v2864 = vpop.f32.mrf.mxu0
        %v2865 = vadd.f32 %v2672, %v2864
        %v2866 = vpop.f32.mrf.mxu0
        %v2867 = vadd.f32 %v2674, %v2866
        %v2868 = vpop.f32.mrf.mxu0
        %v2869 = vadd.f32 %v2676, %v2868
        %v2870 = vpop.f32.mrf.mxu0
        %v2871 = vadd.f32 %v2678, %v2870
        %2872 = vmatprep.mubr.bf16.mxu0 0
        %2873 = vmatmul.mubr.bf16.gmra.mxu0 %v1036
        %v2874 = vpop.f32.mrf.mxu0
        %v2875 = vadd.f32 %v2682, %v2874
        %v2876 = vpop.f32.mrf.mxu0
        %v2877 = vadd.f32 %v2684, %v2876
        %v2878 = vpop.f32.mrf.mxu0
        %v2879 = vadd.f32 %v2686, %v2878
        %v2880 = vpop.f32.mrf.mxu0
        %v2881 = vadd.f32 %v2688, %v2880
        %2882 = vmatprep.mubr.bf16.mxu0 0
        %2883 = vmatmul.mubr.bf16.gmra.mxu0 %v1039
        %v2884 = vpop.f32.mrf.mxu0
        %v2885 = vadd.f32 %v2692, %v2884
        %v2886 = vpop.f32.mrf.mxu0
        %v2887 = vadd.f32 %v2694, %v2886
        %v2888 = vpop.f32.mrf.mxu0
        %v2889 = vadd.f32 %v2696, %v2888
        %v2890 = vpop.f32.mrf.mxu0
        %v2891 = vadd.f32 %v2698, %v2890
        %2892 = vmatprep.mubr.bf16.mxu0 0
        %2893 = vmatmul.mubr.bf16.gmra.mxu0 %v1042
        %v2894 = vpop.f32.mrf.mxu0
        %v2895 = vadd.f32 %v2702, %v2894
        %v2896 = vpop.f32.mrf.mxu0
        %v2897 = vadd.f32 %v2704, %v2896
        %v2898 = vpop.f32.mrf.mxu0
        %v2899 = vadd.f32 %v2706, %v2898
        %v2900 = vpop.f32.mrf.mxu0
        %v2901 = vadd.f32 %v2708, %v2900
        %2902 = vmatprep.mubr.bf16.mxu0 0
        %2903 = vmatmul.mubr.bf16.gmra.mxu0 %v1045
        %v2904 = vpop.f32.mrf.mxu0
        %v2905 = vadd.f32 %v2712, %v2904
        %v2906 = vpop.f32.mrf.mxu0
        %v2907 = vadd.f32 %v2714, %v2906
        %v2908 = vpop.f32.mrf.mxu0
        %v2909 = vadd.f32 %v2716, %v2908
        %v2910 = vpop.f32.mrf.mxu0
        %v2911 = vadd.f32 %v2718, %v2910
        %2912 = vmatprep.mubr.bf16.mxu0 0
        %2913 = vmatmul.mubr.bf16.gmra.mxu0 %v1048
        %v2914 = vpop.f32.mrf.mxu0
        %v2915 = vadd.f32 %v2722, %v2914
        %v2916 = vpop.f32.mrf.mxu0
        %v2917 = vadd.f32 %v2724, %v2916
        %v2918 = vpop.f32.mrf.mxu0
        %v2919 = vadd.f32 %v2726, %v2918
        %v2920 = vpop.f32.mrf.mxu0
        %v2921 = vadd.f32 %v2728, %v2920
        %2922 = vdwg.mxu0
        %2923 = vmatprep.subr.bf16.mxu0 %v2048
        %2924 = vmatpush1.bf16.msra.mxu0 %v2047
        %2925 = vmatprep.subr.bf16.mxu0 %v2036
        %2926 = vmatpush1.bf16.msra.mxu0 %v2035
        %2927 = vmatprep.subr.bf16.mxu0 %v2024
        %2928 = vmatpush1.bf16.msra.mxu0 %v2023
        %2929 = vmatprep.subr.bf16.mxu0 %v2012
        %2930 = vmatpush1.bf16.msra.mxu0 %v2011
        %2931 = vmatprep.subr.bf16.mxu0 %v2000
        %2932 = vmatpush1.bf16.msra.mxu0 %v1999
        %2933 = vmatprep.subr.bf16.mxu0 %v1988
        %2934 = vmatpush1.bf16.msra.mxu0 %v1987
        %2935 = vmatprep.subr.bf16.mxu0 %v1976
        %2936 = vmatpush1.bf16.msra.mxu0 %v1975
        %2937 = vmatprep.subr.bf16.mxu0 %v1964
        %2938 = vmatpush1.bf16.msra.mxu0 %v1963
        %2939 = vmatprep.subr.bf16.mxu0 %v2144
        %2940 = vmatpush2.bf16.msra.mxu0 %v2143
        %2941 = vmatprep.subr.bf16.mxu0 %v2132
        %2942 = vmatpush2.bf16.msra.mxu0 %v2131
        %2943 = vmatprep.subr.bf16.mxu0 %v2120
        %2944 = vmatpush2.bf16.msra.mxu0 %v2119
        %2945 = vmatprep.subr.bf16.mxu0 %v2108
        %2946 = vmatpush2.bf16.msra.mxu0 %v2107
        %2947 = vmatprep.subr.bf16.mxu0 %v2096
        %2948 = vmatpush2.bf16.msra.mxu0 %v2095
        %2949 = vmatprep.subr.bf16.mxu0 %v2084
        %2950 = vmatpush2.bf16.msra.mxu0 %v2083
        %2951 = vmatprep.subr.bf16.mxu0 %v2072
        %2952 = vmatpush2.bf16.msra.mxu0 %v2071
        %2953 = vmatprep.subr.bf16.mxu0 %v2060
        %2954 = vmatpush2.bf16.msra.mxu0 %v2059
        %2955 = vmatprep.mubr.bf16.mxu0 %v1002
        %2956 = vmatmul.mubr.bf16.gmra.mxu0 %v1001
        %v2957 = vpop.f32.mrf.mxu0
        %v2958 = vadd.f32 %v792, %v2957
        %v2959 = vpop.f32.mrf.mxu0
        %v2960 = vadd.f32 %v796, %v2959
        %v2961 = vpop.f32.mrf.mxu0
        %v2962 = vadd.f32 %v792, %v2961
        %v2963 = vpop.f32.mrf.mxu0
        %v2964 = vadd.f32 %v796, %v2963
        %2965 = vmatprep.mubr.bf16.mxu0 %v1005
        %2966 = vmatmul.mubr.bf16.gmra.mxu0 %v1004
        %v2967 = vpop.f32.mrf.mxu0
        %v2968 = vadd.f32 %v792, %v2967
        %v2969 = vpop.f32.mrf.mxu0
        %v2970 = vadd.f32 %v796, %v2969
        %v2971 = vpop.f32.mrf.mxu0
        %v2972 = vadd.f32 %v792, %v2971
        %v2973 = vpop.f32.mrf.mxu0
        %v2974 = vadd.f32 %v796, %v2973
        %2975 = vmatprep.mubr.bf16.mxu0 %v1008
        %2976 = vmatmul.mubr.bf16.gmra.mxu0 %v1007
        %v2977 = vpop.f32.mrf.mxu0
        %v2978 = vadd.f32 %v792, %v2977
        %v2979 = vpop.f32.mrf.mxu0
        %v2980 = vadd.f32 %v796, %v2979
        %v2981 = vpop.f32.mrf.mxu0
        %v2982 = vadd.f32 %v792, %v2981
        %v2983 = vpop.f32.mrf.mxu0
        %v2984 = vadd.f32 %v796, %v2983
        %2985 = vmatprep.mubr.bf16.mxu0 %v1011
        %2986 = vmatmul.mubr.bf16.gmra.mxu0 %v1010
        %v2987 = vpop.f32.mrf.mxu0
        %v2988 = vadd.f32 %v792, %v2987
        %v2989 = vpop.f32.mrf.mxu0
        %v2990 = vadd.f32 %v796, %v2989
        %v2991 = vpop.f32.mrf.mxu0
        %v2992 = vadd.f32 %v792, %v2991
        %v2993 = vpop.f32.mrf.mxu0
        %v2994 = vadd.f32 %v796, %v2993
        %2995 = vmatprep.mubr.bf16.mxu0 %v1014
        %2996 = vmatmul.mubr.bf16.gmra.mxu0 %v1013
        %v2997 = vpop.f32.mrf.mxu0
        %v2998 = vadd.f32 %v792, %v2997
        %v2999 = vpop.f32.mrf.mxu0
        %v3000 = vadd.f32 %v796, %v2999
        %v3001 = vpop.f32.mrf.mxu0
        %v3002 = vadd.f32 %v792, %v3001
        %v3003 = vpop.f32.mrf.mxu0
        %v3004 = vadd.f32 %v796, %v3003
        %3005 = vmatprep.mubr.bf16.mxu0 %v1017
        %3006 = vmatmul.mubr.bf16.gmra.mxu0 %v1016
        %v3007 = vpop.f32.mrf.mxu0
        %v3008 = vadd.f32 %v792, %v3007
        %v3009 = vpop.f32.mrf.mxu0
        %v3010 = vadd.f32 %v796, %v3009
        %v3011 = vpop.f32.mrf.mxu0
        %v3012 = vadd.f32 %v792, %v3011
        %v3013 = vpop.f32.mrf.mxu0
        %v3014 = vadd.f32 %v796, %v3013
        %3015 = vmatprep.mubr.bf16.mxu0 %v1020
        %3016 = vmatmul.mubr.bf16.gmra.mxu0 %v1019
        %v3017 = vpop.f32.mrf.mxu0
        %v3018 = vadd.f32 %v792, %v3017
        %v3019 = vpop.f32.mrf.mxu0
        %v3020 = vadd.f32 %v796, %v3019
        %v3021 = vpop.f32.mrf.mxu0
        %v3022 = vadd.f32 %v792, %v3021
        %v3023 = vpop.f32.mrf.mxu0
        %v3024 = vadd.f32 %v796, %v3023
        %3025 = vmatprep.mubr.bf16.mxu0 %v1023
        %3026 = vmatmul.mubr.bf16.gmra.mxu0 %v1022
        %v3027 = vpop.f32.mrf.mxu0
        %v3028 = vadd.f32 %v792, %v3027
        %v3029 = vpop.f32.mrf.mxu0
        %v3030 = vadd.f32 %v796, %v3029
        %v3031 = vpop.f32.mrf.mxu0
        %v3032 = vadd.f32 %v792, %v3031
        %v3033 = vpop.f32.mrf.mxu0
        %v3034 = vadd.f32 %v796, %v3033
        %3035 = vmatprep.mubr.bf16.mxu0 %v1026
        %3036 = vmatmul.mubr.bf16.gmra.mxu0 %v1025
        %v3037 = vpop.f32.mrf.mxu0
        %v3038 = vadd.f32 %v792, %v3037
        %v3039 = vpop.f32.mrf.mxu0
        %v3040 = vadd.f32 %v796, %v3039
        %v3041 = vpop.f32.mrf.mxu0
        %v3042 = vadd.f32 %v792, %v3041
        %v3043 = vpop.f32.mrf.mxu0
        %v3044 = vadd.f32 %v796, %v3043
        %3045 = vmatprep.mubr.bf16.mxu0 %v1029
        %3046 = vmatmul.mubr.bf16.gmra.mxu0 %v1028
        %v3047 = vpop.f32.mrf.mxu0
        %v3048 = vadd.f32 %v792, %v3047
        %v3049 = vpop.f32.mrf.mxu0
        %v3050 = vadd.f32 %v796, %v3049
        %v3051 = vpop.f32.mrf.mxu0
        %v3052 = vadd.f32 %v792, %v3051
        %v3053 = vpop.f32.mrf.mxu0
        %v3054 = vadd.f32 %v796, %v3053
        %3055 = vmatprep.mubr.bf16.mxu0 %v1032
        %3056 = vmatmul.mubr.bf16.gmra.mxu0 %v1031
        %v3057 = vpop.f32.mrf.mxu0
        %v3058 = vadd.f32 %v792, %v3057
        %v3059 = vpop.f32.mrf.mxu0
        %v3060 = vadd.f32 %v796, %v3059
        %v3061 = vpop.f32.mrf.mxu0
        %v3062 = vadd.f32 %v792, %v3061
        %v3063 = vpop.f32.mrf.mxu0
        %v3064 = vadd.f32 %v796, %v3063
        %3065 = vmatprep.mubr.bf16.mxu0 %v1035
        %3066 = vmatmul.mubr.bf16.gmra.mxu0 %v1034
        %v3067 = vpop.f32.mrf.mxu0
        %v3068 = vadd.f32 %v792, %v3067
        %v3069 = vpop.f32.mrf.mxu0
        %v3070 = vadd.f32 %v796, %v3069
        %v3071 = vpop.f32.mrf.mxu0
        %v3072 = vadd.f32 %v792, %v3071
        %v3073 = vpop.f32.mrf.mxu0
        %v3074 = vadd.f32 %v796, %v3073
        %3075 = vmatprep.mubr.bf16.mxu0 %v1038
        %3076 = vmatmul.mubr.bf16.gmra.mxu0 %v1037
        %v3077 = vpop.f32.mrf.mxu0
        %v3078 = vadd.f32 %v792, %v3077
        %v3079 = vpop.f32.mrf.mxu0
        %v3080 = vadd.f32 %v796, %v3079
        %v3081 = vpop.f32.mrf.mxu0
        %v3082 = vadd.f32 %v792, %v3081
        %v3083 = vpop.f32.mrf.mxu0
        %v3084 = vadd.f32 %v796, %v3083
        %3085 = vmatprep.mubr.bf16.mxu0 %v1041
        %3086 = vmatmul.mubr.bf16.gmra.mxu0 %v1040
        %v3087 = vpop.f32.mrf.mxu0
        %v3088 = vadd.f32 %v792, %v3087
        %v3089 = vpop.f32.mrf.mxu0
        %v3090 = vadd.f32 %v796, %v3089
        %v3091 = vpop.f32.mrf.mxu0
        %v3092 = vadd.f32 %v792, %v3091
        %v3093 = vpop.f32.mrf.mxu0
        %v3094 = vadd.f32 %v796, %v3093
        %3095 = vmatprep.mubr.bf16.mxu0 %v1044
        %3096 = vmatmul.mubr.bf16.gmra.mxu0 %v1043
        %v3097 = vpop.f32.mrf.mxu0
        %v3098 = vadd.f32 %v792, %v3097
        %v3099 = vpop.f32.mrf.mxu0
        %v3100 = vadd.f32 %v796, %v3099
        %v3101 = vpop.f32.mrf.mxu0
        %v3102 = vadd.f32 %v792, %v3101
        %v3103 = vpop.f32.mrf.mxu0
        %v3104 = vadd.f32 %v796, %v3103
        %3105 = vmatprep.mubr.bf16.mxu0 %v1047
        %3106 = vmatmul.mubr.bf16.gmra.mxu0 %v1046
        %v3107 = vpop.f32.mrf.mxu0
        %v3108 = vadd.f32 %v792, %v3107
        %v3109 = vpop.f32.mrf.mxu0
        %v3110 = vadd.f32 %v796, %v3109
        %v3111 = vpop.f32.mrf.mxu0
        %v3112 = vadd.f32 %v792, %v3111
        %v3113 = vpop.f32.mrf.mxu0
        %v3114 = vadd.f32 %v796, %v3113
        %3115 = vdwg.mxu0
        %3116 = vmatprep.subr.bf16.mxu0 %v2240
        %3117 = vmatpush1.bf16.msra.mxu0 %v2239
        %3118 = vmatprep.subr.bf16.mxu0 %v2228
        %3119 = vmatpush1.bf16.msra.mxu0 %v2227
        %3120 = vmatprep.subr.bf16.mxu0 %v2216
        %3121 = vmatpush1.bf16.msra.mxu0 %v2215
        %3122 = vmatprep.subr.bf16.mxu0 %v2204
        %3123 = vmatpush1.bf16.msra.mxu0 %v2203
        %3124 = vmatprep.subr.bf16.mxu0 %v2192
        %3125 = vmatpush1.bf16.msra.mxu0 %v2191
        %3126 = vmatprep.subr.bf16.mxu0 %v2180
        %3127 = vmatpush1.bf16.msra.mxu0 %v2179
        %3128 = vmatprep.subr.bf16.mxu0 %v2168
        %3129 = vmatpush1.bf16.msra.mxu0 %v2167
        %3130 = vmatprep.subr.bf16.mxu0 %v2156
        %3131 = vmatpush1.bf16.msra.mxu0 %v2155
        %3132 = vmatprep.subr.bf16.mxu0 0
        %3133 = vmatpush2.bf16.msra.mxu0 0
        %3134 = vmatprep.subr.bf16.mxu0 0
        %3135 = vmatpush2.bf16.msra.mxu0 0
        %3136 = vmatprep.subr.bf16.mxu0 0
        %3137 = vmatpush2.bf16.msra.mxu0 0
        %3138 = vmatprep.subr.bf16.mxu0 0
        %3139 = vmatpush2.bf16.msra.mxu0 0
        %3140 = vmatprep.subr.bf16.mxu0 0
        %3141 = vmatpush2.bf16.msra.mxu0 0
        %3142 = vmatprep.subr.bf16.mxu0 0
        %3143 = vmatpush2.bf16.msra.mxu0 0
        %3144 = vmatprep.subr.bf16.mxu0 0
        %3145 = vmatpush2.bf16.msra.mxu0 0
        %3146 = vmatprep.subr.bf16.mxu0 0
        %3147 = vmatpush2.bf16.msra.mxu0 0
        %3148 = vmatprep.mubr.bf16.mxu0 0
        %3149 = vmatmul.mubr.bf16.gmra.mxu0 %v1003
        %v3150 = vpop.f32.mrf.mxu0
        %v3151 = vadd.f32 %v2958, %v3150
        %v3152 = vpop.f32.mrf.mxu0
        %v3153 = vadd.f32 %v2960, %v3152
        %v3154 = vpop.f32.mrf.mxu0
        %v3155 = vadd.f32 %v2962, %v3154
        %v3156 = vpop.f32.mrf.mxu0
        %v3157 = vadd.f32 %v2964, %v3156
        %3158 = vmatprep.mubr.bf16.mxu0 0
        %3159 = vmatmul.mubr.bf16.gmra.mxu0 %v1006
        %v3160 = vpop.f32.mrf.mxu0
        %v3161 = vadd.f32 %v2968, %v3160
        %v3162 = vpop.f32.mrf.mxu0
        %v3163 = vadd.f32 %v2970, %v3162
        %v3164 = vpop.f32.mrf.mxu0
        %v3165 = vadd.f32 %v2972, %v3164
        %v3166 = vpop.f32.mrf.mxu0
        %v3167 = vadd.f32 %v2974, %v3166
        %3168 = vmatprep.mubr.bf16.mxu0 0
        %3169 = vmatmul.mubr.bf16.gmra.mxu0 %v1009
        %v3170 = vpop.f32.mrf.mxu0
        %v3171 = vadd.f32 %v2978, %v3170
        %v3172 = vpop.f32.mrf.mxu0
        %v3173 = vadd.f32 %v2980, %v3172
        %v3174 = vpop.f32.mrf.mxu0
        %v3175 = vadd.f32 %v2982, %v3174
        %v3176 = vpop.f32.mrf.mxu0
        %v3177 = vadd.f32 %v2984, %v3176
        %3178 = vmatprep.mubr.bf16.mxu0 0
        %3179 = vmatmul.mubr.bf16.gmra.mxu0 %v1012
        %v3180 = vpop.f32.mrf.mxu0
        %v3181 = vadd.f32 %v2988, %v3180
        %v3182 = vpop.f32.mrf.mxu0
        %v3183 = vadd.f32 %v2990, %v3182
        %v3184 = vpop.f32.mrf.mxu0
        %v3185 = vadd.f32 %v2992, %v3184
        %v3186 = vpop.f32.mrf.mxu0
        %v3187 = vadd.f32 %v2994, %v3186
        %3188 = vmatprep.mubr.bf16.mxu0 0
        %3189 = vmatmul.mubr.bf16.gmra.mxu0 %v1015
        %v3190 = vpop.f32.mrf.mxu0
        %v3191 = vadd.f32 %v2998, %v3190
        %v3192 = vpop.f32.mrf.mxu0
        %v3193 = vadd.f32 %v3000, %v3192
        %v3194 = vpop.f32.mrf.mxu0
        %v3195 = vadd.f32 %v3002, %v3194
        %v3196 = vpop.f32.mrf.mxu0
        %v3197 = vadd.f32 %v3004, %v3196
        %3198 = vmatprep.mubr.bf16.mxu0 0
        %3199 = vmatmul.mubr.bf16.gmra.mxu0 %v1018
        %v3200 = vpop.f32.mrf.mxu0
        %v3201 = vadd.f32 %v3008, %v3200
        %v3202 = vpop.f32.mrf.mxu0
        %v3203 = vadd.f32 %v3010, %v3202
        %v3204 = vpop.f32.mrf.mxu0
        %v3205 = vadd.f32 %v3012, %v3204
        %v3206 = vpop.f32.mrf.mxu0
        %v3207 = vadd.f32 %v3014, %v3206
        %3208 = vmatprep.mubr.bf16.mxu0 0
        %3209 = vmatmul.mubr.bf16.gmra.mxu0 %v1021
        %v3210 = vpop.f32.mrf.mxu0
        %v3211 = vadd.f32 %v3018, %v3210
        %v3212 = vpop.f32.mrf.mxu0
        %v3213 = vadd.f32 %v3020, %v3212
        %v3214 = vpop.f32.mrf.mxu0
        %v3215 = vadd.f32 %v3022, %v3214
        %v3216 = vpop.f32.mrf.mxu0
        %v3217 = vadd.f32 %v3024, %v3216
        %3218 = vmatprep.mubr.bf16.mxu0 0
        %3219 = vmatmul.mubr.bf16.gmra.mxu0 %v1024
        %v3220 = vpop.f32.mrf.mxu0
        %v3221 = vadd.f32 %v3028, %v3220
        %v3222 = vpop.f32.mrf.mxu0
        %v3223 = vadd.f32 %v3030, %v3222
        %v3224 = vpop.f32.mrf.mxu0
        %v3225 = vadd.f32 %v3032, %v3224
        %v3226 = vpop.f32.mrf.mxu0
        %v3227 = vadd.f32 %v3034, %v3226
        %3228 = vmatprep.mubr.bf16.mxu0 0
        %3229 = vmatmul.mubr.bf16.gmra.mxu0 %v1027
        %v3230 = vpop.f32.mrf.mxu0
        %v3231 = vadd.f32 %v3038, %v3230
        %v3232 = vpop.f32.mrf.mxu0
        %v3233 = vadd.f32 %v3040, %v3232
        %v3234 = vpop.f32.mrf.mxu0
        %v3235 = vadd.f32 %v3042, %v3234
        %v3236 = vpop.f32.mrf.mxu0
        %v3237 = vadd.f32 %v3044, %v3236
        %3238 = vmatprep.mubr.bf16.mxu0 0
        %3239 = vmatmul.mubr.bf16.gmra.mxu0 %v1030
        %v3240 = vpop.f32.mrf.mxu0
        %v3241 = vadd.f32 %v3048, %v3240
        %v3242 = vpop.f32.mrf.mxu0
        %v3243 = vadd.f32 %v3050, %v3242
        %v3244 = vpop.f32.mrf.mxu0
        %v3245 = vadd.f32 %v3052, %v3244
        %v3246 = vpop.f32.mrf.mxu0
        %v3247 = vadd.f32 %v3054, %v3246
        %3248 = vmatprep.mubr.bf16.mxu0 0
        %3249 = vmatmul.mubr.bf16.gmra.mxu0 %v1033
        %v3250 = vpop.f32.mrf.mxu0
        %v3251 = vadd.f32 %v3058, %v3250
        %v3252 = vpop.f32.mrf.mxu0
        %v3253 = vadd.f32 %v3060, %v3252
        %v3254 = vpop.f32.mrf.mxu0
        %v3255 = vadd.f32 %v3062, %v3254
        %v3256 = vpop.f32.mrf.mxu0
        %v3257 = vadd.f32 %v3064, %v3256
        %3258 = vmatprep.mubr.bf16.mxu0 0
        %3259 = vmatmul.mubr.bf16.gmra.mxu0 %v1036
        %v3260 = vpop.f32.mrf.mxu0
        %v3261 = vadd.f32 %v3068, %v3260
        %v3262 = vpop.f32.mrf.mxu0
        %v3263 = vadd.f32 %v3070, %v3262
        %v3264 = vpop.f32.mrf.mxu0
        %v3265 = vadd.f32 %v3072, %v3264
        %v3266 = vpop.f32.mrf.mxu0
        %v3267 = vadd.f32 %v3074, %v3266
        %3268 = vmatprep.mubr.bf16.mxu0 0
        %3269 = vmatmul.mubr.bf16.gmra.mxu0 %v1039
        %v3270 = vpop.f32.mrf.mxu0
        %v3271 = vadd.f32 %v3078, %v3270
        %v3272 = vpop.f32.mrf.mxu0
        %v3273 = vadd.f32 %v3080, %v3272
        %v3274 = vpop.f32.mrf.mxu0
        %v3275 = vadd.f32 %v3082, %v3274
        %v3276 = vpop.f32.mrf.mxu0
        %v3277 = vadd.f32 %v3084, %v3276
        %3278 = vmatprep.mubr.bf16.mxu0 0
        %3279 = vmatmul.mubr.bf16.gmra.mxu0 %v1042
        %v3280 = vpop.f32.mrf.mxu0
        %v3281 = vadd.f32 %v3088, %v3280
        %v3282 = vpop.f32.mrf.mxu0
        %v3283 = vadd.f32 %v3090, %v3282
        %v3284 = vpop.f32.mrf.mxu0
        %v3285 = vadd.f32 %v3092, %v3284
        %v3286 = vpop.f32.mrf.mxu0
        %v3287 = vadd.f32 %v3094, %v3286
        %3288 = vmatprep.mubr.bf16.mxu0 0
        %3289 = vmatmul.mubr.bf16.gmra.mxu0 %v1045
        %v3290 = vpop.f32.mrf.mxu0
        %v3291 = vadd.f32 %v3098, %v3290
        %v3292 = vpop.f32.mrf.mxu0
        %v3293 = vadd.f32 %v3100, %v3292
        %v3294 = vpop.f32.mrf.mxu0
        %v3295 = vadd.f32 %v3102, %v3294
        %v3296 = vpop.f32.mrf.mxu0
        %v3297 = vadd.f32 %v3104, %v3296
        %3298 = vmatprep.mubr.bf16.mxu0 0
        %3299 = vmatmul.mubr.bf16.gmra.mxu0 %v1048
        %v3300 = vpop.f32.mrf.mxu0
        %v3301 = vadd.f32 %v3108, %v3300
        %v3302 = vpop.f32.mrf.mxu0
        %v3303 = vadd.f32 %v3110, %v3302
        %v3304 = vpop.f32.mrf.mxu0
        %v3305 = vadd.f32 %v3112, %v3304
        %v3306 = vpop.f32.mrf.mxu0
        %v3307 = vadd.f32 %v3114, %v3306
        %3308 = vdwg.mxu0
        %3309 = vmatprep.subr.bf16.mxu0 %v2050
        %3310 = vmatpush1.bf16.msra.mxu0 %v2049
        %3311 = vmatprep.subr.bf16.mxu0 %v2038
        %3312 = vmatpush1.bf16.msra.mxu0 %v2037
        %3313 = vmatprep.subr.bf16.mxu0 %v2026
        %3314 = vmatpush1.bf16.msra.mxu0 %v2025
        %3315 = vmatprep.subr.bf16.mxu0 %v2014
        %3316 = vmatpush1.bf16.msra.mxu0 %v2013
        %3317 = vmatprep.subr.bf16.mxu0 %v2002
        %3318 = vmatpush1.bf16.msra.mxu0 %v2001
        %3319 = vmatprep.subr.bf16.mxu0 %v1990
        %3320 = vmatpush1.bf16.msra.mxu0 %v1989
        %3321 = vmatprep.subr.bf16.mxu0 %v1978
        %3322 = vmatpush1.bf16.msra.mxu0 %v1977
        %3323 = vmatprep.subr.bf16.mxu0 %v1966
        %3324 = vmatpush1.bf16.msra.mxu0 %v1965
        %3325 = vmatprep.subr.bf16.mxu0 %v2146
        %3326 = vmatpush2.bf16.msra.mxu0 %v2145
        %3327 = vmatprep.subr.bf16.mxu0 %v2134
        %3328 = vmatpush2.bf16.msra.mxu0 %v2133
        %3329 = vmatprep.subr.bf16.mxu0 %v2122
        %3330 = vmatpush2.bf16.msra.mxu0 %v2121
        %3331 = vmatprep.subr.bf16.mxu0 %v2110
        %3332 = vmatpush2.bf16.msra.mxu0 %v2109
        %3333 = vmatprep.subr.bf16.mxu0 %v2098
        %3334 = vmatpush2.bf16.msra.mxu0 %v2097
        %3335 = vmatprep.subr.bf16.mxu0 %v2086
        %3336 = vmatpush2.bf16.msra.mxu0 %v2085
        %3337 = vmatprep.subr.bf16.mxu0 %v2074
        %3338 = vmatpush2.bf16.msra.mxu0 %v2073
        %3339 = vmatprep.subr.bf16.mxu0 %v2062
        %3340 = vmatpush2.bf16.msra.mxu0 %v2061
        %3341 = vmatprep.mubr.bf16.mxu0 %v1002
        %3342 = vmatmul.mubr.bf16.gmra.mxu0 %v1001
        %v3343 = vpop.f32.mrf.mxu0
        %v3344 = vadd.f32 %v800, %v3343
        %v3345 = vpop.f32.mrf.mxu0
        %v3346 = vadd.f32 %v804, %v3345
        %v3347 = vpop.f32.mrf.mxu0
        %v3348 = vadd.f32 %v800, %v3347
        %v3349 = vpop.f32.mrf.mxu0
        %v3350 = vadd.f32 %v804, %v3349
        %3351 = vmatprep.mubr.bf16.mxu0 %v1005
        %3352 = vmatmul.mubr.bf16.gmra.mxu0 %v1004
        %v3353 = vpop.f32.mrf.mxu0
        %v3354 = vadd.f32 %v800, %v3353
        %v3355 = vpop.f32.mrf.mxu0
        %v3356 = vadd.f32 %v804, %v3355
        %v3357 = vpop.f32.mrf.mxu0
        %v3358 = vadd.f32 %v800, %v3357
        %v3359 = vpop.f32.mrf.mxu0
        %v3360 = vadd.f32 %v804, %v3359
        %3361 = vmatprep.mubr.bf16.mxu0 %v1008
        %3362 = vmatmul.mubr.bf16.gmra.mxu0 %v1007
        %v3363 = vpop.f32.mrf.mxu0
        %v3364 = vadd.f32 %v800, %v3363
        %v3365 = vpop.f32.mrf.mxu0
        %v3366 = vadd.f32 %v804, %v3365
        %v3367 = vpop.f32.mrf.mxu0
        %v3368 = vadd.f32 %v800, %v3367
        %v3369 = vpop.f32.mrf.mxu0
        %v3370 = vadd.f32 %v804, %v3369
        %3371 = vmatprep.mubr.bf16.mxu0 %v1011
        %3372 = vmatmul.mubr.bf16.gmra.mxu0 %v1010
        %v3373 = vpop.f32.mrf.mxu0
        %v3374 = vadd.f32 %v800, %v3373
        %v3375 = vpop.f32.mrf.mxu0
        %v3376 = vadd.f32 %v804, %v3375
        %v3377 = vpop.f32.mrf.mxu0
        %v3378 = vadd.f32 %v800, %v3377
        %v3379 = vpop.f32.mrf.mxu0
        %v3380 = vadd.f32 %v804, %v3379
        %3381 = vmatprep.mubr.bf16.mxu0 %v1014
        %3382 = vmatmul.mubr.bf16.gmra.mxu0 %v1013
        %v3383 = vpop.f32.mrf.mxu0
        %v3384 = vadd.f32 %v800, %v3383
        %v3385 = vpop.f32.mrf.mxu0
        %v3386 = vadd.f32 %v804, %v3385
        %v3387 = vpop.f32.mrf.mxu0
        %v3388 = vadd.f32 %v800, %v3387
        %v3389 = vpop.f32.mrf.mxu0
        %v3390 = vadd.f32 %v804, %v3389
        %3391 = vmatprep.mubr.bf16.mxu0 %v1017
        %3392 = vmatmul.mubr.bf16.gmra.mxu0 %v1016
        %v3393 = vpop.f32.mrf.mxu0
        %v3394 = vadd.f32 %v800, %v3393
        %v3395 = vpop.f32.mrf.mxu0
        %v3396 = vadd.f32 %v804, %v3395
        %v3397 = vpop.f32.mrf.mxu0
        %v3398 = vadd.f32 %v800, %v3397
        %v3399 = vpop.f32.mrf.mxu0
        %v3400 = vadd.f32 %v804, %v3399
        %3401 = vmatprep.mubr.bf16.mxu0 %v1020
        %3402 = vmatmul.mubr.bf16.gmra.mxu0 %v1019
        %v3403 = vpop.f32.mrf.mxu0
        %v3404 = vadd.f32 %v800, %v3403
        %v3405 = vpop.f32.mrf.mxu0
        %v3406 = vadd.f32 %v804, %v3405
        %v3407 = vpop.f32.mrf.mxu0
        %v3408 = vadd.f32 %v800, %v3407
        %v3409 = vpop.f32.mrf.mxu0
        %v3410 = vadd.f32 %v804, %v3409
        %3411 = vmatprep.mubr.bf16.mxu0 %v1023
        %3412 = vmatmul.mubr.bf16.gmra.mxu0 %v1022
        %v3413 = vpop.f32.mrf.mxu0
        %v3414 = vadd.f32 %v800, %v3413
        %v3415 = vpop.f32.mrf.mxu0
        %v3416 = vadd.f32 %v804, %v3415
        %v3417 = vpop.f32.mrf.mxu0
        %v3418 = vadd.f32 %v800, %v3417
        %v3419 = vpop.f32.mrf.mxu0
        %v3420 = vadd.f32 %v804, %v3419
        %3421 = vmatprep.mubr.bf16.mxu0 %v1026
        %3422 = vmatmul.mubr.bf16.gmra.mxu0 %v1025
        %v3423 = vpop.f32.mrf.mxu0
        %v3424 = vadd.f32 %v800, %v3423
        %v3425 = vpop.f32.mrf.mxu0
        %v3426 = vadd.f32 %v804, %v3425
        %v3427 = vpop.f32.mrf.mxu0
        %v3428 = vadd.f32 %v800, %v3427
        %v3429 = vpop.f32.mrf.mxu0
        %v3430 = vadd.f32 %v804, %v3429
        %3431 = vmatprep.mubr.bf16.mxu0 %v1029
        %3432 = vmatmul.mubr.bf16.gmra.mxu0 %v1028
        %v3433 = vpop.f32.mrf.mxu0
        %v3434 = vadd.f32 %v800, %v3433
        %v3435 = vpop.f32.mrf.mxu0
        %v3436 = vadd.f32 %v804, %v3435
        %v3437 = vpop.f32.mrf.mxu0
        %v3438 = vadd.f32 %v800, %v3437
        %v3439 = vpop.f32.mrf.mxu0
        %v3440 = vadd.f32 %v804, %v3439
        %3441 = vmatprep.mubr.bf16.mxu0 %v1032
        %3442 = vmatmul.mubr.bf16.gmra.mxu0 %v1031
        %v3443 = vpop.f32.mrf.mxu0
        %v3444 = vadd.f32 %v800, %v3443
        %v3445 = vpop.f32.mrf.mxu0
        %v3446 = vadd.f32 %v804, %v3445
        %v3447 = vpop.f32.mrf.mxu0
        %v3448 = vadd.f32 %v800, %v3447
        %v3449 = vpop.f32.mrf.mxu0
        %v3450 = vadd.f32 %v804, %v3449
        %3451 = vmatprep.mubr.bf16.mxu0 %v1035
        %3452 = vmatmul.mubr.bf16.gmra.mxu0 %v1034
        %v3453 = vpop.f32.mrf.mxu0
        %v3454 = vadd.f32 %v800, %v3453
        %v3455 = vpop.f32.mrf.mxu0
        %v3456 = vadd.f32 %v804, %v3455
        %v3457 = vpop.f32.mrf.mxu0
        %v3458 = vadd.f32 %v800, %v3457
        %v3459 = vpop.f32.mrf.mxu0
        %v3460 = vadd.f32 %v804, %v3459
        %3461 = vmatprep.mubr.bf16.mxu0 %v1038
        %3462 = vmatmul.mubr.bf16.gmra.mxu0 %v1037
        %v3463 = vpop.f32.mrf.mxu0
        %v3464 = vadd.f32 %v800, %v3463
        %v3465 = vpop.f32.mrf.mxu0
        %v3466 = vadd.f32 %v804, %v3465
        %v3467 = vpop.f32.mrf.mxu0
        %v3468 = vadd.f32 %v800, %v3467
        %v3469 = vpop.f32.mrf.mxu0
        %v3470 = vadd.f32 %v804, %v3469
        %3471 = vmatprep.mubr.bf16.mxu0 %v1041
        %3472 = vmatmul.mubr.bf16.gmra.mxu0 %v1040
        %v3473 = vpop.f32.mrf.mxu0
        %v3474 = vadd.f32 %v800, %v3473
        %v3475 = vpop.f32.mrf.mxu0
        %v3476 = vadd.f32 %v804, %v3475
        %v3477 = vpop.f32.mrf.mxu0
        %v3478 = vadd.f32 %v800, %v3477
        %v3479 = vpop.f32.mrf.mxu0
        %v3480 = vadd.f32 %v804, %v3479
        %3481 = vmatprep.mubr.bf16.mxu0 %v1044
        %3482 = vmatmul.mubr.bf16.gmra.mxu0 %v1043
        %v3483 = vpop.f32.mrf.mxu0
        %v3484 = vadd.f32 %v800, %v3483
        %v3485 = vpop.f32.mrf.mxu0
        %v3486 = vadd.f32 %v804, %v3485
        %v3487 = vpop.f32.mrf.mxu0
        %v3488 = vadd.f32 %v800, %v3487
        %v3489 = vpop.f32.mrf.mxu0
        %v3490 = vadd.f32 %v804, %v3489
        %3491 = vmatprep.mubr.bf16.mxu0 %v1047
        %3492 = vmatmul.mubr.bf16.gmra.mxu0 %v1046
        %v3493 = vpop.f32.mrf.mxu0
        %v3494 = vadd.f32 %v800, %v3493
        %v3495 = vpop.f32.mrf.mxu0
        %v3496 = vadd.f32 %v804, %v3495
        %v3497 = vpop.f32.mrf.mxu0
        %v3498 = vadd.f32 %v800, %v3497
        %v3499 = vpop.f32.mrf.mxu0
        %v3500 = vadd.f32 %v804, %v3499
        %3501 = vdwg.mxu0
        %3502 = vmatprep.subr.bf16.mxu0 %v2242
        %3503 = vmatpush1.bf16.msra.mxu0 %v2241
        %3504 = vmatprep.subr.bf16.mxu0 %v2230
        %3505 = vmatpush1.bf16.msra.mxu0 %v2229
        %3506 = vmatprep.subr.bf16.mxu0 %v2218
        %3507 = vmatpush1.bf16.msra.mxu0 %v2217
        %3508 = vmatprep.subr.bf16.mxu0 %v2206
        %3509 = vmatpush1.bf16.msra.mxu0 %v2205
        %3510 = vmatprep.subr.bf16.mxu0 %v2194
        %3511 = vmatpush1.bf16.msra.mxu0 %v2193
        %3512 = vmatprep.subr.bf16.mxu0 %v2182
        %3513 = vmatpush1.bf16.msra.mxu0 %v2181
        %3514 = vmatprep.subr.bf16.mxu0 %v2170
        %3515 = vmatpush1.bf16.msra.mxu0 %v2169
        %3516 = vmatprep.subr.bf16.mxu0 %v2158
        %3517 = vmatpush1.bf16.msra.mxu0 %v2157
        %3518 = vmatprep.subr.bf16.mxu0 0
        %3519 = vmatpush2.bf16.msra.mxu0 0
        %3520 = vmatprep.subr.bf16.mxu0 0
        %3521 = vmatpush2.bf16.msra.mxu0 0
        %3522 = vmatprep.subr.bf16.mxu0 0
        %3523 = vmatpush2.bf16.msra.mxu0 0
        %3524 = vmatprep.subr.bf16.mxu0 0
        %3525 = vmatpush2.bf16.msra.mxu0 0
        %3526 = vmatprep.subr.bf16.mxu0 0
        %3527 = vmatpush2.bf16.msra.mxu0 0
        %3528 = vmatprep.subr.bf16.mxu0 0
        %3529 = vmatpush2.bf16.msra.mxu0 0
        %3530 = vmatprep.subr.bf16.mxu0 0
        %3531 = vmatpush2.bf16.msra.mxu0 0
        %3532 = vmatprep.subr.bf16.mxu0 0
        %3533 = vmatpush2.bf16.msra.mxu0 0
        %3534 = vmatprep.mubr.bf16.mxu0 0
        %3535 = vmatmul.mubr.bf16.gmra.mxu0 %v1003
        %v3536 = vpop.f32.mrf.mxu0
        %v3537 = vadd.f32 %v3344, %v3536
        %v3538 = vpop.f32.mrf.mxu0
        %v3539 = vadd.f32 %v3346, %v3538
        %v3540 = vpop.f32.mrf.mxu0
        %v3541 = vadd.f32 %v3348, %v3540
        %v3542 = vpop.f32.mrf.mxu0
        %v3543 = vadd.f32 %v3350, %v3542
        %3544 = vmatprep.mubr.bf16.mxu0 0
        %3545 = vmatmul.mubr.bf16.gmra.mxu0 %v1006
        %v3546 = vpop.f32.mrf.mxu0
        %v3547 = vadd.f32 %v3354, %v3546
        %v3548 = vpop.f32.mrf.mxu0
        %v3549 = vadd.f32 %v3356, %v3548
        %v3550 = vpop.f32.mrf.mxu0
        %v3551 = vadd.f32 %v3358, %v3550
        %v3552 = vpop.f32.mrf.mxu0
        %v3553 = vadd.f32 %v3360, %v3552
        %3554 = vmatprep.mubr.bf16.mxu0 0
        %3555 = vmatmul.mubr.bf16.gmra.mxu0 %v1009
        %v3556 = vpop.f32.mrf.mxu0
        %v3557 = vadd.f32 %v3364, %v3556
        %v3558 = vpop.f32.mrf.mxu0
        %v3559 = vadd.f32 %v3366, %v3558
        %v3560 = vpop.f32.mrf.mxu0
        %v3561 = vadd.f32 %v3368, %v3560
        %v3562 = vpop.f32.mrf.mxu0
        %v3563 = vadd.f32 %v3370, %v3562
        %3564 = vmatprep.mubr.bf16.mxu0 0
        %3565 = vmatmul.mubr.bf16.gmra.mxu0 %v1012
        %v3566 = vpop.f32.mrf.mxu0
        %v3567 = vadd.f32 %v3374, %v3566
        %v3568 = vpop.f32.mrf.mxu0
        %v3569 = vadd.f32 %v3376, %v3568
        %v3570 = vpop.f32.mrf.mxu0
        %v3571 = vadd.f32 %v3378, %v3570
        %v3572 = vpop.f32.mrf.mxu0
        %v3573 = vadd.f32 %v3380, %v3572
        %3574 = vmatprep.mubr.bf16.mxu0 0
        %3575 = vmatmul.mubr.bf16.gmra.mxu0 %v1015
        %v3576 = vpop.f32.mrf.mxu0
        %v3577 = vadd.f32 %v3384, %v3576
        %v3578 = vpop.f32.mrf.mxu0
        %v3579 = vadd.f32 %v3386, %v3578
        %v3580 = vpop.f32.mrf.mxu0
        %v3581 = vadd.f32 %v3388, %v3580
        %v3582 = vpop.f32.mrf.mxu0
        %v3583 = vadd.f32 %v3390, %v3582
        %3584 = vmatprep.mubr.bf16.mxu0 0
        %3585 = vmatmul.mubr.bf16.gmra.mxu0 %v1018
        %v3586 = vpop.f32.mrf.mxu0
        %v3587 = vadd.f32 %v3394, %v3586
        %v3588 = vpop.f32.mrf.mxu0
        %v3589 = vadd.f32 %v3396, %v3588
        %v3590 = vpop.f32.mrf.mxu0
        %v3591 = vadd.f32 %v3398, %v3590
        %v3592 = vpop.f32.mrf.mxu0
        %v3593 = vadd.f32 %v3400, %v3592
        %3594 = vmatprep.mubr.bf16.mxu0 0
        %3595 = vmatmul.mubr.bf16.gmra.mxu0 %v1021
        %v3596 = vpop.f32.mrf.mxu0
        %v3597 = vadd.f32 %v3404, %v3596
        %v3598 = vpop.f32.mrf.mxu0
        %v3599 = vadd.f32 %v3406, %v3598
        %v3600 = vpop.f32.mrf.mxu0
        %v3601 = vadd.f32 %v3408, %v3600
        %v3602 = vpop.f32.mrf.mxu0
        %v3603 = vadd.f32 %v3410, %v3602
        %3604 = vmatprep.mubr.bf16.mxu0 0
        %3605 = vmatmul.mubr.bf16.gmra.mxu0 %v1024
        %v3606 = vpop.f32.mrf.mxu0
        %v3607 = vadd.f32 %v3414, %v3606
        %v3608 = vpop.f32.mrf.mxu0
        %v3609 = vadd.f32 %v3416, %v3608
        %v3610 = vpop.f32.mrf.mxu0
        %v3611 = vadd.f32 %v3418, %v3610
        %v3612 = vpop.f32.mrf.mxu0
        %v3613 = vadd.f32 %v3420, %v3612
        %3614 = vmatprep.mubr.bf16.mxu0 0
        %3615 = vmatmul.mubr.bf16.gmra.mxu0 %v1027
        %v3616 = vpop.f32.mrf.mxu0
        %v3617 = vadd.f32 %v3424, %v3616
        %v3618 = vpop.f32.mrf.mxu0
        %v3619 = vadd.f32 %v3426, %v3618
        %v3620 = vpop.f32.mrf.mxu0
        %v3621 = vadd.f32 %v3428, %v3620
        %v3622 = vpop.f32.mrf.mxu0
        %v3623 = vadd.f32 %v3430, %v3622
        %3624 = vmatprep.mubr.bf16.mxu0 0
        %3625 = vmatmul.mubr.bf16.gmra.mxu0 %v1030
        %v3626 = vpop.f32.mrf.mxu0
        %v3627 = vadd.f32 %v3434, %v3626
        %v3628 = vpop.f32.mrf.mxu0
        %v3629 = vadd.f32 %v3436, %v3628
        %v3630 = vpop.f32.mrf.mxu0
        %v3631 = vadd.f32 %v3438, %v3630
        %v3632 = vpop.f32.mrf.mxu0
        %v3633 = vadd.f32 %v3440, %v3632
        %3634 = vmatprep.mubr.bf16.mxu0 0
        %3635 = vmatmul.mubr.bf16.gmra.mxu0 %v1033
        %v3636 = vpop.f32.mrf.mxu0
        %v3637 = vadd.f32 %v3444, %v3636
        %v3638 = vpop.f32.mrf.mxu0
        %v3639 = vadd.f32 %v3446, %v3638
        %v3640 = vpop.f32.mrf.mxu0
        %v3641 = vadd.f32 %v3448, %v3640
        %v3642 = vpop.f32.mrf.mxu0
        %v3643 = vadd.f32 %v3450, %v3642
        %3644 = vmatprep.mubr.bf16.mxu0 0
        %3645 = vmatmul.mubr.bf16.gmra.mxu0 %v1036
        %v3646 = vpop.f32.mrf.mxu0
        %v3647 = vadd.f32 %v3454, %v3646
        %v3648 = vpop.f32.mrf.mxu0
        %v3649 = vadd.f32 %v3456, %v3648
        %v3650 = vpop.f32.mrf.mxu0
        %v3651 = vadd.f32 %v3458, %v3650
        %v3652 = vpop.f32.mrf.mxu0
        %v3653 = vadd.f32 %v3460, %v3652
        %3654 = vmatprep.mubr.bf16.mxu0 0
        %3655 = vmatmul.mubr.bf16.gmra.mxu0 %v1039
        %v3656 = vpop.f32.mrf.mxu0
        %v3657 = vadd.f32 %v3464, %v3656
        %v3658 = vpop.f32.mrf.mxu0
        %v3659 = vadd.f32 %v3466, %v3658
        %v3660 = vpop.f32.mrf.mxu0
        %v3661 = vadd.f32 %v3468, %v3660
        %v3662 = vpop.f32.mrf.mxu0
        %v3663 = vadd.f32 %v3470, %v3662
        %3664 = vmatprep.mubr.bf16.mxu0 0
        %3665 = vmatmul.mubr.bf16.gmra.mxu0 %v1042
        %v3666 = vpop.f32.mrf.mxu0
        %v3667 = vadd.f32 %v3474, %v3666
        %v3668 = vpop.f32.mrf.mxu0
        %v3669 = vadd.f32 %v3476, %v3668
        %v3670 = vpop.f32.mrf.mxu0
        %v3671 = vadd.f32 %v3478, %v3670
        %v3672 = vpop.f32.mrf.mxu0
        %v3673 = vadd.f32 %v3480, %v3672
        %3674 = vmatprep.mubr.bf16.mxu0 0
        %3675 = vmatmul.mubr.bf16.gmra.mxu0 %v1045
        %v3676 = vpop.f32.mrf.mxu0
        %v3677 = vadd.f32 %v3484, %v3676
        %v3678 = vpop.f32.mrf.mxu0
        %v3679 = vadd.f32 %v3486, %v3678
        %v3680 = vpop.f32.mrf.mxu0
        %v3681 = vadd.f32 %v3488, %v3680
        %v3682 = vpop.f32.mrf.mxu0
        %v3683 = vadd.f32 %v3490, %v3682
        %3684 = vmatprep.mubr.bf16.mxu0 0
        %3685 = vmatmul.mubr.bf16.gmra.mxu0 %v1048
        %v3686 = vpop.f32.mrf.mxu0
        %v3687 = vadd.f32 %v3494, %v3686
        %v3688 = vpop.f32.mrf.mxu0
        %v3689 = vadd.f32 %v3496, %v3688
        %v3690 = vpop.f32.mrf.mxu0
        %v3691 = vadd.f32 %v3498, %v3690
        %v3692 = vpop.f32.mrf.mxu0
        %v3693 = vadd.f32 %v3500, %v3692
        %3694 = vdwg.mxu0
        %3695 = vmatprep.subr.bf16.mxu0 %v2052
        %3696 = vmatpush1.bf16.msra.mxu0 %v2051
        %3697 = vmatprep.subr.bf16.mxu0 %v2040
        %3698 = vmatpush1.bf16.msra.mxu0 %v2039
        %3699 = vmatprep.subr.bf16.mxu0 %v2028
        %3700 = vmatpush1.bf16.msra.mxu0 %v2027
        %3701 = vmatprep.subr.bf16.mxu0 %v2016
        %3702 = vmatpush1.bf16.msra.mxu0 %v2015
        %3703 = vmatprep.subr.bf16.mxu0 %v2004
        %3704 = vmatpush1.bf16.msra.mxu0 %v2003
        %3705 = vmatprep.subr.bf16.mxu0 %v1992
        %3706 = vmatpush1.bf16.msra.mxu0 %v1991
        %3707 = vmatprep.subr.bf16.mxu0 %v1980
        %3708 = vmatpush1.bf16.msra.mxu0 %v1979
        %3709 = vmatprep.subr.bf16.mxu0 %v1968
        %3710 = vmatpush1.bf16.msra.mxu0 %v1967
        %3711 = vmatprep.subr.bf16.mxu0 %v2148
        %3712 = vmatpush2.bf16.msra.mxu0 %v2147
        %3713 = vmatprep.subr.bf16.mxu0 %v2136
        %3714 = vmatpush2.bf16.msra.mxu0 %v2135
        %3715 = vmatprep.subr.bf16.mxu0 %v2124
        %3716 = vmatpush2.bf16.msra.mxu0 %v2123
        %3717 = vmatprep.subr.bf16.mxu0 %v2112
        %3718 = vmatpush2.bf16.msra.mxu0 %v2111
        %3719 = vmatprep.subr.bf16.mxu0 %v2100
        %3720 = vmatpush2.bf16.msra.mxu0 %v2099
        %3721 = vmatprep.subr.bf16.mxu0 %v2088
        %3722 = vmatpush2.bf16.msra.mxu0 %v2087
        %3723 = vmatprep.subr.bf16.mxu0 %v2076
        %3724 = vmatpush2.bf16.msra.mxu0 %v2075
        %3725 = vmatprep.subr.bf16.mxu0 %v2064
        %3726 = vmatpush2.bf16.msra.mxu0 %v2063
        %3727 = vmatprep.mubr.bf16.mxu0 %v1002
        %3728 = vmatmul.mubr.bf16.gmra.mxu0 %v1001
        %v3729 = vpop.f32.mrf.mxu0
        %v3730 = vadd.f32 %v808, %v3729
        %v3731 = vpop.f32.mrf.mxu0
        %v3732 = vadd.f32 %v812, %v3731
        %v3733 = vpop.f32.mrf.mxu0
        %v3734 = vadd.f32 %v808, %v3733
        %v3735 = vpop.f32.mrf.mxu0
        %v3736 = vadd.f32 %v812, %v3735
        %3737 = vmatprep.mubr.bf16.mxu0 %v1005
        %3738 = vmatmul.mubr.bf16.gmra.mxu0 %v1004
        %v3739 = vpop.f32.mrf.mxu0
        %v3740 = vadd.f32 %v808, %v3739
        %v3741 = vpop.f32.mrf.mxu0
        %v3742 = vadd.f32 %v812, %v3741
        %v3743 = vpop.f32.mrf.mxu0
        %v3744 = vadd.f32 %v808, %v3743
        %v3745 = vpop.f32.mrf.mxu0
        %v3746 = vadd.f32 %v812, %v3745
        %3747 = vmatprep.mubr.bf16.mxu0 %v1008
        %3748 = vmatmul.mubr.bf16.gmra.mxu0 %v1007
        %v3749 = vpop.f32.mrf.mxu0
        %v3750 = vadd.f32 %v808, %v3749
        %v3751 = vpop.f32.mrf.mxu0
        %v3752 = vadd.f32 %v812, %v3751
        %v3753 = vpop.f32.mrf.mxu0
        %v3754 = vadd.f32 %v808, %v3753
        %v3755 = vpop.f32.mrf.mxu0
        %v3756 = vadd.f32 %v812, %v3755
        %3757 = vmatprep.mubr.bf16.mxu0 %v1011
        %3758 = vmatmul.mubr.bf16.gmra.mxu0 %v1010
        %v3759 = vpop.f32.mrf.mxu0
        %v3760 = vadd.f32 %v808, %v3759
        %v3761 = vpop.f32.mrf.mxu0
        %v3762 = vadd.f32 %v812, %v3761
        %v3763 = vpop.f32.mrf.mxu0
        %v3764 = vadd.f32 %v808, %v3763
        %v3765 = vpop.f32.mrf.mxu0
        %v3766 = vadd.f32 %v812, %v3765
        %3767 = vmatprep.mubr.bf16.mxu0 %v1014
        %3768 = vmatmul.mubr.bf16.gmra.mxu0 %v1013
        %v3769 = vpop.f32.mrf.mxu0
        %v3770 = vadd.f32 %v808, %v3769
        %v3771 = vpop.f32.mrf.mxu0
        %v3772 = vadd.f32 %v812, %v3771
        %v3773 = vpop.f32.mrf.mxu0
        %v3774 = vadd.f32 %v808, %v3773
        %v3775 = vpop.f32.mrf.mxu0
        %v3776 = vadd.f32 %v812, %v3775
        %3777 = vmatprep.mubr.bf16.mxu0 %v1017
        %3778 = vmatmul.mubr.bf16.gmra.mxu0 %v1016
        %v3779 = vpop.f32.mrf.mxu0
        %v3780 = vadd.f32 %v808, %v3779
        %v3781 = vpop.f32.mrf.mxu0
        %v3782 = vadd.f32 %v812, %v3781
        %v3783 = vpop.f32.mrf.mxu0
        %v3784 = vadd.f32 %v808, %v3783
        %v3785 = vpop.f32.mrf.mxu0
        %v3786 = vadd.f32 %v812, %v3785
        %3787 = vmatprep.mubr.bf16.mxu0 %v1020
        %3788 = vmatmul.mubr.bf16.gmra.mxu0 %v1019
        %v3789 = vpop.f32.mrf.mxu0
        %v3790 = vadd.f32 %v808, %v3789
        %v3791 = vpop.f32.mrf.mxu0
        %v3792 = vadd.f32 %v812, %v3791
        %v3793 = vpop.f32.mrf.mxu0
        %v3794 = vadd.f32 %v808, %v3793
        %v3795 = vpop.f32.mrf.mxu0
        %v3796 = vadd.f32 %v812, %v3795
        %3797 = vmatprep.mubr.bf16.mxu0 %v1023
        %3798 = vmatmul.mubr.bf16.gmra.mxu0 %v1022
        %v3799 = vpop.f32.mrf.mxu0
        %v3800 = vadd.f32 %v808, %v3799
        %v3801 = vpop.f32.mrf.mxu0
        %v3802 = vadd.f32 %v812, %v3801
        %v3803 = vpop.f32.mrf.mxu0
        %v3804 = vadd.f32 %v808, %v3803
        %v3805 = vpop.f32.mrf.mxu0
        %v3806 = vadd.f32 %v812, %v3805
        %3807 = vmatprep.mubr.bf16.mxu0 %v1026
        %3808 = vmatmul.mubr.bf16.gmra.mxu0 %v1025
        %v3809 = vpop.f32.mrf.mxu0
        %v3810 = vadd.f32 %v808, %v3809
        %v3811 = vpop.f32.mrf.mxu0
        %v3812 = vadd.f32 %v812, %v3811
        %v3813 = vpop.f32.mrf.mxu0
        %v3814 = vadd.f32 %v808, %v3813
        %v3815 = vpop.f32.mrf.mxu0
        %v3816 = vadd.f32 %v812, %v3815
        %3817 = vmatprep.mubr.bf16.mxu0 %v1029
        %3818 = vmatmul.mubr.bf16.gmra.mxu0 %v1028
        %v3819 = vpop.f32.mrf.mxu0
        %v3820 = vadd.f32 %v808, %v3819
        %v3821 = vpop.f32.mrf.mxu0
        %v3822 = vadd.f32 %v812, %v3821
        %v3823 = vpop.f32.mrf.mxu0
        %v3824 = vadd.f32 %v808, %v3823
        %v3825 = vpop.f32.mrf.mxu0
        %v3826 = vadd.f32 %v812, %v3825
        %3827 = vmatprep.mubr.bf16.mxu0 %v1032
        %3828 = vmatmul.mubr.bf16.gmra.mxu0 %v1031
        %v3829 = vpop.f32.mrf.mxu0
        %v3830 = vadd.f32 %v808, %v3829
        %v3831 = vpop.f32.mrf.mxu0
        %v3832 = vadd.f32 %v812, %v3831
        %v3833 = vpop.f32.mrf.mxu0
        %v3834 = vadd.f32 %v808, %v3833
        %v3835 = vpop.f32.mrf.mxu0
        %v3836 = vadd.f32 %v812, %v3835
        %3837 = vmatprep.mubr.bf16.mxu0 %v1035
        %3838 = vmatmul.mubr.bf16.gmra.mxu0 %v1034
        %v3839 = vpop.f32.mrf.mxu0
        %v3840 = vadd.f32 %v808, %v3839
        %v3841 = vpop.f32.mrf.mxu0
        %v3842 = vadd.f32 %v812, %v3841
        %v3843 = vpop.f32.mrf.mxu0
        %v3844 = vadd.f32 %v808, %v3843
        %v3845 = vpop.f32.mrf.mxu0
        %v3846 = vadd.f32 %v812, %v3845
        %3847 = vmatprep.mubr.bf16.mxu0 %v1038
        %3848 = vmatmul.mubr.bf16.gmra.mxu0 %v1037
        %v3849 = vpop.f32.mrf.mxu0
        %v3850 = vadd.f32 %v808, %v3849
        %v3851 = vpop.f32.mrf.mxu0
        %v3852 = vadd.f32 %v812, %v3851
        %v3853 = vpop.f32.mrf.mxu0
        %v3854 = vadd.f32 %v808, %v3853
        %v3855 = vpop.f32.mrf.mxu0
        %v3856 = vadd.f32 %v812, %v3855
        %3857 = vmatprep.mubr.bf16.mxu0 %v1041
        %3858 = vmatmul.mubr.bf16.gmra.mxu0 %v1040
        %v3859 = vpop.f32.mrf.mxu0
        %v3860 = vadd.f32 %v808, %v3859
        %v3861 = vpop.f32.mrf.mxu0
        %v3862 = vadd.f32 %v812, %v3861
        %v3863 = vpop.f32.mrf.mxu0
        %v3864 = vadd.f32 %v808, %v3863
        %v3865 = vpop.f32.mrf.mxu0
        %v3866 = vadd.f32 %v812, %v3865
        %3867 = vmatprep.mubr.bf16.mxu0 %v1044
        %3868 = vmatmul.mubr.bf16.gmra.mxu0 %v1043
        %v3869 = vpop.f32.mrf.mxu0
        %v3870 = vadd.f32 %v808, %v3869
        %v3871 = vpop.f32.mrf.mxu0
        %v3872 = vadd.f32 %v812, %v3871
        %v3873 = vpop.f32.mrf.mxu0
        %v3874 = vadd.f32 %v808, %v3873
        %v3875 = vpop.f32.mrf.mxu0
        %v3876 = vadd.f32 %v812, %v3875
        %3877 = vmatprep.mubr.bf16.mxu0 %v1047
        %3878 = vmatmul.mubr.bf16.gmra.mxu0 %v1046
        %v3879 = vpop.f32.mrf.mxu0
        %v3880 = vadd.f32 %v808, %v3879
        %v3881 = vpop.f32.mrf.mxu0
        %v3882 = vadd.f32 %v812, %v3881
        %v3883 = vpop.f32.mrf.mxu0
        %v3884 = vadd.f32 %v808, %v3883
        %v3885 = vpop.f32.mrf.mxu0
        %v3886 = vadd.f32 %v812, %v3885
        %3887 = vdwg.mxu0
        %3888 = vmatprep.subr.bf16.mxu0 %v2244
        %3889 = vmatpush1.bf16.msra.mxu0 %v2243
        %3890 = vmatprep.subr.bf16.mxu0 %v2232
        %3891 = vmatpush1.bf16.msra.mxu0 %v2231
        %3892 = vmatprep.subr.bf16.mxu0 %v2220
        %3893 = vmatpush1.bf16.msra.mxu0 %v2219
        %3894 = vmatprep.subr.bf16.mxu0 %v2208
        %3895 = vmatpush1.bf16.msra.mxu0 %v2207
        %3896 = vmatprep.subr.bf16.mxu0 %v2196
        %3897 = vmatpush1.bf16.msra.mxu0 %v2195
        %3898 = vmatprep.subr.bf16.mxu0 %v2184
        %3899 = vmatpush1.bf16.msra.mxu0 %v2183
        %3900 = vmatprep.subr.bf16.mxu0 %v2172
        %3901 = vmatpush1.bf16.msra.mxu0 %v2171
        %3902 = vmatprep.subr.bf16.mxu0 %v2160
        %3903 = vmatpush1.bf16.msra.mxu0 %v2159
        %3904 = vmatprep.subr.bf16.mxu0 0
        %3905 = vmatpush2.bf16.msra.mxu0 0
        %3906 = vmatprep.subr.bf16.mxu0 0
        %3907 = vmatpush2.bf16.msra.mxu0 0
        %3908 = vmatprep.subr.bf16.mxu0 0
        %3909 = vmatpush2.bf16.msra.mxu0 0
        %3910 = vmatprep.subr.bf16.mxu0 0
        %3911 = vmatpush2.bf16.msra.mxu0 0
        %3912 = vmatprep.subr.bf16.mxu0 0
        %3913 = vmatpush2.bf16.msra.mxu0 0
        %3914 = vmatprep.subr.bf16.mxu0 0
        %3915 = vmatpush2.bf16.msra.mxu0 0
        %3916 = vmatprep.subr.bf16.mxu0 0
        %3917 = vmatpush2.bf16.msra.mxu0 0
        %3918 = vmatprep.subr.bf16.mxu0 0
        %3919 = vmatpush2.bf16.msra.mxu0 0
        %3920 = vmatprep.mubr.bf16.mxu0 0
        %3921 = vmatmul.mubr.bf16.gmra.mxu0 %v1003
        %v3922 = vpop.f32.mrf.mxu0
        %v3923 = vadd.f32 %v3730, %v3922
        %v3924 = vpop.f32.mrf.mxu0
        %v3925 = vadd.f32 %v3732, %v3924
        %v3926 = vpop.f32.mrf.mxu0
        %v3927 = vadd.f32 %v3734, %v3926
        %v3928 = vpop.f32.mrf.mxu0
        %v3929 = vadd.f32 %v3736, %v3928
        %3930 = vmatprep.mubr.bf16.mxu0 0
        %3931 = vmatmul.mubr.bf16.gmra.mxu0 %v1006
        %v3932 = vpop.f32.mrf.mxu0
        %v3933 = vadd.f32 %v3740, %v3932
        %v3934 = vpop.f32.mrf.mxu0
        %v3935 = vadd.f32 %v3742, %v3934
        %v3936 = vpop.f32.mrf.mxu0
        %v3937 = vadd.f32 %v3744, %v3936
        %v3938 = vpop.f32.mrf.mxu0
        %v3939 = vadd.f32 %v3746, %v3938
        %3940 = vmatprep.mubr.bf16.mxu0 0
        %3941 = vmatmul.mubr.bf16.gmra.mxu0 %v1009
        %v3942 = vpop.f32.mrf.mxu0
        %v3943 = vadd.f32 %v3750, %v3942
        %v3944 = vpop.f32.mrf.mxu0
        %v3945 = vadd.f32 %v3752, %v3944
        %v3946 = vpop.f32.mrf.mxu0
        %v3947 = vadd.f32 %v3754, %v3946
        %v3948 = vpop.f32.mrf.mxu0
        %v3949 = vadd.f32 %v3756, %v3948
        %3950 = vmatprep.mubr.bf16.mxu0 0
        %3951 = vmatmul.mubr.bf16.gmra.mxu0 %v1012
        %v3952 = vpop.f32.mrf.mxu0
        %v3953 = vadd.f32 %v3760, %v3952
        %v3954 = vpop.f32.mrf.mxu0
        %v3955 = vadd.f32 %v3762, %v3954
        %v3956 = vpop.f32.mrf.mxu0
        %v3957 = vadd.f32 %v3764, %v3956
        %v3958 = vpop.f32.mrf.mxu0
        %v3959 = vadd.f32 %v3766, %v3958
        %3960 = vmatprep.mubr.bf16.mxu0 0
        %3961 = vmatmul.mubr.bf16.gmra.mxu0 %v1015
        %v3962 = vpop.f32.mrf.mxu0
        %v3963 = vadd.f32 %v3770, %v3962
        %v3964 = vpop.f32.mrf.mxu0
        %v3965 = vadd.f32 %v3772, %v3964
        %v3966 = vpop.f32.mrf.mxu0
        %v3967 = vadd.f32 %v3774, %v3966
        %v3968 = vpop.f32.mrf.mxu0
        %v3969 = vadd.f32 %v3776, %v3968
        %3970 = vmatprep.mubr.bf16.mxu0 0
        %3971 = vmatmul.mubr.bf16.gmra.mxu0 %v1018
        %v3972 = vpop.f32.mrf.mxu0
        %v3973 = vadd.f32 %v3780, %v3972
        %v3974 = vpop.f32.mrf.mxu0
        %v3975 = vadd.f32 %v3782, %v3974
        %v3976 = vpop.f32.mrf.mxu0
        %v3977 = vadd.f32 %v3784, %v3976
        %v3978 = vpop.f32.mrf.mxu0
        %v3979 = vadd.f32 %v3786, %v3978
        %3980 = vmatprep.mubr.bf16.mxu0 0
        %3981 = vmatmul.mubr.bf16.gmra.mxu0 %v1021
        %v3982 = vpop.f32.mrf.mxu0
        %v3983 = vadd.f32 %v3790, %v3982
        %v3984 = vpop.f32.mrf.mxu0
        %v3985 = vadd.f32 %v3792, %v3984
        %v3986 = vpop.f32.mrf.mxu0
        %v3987 = vadd.f32 %v3794, %v3986
        %v3988 = vpop.f32.mrf.mxu0
        %v3989 = vadd.f32 %v3796, %v3988
        %3990 = vmatprep.mubr.bf16.mxu0 0
        %3991 = vmatmul.mubr.bf16.gmra.mxu0 %v1024
        %v3992 = vpop.f32.mrf.mxu0
        %v3993 = vadd.f32 %v3800, %v3992
        %v3994 = vpop.f32.mrf.mxu0
        %v3995 = vadd.f32 %v3802, %v3994
        %v3996 = vpop.f32.mrf.mxu0
        %v3997 = vadd.f32 %v3804, %v3996
        %v3998 = vpop.f32.mrf.mxu0
        %v3999 = vadd.f32 %v3806, %v3998
        %4000 = vmatprep.mubr.bf16.mxu0 0
        %4001 = vmatmul.mubr.bf16.gmra.mxu0 %v1027
        %v4002 = vpop.f32.mrf.mxu0
        %v4003 = vadd.f32 %v3810, %v4002
        %v4004 = vpop.f32.mrf.mxu0
        %v4005 = vadd.f32 %v3812, %v4004
        %v4006 = vpop.f32.mrf.mxu0
        %v4007 = vadd.f32 %v3814, %v4006
        %v4008 = vpop.f32.mrf.mxu0
        %v4009 = vadd.f32 %v3816, %v4008
        %4010 = vmatprep.mubr.bf16.mxu0 0
        %4011 = vmatmul.mubr.bf16.gmra.mxu0 %v1030
        %v4012 = vpop.f32.mrf.mxu0
        %v4013 = vadd.f32 %v3820, %v4012
        %v4014 = vpop.f32.mrf.mxu0
        %v4015 = vadd.f32 %v3822, %v4014
        %v4016 = vpop.f32.mrf.mxu0
        %v4017 = vadd.f32 %v3824, %v4016
        %v4018 = vpop.f32.mrf.mxu0
        %v4019 = vadd.f32 %v3826, %v4018
        %4020 = vmatprep.mubr.bf16.mxu0 0
        %4021 = vmatmul.mubr.bf16.gmra.mxu0 %v1033
        %v4022 = vpop.f32.mrf.mxu0
        %v4023 = vadd.f32 %v3830, %v4022
        %v4024 = vpop.f32.mrf.mxu0
        %v4025 = vadd.f32 %v3832, %v4024
        %v4026 = vpop.f32.mrf.mxu0
        %v4027 = vadd.f32 %v3834, %v4026
        %v4028 = vpop.f32.mrf.mxu0
        %v4029 = vadd.f32 %v3836, %v4028
        %4030 = vmatprep.mubr.bf16.mxu0 0
        %4031 = vmatmul.mubr.bf16.gmra.mxu0 %v1036
        %v4032 = vpop.f32.mrf.mxu0
        %v4033 = vadd.f32 %v3840, %v4032
        %v4034 = vpop.f32.mrf.mxu0
        %v4035 = vadd.f32 %v3842, %v4034
        %v4036 = vpop.f32.mrf.mxu0
        %v4037 = vadd.f32 %v3844, %v4036
        %v4038 = vpop.f32.mrf.mxu0
        %v4039 = vadd.f32 %v3846, %v4038
        %4040 = vmatprep.mubr.bf16.mxu0 0
        %4041 = vmatmul.mubr.bf16.gmra.mxu0 %v1039
        %v4042 = vpop.f32.mrf.mxu0
        %v4043 = vadd.f32 %v3850, %v4042
        %v4044 = vpop.f32.mrf.mxu0
        %v4045 = vadd.f32 %v3852, %v4044
        %v4046 = vpop.f32.mrf.mxu0
        %v4047 = vadd.f32 %v3854, %v4046
        %v4048 = vpop.f32.mrf.mxu0
        %v4049 = vadd.f32 %v3856, %v4048
        %4050 = vmatprep.mubr.bf16.mxu0 0
        %4051 = vmatmul.mubr.bf16.gmra.mxu0 %v1042
        %v4052 = vpop.f32.mrf.mxu0
        %v4053 = vadd.f32 %v3860, %v4052
        %v4054 = vpop.f32.mrf.mxu0
        %v4055 = vadd.f32 %v3862, %v4054
        %v4056 = vpop.f32.mrf.mxu0
        %v4057 = vadd.f32 %v3864, %v4056
        %v4058 = vpop.f32.mrf.mxu0
        %v4059 = vadd.f32 %v3866, %v4058
        %4060 = vmatprep.mubr.bf16.mxu0 0
        %4061 = vmatmul.mubr.bf16.gmra.mxu0 %v1045
        %v4062 = vpop.f32.mrf.mxu0
        %v4063 = vadd.f32 %v3870, %v4062
        %v4064 = vpop.f32.mrf.mxu0
        %v4065 = vadd.f32 %v3872, %v4064
        %v4066 = vpop.f32.mrf.mxu0
        %v4067 = vadd.f32 %v3874, %v4066
        %v4068 = vpop.f32.mrf.mxu0
        %v4069 = vadd.f32 %v3876, %v4068
        %4070 = vmatprep.mubr.bf16.mxu0 0
        %4071 = vmatmul.mubr.bf16.gmra.mxu0 %v1048
        %v4072 = vpop.f32.mrf.mxu0
        %v4073 = vadd.f32 %v3880, %v4072
        %v4074 = vpop.f32.mrf.mxu0
        %v4075 = vadd.f32 %v3882, %v4074
        %v4076 = vpop.f32.mrf.mxu0
        %v4077 = vadd.f32 %v3884, %v4076
        %v4078 = vpop.f32.mrf.mxu0
        %v4079 = vadd.f32 %v3886, %v4078
        %4080 = vdwg.mxu0
        %4081 = vmatprep.subr.bf16.mxu0 %v2054
        %4082 = vmatpush1.bf16.msra.mxu0 %v2053
        %4083 = vmatprep.subr.bf16.mxu0 %v2042
        %4084 = vmatpush1.bf16.msra.mxu0 %v2041
        %4085 = vmatprep.subr.bf16.mxu0 %v2030
        %4086 = vmatpush1.bf16.msra.mxu0 %v2029
        %4087 = vmatprep.subr.bf16.mxu0 %v2018
        %4088 = vmatpush1.bf16.msra.mxu0 %v2017
        %4089 = vmatprep.subr.bf16.mxu0 %v2006
        %4090 = vmatpush1.bf16.msra.mxu0 %v2005
        %4091 = vmatprep.subr.bf16.mxu0 %v1994
        %4092 = vmatpush1.bf16.msra.mxu0 %v1993
        %4093 = vmatprep.subr.bf16.mxu0 %v1982
        %4094 = vmatpush1.bf16.msra.mxu0 %v1981
        %4095 = vmatprep.subr.bf16.mxu0 %v1970
        %4096 = vmatpush1.bf16.msra.mxu0 %v1969
        %4097 = vmatprep.subr.bf16.mxu0 %v2150
        %4098 = vmatpush2.bf16.msra.mxu0 %v2149
        %4099 = vmatprep.subr.bf16.mxu0 %v2138
        %4100 = vmatpush2.bf16.msra.mxu0 %v2137
        %4101 = vmatprep.subr.bf16.mxu0 %v2126
        %4102 = vmatpush2.bf16.msra.mxu0 %v2125
        %4103 = vmatprep.subr.bf16.mxu0 %v2114
        %4104 = vmatpush2.bf16.msra.mxu0 %v2113
        %4105 = vmatprep.subr.bf16.mxu0 %v2102
        %4106 = vmatpush2.bf16.msra.mxu0 %v2101
        %4107 = vmatprep.subr.bf16.mxu0 %v2090
        %4108 = vmatpush2.bf16.msra.mxu0 %v2089
        %4109 = vmatprep.subr.bf16.mxu0 %v2078
        %4110 = vmatpush2.bf16.msra.mxu0 %v2077
        %4111 = vmatprep.subr.bf16.mxu0 %v2066
        %4112 = vmatpush2.bf16.msra.mxu0 %v2065
        %4113 = vmatprep.mubr.bf16.mxu0 %v1002
        %4114 = vmatmul.mubr.bf16.gmra.mxu0 %v1001
        %v4115 = vpop.f32.mrf.mxu0
        %v4116 = vadd.f32 %v816, %v4115
        %v4117 = vpop.f32.mrf.mxu0
        %v4118 = vadd.f32 %v820, %v4117
        %v4119 = vpop.f32.mrf.mxu0
        %v4120 = vadd.f32 %v816, %v4119
        %v4121 = vpop.f32.mrf.mxu0
        %v4122 = vadd.f32 %v820, %v4121
        %4123 = vmatprep.mubr.bf16.mxu0 %v1005
        %4124 = vmatmul.mubr.bf16.gmra.mxu0 %v1004
        %v4125 = vpop.f32.mrf.mxu0
        %v4126 = vadd.f32 %v816, %v4125
        %v4127 = vpop.f32.mrf.mxu0
        %v4128 = vadd.f32 %v820, %v4127
        %v4129 = vpop.f32.mrf.mxu0
        %v4130 = vadd.f32 %v816, %v4129
        %v4131 = vpop.f32.mrf.mxu0
        %v4132 = vadd.f32 %v820, %v4131
        %4133 = vmatprep.mubr.bf16.mxu0 %v1008
        %4134 = vmatmul.mubr.bf16.gmra.mxu0 %v1007
        %v4135 = vpop.f32.mrf.mxu0
        %v4136 = vadd.f32 %v816, %v4135
        %v4137 = vpop.f32.mrf.mxu0
        %v4138 = vadd.f32 %v820, %v4137
        %v4139 = vpop.f32.mrf.mxu0
        %v4140 = vadd.f32 %v816, %v4139
        %v4141 = vpop.f32.mrf.mxu0
        %v4142 = vadd.f32 %v820, %v4141
        %4143 = vmatprep.mubr.bf16.mxu0 %v1011
        %4144 = vmatmul.mubr.bf16.gmra.mxu0 %v1010
        %v4145 = vpop.f32.mrf.mxu0
        %v4146 = vadd.f32 %v816, %v4145
        %v4147 = vpop.f32.mrf.mxu0
        %v4148 = vadd.f32 %v820, %v4147
        %v4149 = vpop.f32.mrf.mxu0
        %v4150 = vadd.f32 %v816, %v4149
        %v4151 = vpop.f32.mrf.mxu0
        %v4152 = vadd.f32 %v820, %v4151
        %4153 = vmatprep.mubr.bf16.mxu0 %v1014
        %4154 = vmatmul.mubr.bf16.gmra.mxu0 %v1013
        %v4155 = vpop.f32.mrf.mxu0
        %v4156 = vadd.f32 %v816, %v4155
        %v4157 = vpop.f32.mrf.mxu0
        %v4158 = vadd.f32 %v820, %v4157
        %v4159 = vpop.f32.mrf.mxu0
        %v4160 = vadd.f32 %v816, %v4159
        %v4161 = vpop.f32.mrf.mxu0
        %v4162 = vadd.f32 %v820, %v4161
        %4163 = vmatprep.mubr.bf16.mxu0 %v1017
        %4164 = vmatmul.mubr.bf16.gmra.mxu0 %v1016
        %v4165 = vpop.f32.mrf.mxu0
        %v4166 = vadd.f32 %v816, %v4165
        %v4167 = vpop.f32.mrf.mxu0
        %v4168 = vadd.f32 %v820, %v4167
        %v4169 = vpop.f32.mrf.mxu0
        %v4170 = vadd.f32 %v816, %v4169
        %v4171 = vpop.f32.mrf.mxu0
        %v4172 = vadd.f32 %v820, %v4171
        %4173 = vmatprep.mubr.bf16.mxu0 %v1020
        %4174 = vmatmul.mubr.bf16.gmra.mxu0 %v1019
        %v4175 = vpop.f32.mrf.mxu0
        %v4176 = vadd.f32 %v816, %v4175
        %v4177 = vpop.f32.mrf.mxu0
        %v4178 = vadd.f32 %v820, %v4177
        %v4179 = vpop.f32.mrf.mxu0
        %v4180 = vadd.f32 %v816, %v4179
        %v4181 = vpop.f32.mrf.mxu0
        %v4182 = vadd.f32 %v820, %v4181
        %4183 = vmatprep.mubr.bf16.mxu0 %v1023
        %4184 = vmatmul.mubr.bf16.gmra.mxu0 %v1022
        %v4185 = vpop.f32.mrf.mxu0
        %v4186 = vadd.f32 %v816, %v4185
        %v4187 = vpop.f32.mrf.mxu0
        %v4188 = vadd.f32 %v820, %v4187
        %v4189 = vpop.f32.mrf.mxu0
        %v4190 = vadd.f32 %v816, %v4189
        %v4191 = vpop.f32.mrf.mxu0
        %v4192 = vadd.f32 %v820, %v4191
        %4193 = vmatprep.mubr.bf16.mxu0 %v1026
        %4194 = vmatmul.mubr.bf16.gmra.mxu0 %v1025
        %v4195 = vpop.f32.mrf.mxu0
        %v4196 = vadd.f32 %v816, %v4195
        %v4197 = vpop.f32.mrf.mxu0
        %v4198 = vadd.f32 %v820, %v4197
        %v4199 = vpop.f32.mrf.mxu0
        %v4200 = vadd.f32 %v816, %v4199
        %v4201 = vpop.f32.mrf.mxu0
        %v4202 = vadd.f32 %v820, %v4201
        %4203 = vmatprep.mubr.bf16.mxu0 %v1029
        %4204 = vmatmul.mubr.bf16.gmra.mxu0 %v1028
        %v4205 = vpop.f32.mrf.mxu0
        %v4206 = vadd.f32 %v816, %v4205
        %v4207 = vpop.f32.mrf.mxu0
        %v4208 = vadd.f32 %v820, %v4207
        %v4209 = vpop.f32.mrf.mxu0
        %v4210 = vadd.f32 %v816, %v4209
        %v4211 = vpop.f32.mrf.mxu0
        %v4212 = vadd.f32 %v820, %v4211
        %4213 = vmatprep.mubr.bf16.mxu0 %v1032
        %4214 = vmatmul.mubr.bf16.gmra.mxu0 %v1031
        %v4215 = vpop.f32.mrf.mxu0
        %v4216 = vadd.f32 %v816, %v4215
        %v4217 = vpop.f32.mrf.mxu0
        %v4218 = vadd.f32 %v820, %v4217
        %v4219 = vpop.f32.mrf.mxu0
        %v4220 = vadd.f32 %v816, %v4219
        %v4221 = vpop.f32.mrf.mxu0
        %v4222 = vadd.f32 %v820, %v4221
        %4223 = vmatprep.mubr.bf16.mxu0 %v1035
        %4224 = vmatmul.mubr.bf16.gmra.mxu0 %v1034
        %v4225 = vpop.f32.mrf.mxu0
        %v4226 = vadd.f32 %v816, %v4225
        %v4227 = vpop.f32.mrf.mxu0
        %v4228 = vadd.f32 %v820, %v4227
        %v4229 = vpop.f32.mrf.mxu0
        %v4230 = vadd.f32 %v816, %v4229
        %v4231 = vpop.f32.mrf.mxu0
        %v4232 = vadd.f32 %v820, %v4231
        %4233 = vmatprep.mubr.bf16.mxu0 %v1038
        %4234 = vmatmul.mubr.bf16.gmra.mxu0 %v1037
        %v4235 = vpop.f32.mrf.mxu0
        %v4236 = vadd.f32 %v816, %v4235
        %v4237 = vpop.f32.mrf.mxu0
        %v4238 = vadd.f32 %v820, %v4237
        %v4239 = vpop.f32.mrf.mxu0
        %v4240 = vadd.f32 %v816, %v4239
        %v4241 = vpop.f32.mrf.mxu0
        %v4242 = vadd.f32 %v820, %v4241
        %4243 = vmatprep.mubr.bf16.mxu0 %v1041
        %4244 = vmatmul.mubr.bf16.gmra.mxu0 %v1040
        %v4245 = vpop.f32.mrf.mxu0
        %v4246 = vadd.f32 %v816, %v4245
        %v4247 = vpop.f32.mrf.mxu0
        %v4248 = vadd.f32 %v820, %v4247
        %v4249 = vpop.f32.mrf.mxu0
        %v4250 = vadd.f32 %v816, %v4249
        %v4251 = vpop.f32.mrf.mxu0
        %v4252 = vadd.f32 %v820, %v4251
        %4253 = vmatprep.mubr.bf16.mxu0 %v1044
        %4254 = vmatmul.mubr.bf16.gmra.mxu0 %v1043
        %v4255 = vpop.f32.mrf.mxu0
        %v4256 = vadd.f32 %v816, %v4255
        %v4257 = vpop.f32.mrf.mxu0
        %v4258 = vadd.f32 %v820, %v4257
        %v4259 = vpop.f32.mrf.mxu0
        %v4260 = vadd.f32 %v816, %v4259
        %v4261 = vpop.f32.mrf.mxu0
        %v4262 = vadd.f32 %v820, %v4261
        %4263 = vmatprep.mubr.bf16.mxu0 %v1047
        %4264 = vmatmul.mubr.bf16.gmra.mxu0 %v1046
        %v4265 = vpop.f32.mrf.mxu0
        %v4266 = vadd.f32 %v816, %v4265
        %v4267 = vpop.f32.mrf.mxu0
        %v4268 = vadd.f32 %v820, %v4267
        %v4269 = vpop.f32.mrf.mxu0
        %v4270 = vadd.f32 %v816, %v4269
        %v4271 = vpop.f32.mrf.mxu0
        %v4272 = vadd.f32 %v820, %v4271
        %4273 = vdwg.mxu0
        %4274 = vmatprep.subr.bf16.mxu0 %v2246
        %4275 = vmatpush1.bf16.msra.mxu0 %v2245
        %4276 = vmatprep.subr.bf16.mxu0 %v2234
        %4277 = vmatpush1.bf16.msra.mxu0 %v2233
        %4278 = vmatprep.subr.bf16.mxu0 %v2222
        %4279 = vmatpush1.bf16.msra.mxu0 %v2221
        %4280 = vmatprep.subr.bf16.mxu0 %v2210
        %4281 = vmatpush1.bf16.msra.mxu0 %v2209
        %4282 = vmatprep.subr.bf16.mxu0 %v2198
        %4283 = vmatpush1.bf16.msra.mxu0 %v2197
        %4284 = vmatprep.subr.bf16.mxu0 %v2186
        %4285 = vmatpush1.bf16.msra.mxu0 %v2185
        %4286 = vmatprep.subr.bf16.mxu0 %v2174
        %4287 = vmatpush1.bf16.msra.mxu0 %v2173
        %4288 = vmatprep.subr.bf16.mxu0 %v2162
        %4289 = vmatpush1.bf16.msra.mxu0 %v2161
        %4290 = vmatprep.subr.bf16.mxu0 0
        %4291 = vmatpush2.bf16.msra.mxu0 0
        %4292 = vmatprep.subr.bf16.mxu0 0
        %4293 = vmatpush2.bf16.msra.mxu0 0
        %4294 = vmatprep.subr.bf16.mxu0 0
        %4295 = vmatpush2.bf16.msra.mxu0 0
        %4296 = vmatprep.subr.bf16.mxu0 0
        %4297 = vmatpush2.bf16.msra.mxu0 0
        %4298 = vmatprep.subr.bf16.mxu0 0
        %4299 = vmatpush2.bf16.msra.mxu0 0
        %4300 = vmatprep.subr.bf16.mxu0 0
        %4301 = vmatpush2.bf16.msra.mxu0 0
        %4302 = vmatprep.subr.bf16.mxu0 0
        %4303 = vmatpush2.bf16.msra.mxu0 0
        %4304 = vmatprep.subr.bf16.mxu0 0
        %4305 = vmatpush2.bf16.msra.mxu0 0
        %4306 = vmatprep.mubr.bf16.mxu0 0
        %4307 = vmatmul.mubr.bf16.gmra.mxu0 %v1003
        %v4308 = vpop.f32.mrf.mxu0
        %v4309 = vadd.f32 %v4116, %v4308
        %v4310 = vpop.f32.mrf.mxu0
        %v4311 = vadd.f32 %v4118, %v4310
        %v4312 = vpop.f32.mrf.mxu0
        %v4313 = vadd.f32 %v4120, %v4312
        %v4314 = vpop.f32.mrf.mxu0
        %v4315 = vadd.f32 %v4122, %v4314
        %4316 = vmatprep.mubr.bf16.mxu0 0
        %4317 = vmatmul.mubr.bf16.gmra.mxu0 %v1006
        %v4318 = vpop.f32.mrf.mxu0
        %v4319 = vadd.f32 %v4126, %v4318
        %v4320 = vpop.f32.mrf.mxu0
        %v4321 = vadd.f32 %v4128, %v4320
        %v4322 = vpop.f32.mrf.mxu0
        %v4323 = vadd.f32 %v4130, %v4322
        %v4324 = vpop.f32.mrf.mxu0
        %v4325 = vadd.f32 %v4132, %v4324
        %4326 = vmatprep.mubr.bf16.mxu0 0
        %4327 = vmatmul.mubr.bf16.gmra.mxu0 %v1009
        %v4328 = vpop.f32.mrf.mxu0
        %v4329 = vadd.f32 %v4136, %v4328
        %v4330 = vpop.f32.mrf.mxu0
        %v4331 = vadd.f32 %v4138, %v4330
        %v4332 = vpop.f32.mrf.mxu0
        %v4333 = vadd.f32 %v4140, %v4332
        %v4334 = vpop.f32.mrf.mxu0
        %v4335 = vadd.f32 %v4142, %v4334
        %4336 = vmatprep.mubr.bf16.mxu0 0
        %4337 = vmatmul.mubr.bf16.gmra.mxu0 %v1012
        %v4338 = vpop.f32.mrf.mxu0
        %v4339 = vadd.f32 %v4146, %v4338
        %v4340 = vpop.f32.mrf.mxu0
        %v4341 = vadd.f32 %v4148, %v4340
        %v4342 = vpop.f32.mrf.mxu0
        %v4343 = vadd.f32 %v4150, %v4342
        %v4344 = vpop.f32.mrf.mxu0
        %v4345 = vadd.f32 %v4152, %v4344
        %4346 = vmatprep.mubr.bf16.mxu0 0
        %4347 = vmatmul.mubr.bf16.gmra.mxu0 %v1015
        %v4348 = vpop.f32.mrf.mxu0
        %v4349 = vadd.f32 %v4156, %v4348
        %v4350 = vpop.f32.mrf.mxu0
        %v4351 = vadd.f32 %v4158, %v4350
        %v4352 = vpop.f32.mrf.mxu0
        %v4353 = vadd.f32 %v4160, %v4352
        %v4354 = vpop.f32.mrf.mxu0
        %v4355 = vadd.f32 %v4162, %v4354
        %4356 = vmatprep.mubr.bf16.mxu0 0
        %4357 = vmatmul.mubr.bf16.gmra.mxu0 %v1018
        %v4358 = vpop.f32.mrf.mxu0
        %v4359 = vadd.f32 %v4166, %v4358
        %v4360 = vpop.f32.mrf.mxu0
        %v4361 = vadd.f32 %v4168, %v4360
        %v4362 = vpop.f32.mrf.mxu0
        %v4363 = vadd.f32 %v4170, %v4362
        %v4364 = vpop.f32.mrf.mxu0
        %v4365 = vadd.f32 %v4172, %v4364
        %4366 = vmatprep.mubr.bf16.mxu0 0
        %4367 = vmatmul.mubr.bf16.gmra.mxu0 %v1021
        %v4368 = vpop.f32.mrf.mxu0
        %v4369 = vadd.f32 %v4176, %v4368
        %v4370 = vpop.f32.mrf.mxu0
        %v4371 = vadd.f32 %v4178, %v4370
        %v4372 = vpop.f32.mrf.mxu0
        %v4373 = vadd.f32 %v4180, %v4372
        %v4374 = vpop.f32.mrf.mxu0
        %v4375 = vadd.f32 %v4182, %v4374
        %4376 = vmatprep.mubr.bf16.mxu0 0
        %4377 = vmatmul.mubr.bf16.gmra.mxu0 %v1024
        %v4378 = vpop.f32.mrf.mxu0
        %v4379 = vadd.f32 %v4186, %v4378
        %v4380 = vpop.f32.mrf.mxu0
        %v4381 = vadd.f32 %v4188, %v4380
        %v4382 = vpop.f32.mrf.mxu0
        %v4383 = vadd.f32 %v4190, %v4382
        %v4384 = vpop.f32.mrf.mxu0
        %v4385 = vadd.f32 %v4192, %v4384
        %4386 = vmatprep.mubr.bf16.mxu0 0
        %4387 = vmatmul.mubr.bf16.gmra.mxu0 %v1027
        %v4388 = vpop.f32.mrf.mxu0
        %v4389 = vadd.f32 %v4196, %v4388
        %v4390 = vpop.f32.mrf.mxu0
        %v4391 = vadd.f32 %v4198, %v4390
        %v4392 = vpop.f32.mrf.mxu0
        %v4393 = vadd.f32 %v4200, %v4392
        %v4394 = vpop.f32.mrf.mxu0
        %v4395 = vadd.f32 %v4202, %v4394
        %4396 = vmatprep.mubr.bf16.mxu0 0
        %4397 = vmatmul.mubr.bf16.gmra.mxu0 %v1030
        %v4398 = vpop.f32.mrf.mxu0
        %v4399 = vadd.f32 %v4206, %v4398
        %v4400 = vpop.f32.mrf.mxu0
        %v4401 = vadd.f32 %v4208, %v4400
        %v4402 = vpop.f32.mrf.mxu0
        %v4403 = vadd.f32 %v4210, %v4402
        %v4404 = vpop.f32.mrf.mxu0
        %v4405 = vadd.f32 %v4212, %v4404
        %4406 = vmatprep.mubr.bf16.mxu0 0
        %4407 = vmatmul.mubr.bf16.gmra.mxu0 %v1033
        %v4408 = vpop.f32.mrf.mxu0
        %v4409 = vadd.f32 %v4216, %v4408
        %v4410 = vpop.f32.mrf.mxu0
        %v4411 = vadd.f32 %v4218, %v4410
        %v4412 = vpop.f32.mrf.mxu0
        %v4413 = vadd.f32 %v4220, %v4412
        %v4414 = vpop.f32.mrf.mxu0
        %v4415 = vadd.f32 %v4222, %v4414
        %4416 = vmatprep.mubr.bf16.mxu0 0
        %4417 = vmatmul.mubr.bf16.gmra.mxu0 %v1036
        %v4418 = vpop.f32.mrf.mxu0
        %v4419 = vadd.f32 %v4226, %v4418
        %v4420 = vpop.f32.mrf.mxu0
        %v4421 = vadd.f32 %v4228, %v4420
        %v4422 = vpop.f32.mrf.mxu0
        %v4423 = vadd.f32 %v4230, %v4422
        %v4424 = vpop.f32.mrf.mxu0
        %v4425 = vadd.f32 %v4232, %v4424
        %4426 = vmatprep.mubr.bf16.mxu0 0
        %4427 = vmatmul.mubr.bf16.gmra.mxu0 %v1039
        %v4428 = vpop.f32.mrf.mxu0
        %v4429 = vadd.f32 %v4236, %v4428
        %v4430 = vpop.f32.mrf.mxu0
        %v4431 = vadd.f32 %v4238, %v4430
        %v4432 = vpop.f32.mrf.mxu0
        %v4433 = vadd.f32 %v4240, %v4432
        %v4434 = vpop.f32.mrf.mxu0
        %v4435 = vadd.f32 %v4242, %v4434
        %4436 = vmatprep.mubr.bf16.mxu0 0
        %4437 = vmatmul.mubr.bf16.gmra.mxu0 %v1042
        %v4438 = vpop.f32.mrf.mxu0
        %v4439 = vadd.f32 %v4246, %v4438
        %v4440 = vpop.f32.mrf.mxu0
        %v4441 = vadd.f32 %v4248, %v4440
        %v4442 = vpop.f32.mrf.mxu0
        %v4443 = vadd.f32 %v4250, %v4442
        %v4444 = vpop.f32.mrf.mxu0
        %v4445 = vadd.f32 %v4252, %v4444
        %4446 = vmatprep.mubr.bf16.mxu0 0
        %4447 = vmatmul.mubr.bf16.gmra.mxu0 %v1045
        %v4448 = vpop.f32.mrf.mxu0
        %v4449 = vadd.f32 %v4256, %v4448
        %v4450 = vpop.f32.mrf.mxu0
        %v4451 = vadd.f32 %v4258, %v4450
        %v4452 = vpop.f32.mrf.mxu0
        %v4453 = vadd.f32 %v4260, %v4452
        %v4454 = vpop.f32.mrf.mxu0
        %v4455 = vadd.f32 %v4262, %v4454
        %4456 = vmatprep.mubr.bf16.mxu0 0
        %4457 = vmatmul.mubr.bf16.gmra.mxu0 %v1048
        %v4458 = vpop.f32.mrf.mxu0
        %v4459 = vadd.f32 %v4266, %v4458
        %v4460 = vpop.f32.mrf.mxu0
        %v4461 = vadd.f32 %v4268, %v4460
        %v4462 = vpop.f32.mrf.mxu0
        %v4463 = vadd.f32 %v4270, %v4462
        %v4464 = vpop.f32.mrf.mxu0
        %v4465 = vadd.f32 %v4272, %v4464
        %4466 = vdwg.mxu0
        %4467 = vmatprep.subr.bf16.mxu0 %v2056
        %4468 = vmatpush1.bf16.msra.mxu0 %v2055
        %4469 = vmatprep.subr.bf16.mxu0 %v2044
        %4470 = vmatpush1.bf16.msra.mxu0 %v2043
        %4471 = vmatprep.subr.bf16.mxu0 %v2032
        %4472 = vmatpush1.bf16.msra.mxu0 %v2031
        %4473 = vmatprep.subr.bf16.mxu0 %v2020
        %4474 = vmatpush1.bf16.msra.mxu0 %v2019
        %4475 = vmatprep.subr.bf16.mxu0 %v2008
        %4476 = vmatpush1.bf16.msra.mxu0 %v2007
        %4477 = vmatprep.subr.bf16.mxu0 %v1996
        %4478 = vmatpush1.bf16.msra.mxu0 %v1995
        %4479 = vmatprep.subr.bf16.mxu0 %v1984
        %4480 = vmatpush1.bf16.msra.mxu0 %v1983
        %4481 = vmatprep.subr.bf16.mxu0 %v1972
        %4482 = vmatpush1.bf16.msra.mxu0 %v1971
        %4483 = vmatprep.subr.bf16.mxu0 %v2152
        %4484 = vmatpush2.bf16.msra.mxu0 %v2151
        %4485 = vmatprep.subr.bf16.mxu0 %v2140
        %4486 = vmatpush2.bf16.msra.mxu0 %v2139
        %4487 = vmatprep.subr.bf16.mxu0 %v2128
        %4488 = vmatpush2.bf16.msra.mxu0 %v2127
        %4489 = vmatprep.subr.bf16.mxu0 %v2116
        %4490 = vmatpush2.bf16.msra.mxu0 %v2115
        %4491 = vmatprep.subr.bf16.mxu0 %v2104
        %4492 = vmatpush2.bf16.msra.mxu0 %v2103
        %4493 = vmatprep.subr.bf16.mxu0 %v2092
        %4494 = vmatpush2.bf16.msra.mxu0 %v2091
        %4495 = vmatprep.subr.bf16.mxu0 %v2080
        %4496 = vmatpush2.bf16.msra.mxu0 %v2079
        %4497 = vmatprep.subr.bf16.mxu0 %v2068
        %4498 = vmatpush2.bf16.msra.mxu0 %v2067
        %4499 = vmatprep.mubr.bf16.mxu0 %v1002
        %4500 = vmatmul.mubr.bf16.gmra.mxu0 %v1001
        %v4501 = vpop.f32.mrf.mxu0
        %v4502 = vadd.f32 %v824, %v4501
        %v4503 = vpop.f32.mrf.mxu0
        %v4504 = vadd.f32 %v828, %v4503
        %v4505 = vpop.f32.mrf.mxu0
        %v4506 = vadd.f32 %v824, %v4505
        %v4507 = vpop.f32.mrf.mxu0
        %v4508 = vadd.f32 %v828, %v4507
        %4509 = vmatprep.mubr.bf16.mxu0 %v1005
        %4510 = vmatmul.mubr.bf16.gmra.mxu0 %v1004
        %v4511 = vpop.f32.mrf.mxu0
        %v4512 = vadd.f32 %v824, %v4511
        %v4513 = vpop.f32.mrf.mxu0
        %v4514 = vadd.f32 %v828, %v4513
        %v4515 = vpop.f32.mrf.mxu0
        %v4516 = vadd.f32 %v824, %v4515
        %v4517 = vpop.f32.mrf.mxu0
        %v4518 = vadd.f32 %v828, %v4517
        %4519 = vmatprep.mubr.bf16.mxu0 %v1008
        %4520 = vmatmul.mubr.bf16.gmra.mxu0 %v1007
        %v4521 = vpop.f32.mrf.mxu0
        %v4522 = vadd.f32 %v824, %v4521
        %v4523 = vpop.f32.mrf.mxu0
        %v4524 = vadd.f32 %v828, %v4523
        %v4525 = vpop.f32.mrf.mxu0
        %v4526 = vadd.f32 %v824, %v4525
        %v4527 = vpop.f32.mrf.mxu0
        %v4528 = vadd.f32 %v828, %v4527
        %4529 = vmatprep.mubr.bf16.mxu0 %v1011
        %4530 = vmatmul.mubr.bf16.gmra.mxu0 %v1010
        %v4531 = vpop.f32.mrf.mxu0
        %v4532 = vadd.f32 %v824, %v4531
        %v4533 = vpop.f32.mrf.mxu0
        %v4534 = vadd.f32 %v828, %v4533
        %v4535 = vpop.f32.mrf.mxu0
        %v4536 = vadd.f32 %v824, %v4535
        %v4537 = vpop.f32.mrf.mxu0
        %v4538 = vadd.f32 %v828, %v4537
        %4539 = vmatprep.mubr.bf16.mxu0 %v1014
        %4540 = vmatmul.mubr.bf16.gmra.mxu0 %v1013
        %v4541 = vpop.f32.mrf.mxu0
        %v4542 = vadd.f32 %v824, %v4541
        %v4543 = vpop.f32.mrf.mxu0
        %v4544 = vadd.f32 %v828, %v4543
        %v4545 = vpop.f32.mrf.mxu0
        %v4546 = vadd.f32 %v824, %v4545
        %v4547 = vpop.f32.mrf.mxu0
        %v4548 = vadd.f32 %v828, %v4547
        %4549 = vmatprep.mubr.bf16.mxu0 %v1017
        %4550 = vmatmul.mubr.bf16.gmra.mxu0 %v1016
        %v4551 = vpop.f32.mrf.mxu0
        %v4552 = vadd.f32 %v824, %v4551
        %v4553 = vpop.f32.mrf.mxu0
        %v4554 = vadd.f32 %v828, %v4553
        %v4555 = vpop.f32.mrf.mxu0
        %v4556 = vadd.f32 %v824, %v4555
        %v4557 = vpop.f32.mrf.mxu0
        %v4558 = vadd.f32 %v828, %v4557
        %4559 = vmatprep.mubr.bf16.mxu0 %v1020
        %4560 = vmatmul.mubr.bf16.gmra.mxu0 %v1019
        %v4561 = vpop.f32.mrf.mxu0
        %v4562 = vadd.f32 %v824, %v4561
        %v4563 = vpop.f32.mrf.mxu0
        %v4564 = vadd.f32 %v828, %v4563
        %v4565 = vpop.f32.mrf.mxu0
        %v4566 = vadd.f32 %v824, %v4565
        %v4567 = vpop.f32.mrf.mxu0
        %v4568 = vadd.f32 %v828, %v4567
        %4569 = vmatprep.mubr.bf16.mxu0 %v1023
        %4570 = vmatmul.mubr.bf16.gmra.mxu0 %v1022
        %v4571 = vpop.f32.mrf.mxu0
        %v4572 = vadd.f32 %v824, %v4571
        %v4573 = vpop.f32.mrf.mxu0
        %v4574 = vadd.f32 %v828, %v4573
        %v4575 = vpop.f32.mrf.mxu0
        %v4576 = vadd.f32 %v824, %v4575
        %v4577 = vpop.f32.mrf.mxu0
        %v4578 = vadd.f32 %v828, %v4577
        %4579 = vmatprep.mubr.bf16.mxu0 %v1026
        %4580 = vmatmul.mubr.bf16.gmra.mxu0 %v1025
        %v4581 = vpop.f32.mrf.mxu0
        %v4582 = vadd.f32 %v824, %v4581
        %v4583 = vpop.f32.mrf.mxu0
        %v4584 = vadd.f32 %v828, %v4583
        %v4585 = vpop.f32.mrf.mxu0
        %v4586 = vadd.f32 %v824, %v4585
        %v4587 = vpop.f32.mrf.mxu0
        %v4588 = vadd.f32 %v828, %v4587
        %4589 = vmatprep.mubr.bf16.mxu0 %v1029
        %4590 = vmatmul.mubr.bf16.gmra.mxu0 %v1028
        %v4591 = vpop.f32.mrf.mxu0
        %v4592 = vadd.f32 %v824, %v4591
        %v4593 = vpop.f32.mrf.mxu0
        %v4594 = vadd.f32 %v828, %v4593
        %v4595 = vpop.f32.mrf.mxu0
        %v4596 = vadd.f32 %v824, %v4595
        %v4597 = vpop.f32.mrf.mxu0
        %v4598 = vadd.f32 %v828, %v4597
        %4599 = vmatprep.mubr.bf16.mxu0 %v1032
        %4600 = vmatmul.mubr.bf16.gmra.mxu0 %v1031
        %v4601 = vpop.f32.mrf.mxu0
        %v4602 = vadd.f32 %v824, %v4601
        %v4603 = vpop.f32.mrf.mxu0
        %v4604 = vadd.f32 %v828, %v4603
        %v4605 = vpop.f32.mrf.mxu0
        %v4606 = vadd.f32 %v824, %v4605
        %v4607 = vpop.f32.mrf.mxu0
        %v4608 = vadd.f32 %v828, %v4607
        %4609 = vmatprep.mubr.bf16.mxu0 %v1035
        %4610 = vmatmul.mubr.bf16.gmra.mxu0 %v1034
        %v4611 = vpop.f32.mrf.mxu0
        %v4612 = vadd.f32 %v824, %v4611
        %v4613 = vpop.f32.mrf.mxu0
        %v4614 = vadd.f32 %v828, %v4613
        %v4615 = vpop.f32.mrf.mxu0
        %v4616 = vadd.f32 %v824, %v4615
        %v4617 = vpop.f32.mrf.mxu0
        %v4618 = vadd.f32 %v828, %v4617
        %4619 = vmatprep.mubr.bf16.mxu0 %v1038
        %4620 = vmatmul.mubr.bf16.gmra.mxu0 %v1037
        %v4621 = vpop.f32.mrf.mxu0
        %v4622 = vadd.f32 %v824, %v4621
        %v4623 = vpop.f32.mrf.mxu0
        %v4624 = vadd.f32 %v828, %v4623
        %v4625 = vpop.f32.mrf.mxu0
        %v4626 = vadd.f32 %v824, %v4625
        %v4627 = vpop.f32.mrf.mxu0
        %v4628 = vadd.f32 %v828, %v4627
        %4629 = vmatprep.mubr.bf16.mxu0 %v1041
        %4630 = vmatmul.mubr.bf16.gmra.mxu0 %v1040
        %v4631 = vpop.f32.mrf.mxu0
        %v4632 = vadd.f32 %v824, %v4631
        %v4633 = vpop.f32.mrf.mxu0
        %v4634 = vadd.f32 %v828, %v4633
        %v4635 = vpop.f32.mrf.mxu0
        %v4636 = vadd.f32 %v824, %v4635
        %v4637 = vpop.f32.mrf.mxu0
        %v4638 = vadd.f32 %v828, %v4637
        %4639 = vmatprep.mubr.bf16.mxu0 %v1044
        %4640 = vmatmul.mubr.bf16.gmra.mxu0 %v1043
        %v4641 = vpop.f32.mrf.mxu0
        %v4642 = vadd.f32 %v824, %v4641
        %v4643 = vpop.f32.mrf.mxu0
        %v4644 = vadd.f32 %v828, %v4643
        %v4645 = vpop.f32.mrf.mxu0
        %v4646 = vadd.f32 %v824, %v4645
        %v4647 = vpop.f32.mrf.mxu0
        %v4648 = vadd.f32 %v828, %v4647
        %4649 = vmatprep.mubr.bf16.mxu0 %v1047
        %4650 = vmatmul.mubr.bf16.gmra.mxu0 %v1046
        %v4651 = vpop.f32.mrf.mxu0
        %v4652 = vadd.f32 %v824, %v4651
        %v4653 = vpop.f32.mrf.mxu0
        %v4654 = vadd.f32 %v828, %v4653
        %v4655 = vpop.f32.mrf.mxu0
        %v4656 = vadd.f32 %v824, %v4655
        %v4657 = vpop.f32.mrf.mxu0
        %v4658 = vadd.f32 %v828, %v4657
        %4659 = vdwg.mxu0
        %4660 = vmatprep.subr.bf16.mxu0 %v2248
        %4661 = vmatpush1.bf16.msra.mxu0 %v2247
        %4662 = vmatprep.subr.bf16.mxu0 %v2236
        %4663 = vmatpush1.bf16.msra.mxu0 %v2235
        %4664 = vmatprep.subr.bf16.mxu0 %v2224
        %4665 = vmatpush1.bf16.msra.mxu0 %v2223
        %4666 = vmatprep.subr.bf16.mxu0 %v2212
        %4667 = vmatpush1.bf16.msra.mxu0 %v2211
        %4668 = vmatprep.subr.bf16.mxu0 %v2200
        %4669 = vmatpush1.bf16.msra.mxu0 %v2199
        %4670 = vmatprep.subr.bf16.mxu0 %v2188
        %4671 = vmatpush1.bf16.msra.mxu0 %v2187
        %4672 = vmatprep.subr.bf16.mxu0 %v2176
        %4673 = vmatpush1.bf16.msra.mxu0 %v2175
        %4674 = vmatprep.subr.bf16.mxu0 %v2164
        %4675 = vmatpush1.bf16.msra.mxu0 %v2163
        %4676 = vmatprep.subr.bf16.mxu0 0
        %4677 = vmatpush2.bf16.msra.mxu0 0
        %4678 = vmatprep.subr.bf16.mxu0 0
        %4679 = vmatpush2.bf16.msra.mxu0 0
        %4680 = vmatprep.subr.bf16.mxu0 0
        %4681 = vmatpush2.bf16.msra.mxu0 0
        %4682 = vmatprep.subr.bf16.mxu0 0
        %4683 = vmatpush2.bf16.msra.mxu0 0
        %4684 = vmatprep.subr.bf16.mxu0 0
        %4685 = vmatpush2.bf16.msra.mxu0 0
        %4686 = vmatprep.subr.bf16.mxu0 0
        %4687 = vmatpush2.bf16.msra.mxu0 0
        %4688 = vmatprep.subr.bf16.mxu0 0
        %4689 = vmatpush2.bf16.msra.mxu0 0
        %4690 = vmatprep.subr.bf16.mxu0 0
        %4691 = vmatpush2.bf16.msra.mxu0 0
        %4692 = vmatprep.mubr.bf16.mxu0 0
        %4693 = vmatmul.mubr.bf16.gmra.mxu0 %v1003
        %v4694 = vpop.f32.mrf.mxu0
        %v4695 = vadd.f32 %v4502, %v4694
        %v4696 = vpop.f32.mrf.mxu0
        %v4697 = vadd.f32 %v4504, %v4696
        %v4698 = vpop.f32.mrf.mxu0
        %v4699 = vadd.f32 %v4506, %v4698
        %v4700 = vpop.f32.mrf.mxu0
        %v4701 = vadd.f32 %v4508, %v4700
        %4702 = vmatprep.mubr.bf16.mxu0 0
        %4703 = vmatmul.mubr.bf16.gmra.mxu0 %v1006
        %v4704 = vpop.f32.mrf.mxu0
        %v4705 = vadd.f32 %v4512, %v4704
        %v4706 = vpop.f32.mrf.mxu0
        %v4707 = vadd.f32 %v4514, %v4706
        %v4708 = vpop.f32.mrf.mxu0
        %v4709 = vadd.f32 %v4516, %v4708
        %v4710 = vpop.f32.mrf.mxu0
        %v4711 = vadd.f32 %v4518, %v4710
        %4712 = vmatprep.mubr.bf16.mxu0 0
        %4713 = vmatmul.mubr.bf16.gmra.mxu0 %v1009
        %v4714 = vpop.f32.mrf.mxu0
        %v4715 = vadd.f32 %v4522, %v4714
        %v4716 = vpop.f32.mrf.mxu0
        %v4717 = vadd.f32 %v4524, %v4716
        %v4718 = vpop.f32.mrf.mxu0
        %v4719 = vadd.f32 %v4526, %v4718
        %v4720 = vpop.f32.mrf.mxu0
        %v4721 = vadd.f32 %v4528, %v4720
        %4722 = vmatprep.mubr.bf16.mxu0 0
        %4723 = vmatmul.mubr.bf16.gmra.mxu0 %v1012
        %v4724 = vpop.f32.mrf.mxu0
        %v4725 = vadd.f32 %v4532, %v4724
        %v4726 = vpop.f32.mrf.mxu0
        %v4727 = vadd.f32 %v4534, %v4726
        %v4728 = vpop.f32.mrf.mxu0
        %v4729 = vadd.f32 %v4536, %v4728
        %v4730 = vpop.f32.mrf.mxu0
        %v4731 = vadd.f32 %v4538, %v4730
        %4732 = vmatprep.mubr.bf16.mxu0 0
        %4733 = vmatmul.mubr.bf16.gmra.mxu0 %v1015
        %v4734 = vpop.f32.mrf.mxu0
        %v4735 = vadd.f32 %v4542, %v4734
        %v4736 = vpop.f32.mrf.mxu0
        %v4737 = vadd.f32 %v4544, %v4736
        %v4738 = vpop.f32.mrf.mxu0
        %v4739 = vadd.f32 %v4546, %v4738
        %v4740 = vpop.f32.mrf.mxu0
        %v4741 = vadd.f32 %v4548, %v4740
        %4742 = vmatprep.mubr.bf16.mxu0 0
        %4743 = vmatmul.mubr.bf16.gmra.mxu0 %v1018
        %v4744 = vpop.f32.mrf.mxu0
        %v4745 = vadd.f32 %v4552, %v4744
        %v4746 = vpop.f32.mrf.mxu0
        %v4747 = vadd.f32 %v4554, %v4746
        %v4748 = vpop.f32.mrf.mxu0
        %v4749 = vadd.f32 %v4556, %v4748
        %v4750 = vpop.f32.mrf.mxu0
        %v4751 = vadd.f32 %v4558, %v4750
        %4752 = vmatprep.mubr.bf16.mxu0 0
        %4753 = vmatmul.mubr.bf16.gmra.mxu0 %v1021
        %v4754 = vpop.f32.mrf.mxu0
        %v4755 = vadd.f32 %v4562, %v4754
        %v4756 = vpop.f32.mrf.mxu0
        %v4757 = vadd.f32 %v4564, %v4756
        %v4758 = vpop.f32.mrf.mxu0
        %v4759 = vadd.f32 %v4566, %v4758
        %v4760 = vpop.f32.mrf.mxu0
        %v4761 = vadd.f32 %v4568, %v4760
        %4762 = vmatprep.mubr.bf16.mxu0 0
        %4763 = vmatmul.mubr.bf16.gmra.mxu0 %v1024
        %v4764 = vpop.f32.mrf.mxu0
        %v4765 = vadd.f32 %v4572, %v4764
        %v4766 = vpop.f32.mrf.mxu0
        %v4767 = vadd.f32 %v4574, %v4766
        %v4768 = vpop.f32.mrf.mxu0
        %v4769 = vadd.f32 %v4576, %v4768
        %v4770 = vpop.f32.mrf.mxu0
        %v4771 = vadd.f32 %v4578, %v4770
        %4772 = vmatprep.mubr.bf16.mxu0 0
        %4773 = vmatmul.mubr.bf16.gmra.mxu0 %v1027
        %v4774 = vpop.f32.mrf.mxu0
        %v4775 = vadd.f32 %v4582, %v4774
        %v4776 = vpop.f32.mrf.mxu0
        %v4777 = vadd.f32 %v4584, %v4776
        %v4778 = vpop.f32.mrf.mxu0
        %v4779 = vadd.f32 %v4586, %v4778
        %v4780 = vpop.f32.mrf.mxu0
        %v4781 = vadd.f32 %v4588, %v4780
        %4782 = vmatprep.mubr.bf16.mxu0 0
        %4783 = vmatmul.mubr.bf16.gmra.mxu0 %v1030
        %v4784 = vpop.f32.mrf.mxu0
        %v4785 = vadd.f32 %v4592, %v4784
        %v4786 = vpop.f32.mrf.mxu0
        %v4787 = vadd.f32 %v4594, %v4786
        %v4788 = vpop.f32.mrf.mxu0
        %v4789 = vadd.f32 %v4596, %v4788
        %v4790 = vpop.f32.mrf.mxu0
        %v4791 = vadd.f32 %v4598, %v4790
        %4792 = vmatprep.mubr.bf16.mxu0 0
        %4793 = vmatmul.mubr.bf16.gmra.mxu0 %v1033
        %v4794 = vpop.f32.mrf.mxu0
        %v4795 = vadd.f32 %v4602, %v4794
        %v4796 = vpop.f32.mrf.mxu0
        %v4797 = vadd.f32 %v4604, %v4796
        %v4798 = vpop.f32.mrf.mxu0
        %v4799 = vadd.f32 %v4606, %v4798
        %v4800 = vpop.f32.mrf.mxu0
        %v4801 = vadd.f32 %v4608, %v4800
        %4802 = vmatprep.mubr.bf16.mxu0 0
        %4803 = vmatmul.mubr.bf16.gmra.mxu0 %v1036
        %v4804 = vpop.f32.mrf.mxu0
        %v4805 = vadd.f32 %v4612, %v4804
        %v4806 = vpop.f32.mrf.mxu0
        %v4807 = vadd.f32 %v4614, %v4806
        %v4808 = vpop.f32.mrf.mxu0
        %v4809 = vadd.f32 %v4616, %v4808
        %v4810 = vpop.f32.mrf.mxu0
        %v4811 = vadd.f32 %v4618, %v4810
        %4812 = vmatprep.mubr.bf16.mxu0 0
        %4813 = vmatmul.mubr.bf16.gmra.mxu0 %v1039
        %v4814 = vpop.f32.mrf.mxu0
        %v4815 = vadd.f32 %v4622, %v4814
        %v4816 = vpop.f32.mrf.mxu0
        %v4817 = vadd.f32 %v4624, %v4816
        %v4818 = vpop.f32.mrf.mxu0
        %v4819 = vadd.f32 %v4626, %v4818
        %v4820 = vpop.f32.mrf.mxu0
        %v4821 = vadd.f32 %v4628, %v4820
        %4822 = vmatprep.mubr.bf16.mxu0 0
        %4823 = vmatmul.mubr.bf16.gmra.mxu0 %v1042
        %v4824 = vpop.f32.mrf.mxu0
        %v4825 = vadd.f32 %v4632, %v4824
        %v4826 = vpop.f32.mrf.mxu0
        %v4827 = vadd.f32 %v4634, %v4826
        %v4828 = vpop.f32.mrf.mxu0
        %v4829 = vadd.f32 %v4636, %v4828
        %v4830 = vpop.f32.mrf.mxu0
        %v4831 = vadd.f32 %v4638, %v4830
        %4832 = vmatprep.mubr.bf16.mxu0 0
        %4833 = vmatmul.mubr.bf16.gmra.mxu0 %v1045
        %v4834 = vpop.f32.mrf.mxu0
        %v4835 = vadd.f32 %v4642, %v4834
        %v4836 = vpop.f32.mrf.mxu0
        %v4837 = vadd.f32 %v4644, %v4836
        %v4838 = vpop.f32.mrf.mxu0
        %v4839 = vadd.f32 %v4646, %v4838
        %v4840 = vpop.f32.mrf.mxu0
        %v4841 = vadd.f32 %v4648, %v4840
        %4842 = vmatprep.mubr.bf16.mxu0 0
        %4843 = vmatmul.mubr.bf16.gmra.mxu0 %v1048
        %v4844 = vpop.f32.mrf.mxu0
        %v4845 = vadd.f32 %v4652, %v4844
        %v4846 = vpop.f32.mrf.mxu0
        %v4847 = vadd.f32 %v4654, %v4846
        %v4848 = vpop.f32.mrf.mxu0
        %v4849 = vadd.f32 %v4656, %v4848
        %v4850 = vpop.f32.mrf.mxu0
        %v4851 = vadd.f32 %v4658, %v4850
        %4852 = vdwg.mxu0
        %v4853 = vmax.f32 %v2765, 0.0
        %v4854 = vmax.f32 %v2767, 0.0
        %v4855 = vmax.f32 %v3151, 0.0
        %v4856 = vmax.f32 %v3153, 0.0
        %v4857 = vmax.f32 %v3537, 0.0
        %v4858 = vmax.f32 %v3539, 0.0
        %v4859 = vmax.f32 %v3923, 0.0
        %v4860 = vmax.f32 %v3925, 0.0
        %v4861 = vmax.f32 %v4309, 0.0
        %v4862 = vmax.f32 %v4311, 0.0
        %v4863 = vmax.f32 %v4695, 0.0
        %v4864 = vmax.f32 %v4697, 0.0
        %v4865 = vmax.f32 %v2769, 0.0
        %v4866 = vmax.f32 %v2771, 0.0
        %v4867 = vmax.f32 %v3155, 0.0
        %v4868 = vmax.f32 %v3157, 0.0
        %v4869 = vmax.f32 %v3541, 0.0
        %v4870 = vmax.f32 %v3543, 0.0
        %v4871 = vmax.f32 %v3927, 0.0
        %v4872 = vmax.f32 %v3929, 0.0
        %v4873 = vmax.f32 %v4313, 0.0
        %v4874 = vmax.f32 %v4315, 0.0
        %v4875 = vmax.f32 %v4699, 0.0
        %v4876 = vmax.f32 %v4701, 0.0
        %v4877 = vmax.f32 %v2775, 0.0
        %v4878 = vmax.f32 %v2777, 0.0
        %v4879 = vmax.f32 %v3161, 0.0
        %v4880 = vmax.f32 %v3163, 0.0
        %v4881 = vmax.f32 %v3547, 0.0
        %v4882 = vmax.f32 %v3549, 0.0
        %v4883 = vmax.f32 %v3933, 0.0
        %v4884 = vmax.f32 %v3935, 0.0
        %v4885 = vmax.f32 %v4319, 0.0
        %v4886 = vmax.f32 %v4321, 0.0
        %v4887 = vmax.f32 %v4705, 0.0
        %v4888 = vmax.f32 %v4707, 0.0
        %v4889 = vmax.f32 %v2779, 0.0
        %v4890 = vmax.f32 %v2781, 0.0
        %v4891 = vmax.f32 %v3165, 0.0
        %v4892 = vmax.f32 %v3167, 0.0
        %v4893 = vmax.f32 %v3551, 0.0
        %v4894 = vmax.f32 %v3553, 0.0
        %v4895 = vmax.f32 %v3937, 0.0
        %v4896 = vmax.f32 %v3939, 0.0
        %v4897 = vmax.f32 %v4323, 0.0
        %v4898 = vmax.f32 %v4325, 0.0
        %v4899 = vmax.f32 %v4709, 0.0
        %v4900 = vmax.f32 %v4711, 0.0
        %v4901 = vmax.f32 %v2785, 0.0
        %v4902 = vmax.f32 %v2787, 0.0
        %v4903 = vmax.f32 %v3171, 0.0
        %v4904 = vmax.f32 %v3173, 0.0
        %v4905 = vmax.f32 %v3557, 0.0
        %v4906 = vmax.f32 %v3559, 0.0
        %v4907 = vmax.f32 %v3943, 0.0
        %v4908 = vmax.f32 %v3945, 0.0
        %v4909 = vmax.f32 %v4329, 0.0
        %v4910 = vmax.f32 %v4331, 0.0
        %v4911 = vmax.f32 %v4715, 0.0
        %v4912 = vmax.f32 %v4717, 0.0
        %v4913 = vmax.f32 %v2789, 0.0
        %v4914 = vmax.f32 %v2791, 0.0
        %v4915 = vmax.f32 %v3175, 0.0
        %v4916 = vmax.f32 %v3177, 0.0
        %v4917 = vmax.f32 %v3561, 0.0
        %v4918 = vmax.f32 %v3563, 0.0
        %v4919 = vmax.f32 %v3947, 0.0
        %v4920 = vmax.f32 %v3949, 0.0
        %v4921 = vmax.f32 %v4333, 0.0
        %v4922 = vmax.f32 %v4335, 0.0
        %v4923 = vmax.f32 %v4719, 0.0
        %v4924 = vmax.f32 %v4721, 0.0
        %v4925 = vmax.f32 %v2795, 0.0
        %v4926 = vmax.f32 %v2797, 0.0
        %v4927 = vmax.f32 %v3181, 0.0
        %v4928 = vmax.f32 %v3183, 0.0
        %v4929 = vmax.f32 %v3567, 0.0
        %v4930 = vmax.f32 %v3569, 0.0
        %v4931 = vmax.f32 %v3953, 0.0
        %v4932 = vmax.f32 %v3955, 0.0
        %v4933 = vmax.f32 %v4339, 0.0
        %v4934 = vmax.f32 %v4341, 0.0
        %v4935 = vmax.f32 %v4725, 0.0
        %v4936 = vmax.f32 %v4727, 0.0
        %v4937 = vmax.f32 %v2799, 0.0
        %v4938 = vmax.f32 %v2801, 0.0
        %v4939 = vmax.f32 %v3185, 0.0
        %v4940 = vmax.f32 %v3187, 0.0
        %v4941 = vmax.f32 %v3571, 0.0
        %v4942 = vmax.f32 %v3573, 0.0
        %v4943 = vmax.f32 %v3957, 0.0
        %v4944 = vmax.f32 %v3959, 0.0
        %v4945 = vmax.f32 %v4343, 0.0
        %v4946 = vmax.f32 %v4345, 0.0
        %v4947 = vmax.f32 %v4729, 0.0
        %v4948 = vmax.f32 %v4731, 0.0
        %v4949 = vmax.f32 %v2805, 0.0
        %v4950 = vmax.f32 %v2807, 0.0
        %v4951 = vmax.f32 %v3191, 0.0
        %v4952 = vmax.f32 %v3193, 0.0
        %v4953 = vmax.f32 %v3577, 0.0
        %v4954 = vmax.f32 %v3579, 0.0
        %v4955 = vmax.f32 %v3963, 0.0
        %v4956 = vmax.f32 %v3965, 0.0
        %v4957 = vmax.f32 %v4349, 0.0
        %v4958 = vmax.f32 %v4351, 0.0
        %v4959 = vmax.f32 %v4735, 0.0
        %v4960 = vmax.f32 %v4737, 0.0
        %v4961 = vmax.f32 %v2809, 0.0
        %v4962 = vmax.f32 %v2811, 0.0
        %v4963 = vmax.f32 %v3195, 0.0
        %v4964 = vmax.f32 %v3197, 0.0
        %v4965 = vmax.f32 %v3581, 0.0
        %v4966 = vmax.f32 %v3583, 0.0
        %v4967 = vmax.f32 %v3967, 0.0
        %v4968 = vmax.f32 %v3969, 0.0
        %v4969 = vmax.f32 %v4353, 0.0
        %v4970 = vmax.f32 %v4355, 0.0
        %v4971 = vmax.f32 %v4739, 0.0
        %v4972 = vmax.f32 %v4741, 0.0
        %v4973 = vmax.f32 %v2815, 0.0
        %v4974 = vmax.f32 %v2817, 0.0
        %v4975 = vmax.f32 %v3201, 0.0
        %v4976 = vmax.f32 %v3203, 0.0
        %v4977 = vmax.f32 %v3587, 0.0
        %v4978 = vmax.f32 %v3589, 0.0
        %v4979 = vmax.f32 %v3973, 0.0
        %v4980 = vmax.f32 %v3975, 0.0
        %v4981 = vmax.f32 %v4359, 0.0
        %v4982 = vmax.f32 %v4361, 0.0
        %v4983 = vmax.f32 %v4745, 0.0
        %v4984 = vmax.f32 %v4747, 0.0
        %v4985 = vmax.f32 %v2819, 0.0
        %v4986 = vmax.f32 %v2821, 0.0
        %v4987 = vmax.f32 %v3205, 0.0
        %v4988 = vmax.f32 %v3207, 0.0
        %v4989 = vmax.f32 %v3591, 0.0
        %v4990 = vmax.f32 %v3593, 0.0
        %v4991 = vmax.f32 %v3977, 0.0
        %v4992 = vmax.f32 %v3979, 0.0
        %v4993 = vmax.f32 %v4363, 0.0
        %v4994 = vmax.f32 %v4365, 0.0
        %v4995 = vmax.f32 %v4749, 0.0
        %v4996 = vmax.f32 %v4751, 0.0
        %v4997 = vmax.f32 %v2825, 0.0
        %v4998 = vmax.f32 %v2827, 0.0
        %v4999 = vmax.f32 %v3211, 0.0
        %v5000 = vmax.f32 %v3213, 0.0
        %v5001 = vmax.f32 %v3597, 0.0
        %v5002 = vmax.f32 %v3599, 0.0
        %v5003 = vmax.f32 %v3983, 0.0
        %v5004 = vmax.f32 %v3985, 0.0
        %v5005 = vmax.f32 %v4369, 0.0
        %v5006 = vmax.f32 %v4371, 0.0
        %v5007 = vmax.f32 %v4755, 0.0
        %v5008 = vmax.f32 %v4757, 0.0
        %v5009 = vmax.f32 %v2829, 0.0
        %v5010 = vmax.f32 %v2831, 0.0
        %v5011 = vmax.f32 %v3215, 0.0
        %v5012 = vmax.f32 %v3217, 0.0
        %v5013 = vmax.f32 %v3601, 0.0
        %v5014 = vmax.f32 %v3603, 0.0
        %v5015 = vmax.f32 %v3987, 0.0
        %v5016 = vmax.f32 %v3989, 0.0
        %v5017 = vmax.f32 %v4373, 0.0
        %v5018 = vmax.f32 %v4375, 0.0
        %v5019 = vmax.f32 %v4759, 0.0
        %v5020 = vmax.f32 %v4761, 0.0
        %v5021 = vmax.f32 %v2835, 0.0
        %v5022 = vmax.f32 %v2837, 0.0
        %v5023 = vmax.f32 %v3221, 0.0
        %v5024 = vmax.f32 %v3223, 0.0
        %v5025 = vmax.f32 %v3607, 0.0
        %v5026 = vmax.f32 %v3609, 0.0
        %v5027 = vmax.f32 %v3993, 0.0
        %v5028 = vmax.f32 %v3995, 0.0
        %v5029 = vmax.f32 %v4379, 0.0
        %v5030 = vmax.f32 %v4381, 0.0
        %v5031 = vmax.f32 %v4765, 0.0
        %v5032 = vmax.f32 %v4767, 0.0
        %v5033 = vmax.f32 %v2839, 0.0
        %v5034 = vmax.f32 %v2841, 0.0
        %v5035 = vmax.f32 %v3225, 0.0
        %v5036 = vmax.f32 %v3227, 0.0
        %v5037 = vmax.f32 %v3611, 0.0
        %v5038 = vmax.f32 %v3613, 0.0
        %v5039 = vmax.f32 %v3997, 0.0
        %v5040 = vmax.f32 %v3999, 0.0
        %v5041 = vmax.f32 %v4383, 0.0
        %v5042 = vmax.f32 %v4385, 0.0
        %v5043 = vmax.f32 %v4769, 0.0
        %v5044 = vmax.f32 %v4771, 0.0
        %v5045 = vmax.f32 %v2845, 0.0
        %v5046 = vmax.f32 %v2847, 0.0
        %v5047 = vmax.f32 %v3231, 0.0
        %v5048 = vmax.f32 %v3233, 0.0
        %v5049 = vmax.f32 %v3617, 0.0
        %v5050 = vmax.f32 %v3619, 0.0
        %v5051 = vmax.f32 %v4003, 0.0
        %v5052 = vmax.f32 %v4005, 0.0
        %v5053 = vmax.f32 %v4389, 0.0
        %v5054 = vmax.f32 %v4391, 0.0
        %v5055 = vmax.f32 %v4775, 0.0
        %v5056 = vmax.f32 %v4777, 0.0
        %v5057 = vmax.f32 %v2849, 0.0
        %v5058 = vmax.f32 %v2851, 0.0
        %v5059 = vmax.f32 %v3235, 0.0
        %v5060 = vmax.f32 %v3237, 0.0
        %v5061 = vmax.f32 %v3621, 0.0
        %v5062 = vmax.f32 %v3623, 0.0
        %v5063 = vmax.f32 %v4007, 0.0
        %v5064 = vmax.f32 %v4009, 0.0
        %v5065 = vmax.f32 %v4393, 0.0
        %v5066 = vmax.f32 %v4395, 0.0
        %v5067 = vmax.f32 %v4779, 0.0
        %v5068 = vmax.f32 %v4781, 0.0
        %v5069 = vmax.f32 %v2855, 0.0
        %v5070 = vmax.f32 %v2857, 0.0
        %v5071 = vmax.f32 %v3241, 0.0
        %v5072 = vmax.f32 %v3243, 0.0
        %v5073 = vmax.f32 %v3627, 0.0
        %v5074 = vmax.f32 %v3629, 0.0
        %v5075 = vmax.f32 %v4013, 0.0
        %v5076 = vmax.f32 %v4015, 0.0
        %v5077 = vmax.f32 %v4399, 0.0
        %v5078 = vmax.f32 %v4401, 0.0
        %v5079 = vmax.f32 %v4785, 0.0
        %v5080 = vmax.f32 %v4787, 0.0
        %v5081 = vmax.f32 %v2859, 0.0
        %v5082 = vmax.f32 %v2861, 0.0
        %v5083 = vmax.f32 %v3245, 0.0
        %v5084 = vmax.f32 %v3247, 0.0
        %v5085 = vmax.f32 %v3631, 0.0
        %v5086 = vmax.f32 %v3633, 0.0
        %v5087 = vmax.f32 %v4017, 0.0
        %v5088 = vmax.f32 %v4019, 0.0
        %v5089 = vmax.f32 %v4403, 0.0
        %v5090 = vmax.f32 %v4405, 0.0
        %v5091 = vmax.f32 %v4789, 0.0
        %v5092 = vmax.f32 %v4791, 0.0
        %v5093 = vmax.f32 %v2865, 0.0
        %v5094 = vmax.f32 %v2867, 0.0
        %v5095 = vmax.f32 %v3251, 0.0
        %v5096 = vmax.f32 %v3253, 0.0
        %v5097 = vmax.f32 %v3637, 0.0
        %v5098 = vmax.f32 %v3639, 0.0
        %v5099 = vmax.f32 %v4023, 0.0
        %v5100 = vmax.f32 %v4025, 0.0
        %v5101 = vmax.f32 %v4409, 0.0
        %v5102 = vmax.f32 %v4411, 0.0
        %v5103 = vmax.f32 %v4795, 0.0
        %v5104 = vmax.f32 %v4797, 0.0
        %v5105 = vmax.f32 %v2869, 0.0
        %v5106 = vmax.f32 %v2871, 0.0
        %v5107 = vmax.f32 %v3255, 0.0
        %v5108 = vmax.f32 %v3257, 0.0
        %v5109 = vmax.f32 %v3641, 0.0
        %v5110 = vmax.f32 %v3643, 0.0
        %v5111 = vmax.f32 %v4027, 0.0
        %v5112 = vmax.f32 %v4029, 0.0
        %v5113 = vmax.f32 %v4413, 0.0
        %v5114 = vmax.f32 %v4415, 0.0
        %v5115 = vmax.f32 %v4799, 0.0
        %v5116 = vmax.f32 %v4801, 0.0
        %v5117 = vmax.f32 %v2875, 0.0
        %v5118 = vmax.f32 %v2877, 0.0
        %v5119 = vmax.f32 %v3261, 0.0
        %v5120 = vmax.f32 %v3263, 0.0
        %v5121 = vmax.f32 %v3647, 0.0
        %v5122 = vmax.f32 %v3649, 0.0
        %v5123 = vmax.f32 %v4033, 0.0
        %v5124 = vmax.f32 %v4035, 0.0
        %v5125 = vmax.f32 %v4419, 0.0
        %v5126 = vmax.f32 %v4421, 0.0
        %v5127 = vmax.f32 %v4805, 0.0
        %v5128 = vmax.f32 %v4807, 0.0
        %v5129 = vmax.f32 %v2879, 0.0
        %v5130 = vmax.f32 %v2881, 0.0
        %v5131 = vmax.f32 %v3265, 0.0
        %v5132 = vmax.f32 %v3267, 0.0
        %v5133 = vmax.f32 %v3651, 0.0
        %v5134 = vmax.f32 %v3653, 0.0
        %v5135 = vmax.f32 %v4037, 0.0
        %v5136 = vmax.f32 %v4039, 0.0
        %v5137 = vmax.f32 %v4423, 0.0
        %v5138 = vmax.f32 %v4425, 0.0
        %v5139 = vmax.f32 %v4809, 0.0
        %v5140 = vmax.f32 %v4811, 0.0
        %v5141 = vmax.f32 %v2885, 0.0
        %v5142 = vmax.f32 %v2887, 0.0
        %v5143 = vmax.f32 %v3271, 0.0
        %v5144 = vmax.f32 %v3273, 0.0
        %v5145 = vmax.f32 %v3657, 0.0
        %v5146 = vmax.f32 %v3659, 0.0
        %v5147 = vmax.f32 %v4043, 0.0
        %v5148 = vmax.f32 %v4045, 0.0
        %v5149 = vmax.f32 %v4429, 0.0
        %v5150 = vmax.f32 %v4431, 0.0
        %v5151 = vmax.f32 %v4815, 0.0
        %v5152 = vmax.f32 %v4817, 0.0
        %v5153 = vmax.f32 %v2889, 0.0
        %v5154 = vmax.f32 %v2891, 0.0
        %v5155 = vmax.f32 %v3275, 0.0
        %v5156 = vmax.f32 %v3277, 0.0
        %v5157 = vmax.f32 %v3661, 0.0
        %v5158 = vmax.f32 %v3663, 0.0
        %v5159 = vmax.f32 %v4047, 0.0
        %v5160 = vmax.f32 %v4049, 0.0
        %v5161 = vmax.f32 %v4433, 0.0
        %v5162 = vmax.f32 %v4435, 0.0
        %v5163 = vmax.f32 %v4819, 0.0
        %v5164 = vmax.f32 %v4821, 0.0
        %v5165 = vmax.f32 %v2895, 0.0
        %v5166 = vmax.f32 %v2897, 0.0
        %v5167 = vmax.f32 %v3281, 0.0
        %v5168 = vmax.f32 %v3283, 0.0
        %v5169 = vmax.f32 %v3667, 0.0
        %v5170 = vmax.f32 %v3669, 0.0
        %v5171 = vmax.f32 %v4053, 0.0
        %v5172 = vmax.f32 %v4055, 0.0
        %v5173 = vmax.f32 %v4439, 0.0
        %v5174 = vmax.f32 %v4441, 0.0
        %v5175 = vmax.f32 %v4825, 0.0
        %v5176 = vmax.f32 %v4827, 0.0
        %v5177 = vmax.f32 %v2899, 0.0
        %v5178 = vmax.f32 %v2901, 0.0
        %v5179 = vmax.f32 %v3285, 0.0
        %v5180 = vmax.f32 %v3287, 0.0
        %v5181 = vmax.f32 %v3671, 0.0
        %v5182 = vmax.f32 %v3673, 0.0
        %v5183 = vmax.f32 %v4057, 0.0
        %v5184 = vmax.f32 %v4059, 0.0
        %v5185 = vmax.f32 %v4443, 0.0
        %v5186 = vmax.f32 %v4445, 0.0
        %v5187 = vmax.f32 %v4829, 0.0
        %v5188 = vmax.f32 %v4831, 0.0
        %v5189 = vmax.f32 %v2905, 0.0
        %v5190 = vmax.f32 %v2907, 0.0
        %v5191 = vmax.f32 %v3291, 0.0
        %v5192 = vmax.f32 %v3293, 0.0
        %v5193 = vmax.f32 %v3677, 0.0
        %v5194 = vmax.f32 %v3679, 0.0
        %v5195 = vmax.f32 %v4063, 0.0
        %v5196 = vmax.f32 %v4065, 0.0
        %v5197 = vmax.f32 %v4449, 0.0
        %v5198 = vmax.f32 %v4451, 0.0
        %v5199 = vmax.f32 %v4835, 0.0
        %v5200 = vmax.f32 %v4837, 0.0
        %v5201 = vmax.f32 %v2909, 0.0
        %v5202 = vmax.f32 %v2911, 0.0
        %v5203 = vmax.f32 %v3295, 0.0
        %v5204 = vmax.f32 %v3297, 0.0
        %v5205 = vmax.f32 %v3681, 0.0
        %v5206 = vmax.f32 %v3683, 0.0
        %v5207 = vmax.f32 %v4067, 0.0
        %v5208 = vmax.f32 %v4069, 0.0
        %v5209 = vmax.f32 %v4453, 0.0
        %v5210 = vmax.f32 %v4455, 0.0
        %v5211 = vmax.f32 %v4839, 0.0
        %v5212 = vmax.f32 %v4841, 0.0
        %v5213 = vmax.f32 %v2915, 0.0
        %v5214 = vmax.f32 %v2917, 0.0
        %v5215 = vmax.f32 %v3301, 0.0
        %v5216 = vmax.f32 %v3303, 0.0
        %v5217 = vmax.f32 %v3687, 0.0
        %v5218 = vmax.f32 %v3689, 0.0
        %v5219 = vmax.f32 %v4073, 0.0
        %v5220 = vmax.f32 %v4075, 0.0
        %v5221 = vmax.f32 %v4459, 0.0
        %v5222 = vmax.f32 %v4461, 0.0
        %v5223 = vmax.f32 %v4845, 0.0
        %v5224 = vmax.f32 %v4847, 0.0
        %v5225 = vmax.f32 %v2919, 0.0
        %v5226 = vmax.f32 %v2921, 0.0
        %v5227 = vmax.f32 %v3305, 0.0
        %v5228 = vmax.f32 %v3307, 0.0
        %v5229 = vmax.f32 %v3691, 0.0
        %v5230 = vmax.f32 %v3693, 0.0
        %v5231 = vmax.f32 %v4077, 0.0
        %v5232 = vmax.f32 %v4079, 0.0
        %v5233 = vmax.f32 %v4463, 0.0
        %v5234 = vmax.f32 %v4465, 0.0
        %v5235 = vmax.f32 %v4849, 0.0
        %v5236 = vmax.f32 %v4851, 0.0
        %v5237 = vld [vmem:[%s280] sm:$0xff]
        %v5238 = vld [vmem:[%s280 + $0x8] sm:$0xff]
        %v5239 = vld [vmem:[%s280 + $0x10] sm:$0xff]
        %v5240 = vld [vmem:[%s280 + $0x18] sm:$0xff]
        %v5241 = vld [vmem:[%s280 + $0x20] sm:$0xff]
        %v5242 = vld [vmem:[%s280 + $0x28] sm:$0xff]
        %v5243 = vld [vmem:[%s280 + $0x30] sm:$0xff]
        %v5244 = vld [vmem:[%s280 + $0x38] sm:$0xff]
        %v5245 = vld [vmem:[%s280 + $0x40] sm:$0xff]
        %v5246 = vld [vmem:[%s280 + $0x48] sm:$0xff]
        %v5247 = vld [vmem:[%s280 + $0x50] sm:$0xff]
        %v5248 = vld [vmem:[%s280 + $0x58] sm:$0xff]
        %v5249 = vld [vmem:[%s280 + $0x60] sm:$0xff]
        %v5250 = vld [vmem:[%s280 + $0x68] sm:$0xff]
        %v5251 = vld [vmem:[%s280 + $0x70] sm:$0xff]
        %v5252 = vld [vmem:[%s280 + $0x78] sm:$0xff]
        %v5253 = vld [vmem:[%s280 + $0x80] sm:$0xff]
        %v5254 = vld [vmem:[%s280 + $0x88] sm:$0xff]
        %v5255 = vld [vmem:[%s280 + $0x90] sm:$0xff]
        %v5256 = vld [vmem:[%s280 + $0x98] sm:$0xff]
        %v5257 = vld [vmem:[%s280 + $0xa0] sm:$0xff]
        %v5258 = vld [vmem:[%s280 + $0xa8] sm:$0xff]
        %v5259 = vld [vmem:[%s280 + $0xb0] sm:$0xff]
        %v5260 = vld [vmem:[%s280 + $0xb8] sm:$0xff]
        %v5261 = vld [vmem:[%s280 + $0xc0] sm:$0xff]
        %v5262 = vld [vmem:[%s280 + $0xc8] sm:$0xff]
        %v5263 = vld [vmem:[%s280 + $0xd0] sm:$0xff]
        %v5264 = vld [vmem:[%s280 + $0xd8] sm:$0xff]
        %v5265 = vld [vmem:[%s280 + $0xe0] sm:$0xff]
        %v5266 = vld [vmem:[%s280 + $0xe8] sm:$0xff]
        %v5267 = vld [vmem:[%s280 + $0xf0] sm:$0xff]
        %v5268 = vld [vmem:[%s280 + $0xf8] sm:$0xff]
        %v5269 = vld [vmem:[%s280 + $0x100] sm:$0xff]
        %v5270 = vld [vmem:[%s280 + $0x108] sm:$0xff]
        %v5271 = vld [vmem:[%s280 + $0x110] sm:$0xff]
        %v5272 = vld [vmem:[%s280 + $0x118] sm:$0xff]
        %v5273 = vld [vmem:[%s280 + $0x120] sm:$0xff]
        %v5274 = vld [vmem:[%s280 + $0x128] sm:$0xff]
        %v5275 = vld [vmem:[%s280 + $0x130] sm:$0xff]
        %v5276 = vld [vmem:[%s280 + $0x138] sm:$0xff]
        %v5277 = vld [vmem:[%s280 + $0x140] sm:$0xff]
        %v5278 = vld [vmem:[%s280 + $0x148] sm:$0xff]
        %v5279 = vld [vmem:[%s280 + $0x150] sm:$0xff]
        %v5280 = vld [vmem:[%s280 + $0x158] sm:$0xff]
        %v5281 = vld [vmem:[%s280 + $0x160] sm:$0xff]
        %v5282 = vld [vmem:[%s280 + $0x168] sm:$0xff]
        %v5283 = vld [vmem:[%s280 + $0x170] sm:$0xff]
        %v5284 = vld [vmem:[%s280 + $0x178] sm:$0xff]
        %v5285 = vld [vmem:[%s280 + $0x180] sm:$0xff]
        %v5286 = vld [vmem:[%s280 + $0x188] sm:$0xff]
        %v5287 = vld [vmem:[%s280 + $0x190] sm:$0xff]
        %v5288 = vld [vmem:[%s280 + $0x198] sm:$0xff]
        %v5289 = vld [vmem:[%s280 + $0x1a0] sm:$0xff]
        %v5290 = vld [vmem:[%s280 + $0x1a8] sm:$0xff]
        %v5291 = vld [vmem:[%s280 + $0x1b0] sm:$0xff]
        %v5292 = vld [vmem:[%s280 + $0x1b8] sm:$0xff]
        %v5293 = vld [vmem:[%s280 + $0x1c0] sm:$0xff]
        %v5294 = vld [vmem:[%s280 + $0x1c8] sm:$0xff]
        %v5295 = vld [vmem:[%s280 + $0x1d0] sm:$0xff]
        %v5296 = vld [vmem:[%s280 + $0x1d8] sm:$0xff]
        %v5297 = vld [vmem:[%s280 + $0x1e0] sm:$0xff]
        %v5298 = vld [vmem:[%s280 + $0x1e8] sm:$0xff]
        %v5299 = vld [vmem:[%s280 + $0x1f0] sm:$0xff]
        %v5300 = vld [vmem:[%s280 + $0x1f8] sm:$0xff]
        %v5301 = vld [vmem:[%s280 + $0x200] sm:$0xff]
        %v5302 = vld [vmem:[%s280 + $0x208] sm:$0xff]
        %v5303 = vld [vmem:[%s280 + $0x210] sm:$0xff]
        %v5304 = vld [vmem:[%s280 + $0x218] sm:$0xff]
        %v5305 = vld [vmem:[%s280 + $0x220] sm:$0xff]
        %v5306 = vld [vmem:[%s280 + $0x228] sm:$0xff]
        %v5307 = vld [vmem:[%s280 + $0x230] sm:$0xff]
        %v5308 = vld [vmem:[%s280 + $0x238] sm:$0xff]
        %v5309 = vld [vmem:[%s280 + $0x240] sm:$0xff]
        %v5310 = vld [vmem:[%s280 + $0x248] sm:$0xff]
        %v5311 = vld [vmem:[%s280 + $0x250] sm:$0xff]
        %v5312 = vld [vmem:[%s280 + $0x258] sm:$0xff]
        %v5313 = vld [vmem:[%s280 + $0x260] sm:$0xff]
        %v5314 = vld [vmem:[%s280 + $0x268] sm:$0xff]
        %v5315 = vld [vmem:[%s280 + $0x270] sm:$0xff]
        %v5316 = vld [vmem:[%s280 + $0x278] sm:$0xff]
        %v5317 = vld [vmem:[%s280 + $0x280] sm:$0xff]
        %v5318 = vld [vmem:[%s280 + $0x288] sm:$0xff]
        %v5319 = vld [vmem:[%s280 + $0x290] sm:$0xff]
        %v5320 = vld [vmem:[%s280 + $0x298] sm:$0xff]
        %v5321 = vld [vmem:[%s280 + $0x2a0] sm:$0xff]
        %v5322 = vld [vmem:[%s280 + $0x2a8] sm:$0xff]
        %v5323 = vld [vmem:[%s280 + $0x2b0] sm:$0xff]
        %v5324 = vld [vmem:[%s280 + $0x2b8] sm:$0xff]
        %v5325 = vld [vmem:[%s280 + $0x2c0] sm:$0xff]
        %v5326 = vld [vmem:[%s280 + $0x2c8] sm:$0xff]
        %v5327 = vld [vmem:[%s280 + $0x2d0] sm:$0xff]
        %v5328 = vld [vmem:[%s280 + $0x2d8] sm:$0xff]
        %v5329 = vld [vmem:[%s280 + $0x2e0] sm:$0xff]
        %v5330 = vld [vmem:[%s280 + $0x2e8] sm:$0xff]
        %v5331 = vld [vmem:[%s280 + $0x2f0] sm:$0xff]
        %v5332 = vld [vmem:[%s280 + $0x2f8] sm:$0xff]
        %v5333 = vpack.c.bf16 %v4865, %v4853
        %v5334 = vpack.c.bf16 %v4866, %v4854
        %v5335 = vpack.c.bf16 %v4867, %v4855
        %v5336 = vpack.c.bf16 %v4868, %v4856
        %v5337 = vpack.c.bf16 %v4869, %v4857
        %v5338 = vpack.c.bf16 %v4870, %v4858
        %v5339 = vpack.c.bf16 %v4871, %v4859
        %v5340 = vpack.c.bf16 %v4872, %v4860
        %v5341 = vpack.c.bf16 %v4873, %v4861
        %v5342 = vpack.c.bf16 %v4874, %v4862
        %v5343 = vpack.c.bf16 %v4875, %v4863
        %v5344 = vpack.c.bf16 %v4876, %v4864
        %v5345 = vpack.c.bf16 %v4889, %v4877
        %v5346 = vpack.c.bf16 %v4890, %v4878
        %v5347 = vpack.c.bf16 %v4891, %v4879
        %v5348 = vpack.c.bf16 %v4892, %v4880
        %v5349 = vpack.c.bf16 %v4893, %v4881
        %v5350 = vpack.c.bf16 %v4894, %v4882
        %v5351 = vpack.c.bf16 %v4895, %v4883
        %v5352 = vpack.c.bf16 %v4896, %v4884
        %v5353 = vpack.c.bf16 %v4897, %v4885
        %v5354 = vpack.c.bf16 %v4898, %v4886
        %v5355 = vpack.c.bf16 %v4899, %v4887
        %v5356 = vpack.c.bf16 %v4900, %v4888
        %v5357 = vpack.c.bf16 %v4913, %v4901
        %v5358 = vpack.c.bf16 %v4914, %v4902
        %v5359 = vpack.c.bf16 %v4915, %v4903
        %v5360 = vpack.c.bf16 %v4916, %v4904
        %v5361 = vpack.c.bf16 %v4917, %v4905
        %v5362 = vpack.c.bf16 %v4918, %v4906
        %v5363 = vpack.c.bf16 %v4919, %v4907
        %v5364 = vpack.c.bf16 %v4920, %v4908
        %v5365 = vpack.c.bf16 %v4921, %v4909
        %v5366 = vpack.c.bf16 %v4922, %v4910
        %v5367 = vpack.c.bf16 %v4923, %v4911
        %v5368 = vpack.c.bf16 %v4924, %v4912
        %v5369 = vpack.c.bf16 %v4937, %v4925
        %v5370 = vpack.c.bf16 %v4938, %v4926
        %v5371 = vpack.c.bf16 %v4939, %v4927
        %v5372 = vpack.c.bf16 %v4940, %v4928
        %v5373 = vpack.c.bf16 %v4941, %v4929
        %v5374 = vpack.c.bf16 %v4942, %v4930
        %v5375 = vpack.c.bf16 %v4943, %v4931
        %v5376 = vpack.c.bf16 %v4944, %v4932
        %v5377 = vpack.c.bf16 %v4945, %v4933
        %v5378 = vpack.c.bf16 %v4946, %v4934
        %v5379 = vpack.c.bf16 %v4947, %v4935
        %v5380 = vpack.c.bf16 %v4948, %v4936
        %v5381 = vpack.c.bf16 %v4961, %v4949
        %v5382 = vpack.c.bf16 %v4962, %v4950
        %v5383 = vpack.c.bf16 %v4963, %v4951
        %v5384 = vpack.c.bf16 %v4964, %v4952
        %v5385 = vpack.c.bf16 %v4965, %v4953
        %v5386 = vpack.c.bf16 %v4966, %v4954
        %v5387 = vpack.c.bf16 %v4967, %v4955
        %v5388 = vpack.c.bf16 %v4968, %v4956
        %v5389 = vpack.c.bf16 %v4969, %v4957
        %v5390 = vpack.c.bf16 %v4970, %v4958
        %v5391 = vpack.c.bf16 %v4971, %v4959
        %v5392 = vpack.c.bf16 %v4972, %v4960
        %v5393 = vpack.c.bf16 %v4985, %v4973
        %v5394 = vpack.c.bf16 %v4986, %v4974
        %v5395 = vpack.c.bf16 %v4987, %v4975
        %v5396 = vpack.c.bf16 %v4988, %v4976
        %v5397 = vpack.c.bf16 %v4989, %v4977
        %v5398 = vpack.c.bf16 %v4990, %v4978
        %v5399 = vpack.c.bf16 %v4991, %v4979
        %v5400 = vpack.c.bf16 %v4992, %v4980
        %v5401 = vpack.c.bf16 %v4993, %v4981
        %v5402 = vpack.c.bf16 %v4994, %v4982
        %v5403 = vpack.c.bf16 %v4995, %v4983
        %v5404 = vpack.c.bf16 %v4996, %v4984
        %v5405 = vpack.c.bf16 %v5009, %v4997
        %v5406 = vpack.c.bf16 %v5010, %v4998
        %v5407 = vpack.c.bf16 %v5011, %v4999
        %v5408 = vpack.c.bf16 %v5012, %v5000
        %v5409 = vpack.c.bf16 %v5013, %v5001
        %v5410 = vpack.c.bf16 %v5014, %v5002
        %v5411 = vpack.c.bf16 %v5015, %v5003
        %v5412 = vpack.c.bf16 %v5016, %v5004
        %v5413 = vpack.c.bf16 %v5017, %v5005
        %v5414 = vpack.c.bf16 %v5018, %v5006
        %v5415 = vpack.c.bf16 %v5019, %v5007
        %v5416 = vpack.c.bf16 %v5020, %v5008
        %v5417 = vpack.c.bf16 %v5033, %v5021
        %v5418 = vpack.c.bf16 %v5034, %v5022
        %v5419 = vpack.c.bf16 %v5035, %v5023
        %v5420 = vpack.c.bf16 %v5036, %v5024
        %v5421 = vpack.c.bf16 %v5037, %v5025
        %v5422 = vpack.c.bf16 %v5038, %v5026
        %v5423 = vpack.c.bf16 %v5039, %v5027
        %v5424 = vpack.c.bf16 %v5040, %v5028
        %v5425 = vpack.c.bf16 %v5041, %v5029
        %v5426 = vpack.c.bf16 %v5042, %v5030
        %v5427 = vpack.c.bf16 %v5043, %v5031
        %v5428 = vpack.c.bf16 %v5044, %v5032
        %v5429 = vpack.c.bf16 %v5057, %v5045
        %v5430 = vpack.c.bf16 %v5058, %v5046
        %v5431 = vpack.c.bf16 %v5059, %v5047
        %v5432 = vpack.c.bf16 %v5060, %v5048
        %v5433 = vpack.c.bf16 %v5061, %v5049
        %v5434 = vpack.c.bf16 %v5062, %v5050
        %v5435 = vpack.c.bf16 %v5063, %v5051
        %v5436 = vpack.c.bf16 %v5064, %v5052
        %v5437 = vpack.c.bf16 %v5065, %v5053
        %v5438 = vpack.c.bf16 %v5066, %v5054
        %v5439 = vpack.c.bf16 %v5067, %v5055
        %v5440 = vpack.c.bf16 %v5068, %v5056
        %v5441 = vpack.c.bf16 %v5081, %v5069
        %v5442 = vpack.c.bf16 %v5082, %v5070
        %v5443 = vpack.c.bf16 %v5083, %v5071
        %v5444 = vpack.c.bf16 %v5084, %v5072
        %v5445 = vpack.c.bf16 %v5085, %v5073
        %v5446 = vpack.c.bf16 %v5086, %v5074
        %v5447 = vpack.c.bf16 %v5087, %v5075
        %v5448 = vpack.c.bf16 %v5088, %v5076
        %v5449 = vpack.c.bf16 %v5089, %v5077
        %v5450 = vpack.c.bf16 %v5090, %v5078
        %v5451 = vpack.c.bf16 %v5091, %v5079
        %v5452 = vpack.c.bf16 %v5092, %v5080
        %v5453 = vpack.c.bf16 %v5105, %v5093
        %v5454 = vpack.c.bf16 %v5106, %v5094
        %v5455 = vpack.c.bf16 %v5107, %v5095
        %v5456 = vpack.c.bf16 %v5108, %v5096
        %v5457 = vpack.c.bf16 %v5109, %v5097
        %v5458 = vpack.c.bf16 %v5110, %v5098
        %v5459 = vpack.c.bf16 %v5111, %v5099
        %v5460 = vpack.c.bf16 %v5112, %v5100
        %v5461 = vpack.c.bf16 %v5113, %v5101
        %v5462 = vpack.c.bf16 %v5114, %v5102
        %v5463 = vpack.c.bf16 %v5115, %v5103
        %v5464 = vpack.c.bf16 %v5116, %v5104
        %v5465 = vpack.c.bf16 %v5129, %v5117
        %v5466 = vpack.c.bf16 %v5130, %v5118
        %v5467 = vpack.c.bf16 %v5131, %v5119
        %v5468 = vpack.c.bf16 %v5132, %v5120
        %v5469 = vpack.c.bf16 %v5133, %v5121
        %v5470 = vpack.c.bf16 %v5134, %v5122
        %v5471 = vpack.c.bf16 %v5135, %v5123
        %v5472 = vpack.c.bf16 %v5136, %v5124
        %v5473 = vpack.c.bf16 %v5137, %v5125
        %v5474 = vpack.c.bf16 %v5138, %v5126
        %v5475 = vpack.c.bf16 %v5139, %v5127
        %v5476 = vpack.c.bf16 %v5140, %v5128
        %v5477 = vpack.c.bf16 %v5153, %v5141
        %v5478 = vpack.c.bf16 %v5154, %v5142
        %v5479 = vpack.c.bf16 %v5155, %v5143
        %v5480 = vpack.c.bf16 %v5156, %v5144
        %v5481 = vpack.c.bf16 %v5157, %v5145
        %v5482 = vpack.c.bf16 %v5158, %v5146
        %v5483 = vpack.c.bf16 %v5159, %v5147
        %v5484 = vpack.c.bf16 %v5160, %v5148
        %v5485 = vpack.c.bf16 %v5161, %v5149
        %v5486 = vpack.c.bf16 %v5162, %v5150
        %v5487 = vpack.c.bf16 %v5163, %v5151
        %v5488 = vpack.c.bf16 %v5164, %v5152
        %v5489 = vpack.c.bf16 %v5177, %v5165
        %v5490 = vpack.c.bf16 %v5178, %v5166
        %v5491 = vpack.c.bf16 %v5179, %v5167
        %v5492 = vpack.c.bf16 %v5180, %v5168
        %v5493 = vpack.c.bf16 %v5181, %v5169
        %v5494 = vpack.c.bf16 %v5182, %v5170
        %v5495 = vpack.c.bf16 %v5183, %v5171
        %v5496 = vpack.c.bf16 %v5184, %v5172
        %v5497 = vpack.c.bf16 %v5185, %v5173
        %v5498 = vpack.c.bf16 %v5186, %v5174
        %v5499 = vpack.c.bf16 %v5187, %v5175
        %v5500 = vpack.c.bf16 %v5188, %v5176
        %v5501 = vpack.c.bf16 %v5201, %v5189
        %v5502 = vpack.c.bf16 %v5202, %v5190
        %v5503 = vpack.c.bf16 %v5203, %v5191
        %v5504 = vpack.c.bf16 %v5204, %v5192
        %v5505 = vpack.c.bf16 %v5205, %v5193
        %v5506 = vpack.c.bf16 %v5206, %v5194
        %v5507 = vpack.c.bf16 %v5207, %v5195
        %v5508 = vpack.c.bf16 %v5208, %v5196
        %v5509 = vpack.c.bf16 %v5209, %v5197
        %v5510 = vpack.c.bf16 %v5210, %v5198
        %v5511 = vpack.c.bf16 %v5211, %v5199
        %v5512 = vpack.c.bf16 %v5212, %v5200
        %v5513 = vpack.c.bf16 %v5225, %v5213
        %v5514 = vpack.c.bf16 %v5226, %v5214
        %v5515 = vpack.c.bf16 %v5227, %v5215
        %v5516 = vpack.c.bf16 %v5228, %v5216
        %v5517 = vpack.c.bf16 %v5229, %v5217
        %v5518 = vpack.c.bf16 %v5230, %v5218
        %v5519 = vpack.c.bf16 %v5231, %v5219
        %v5520 = vpack.c.bf16 %v5232, %v5220
        %v5521 = vpack.c.bf16 %v5233, %v5221
        %v5522 = vpack.c.bf16 %v5234, %v5222
        %v5523 = vpack.c.bf16 %v5235, %v5223
        %v5524 = vpack.c.bf16 %v5236, %v5224
        %v5525 = vld [vmem:[%s304] sm:$0xff]
        %v5526 = vld [vmem:[%s304 + $0x8] sm:$0xf]
        %v5527 = vld [vmem:[%s304 + $0xc] sm:$0xff]
        %v5528 = vld [vmem:[%s304 + $0x14] sm:$0xf]
        %v5529 = vld [vmem:[%s304 + $0x18] sm:$0xff]
        %v5530 = vld [vmem:[%s304 + $0x20] sm:$0xf]
        %v5531 = vld [vmem:[%s304 + $0x24] sm:$0xff]
        %v5532 = vld [vmem:[%s304 + $0x2c] sm:$0xf]
        %v5533 = vld [vmem:[%s304 + $0x30] sm:$0xff]
        %v5534 = vld [vmem:[%s304 + $0x38] sm:$0xf]
        %v5535 = vld [vmem:[%s304 + $0x3c] sm:$0xff]
        %v5536 = vld [vmem:[%s304 + $0x44] sm:$0xf]
        %v5537 = vld [vmem:[%s304 + $0x48] sm:$0xff]
        %v5538 = vld [vmem:[%s304 + $0x50] sm:$0xf]
        %v5539 = vld [vmem:[%s304 + $0x54] sm:$0xff]
        %v5540 = vld [vmem:[%s304 + $0x5c] sm:$0xf]
        %v5541 = vld [vmem:[%s304 + $0x60] sm:$0xff]
        %v5542 = vld [vmem:[%s304 + $0x68] sm:$0xf]
        %v5543 = vld [vmem:[%s304 + $0x6c] sm:$0xff]
        %v5544 = vld [vmem:[%s304 + $0x74] sm:$0xf]
        %v5545 = vld [vmem:[%s304 + $0x78] sm:$0xff]
        %v5546 = vld [vmem:[%s304 + $0x80] sm:$0xf]
        %v5547 = vld [vmem:[%s304 + $0x84] sm:$0xff]
        %v5548 = vld [vmem:[%s304 + $0x8c] sm:$0xf]
        %v5549 = vld [vmem:[%s304 + $0x90] sm:$0xff]
        %v5550 = vld [vmem:[%s304 + $0x98] sm:$0xf]
        %v5551 = vld [vmem:[%s304 + $0x9c] sm:$0xff]
        %v5552 = vld [vmem:[%s304 + $0xa4] sm:$0xf]
        %v5553 = vld [vmem:[%s304 + $0xa8] sm:$0xff]
        %v5554 = vld [vmem:[%s304 + $0xb0] sm:$0xf]
        %v5555 = vld [vmem:[%s304 + $0xb4] sm:$0xff]
        %v5556 = vld [vmem:[%s304 + $0xbc] sm:$0xf]
        %v5557 = vld [vmem:[%s304 + $0xc0] sm:$0xff]
        %v5558 = vld [vmem:[%s304 + $0xc8] sm:$0xf]
        %v5559 = vld [vmem:[%s304 + $0xcc] sm:$0xff]
        %v5560 = vld [vmem:[%s304 + $0xd4] sm:$0xf]
        %v5561 = vld [vmem:[%s304 + $0xd8] sm:$0xff]
        %v5562 = vld [vmem:[%s304 + $0xe0] sm:$0xf]
        %v5563 = vld [vmem:[%s304 + $0xe4] sm:$0xff]
        %v5564 = vld [vmem:[%s304 + $0xec] sm:$0xf]
        %v5565 = vld [vmem:[%s304 + $0xf0] sm:$0xff]
        %v5566 = vld [vmem:[%s304 + $0xf8] sm:$0xf]
        %v5567 = vld [vmem:[%s304 + $0xfc] sm:$0xff]
        %v5568 = vld [vmem:[%s304 + $0x104] sm:$0xf]
        %v5569 = vld [vmem:[%s304 + $0x108] sm:$0xff]
        %v5570 = vld [vmem:[%s304 + $0x110] sm:$0xf]
        %v5571 = vld [vmem:[%s304 + $0x114] sm:$0xff]
        %v5572 = vld [vmem:[%s304 + $0x11c] sm:$0xf]
        %v5573 = vld [vmem:[%s304 + $0x120] sm:$0xff]
        %v5574 = vld [vmem:[%s304 + $0x128] sm:$0xf]
        %v5575 = vld [vmem:[%s304 + $0x12c] sm:$0xff]
        %v5576 = vld [vmem:[%s304 + $0x134] sm:$0xf]
        %v5577 = vld [vmem:[%s304 + $0x138] sm:$0xff]
        %v5578 = vld [vmem:[%s304 + $0x140] sm:$0xf]
        %v5579 = vld [vmem:[%s304 + $0x144] sm:$0xff]
        %v5580 = vld [vmem:[%s304 + $0x14c] sm:$0xf]
        %v5581 = vld [vmem:[%s304 + $0x150] sm:$0xff]
        %v5582 = vld [vmem:[%s304 + $0x158] sm:$0xf]
        %v5583 = vld [vmem:[%s304 + $0x15c] sm:$0xff]
        %v5584 = vld [vmem:[%s304 + $0x164] sm:$0xf]
        %v5585 = vld [vmem:[%s304 + $0x168] sm:$0xff]
        %v5586 = vld [vmem:[%s304 + $0x170] sm:$0xf]
        %v5587 = vld [vmem:[%s304 + $0x174] sm:$0xff]
        %v5588 = vld [vmem:[%s304 + $0x17c] sm:$0xf]
        %v5589 = vld [vmem:[%s304 + $0x180] sm:$0xff]
        %v5590 = vld [vmem:[%s304 + $0x188] sm:$0xf]
        %v5591 = vld [vmem:[%s304 + $0x18c] sm:$0xff]
        %v5592 = vld [vmem:[%s304 + $0x194] sm:$0xf]
        %v5593 = vld [vmem:[%s304 + $0x198] sm:$0xff]
        %v5594 = vld [vmem:[%s304 + $0x1a0] sm:$0xf]
        %v5595 = vld [vmem:[%s304 + $0x1a4] sm:$0xff]
        %v5596 = vld [vmem:[%s304 + $0x1ac] sm:$0xf]
        %v5597 = vld [vmem:[%s304 + $0x1b0] sm:$0xff]
        %v5598 = vld [vmem:[%s304 + $0x1b8] sm:$0xf]
        %v5599 = vld [vmem:[%s304 + $0x1bc] sm:$0xff]
        %v5600 = vld [vmem:[%s304 + $0x1c4] sm:$0xf]
        %v5601 = vld [vmem:[%s304 + $0x1c8] sm:$0xff]
        %v5602 = vld [vmem:[%s304 + $0x1d0] sm:$0xf]
        %v5603 = vld [vmem:[%s304 + $0x1d4] sm:$0xff]
        %v5604 = vld [vmem:[%s304 + $0x1dc] sm:$0xf]
        %v5605 = vld [vmem:[%s304 + $0x1e0] sm:$0xff]
        %v5606 = vld [vmem:[%s304 + $0x1e8] sm:$0xf]
        %v5607 = vld [vmem:[%s304 + $0x1ec] sm:$0xff]
        %v5608 = vld [vmem:[%s304 + $0x1f4] sm:$0xf]
        %v5609 = vld [vmem:[%s304 + $0x1f8] sm:$0xff]
        %v5610 = vld [vmem:[%s304 + $0x200] sm:$0xf]
        %v5611 = vld [vmem:[%s304 + $0x204] sm:$0xff]
        %v5612 = vld [vmem:[%s304 + $0x20c] sm:$0xf]
        %v5613 = vld [vmem:[%s304 + $0x210] sm:$0xff]
        %v5614 = vld [vmem:[%s304 + $0x218] sm:$0xf]
        %v5615 = vld [vmem:[%s304 + $0x21c] sm:$0xff]
        %v5616 = vld [vmem:[%s304 + $0x224] sm:$0xf]
        %v5617 = vld [vmem:[%s304 + $0x228] sm:$0xff]
        %v5618 = vld [vmem:[%s304 + $0x230] sm:$0xf]
        %v5619 = vld [vmem:[%s304 + $0x234] sm:$0xff]
        %v5620 = vld [vmem:[%s304 + $0x23c] sm:$0xf]
        %v5621 = vld [vmem:[%s304 + $0x240] sm:$0xff]
        %v5622 = vld [vmem:[%s304 + $0x248] sm:$0xf]
        %v5623 = vld [vmem:[%s304 + $0x24c] sm:$0xff]
        %v5624 = vld [vmem:[%s304 + $0x254] sm:$0xf]
        %v5625 = vld [vmem:[%s304 + $0x258] sm:$0xff]
        %v5626 = vld [vmem:[%s304 + $0x260] sm:$0xf]
        %v5627 = vld [vmem:[%s304 + $0x264] sm:$0xff]
        %v5628 = vld [vmem:[%s304 + $0x26c] sm:$0xf]
        %v5629 = vld [vmem:[%s304 + $0x270] sm:$0xff]
        %v5630 = vld [vmem:[%s304 + $0x278] sm:$0xf]
        %v5631 = vld [vmem:[%s304 + $0x27c] sm:$0xff]
        %v5632 = vld [vmem:[%s304 + $0x284] sm:$0xf]
        %v5633 = vld [vmem:[%s304 + $0x288] sm:$0xff]
        %v5634 = vld [vmem:[%s304 + $0x290] sm:$0xf]
        %v5635 = vld [vmem:[%s304 + $0x294] sm:$0xff]
        %v5636 = vld [vmem:[%s304 + $0x29c] sm:$0xf]
        %v5637 = vld [vmem:[%s304 + $0x2a0] sm:$0xff]
        %v5638 = vld [vmem:[%s304 + $0x2a8] sm:$0xf]
        %v5639 = vld [vmem:[%s304 + $0x2ac] sm:$0xff]
        %v5640 = vld [vmem:[%s304 + $0x2b4] sm:$0xf]
        %v5641 = vld [vmem:[%s304 + $0x2b8] sm:$0xff]
        %v5642 = vld [vmem:[%s304 + $0x2c0] sm:$0xf]
        %v5643 = vld [vmem:[%s304 + $0x2c4] sm:$0xff]
        %v5644 = vld [vmem:[%s304 + $0x2cc] sm:$0xf]
        %v5645 = vld [vmem:[%s304 + $0x2d0] sm:$0xff]
        %v5646 = vld [vmem:[%s304 + $0x2d8] sm:$0xf]
        %v5647 = vld [vmem:[%s304 + $0x2dc] sm:$0xff]
        %v5648 = vld [vmem:[%s304 + $0x2e4] sm:$0xf]
        %v5649 = vld [vmem:[%s304 + $0x2e8] sm:$0xff]
        %v5650 = vld [vmem:[%s304 + $0x2f0] sm:$0xf]
        %v5651 = vld [vmem:[%s304 + $0x2f4] sm:$0xff]
        %v5652 = vld [vmem:[%s304 + $0x2fc] sm:$0xf]
        %v5653 = vld [vmem:[%s304 + $0x300] sm:$0xff]
        %v5654 = vld [vmem:[%s304 + $0x308] sm:$0xf]
        %v5655 = vld [vmem:[%s304 + $0x30c] sm:$0xff]
        %v5656 = vld [vmem:[%s304 + $0x314] sm:$0xf]
        %v5657 = vld [vmem:[%s304 + $0x318] sm:$0xff]
        %v5658 = vld [vmem:[%s304 + $0x320] sm:$0xf]
        %v5659 = vld [vmem:[%s304 + $0x324] sm:$0xff]
        %v5660 = vld [vmem:[%s304 + $0x32c] sm:$0xf]
        %v5661 = vld [vmem:[%s304 + $0x330] sm:$0xff]
        %v5662 = vld [vmem:[%s304 + $0x338] sm:$0xf]
        %v5663 = vld [vmem:[%s304 + $0x33c] sm:$0xff]
        %v5664 = vld [vmem:[%s304 + $0x344] sm:$0xf]
        %v5665 = vld [vmem:[%s304 + $0x348] sm:$0xff]
        %v5666 = vld [vmem:[%s304 + $0x350] sm:$0xf]
        %v5667 = vld [vmem:[%s304 + $0x354] sm:$0xff]
        %v5668 = vld [vmem:[%s304 + $0x35c] sm:$0xf]
        %v5669 = vld [vmem:[%s304 + $0x360] sm:$0xff]
        %v5670 = vld [vmem:[%s304 + $0x368] sm:$0xf]
        %v5671 = vld [vmem:[%s304 + $0x36c] sm:$0xff]
        %v5672 = vld [vmem:[%s304 + $0x374] sm:$0xf]
        %v5673 = vld [vmem:[%s304 + $0x378] sm:$0xff]
        %v5674 = vld [vmem:[%s304 + $0x380] sm:$0xf]
        %v5675 = vld [vmem:[%s304 + $0x384] sm:$0xff]
        %v5676 = vld [vmem:[%s304 + $0x38c] sm:$0xf]
        %v5677 = vld [vmem:[%s304 + $0x390] sm:$0xff]
        %v5678 = vld [vmem:[%s304 + $0x398] sm:$0xf]
        %v5679 = vld [vmem:[%s304 + $0x39c] sm:$0xff]
        %v5680 = vld [vmem:[%s304 + $0x3a4] sm:$0xf]
        %v5681 = vld [vmem:[%s304 + $0x3a8] sm:$0xff]
        %v5682 = vld [vmem:[%s304 + $0x3b0] sm:$0xf]
        %v5683 = vld [vmem:[%s304 + $0x3b4] sm:$0xff]
        %v5684 = vld [vmem:[%s304 + $0x3bc] sm:$0xf]
        %v5685 = vld [vmem:[%s304 + $0x3c0] sm:$0xff]
        %v5686 = vld [vmem:[%s304 + $0x3c8] sm:$0xf]
        %v5687 = vld [vmem:[%s304 + $0x3cc] sm:$0xff]
        %v5688 = vld [vmem:[%s304 + $0x3d4] sm:$0xf]
        %v5689 = vld [vmem:[%s304 + $0x3d8] sm:$0xff]
        %v5690 = vld [vmem:[%s304 + $0x3e0] sm:$0xf]
        %v5691 = vld [vmem:[%s304 + $0x3e4] sm:$0xff]
        %v5692 = vld [vmem:[%s304 + $0x3ec] sm:$0xf]
        %v5693 = vld [vmem:[%s304 + $0x3f0] sm:$0xff]
        %v5694 = vld [vmem:[%s304 + $0x3f8] sm:$0xf]
        %v5695 = vld [vmem:[%s304 + $0x3fc] sm:$0xff]
        %v5696 = vld [vmem:[%s304 + $0x404] sm:$0xf]
        %v5697 = vld [vmem:[%s304 + $0x408] sm:$0xff]
        %v5698 = vld [vmem:[%s304 + $0x410] sm:$0xf]
        %v5699 = vld [vmem:[%s304 + $0x414] sm:$0xff]
        %v5700 = vld [vmem:[%s304 + $0x41c] sm:$0xf]
        %v5701 = vld [vmem:[%s304 + $0x420] sm:$0xff]
        %v5702 = vld [vmem:[%s304 + $0x428] sm:$0xf]
        %v5703 = vld [vmem:[%s304 + $0x42c] sm:$0xff]
        %v5704 = vld [vmem:[%s304 + $0x434] sm:$0xf]
        %v5705 = vld [vmem:[%s304 + $0x438] sm:$0xff]
        %v5706 = vld [vmem:[%s304 + $0x440] sm:$0xf]
        %v5707 = vld [vmem:[%s304 + $0x444] sm:$0xff]
        %v5708 = vld [vmem:[%s304 + $0x44c] sm:$0xf]
        %v5709 = vld [vmem:[%s304 + $0x450] sm:$0xff]
        %v5710 = vld [vmem:[%s304 + $0x458] sm:$0xf]
        %v5711 = vld [vmem:[%s304 + $0x45c] sm:$0xff]
        %v5712 = vld [vmem:[%s304 + $0x464] sm:$0xf]
        %v5713 = vld [vmem:[%s304 + $0x468] sm:$0xff]
        %v5714 = vld [vmem:[%s304 + $0x470] sm:$0xf]
        %v5715 = vld [vmem:[%s304 + $0x474] sm:$0xff]
        %v5716 = vld [vmem:[%s304 + $0x47c] sm:$0xf]
        %v5717 = vld [vmem:[%s304 + $0x480] sm:$0xff]
        %v5718 = vld [vmem:[%s304 + $0x488] sm:$0xf]
        %v5719 = vld [vmem:[%s304 + $0x48c] sm:$0xff]
        %v5720 = vld [vmem:[%s304 + $0x494] sm:$0xf]
        %v5721 = vld [vmem:[%s304 + $0x498] sm:$0xff]
        %v5722 = vld [vmem:[%s304 + $0x4a0] sm:$0xf]
        %v5723 = vld [vmem:[%s304 + $0x4a4] sm:$0xff]
        %v5724 = vld [vmem:[%s304 + $0x4ac] sm:$0xf]
        %v5725 = vld [vmem:[%s304 + $0x4b0] sm:$0xff]
        %v5726 = vld [vmem:[%s304 + $0x4b8] sm:$0xf]
        %v5727 = vld [vmem:[%s304 + $0x4bc] sm:$0xff]
        %v5728 = vld [vmem:[%s304 + $0x4c4] sm:$0xf]
        %v5729 = vld [vmem:[%s304 + $0x4c8] sm:$0xff]
        %v5730 = vld [vmem:[%s304 + $0x4d0] sm:$0xf]
        %v5731 = vld [vmem:[%s304 + $0x4d4] sm:$0xff]
        %v5732 = vld [vmem:[%s304 + $0x4dc] sm:$0xf]
        %v5733 = vld [vmem:[%s304 + $0x4e0] sm:$0xff]
        %v5734 = vld [vmem:[%s304 + $0x4e8] sm:$0xf]
        %v5735 = vld [vmem:[%s304 + $0x4ec] sm:$0xff]
        %v5736 = vld [vmem:[%s304 + $0x4f4] sm:$0xf]
        %v5737 = vld [vmem:[%s304 + $0x4f8] sm:$0xff]
        %v5738 = vld [vmem:[%s304 + $0x500] sm:$0xf]
        %v5739 = vld [vmem:[%s304 + $0x504] sm:$0xff]
        %v5740 = vld [vmem:[%s304 + $0x50c] sm:$0xf]
        %v5741 = vld [vmem:[%s304 + $0x510] sm:$0xff]
        %v5742 = vld [vmem:[%s304 + $0x518] sm:$0xf]
        %v5743 = vld [vmem:[%s304 + $0x51c] sm:$0xff]
        %v5744 = vld [vmem:[%s304 + $0x524] sm:$0xf]
        %v5745 = vld [vmem:[%s304 + $0x528] sm:$0xff]
        %v5746 = vld [vmem:[%s304 + $0x530] sm:$0xf]
        %v5747 = vld [vmem:[%s304 + $0x534] sm:$0xff]
        %v5748 = vld [vmem:[%s304 + $0x53c] sm:$0xf]
        %v5749 = vld [vmem:[%s304 + $0x540] sm:$0xff]
        %v5750 = vld [vmem:[%s304 + $0x548] sm:$0xf]
        %v5751 = vld [vmem:[%s304 + $0x54c] sm:$0xff]
        %v5752 = vld [vmem:[%s304 + $0x554] sm:$0xf]
        %v5753 = vld [vmem:[%s304 + $0x558] sm:$0xff]
        %v5754 = vld [vmem:[%s304 + $0x560] sm:$0xf]
        %v5755 = vld [vmem:[%s304 + $0x564] sm:$0xff]
        %v5756 = vld [vmem:[%s304 + $0x56c] sm:$0xf]
        %v5757 = vld [vmem:[%s304 + $0x570] sm:$0xff]
        %v5758 = vld [vmem:[%s304 + $0x578] sm:$0xf]
        %v5759 = vld [vmem:[%s304 + $0x57c] sm:$0xff]
        %v5760 = vld [vmem:[%s304 + $0x584] sm:$0xf]
        %v5761 = vld [vmem:[%s304 + $0x588] sm:$0xff]
        %v5762 = vld [vmem:[%s304 + $0x590] sm:$0xf]
        %v5763 = vld [vmem:[%s304 + $0x594] sm:$0xff]
        %v5764 = vld [vmem:[%s304 + $0x59c] sm:$0xf]
        %v5765 = vld [vmem:[%s304 + $0x5a0] sm:$0xff]
        %v5766 = vld [vmem:[%s304 + $0x5a8] sm:$0xf]
        %v5767 = vld [vmem:[%s304 + $0x5ac] sm:$0xff]
        %v5768 = vld [vmem:[%s304 + $0x5b4] sm:$0xf]
        %v5769 = vld [vmem:[%s304 + $0x5b8] sm:$0xff]
        %v5770 = vld [vmem:[%s304 + $0x5c0] sm:$0xf]
        %v5771 = vld [vmem:[%s304 + $0x5c4] sm:$0xff]
        %v5772 = vld [vmem:[%s304 + $0x5cc] sm:$0xf]
        %v5773 = vld [vmem:[%s304 + $0x5d0] sm:$0xff]
        %v5774 = vld [vmem:[%s304 + $0x5d8] sm:$0xf]
        %v5775 = vld [vmem:[%s304 + $0x5dc] sm:$0xff]
        %v5776 = vld [vmem:[%s304 + $0x5e4] sm:$0xf]
        %v5777 = vld [vmem:[%s304 + $0x5e8] sm:$0xff]
        %v5778 = vld [vmem:[%s304 + $0x5f0] sm:$0xf]
        %v5779 = vld [vmem:[%s304 + $0x5f4] sm:$0xff]
        %v5780 = vld [vmem:[%s304 + $0x5fc] sm:$0xf]
        %v5781 = vld [vmem:[%s304 + $0x600] sm:$0xff]
        %v5782 = vld [vmem:[%s304 + $0x608] sm:$0xf]
        %v5783 = vld [vmem:[%s304 + $0x60c] sm:$0xff]
        %v5784 = vld [vmem:[%s304 + $0x614] sm:$0xf]
        %v5785 = vld [vmem:[%s304 + $0x618] sm:$0xff]
        %v5786 = vld [vmem:[%s304 + $0x620] sm:$0xf]
        %v5787 = vld [vmem:[%s304 + $0x624] sm:$0xff]
        %v5788 = vld [vmem:[%s304 + $0x62c] sm:$0xf]
        %v5789 = vld [vmem:[%s304 + $0x630] sm:$0xff]
        %v5790 = vld [vmem:[%s304 + $0x638] sm:$0xf]
        %v5791 = vld [vmem:[%s304 + $0x63c] sm:$0xff]
        %v5792 = vld [vmem:[%s304 + $0x644] sm:$0xf]
        %v5793 = vld [vmem:[%s304 + $0x648] sm:$0xff]
        %v5794 = vld [vmem:[%s304 + $0x650] sm:$0xf]
        %v5795 = vld [vmem:[%s304 + $0x654] sm:$0xff]
        %v5796 = vld [vmem:[%s304 + $0x65c] sm:$0xf]
        %v5797 = vld [vmem:[%s304 + $0x660] sm:$0xff]
        %v5798 = vld [vmem:[%s304 + $0x668] sm:$0xf]
        %v5799 = vld [vmem:[%s304 + $0x66c] sm:$0xff]
        %v5800 = vld [vmem:[%s304 + $0x674] sm:$0xf]
        %v5801 = vld [vmem:[%s304 + $0x678] sm:$0xff]
        %v5802 = vld [vmem:[%s304 + $0x680] sm:$0xf]
        %v5803 = vld [vmem:[%s304 + $0x684] sm:$0xff]
        %v5804 = vld [vmem:[%s304 + $0x68c] sm:$0xf]
        %v5805 = vld [vmem:[%s304 + $0x690] sm:$0xff]
        %v5806 = vld [vmem:[%s304 + $0x698] sm:$0xf]
        %v5807 = vld [vmem:[%s304 + $0x69c] sm:$0xff]
        %v5808 = vld [vmem:[%s304 + $0x6a4] sm:$0xf]
        %v5809 = vld [vmem:[%s304 + $0x6a8] sm:$0xff]
        %v5810 = vld [vmem:[%s304 + $0x6b0] sm:$0xf]
        %v5811 = vld [vmem:[%s304 + $0x6b4] sm:$0xff]
        %v5812 = vld [vmem:[%s304 + $0x6bc] sm:$0xf]
        %v5813 = vld [vmem:[%s304 + $0x6c0] sm:$0xff]
        %v5814 = vld [vmem:[%s304 + $0x6c8] sm:$0xf]
        %v5815 = vld [vmem:[%s304 + $0x6cc] sm:$0xff]
        %v5816 = vld [vmem:[%s304 + $0x6d4] sm:$0xf]
        %v5817 = vld [vmem:[%s304 + $0x6d8] sm:$0xff]
        %v5818 = vld [vmem:[%s304 + $0x6e0] sm:$0xf]
        %v5819 = vld [vmem:[%s304 + $0x6e4] sm:$0xff]
        %v5820 = vld [vmem:[%s304 + $0x6ec] sm:$0xf]
        %v5821 = vld [vmem:[%s304 + $0x6f0] sm:$0xff]
        %v5822 = vld [vmem:[%s304 + $0x6f8] sm:$0xf]
        %v5823 = vld [vmem:[%s304 + $0x6fc] sm:$0xff]
        %v5824 = vld [vmem:[%s304 + $0x704] sm:$0xf]
        %v5825 = vld [vmem:[%s304 + $0x708] sm:$0xff]
        %v5826 = vld [vmem:[%s304 + $0x710] sm:$0xf]
        %v5827 = vld [vmem:[%s304 + $0x714] sm:$0xff]
        %v5828 = vld [vmem:[%s304 + $0x71c] sm:$0xf]
        %v5829 = vld [vmem:[%s304 + $0x720] sm:$0xff]
        %v5830 = vld [vmem:[%s304 + $0x728] sm:$0xf]
        %v5831 = vld [vmem:[%s304 + $0x72c] sm:$0xff]
        %v5832 = vld [vmem:[%s304 + $0x734] sm:$0xf]
        %v5833 = vld [vmem:[%s304 + $0x738] sm:$0xff]
        %v5834 = vld [vmem:[%s304 + $0x740] sm:$0xf]
        %v5835 = vld [vmem:[%s304 + $0x744] sm:$0xff]
        %v5836 = vld [vmem:[%s304 + $0x74c] sm:$0xf]
        %v5837 = vld [vmem:[%s304 + $0x750] sm:$0xff]
        %v5838 = vld [vmem:[%s304 + $0x758] sm:$0xf]
        %v5839 = vld [vmem:[%s304 + $0x75c] sm:$0xff]
        %v5840 = vld [vmem:[%s304 + $0x764] sm:$0xf]
        %v5841 = vld [vmem:[%s304 + $0x768] sm:$0xff]
        %v5842 = vld [vmem:[%s304 + $0x770] sm:$0xf]
        %v5843 = vld [vmem:[%s304 + $0x774] sm:$0xff]
        %v5844 = vld [vmem:[%s304 + $0x77c] sm:$0xf]
        %v5845 = vld [vmem:[%s304 + $0x780] sm:$0xff]
        %v5846 = vld [vmem:[%s304 + $0x788] sm:$0xf]
        %v5847 = vld [vmem:[%s304 + $0x78c] sm:$0xff]
        %v5848 = vld [vmem:[%s304 + $0x794] sm:$0xf]
        %v5849 = vld [vmem:[%s304 + $0x798] sm:$0xff]
        %v5850 = vld [vmem:[%s304 + $0x7a0] sm:$0xf]
        %v5851 = vld [vmem:[%s304 + $0x7a4] sm:$0xff]
        %v5852 = vld [vmem:[%s304 + $0x7ac] sm:$0xf]
        %v5853 = vld [vmem:[%s304 + $0x7b0] sm:$0xff]
        %v5854 = vld [vmem:[%s304 + $0x7b8] sm:$0xf]
        %v5855 = vld [vmem:[%s304 + $0x7bc] sm:$0xff]
        %v5856 = vld [vmem:[%s304 + $0x7c4] sm:$0xf]
        %v5857 = vld [vmem:[%s304 + $0x7c8] sm:$0xff]
        %v5858 = vld [vmem:[%s304 + $0x7d0] sm:$0xf]
        %v5859 = vld [vmem:[%s304 + $0x7d4] sm:$0xff]
        %v5860 = vld [vmem:[%s304 + $0x7dc] sm:$0xf]
        %v5861 = vld [vmem:[%s304 + $0x7e0] sm:$0xff]
        %v5862 = vld [vmem:[%s304 + $0x7e8] sm:$0xf]
        %v5863 = vld [vmem:[%s304 + $0x7ec] sm:$0xff]
        %v5864 = vld [vmem:[%s304 + $0x7f4] sm:$0xf]
        %v5865 = vld [vmem:[%s304 + $0x7f8] sm:$0xff]
        %v5866 = vld [vmem:[%s304 + $0x800] sm:$0xf]
        %v5867 = vld [vmem:[%s304 + $0x804] sm:$0xff]
        %v5868 = vld [vmem:[%s304 + $0x80c] sm:$0xf]
        %v5869 = vld [vmem:[%s304 + $0x810] sm:$0xff]
        %v5870 = vld [vmem:[%s304 + $0x818] sm:$0xf]
        %v5871 = vld [vmem:[%s304 + $0x81c] sm:$0xff]
        %v5872 = vld [vmem:[%s304 + $0x824] sm:$0xf]
        %v5873 = vld [vmem:[%s304 + $0x828] sm:$0xff]
        %v5874 = vld [vmem:[%s304 + $0x830] sm:$0xf]
        %v5875 = vld [vmem:[%s304 + $0x834] sm:$0xff]
        %v5876 = vld [vmem:[%s304 + $0x83c] sm:$0xf]
        %v5877 = vld [vmem:[%s304 + $0x840] sm:$0xff]
        %v5878 = vld [vmem:[%s304 + $0x848] sm:$0xf]
        %v5879 = vld [vmem:[%s304 + $0x84c] sm:$0xff]
        %v5880 = vld [vmem:[%s304 + $0x854] sm:$0xf]
        %v5881 = vld [vmem:[%s304 + $0x858] sm:$0xff]
        %v5882 = vld [vmem:[%s304 + $0x860] sm:$0xf]
        %v5883 = vld [vmem:[%s304 + $0x864] sm:$0xff]
        %v5884 = vld [vmem:[%s304 + $0x86c] sm:$0xf]
        %v5885 = vld [vmem:[%s304 + $0x870] sm:$0xff]
        %v5886 = vld [vmem:[%s304 + $0x878] sm:$0xf]
        %v5887 = vld [vmem:[%s304 + $0x87c] sm:$0xff]
        %v5888 = vld [vmem:[%s304 + $0x884] sm:$0xf]
        %v5889 = vld [vmem:[%s304 + $0x888] sm:$0xff]
        %v5890 = vld [vmem:[%s304 + $0x890] sm:$0xf]
        %v5891 = vld [vmem:[%s304 + $0x894] sm:$0xff]
        %v5892 = vld [vmem:[%s304 + $0x89c] sm:$0xf]
        %v5893 = vld [vmem:[%s304 + $0x8a0] sm:$0xff]
        %v5894 = vld [vmem:[%s304 + $0x8a8] sm:$0xf]
        %v5895 = vld [vmem:[%s304 + $0x8ac] sm:$0xff]
        %v5896 = vld [vmem:[%s304 + $0x8b4] sm:$0xf]
        %v5897 = vld [vmem:[%s304 + $0x8b8] sm:$0xff]
        %v5898 = vld [vmem:[%s304 + $0x8c0] sm:$0xf]
        %v5899 = vld [vmem:[%s304 + $0x8c4] sm:$0xff]
        %v5900 = vld [vmem:[%s304 + $0x8cc] sm:$0xf]
        %v5901 = vld [vmem:[%s304 + $0x8d0] sm:$0xff]
        %v5902 = vld [vmem:[%s304 + $0x8d8] sm:$0xf]
        %v5903 = vld [vmem:[%s304 + $0x8dc] sm:$0xff]
        %v5904 = vld [vmem:[%s304 + $0x8e4] sm:$0xf]
        %v5905 = vld [vmem:[%s304 + $0x8e8] sm:$0xff]
        %v5906 = vld [vmem:[%s304 + $0x8f0] sm:$0xf]
        %v5907 = vld [vmem:[%s304 + $0x8f4] sm:$0xff]
        %v5908 = vld [vmem:[%s304 + $0x8fc] sm:$0xf]
        %v6293 = vunpack.c.l.b16 %v5525
        %v6294 = vunpack.c.h.b16 %v5525
        %v6295 = vunpack.c.l.b16 %v5526
        %v6296 = vunpack.c.l.b16 %v5527
        %v6297 = vunpack.c.h.b16 %v5527
        %v6298 = vunpack.c.l.b16 %v5528
        %v6299 = vunpack.c.l.b16 %v5529
        %v6300 = vunpack.c.h.b16 %v5529
        %v6301 = vunpack.c.l.b16 %v5530
        %v6302 = vunpack.c.l.b16 %v5531
        %v6303 = vunpack.c.h.b16 %v5531
        %v6304 = vunpack.c.l.b16 %v5532
        %v6305 = vunpack.c.l.b16 %v5533
        %v6306 = vunpack.c.h.b16 %v5533
        %v6307 = vunpack.c.l.b16 %v5534
        %v6308 = vunpack.c.l.b16 %v5535
        %v6309 = vunpack.c.h.b16 %v5535
        %v6310 = vunpack.c.l.b16 %v5536
        %v6311 = vunpack.c.l.b16 %v5537
        %v6312 = vunpack.c.h.b16 %v5537
        %v6313 = vunpack.c.l.b16 %v5538
        %v6314 = vunpack.c.l.b16 %v5539
        %v6315 = vunpack.c.h.b16 %v5539
        %v6316 = vunpack.c.l.b16 %v5540
        %v6317 = vunpack.c.l.b16 %v5541
        %v6318 = vunpack.c.h.b16 %v5541
        %v6319 = vunpack.c.l.b16 %v5542
        %v6320 = vunpack.c.l.b16 %v5543
        %v6321 = vunpack.c.h.b16 %v5543
        %v6322 = vunpack.c.l.b16 %v5544
        %v6323 = vunpack.c.l.b16 %v5545
        %v6324 = vunpack.c.h.b16 %v5545
        %v6325 = vunpack.c.l.b16 %v5546
        %v6326 = vunpack.c.l.b16 %v5547
        %v6327 = vunpack.c.h.b16 %v5547
        %v6328 = vunpack.c.l.b16 %v5548
        %v6329 = vunpack.c.l.b16 %v5549
        %v6330 = vunpack.c.h.b16 %v5549
        %v6331 = vunpack.c.l.b16 %v5550
        %v6332 = vunpack.c.l.b16 %v5551
        %v6333 = vunpack.c.h.b16 %v5551
        %v6334 = vunpack.c.l.b16 %v5552
        %v6335 = vunpack.c.l.b16 %v5553
        %v6336 = vunpack.c.h.b16 %v5553
        %v6337 = vunpack.c.l.b16 %v5554
        %v6338 = vunpack.c.l.b16 %v5555
        %v6339 = vunpack.c.h.b16 %v5555
        %v6340 = vunpack.c.l.b16 %v5556
        %v6341 = vunpack.c.l.b16 %v5557
        %v6342 = vunpack.c.h.b16 %v5557
        %v6343 = vunpack.c.l.b16 %v5558
        %v6344 = vunpack.c.l.b16 %v5559
        %v6345 = vunpack.c.h.b16 %v5559
        %v6346 = vunpack.c.l.b16 %v5560
        %v6347 = vunpack.c.l.b16 %v5561
        %v6348 = vunpack.c.h.b16 %v5561
        %v6349 = vunpack.c.l.b16 %v5562
        %v6350 = vunpack.c.l.b16 %v5563
        %v6351 = vunpack.c.h.b16 %v5563
        %v6352 = vunpack.c.l.b16 %v5564
        %v6353 = vunpack.c.l.b16 %v5565
        %v6354 = vunpack.c.h.b16 %v5565
        %v6355 = vunpack.c.l.b16 %v5566
        %v6356 = vunpack.c.l.b16 %v5567
        %v6357 = vunpack.c.h.b16 %v5567
        %v6358 = vunpack.c.l.b16 %v5568
        %v6359 = vunpack.c.l.b16 %v5569
        %v6360 = vunpack.c.h.b16 %v5569
        %v6361 = vunpack.c.l.b16 %v5570
        %v6362 = vunpack.c.l.b16 %v5571
        %v6363 = vunpack.c.h.b16 %v5571
        %v6364 = vunpack.c.l.b16 %v5572
        %v6365 = vunpack.c.l.b16 %v5573
        %v6366 = vunpack.c.h.b16 %v5573
        %v6367 = vunpack.c.l.b16 %v5574
        %v6368 = vunpack.c.l.b16 %v5575
        %v6369 = vunpack.c.h.b16 %v5575
        %v6370 = vunpack.c.l.b16 %v5576
        %v6371 = vunpack.c.l.b16 %v5577
        %v6372 = vunpack.c.h.b16 %v5577
        %v6373 = vunpack.c.l.b16 %v5578
        %v6374 = vunpack.c.l.b16 %v5579
        %v6375 = vunpack.c.h.b16 %v5579
        %v6376 = vunpack.c.l.b16 %v5580
        %v6377 = vunpack.c.l.b16 %v5581
        %v6378 = vunpack.c.h.b16 %v5581
        %v6379 = vunpack.c.l.b16 %v5582
        %v6380 = vunpack.c.l.b16 %v5583
        %v6381 = vunpack.c.h.b16 %v5583
        %v6382 = vunpack.c.l.b16 %v5584
        %v6383 = vunpack.c.l.b16 %v5585
        %v6384 = vunpack.c.h.b16 %v5585
        %v6385 = vunpack.c.l.b16 %v5586
        %v6386 = vunpack.c.l.b16 %v5587
        %v6387 = vunpack.c.h.b16 %v5587
        %v6388 = vunpack.c.l.b16 %v5588
        %v6389 = vunpack.c.l.b16 %v5589
        %v6390 = vunpack.c.h.b16 %v5589
        %v6391 = vunpack.c.l.b16 %v5590
        %v6392 = vunpack.c.l.b16 %v5591
        %v6393 = vunpack.c.h.b16 %v5591
        %v6394 = vunpack.c.l.b16 %v5592
        %v6395 = vunpack.c.l.b16 %v5593
        %v6396 = vunpack.c.h.b16 %v5593
        %v6397 = vunpack.c.l.b16 %v5594
        %v6398 = vunpack.c.l.b16 %v5595
        %v6399 = vunpack.c.h.b16 %v5595
        %v6400 = vunpack.c.l.b16 %v5596
        %v6401 = vunpack.c.l.b16 %v5597
        %v6402 = vunpack.c.h.b16 %v5597
        %v6403 = vunpack.c.l.b16 %v5598
        %v6404 = vunpack.c.l.b16 %v5599
        %v6405 = vunpack.c.h.b16 %v5599
        %v6406 = vunpack.c.l.b16 %v5600
        %v6407 = vunpack.c.l.b16 %v5601
        %v6408 = vunpack.c.h.b16 %v5601
        %v6409 = vunpack.c.l.b16 %v5602
        %v6410 = vunpack.c.l.b16 %v5603
        %v6411 = vunpack.c.h.b16 %v5603
        %v6412 = vunpack.c.l.b16 %v5604
        %v6413 = vunpack.c.l.b16 %v5605
        %v6414 = vunpack.c.h.b16 %v5605
        %v6415 = vunpack.c.l.b16 %v5606
        %v6416 = vunpack.c.l.b16 %v5607
        %v6417 = vunpack.c.h.b16 %v5607
        %v6418 = vunpack.c.l.b16 %v5608
        %v6419 = vunpack.c.l.b16 %v5609
        %v6420 = vunpack.c.h.b16 %v5609
        %v6421 = vunpack.c.l.b16 %v5610
        %v6422 = vunpack.c.l.b16 %v5611
        %v6423 = vunpack.c.h.b16 %v5611
        %v6424 = vunpack.c.l.b16 %v5612
        %v6425 = vunpack.c.l.b16 %v5613
        %v6426 = vunpack.c.h.b16 %v5613
        %v6427 = vunpack.c.l.b16 %v5614
        %v6428 = vunpack.c.l.b16 %v5615
        %v6429 = vunpack.c.h.b16 %v5615
        %v6430 = vunpack.c.l.b16 %v5616
        %v6431 = vunpack.c.l.b16 %v5617
        %v6432 = vunpack.c.h.b16 %v5617
        %v6433 = vunpack.c.l.b16 %v5618
        %v6434 = vunpack.c.l.b16 %v5619
        %v6435 = vunpack.c.h.b16 %v5619
        %v6436 = vunpack.c.l.b16 %v5620
        %v6437 = vunpack.c.l.b16 %v5621
        %v6438 = vunpack.c.h.b16 %v5621
        %v6439 = vunpack.c.l.b16 %v5622
        %v6440 = vunpack.c.l.b16 %v5623
        %v6441 = vunpack.c.h.b16 %v5623
        %v6442 = vunpack.c.l.b16 %v5624
        %v6443 = vunpack.c.l.b16 %v5625
        %v6444 = vunpack.c.h.b16 %v5625
        %v6445 = vunpack.c.l.b16 %v5626
        %v6446 = vunpack.c.l.b16 %v5627
        %v6447 = vunpack.c.h.b16 %v5627
        %v6448 = vunpack.c.l.b16 %v5628
        %v6449 = vunpack.c.l.b16 %v5629
        %v6450 = vunpack.c.h.b16 %v5629
        %v6451 = vunpack.c.l.b16 %v5630
        %v6452 = vunpack.c.l.b16 %v5631
        %v6453 = vunpack.c.h.b16 %v5631
        %v6454 = vunpack.c.l.b16 %v5632
        %v6455 = vunpack.c.l.b16 %v5633
        %v6456 = vunpack.c.h.b16 %v5633
        %v6457 = vunpack.c.l.b16 %v5634
        %v6458 = vunpack.c.l.b16 %v5635
        %v6459 = vunpack.c.h.b16 %v5635
        %v6460 = vunpack.c.l.b16 %v5636
        %v6461 = vunpack.c.l.b16 %v5637
        %v6462 = vunpack.c.h.b16 %v5637
        %v6463 = vunpack.c.l.b16 %v5638
        %v6464 = vunpack.c.l.b16 %v5639
        %v6465 = vunpack.c.h.b16 %v5639
        %v6466 = vunpack.c.l.b16 %v5640
        %v6467 = vunpack.c.l.b16 %v5641
        %v6468 = vunpack.c.h.b16 %v5641
        %v6469 = vunpack.c.l.b16 %v5642
        %v6470 = vunpack.c.l.b16 %v5643
        %v6471 = vunpack.c.h.b16 %v5643
        %v6472 = vunpack.c.l.b16 %v5644
        %v6473 = vunpack.c.l.b16 %v5645
        %v6474 = vunpack.c.h.b16 %v5645
        %v6475 = vunpack.c.l.b16 %v5646
        %v6476 = vunpack.c.l.b16 %v5647
        %v6477 = vunpack.c.h.b16 %v5647
        %v6478 = vunpack.c.l.b16 %v5648
        %v6479 = vunpack.c.l.b16 %v5649
        %v6480 = vunpack.c.h.b16 %v5649
        %v6481 = vunpack.c.l.b16 %v5650
        %v6482 = vunpack.c.l.b16 %v5651
        %v6483 = vunpack.c.h.b16 %v5651
        %v6484 = vunpack.c.l.b16 %v5652
        %v6485 = vunpack.c.l.b16 %v5653
        %v6486 = vunpack.c.h.b16 %v5653
        %v6487 = vunpack.c.l.b16 %v5654
        %v6488 = vunpack.c.l.b16 %v5655
        %v6489 = vunpack.c.h.b16 %v5655
        %v6490 = vunpack.c.l.b16 %v5656
        %v6491 = vunpack.c.l.b16 %v5657
        %v6492 = vunpack.c.h.b16 %v5657
        %v6493 = vunpack.c.l.b16 %v5658
        %v6494 = vunpack.c.l.b16 %v5659
        %v6495 = vunpack.c.h.b16 %v5659
        %v6496 = vunpack.c.l.b16 %v5660
        %v6497 = vunpack.c.l.b16 %v5661
        %v6498 = vunpack.c.h.b16 %v5661
        %v6499 = vunpack.c.l.b16 %v5662
        %v6500 = vunpack.c.l.b16 %v5663
        %v6501 = vunpack.c.h.b16 %v5663
        %v6502 = vunpack.c.l.b16 %v5664
        %v6503 = vunpack.c.l.b16 %v5665
        %v6504 = vunpack.c.h.b16 %v5665
        %v6505 = vunpack.c.l.b16 %v5666
        %v6506 = vunpack.c.l.b16 %v5667
        %v6507 = vunpack.c.h.b16 %v5667
        %v6508 = vunpack.c.l.b16 %v5668
        %v6509 = vunpack.c.l.b16 %v5669
        %v6510 = vunpack.c.h.b16 %v5669
        %v6511 = vunpack.c.l.b16 %v5670
        %v6512 = vunpack.c.l.b16 %v5671
        %v6513 = vunpack.c.h.b16 %v5671
        %v6514 = vunpack.c.l.b16 %v5672
        %v6515 = vunpack.c.l.b16 %v5673
        %v6516 = vunpack.c.h.b16 %v5673
        %v6517 = vunpack.c.l.b16 %v5674
        %v6518 = vunpack.c.l.b16 %v5675
        %v6519 = vunpack.c.h.b16 %v5675
        %v6520 = vunpack.c.l.b16 %v5676
        %v6521 = vunpack.c.l.b16 %v5677
        %v6522 = vunpack.c.h.b16 %v5677
        %v6523 = vunpack.c.l.b16 %v5678
        %v6524 = vunpack.c.l.b16 %v5679
        %v6525 = vunpack.c.h.b16 %v5679
        %v6526 = vunpack.c.l.b16 %v5680
        %v6527 = vunpack.c.l.b16 %v5681
        %v6528 = vunpack.c.h.b16 %v5681
        %v6529 = vunpack.c.l.b16 %v5682
        %v6530 = vunpack.c.l.b16 %v5683
        %v6531 = vunpack.c.h.b16 %v5683
        %v6532 = vunpack.c.l.b16 %v5684
        %v6533 = vunpack.c.l.b16 %v5685
        %v6534 = vunpack.c.h.b16 %v5685
        %v6535 = vunpack.c.l.b16 %v5686
        %v6536 = vunpack.c.l.b16 %v5687
        %v6537 = vunpack.c.h.b16 %v5687
        %v6538 = vunpack.c.l.b16 %v5688
        %v6539 = vunpack.c.l.b16 %v5689
        %v6540 = vunpack.c.h.b16 %v5689
        %v6541 = vunpack.c.l.b16 %v5690
        %v6542 = vunpack.c.l.b16 %v5691
        %v6543 = vunpack.c.h.b16 %v5691
        %v6544 = vunpack.c.l.b16 %v5692
        %v6545 = vunpack.c.l.b16 %v5693
        %v6546 = vunpack.c.h.b16 %v5693
        %v6547 = vunpack.c.l.b16 %v5694
        %v6548 = vunpack.c.l.b16 %v5695
        %v6549 = vunpack.c.h.b16 %v5695
        %v6550 = vunpack.c.l.b16 %v5696
        %v6551 = vunpack.c.l.b16 %v5697
        %v6552 = vunpack.c.h.b16 %v5697
        %v6553 = vunpack.c.l.b16 %v5698
        %v6554 = vunpack.c.l.b16 %v5699
        %v6555 = vunpack.c.h.b16 %v5699
        %v6556 = vunpack.c.l.b16 %v5700
        %v6557 = vunpack.c.l.b16 %v5701
        %v6558 = vunpack.c.h.b16 %v5701
        %v6559 = vunpack.c.l.b16 %v5702
        %v6560 = vunpack.c.l.b16 %v5703
        %v6561 = vunpack.c.h.b16 %v5703
        %v6562 = vunpack.c.l.b16 %v5704
        %v6563 = vunpack.c.l.b16 %v5705
        %v6564 = vunpack.c.h.b16 %v5705
        %v6565 = vunpack.c.l.b16 %v5706
        %v6566 = vunpack.c.l.b16 %v5707
        %v6567 = vunpack.c.h.b16 %v5707
        %v6568 = vunpack.c.l.b16 %v5708
        %v6569 = vunpack.c.l.b16 %v5709
        %v6570 = vunpack.c.h.b16 %v5709
        %v6571 = vunpack.c.l.b16 %v5710
        %v6572 = vunpack.c.l.b16 %v5711
        %v6573 = vunpack.c.h.b16 %v5711
        %v6574 = vunpack.c.l.b16 %v5712
        %v6575 = vunpack.c.l.b16 %v5713
        %v6576 = vunpack.c.h.b16 %v5713
        %v6577 = vunpack.c.l.b16 %v5714
        %v6578 = vunpack.c.l.b16 %v5715
        %v6579 = vunpack.c.h.b16 %v5715
        %v6580 = vunpack.c.l.b16 %v5716
        %v6581 = vunpack.c.l.b16 %v5717
        %v6582 = vunpack.c.h.b16 %v5717
        %v6583 = vunpack.c.l.b16 %v5718
        %v6584 = vunpack.c.l.b16 %v5719
        %v6585 = vunpack.c.h.b16 %v5719
        %v6586 = vunpack.c.l.b16 %v5720
        %v6587 = vunpack.c.l.b16 %v5721
        %v6588 = vunpack.c.h.b16 %v5721
        %v6589 = vunpack.c.l.b16 %v5722
        %v6590 = vunpack.c.l.b16 %v5723
        %v6591 = vunpack.c.h.b16 %v5723
        %v6592 = vunpack.c.l.b16 %v5724
        %v6593 = vunpack.c.l.b16 %v5725
        %v6594 = vunpack.c.h.b16 %v5725
        %v6595 = vunpack.c.l.b16 %v5726
        %v6596 = vunpack.c.l.b16 %v5727
        %v6597 = vunpack.c.h.b16 %v5727
        %v6598 = vunpack.c.l.b16 %v5728
        %v6599 = vunpack.c.l.b16 %v5729
        %v6600 = vunpack.c.h.b16 %v5729
        %v6601 = vunpack.c.l.b16 %v5730
        %v6602 = vunpack.c.l.b16 %v5731
        %v6603 = vunpack.c.h.b16 %v5731
        %v6604 = vunpack.c.l.b16 %v5732
        %v6605 = vunpack.c.l.b16 %v5733
        %v6606 = vunpack.c.h.b16 %v5733
        %v6607 = vunpack.c.l.b16 %v5734
        %v6608 = vunpack.c.l.b16 %v5735
        %v6609 = vunpack.c.h.b16 %v5735
        %v6610 = vunpack.c.l.b16 %v5736
        %v6611 = vunpack.c.l.b16 %v5737
        %v6612 = vunpack.c.h.b16 %v5737
        %v6613 = vunpack.c.l.b16 %v5738
        %v6614 = vunpack.c.l.b16 %v5739
        %v6615 = vunpack.c.h.b16 %v5739
        %v6616 = vunpack.c.l.b16 %v5740
        %v6617 = vunpack.c.l.b16 %v5741
        %v6618 = vunpack.c.h.b16 %v5741
        %v6619 = vunpack.c.l.b16 %v5742
        %v6620 = vunpack.c.l.b16 %v5743
        %v6621 = vunpack.c.h.b16 %v5743
        %v6622 = vunpack.c.l.b16 %v5744
        %v6623 = vunpack.c.l.b16 %v5745
        %v6624 = vunpack.c.h.b16 %v5745
        %v6625 = vunpack.c.l.b16 %v5746
        %v6626 = vunpack.c.l.b16 %v5747
        %v6627 = vunpack.c.h.b16 %v5747
        %v6628 = vunpack.c.l.b16 %v5748
        %v6629 = vunpack.c.l.b16 %v5749
        %v6630 = vunpack.c.h.b16 %v5749
        %v6631 = vunpack.c.l.b16 %v5750
        %v6632 = vunpack.c.l.b16 %v5751
        %v6633 = vunpack.c.h.b16 %v5751
        %v6634 = vunpack.c.l.b16 %v5752
        %v6635 = vunpack.c.l.b16 %v5753
        %v6636 = vunpack.c.h.b16 %v5753
        %v6637 = vunpack.c.l.b16 %v5754
        %v6638 = vunpack.c.l.b16 %v5755
        %v6639 = vunpack.c.h.b16 %v5755
        %v6640 = vunpack.c.l.b16 %v5756
        %v6641 = vunpack.c.l.b16 %v5757
        %v6642 = vunpack.c.h.b16 %v5757
        %v6643 = vunpack.c.l.b16 %v5758
        %v6644 = vunpack.c.l.b16 %v5759
        %v6645 = vunpack.c.h.b16 %v5759
        %v6646 = vunpack.c.l.b16 %v5760
        %v6647 = vunpack.c.l.b16 %v5761
        %v6648 = vunpack.c.h.b16 %v5761
        %v6649 = vunpack.c.l.b16 %v5762
        %v6650 = vunpack.c.l.b16 %v5763
        %v6651 = vunpack.c.h.b16 %v5763
        %v6652 = vunpack.c.l.b16 %v5764
        %v6653 = vunpack.c.l.b16 %v5765
        %v6654 = vunpack.c.h.b16 %v5765
        %v6655 = vunpack.c.l.b16 %v5766
        %v6656 = vunpack.c.l.b16 %v5767
        %v6657 = vunpack.c.h.b16 %v5767
        %v6658 = vunpack.c.l.b16 %v5768
        %v6659 = vunpack.c.l.b16 %v5769
        %v6660 = vunpack.c.h.b16 %v5769
        %v6661 = vunpack.c.l.b16 %v5770
        %v6662 = vunpack.c.l.b16 %v5771
        %v6663 = vunpack.c.h.b16 %v5771
        %v6664 = vunpack.c.l.b16 %v5772
        %v6665 = vunpack.c.l.b16 %v5773
        %v6666 = vunpack.c.h.b16 %v5773
        %v6667 = vunpack.c.l.b16 %v5774
        %v6668 = vunpack.c.l.b16 %v5775
        %v6669 = vunpack.c.h.b16 %v5775
        %v6670 = vunpack.c.l.b16 %v5776
        %v6671 = vunpack.c.l.b16 %v5777
        %v6672 = vunpack.c.h.b16 %v5777
        %v6673 = vunpack.c.l.b16 %v5778
        %v6674 = vunpack.c.l.b16 %v5779
        %v6675 = vunpack.c.h.b16 %v5779
        %v6676 = vunpack.c.l.b16 %v5780
        %v6677 = vunpack.c.l.b16 %v5781
        %v6678 = vunpack.c.h.b16 %v5781
        %v6679 = vunpack.c.l.b16 %v5782
        %v6680 = vunpack.c.l.b16 %v5783
        %v6681 = vunpack.c.h.b16 %v5783
        %v6682 = vunpack.c.l.b16 %v5784
        %v6683 = vunpack.c.l.b16 %v5785
        %v6684 = vunpack.c.h.b16 %v5785
        %v6685 = vunpack.c.l.b16 %v5786
        %v6686 = vunpack.c.l.b16 %v5787
        %v6687 = vunpack.c.h.b16 %v5787
        %v6688 = vunpack.c.l.b16 %v5788
        %v6689 = vunpack.c.l.b16 %v5789
        %v6690 = vunpack.c.h.b16 %v5789
        %v6691 = vunpack.c.l.b16 %v5790
        %v6692 = vunpack.c.l.b16 %v5791
        %v6693 = vunpack.c.h.b16 %v5791
        %v6694 = vunpack.c.l.b16 %v5792
        %v6695 = vunpack.c.l.b16 %v5793
        %v6696 = vunpack.c.h.b16 %v5793
        %v6697 = vunpack.c.l.b16 %v5794
        %v6698 = vunpack.c.l.b16 %v5795
        %v6699 = vunpack.c.h.b16 %v5795
        %v6700 = vunpack.c.l.b16 %v5796
        %v6701 = vunpack.c.l.b16 %v5797
        %v6702 = vunpack.c.h.b16 %v5797
        %v6703 = vunpack.c.l.b16 %v5798
        %v6704 = vunpack.c.l.b16 %v5799
        %v6705 = vunpack.c.h.b16 %v5799
        %v6706 = vunpack.c.l.b16 %v5800
        %v6707 = vunpack.c.l.b16 %v5801
        %v6708 = vunpack.c.h.b16 %v5801
        %v6709 = vunpack.c.l.b16 %v5802
        %v6710 = vunpack.c.l.b16 %v5803
        %v6711 = vunpack.c.h.b16 %v5803
        %v6712 = vunpack.c.l.b16 %v5804
        %v6713 = vunpack.c.l.b16 %v5805
        %v6714 = vunpack.c.h.b16 %v5805
        %v6715 = vunpack.c.l.b16 %v5806
        %v6716 = vunpack.c.l.b16 %v5807
        %v6717 = vunpack.c.h.b16 %v5807
        %v6718 = vunpack.c.l.b16 %v5808
        %v6719 = vunpack.c.l.b16 %v5809
        %v6720 = vunpack.c.h.b16 %v5809
        %v6721 = vunpack.c.l.b16 %v5810
        %v6722 = vunpack.c.l.b16 %v5811
        %v6723 = vunpack.c.h.b16 %v5811
        %v6724 = vunpack.c.l.b16 %v5812
        %v6725 = vunpack.c.l.b16 %v5813
        %v6726 = vunpack.c.h.b16 %v5813
        %v6727 = vunpack.c.l.b16 %v5814
        %v6728 = vunpack.c.l.b16 %v5815
        %v6729 = vunpack.c.h.b16 %v5815
        %v6730 = vunpack.c.l.b16 %v5816
        %v6731 = vunpack.c.l.b16 %v5817
        %v6732 = vunpack.c.h.b16 %v5817
        %v6733 = vunpack.c.l.b16 %v5818
        %v6734 = vunpack.c.l.b16 %v5819
        %v6735 = vunpack.c.h.b16 %v5819
        %v6736 = vunpack.c.l.b16 %v5820
        %v6737 = vunpack.c.l.b16 %v5821
        %v6738 = vunpack.c.h.b16 %v5821
        %v6739 = vunpack.c.l.b16 %v5822
        %v6740 = vunpack.c.l.b16 %v5823
        %v6741 = vunpack.c.h.b16 %v5823
        %v6742 = vunpack.c.l.b16 %v5824
        %v6743 = vunpack.c.l.b16 %v5825
        %v6744 = vunpack.c.h.b16 %v5825
        %v6745 = vunpack.c.l.b16 %v5826
        %v6746 = vunpack.c.l.b16 %v5827
        %v6747 = vunpack.c.h.b16 %v5827
        %v6748 = vunpack.c.l.b16 %v5828
        %v6749 = vunpack.c.l.b16 %v5829
        %v6750 = vunpack.c.h.b16 %v5829
        %v6751 = vunpack.c.l.b16 %v5830
        %v6752 = vunpack.c.l.b16 %v5831
        %v6753 = vunpack.c.h.b16 %v5831
        %v6754 = vunpack.c.l.b16 %v5832
        %v6755 = vunpack.c.l.b16 %v5833
        %v6756 = vunpack.c.h.b16 %v5833
        %v6757 = vunpack.c.l.b16 %v5834
        %v6758 = vunpack.c.l.b16 %v5835
        %v6759 = vunpack.c.h.b16 %v5835
        %v6760 = vunpack.c.l.b16 %v5836
        %v6761 = vunpack.c.l.b16 %v5837
        %v6762 = vunpack.c.h.b16 %v5837
        %v6763 = vunpack.c.l.b16 %v5838
        %v6764 = vunpack.c.l.b16 %v5839
        %v6765 = vunpack.c.h.b16 %v5839
        %v6766 = vunpack.c.l.b16 %v5840
        %v6767 = vunpack.c.l.b16 %v5841
        %v6768 = vunpack.c.h.b16 %v5841
        %v6769 = vunpack.c.l.b16 %v5842
        %v6770 = vunpack.c.l.b16 %v5843
        %v6771 = vunpack.c.h.b16 %v5843
        %v6772 = vunpack.c.l.b16 %v5844
        %v6773 = vunpack.c.l.b16 %v5845
        %v6774 = vunpack.c.h.b16 %v5845
        %v6775 = vunpack.c.l.b16 %v5846
        %v6776 = vunpack.c.l.b16 %v5847
        %v6777 = vunpack.c.h.b16 %v5847
        %v6778 = vunpack.c.l.b16 %v5848
        %v6779 = vunpack.c.l.b16 %v5849
        %v6780 = vunpack.c.h.b16 %v5849
        %v6781 = vunpack.c.l.b16 %v5850
        %v6782 = vunpack.c.l.b16 %v5851
        %v6783 = vunpack.c.h.b16 %v5851
        %v6784 = vunpack.c.l.b16 %v5852
        %v6785 = vunpack.c.l.b16 %v5853
        %v6786 = vunpack.c.h.b16 %v5853
        %v6787 = vunpack.c.l.b16 %v5854
        %v6788 = vunpack.c.l.b16 %v5855
        %v6789 = vunpack.c.h.b16 %v5855
        %v6790 = vunpack.c.l.b16 %v5856
        %v6791 = vunpack.c.l.b16 %v5857
        %v6792 = vunpack.c.h.b16 %v5857
        %v6793 = vunpack.c.l.b16 %v5858
        %v6794 = vunpack.c.l.b16 %v5859
        %v6795 = vunpack.c.h.b16 %v5859
        %v6796 = vunpack.c.l.b16 %v5860
        %v6797 = vunpack.c.l.b16 %v5861
        %v6798 = vunpack.c.h.b16 %v5861
        %v6799 = vunpack.c.l.b16 %v5862
        %v6800 = vunpack.c.l.b16 %v5863
        %v6801 = vunpack.c.h.b16 %v5863
        %v6802 = vunpack.c.l.b16 %v5864
        %v6803 = vunpack.c.l.b16 %v5865
        %v6804 = vunpack.c.h.b16 %v5865
        %v6805 = vunpack.c.l.b16 %v5866
        %v6806 = vunpack.c.l.b16 %v5867
        %v6807 = vunpack.c.h.b16 %v5867
        %v6808 = vunpack.c.l.b16 %v5868
        %v6809 = vunpack.c.l.b16 %v5869
        %v6810 = vunpack.c.h.b16 %v5869
        %v6811 = vunpack.c.l.b16 %v5870
        %v6812 = vunpack.c.l.b16 %v5871
        %v6813 = vunpack.c.h.b16 %v5871
        %v6814 = vunpack.c.l.b16 %v5872
        %v6815 = vunpack.c.l.b16 %v5873
        %v6816 = vunpack.c.h.b16 %v5873
        %v6817 = vunpack.c.l.b16 %v5874
        %v6818 = vunpack.c.l.b16 %v5875
        %v6819 = vunpack.c.h.b16 %v5875
        %v6820 = vunpack.c.l.b16 %v5876
        %v6821 = vunpack.c.l.b16 %v5877
        %v6822 = vunpack.c.h.b16 %v5877
        %v6823 = vunpack.c.l.b16 %v5878
        %v6824 = vunpack.c.l.b16 %v5879
        %v6825 = vunpack.c.h.b16 %v5879
        %v6826 = vunpack.c.l.b16 %v5880
        %v6827 = vunpack.c.l.b16 %v5881
        %v6828 = vunpack.c.h.b16 %v5881
        %v6829 = vunpack.c.l.b16 %v5882
        %v6830 = vunpack.c.l.b16 %v5883
        %v6831 = vunpack.c.h.b16 %v5883
        %v6832 = vunpack.c.l.b16 %v5884
        %v6833 = vunpack.c.l.b16 %v5885
        %v6834 = vunpack.c.h.b16 %v5885
        %v6835 = vunpack.c.l.b16 %v5886
        %v6836 = vunpack.c.l.b16 %v5887
        %v6837 = vunpack.c.h.b16 %v5887
        %v6838 = vunpack.c.l.b16 %v5888
        %v6839 = vunpack.c.l.b16 %v5889
        %v6840 = vunpack.c.h.b16 %v5889
        %v6841 = vunpack.c.l.b16 %v5890
        %v6842 = vunpack.c.l.b16 %v5891
        %v6843 = vunpack.c.h.b16 %v5891
        %v6844 = vunpack.c.l.b16 %v5892
        %v6845 = vunpack.c.l.b16 %v5893
        %v6846 = vunpack.c.h.b16 %v5893
        %v6847 = vunpack.c.l.b16 %v5894
        %v6848 = vunpack.c.l.b16 %v5895
        %v6849 = vunpack.c.h.b16 %v5895
        %v6850 = vunpack.c.l.b16 %v5896
        %v6851 = vunpack.c.l.b16 %v5897
        %v6852 = vunpack.c.h.b16 %v5897
        %v6853 = vunpack.c.l.b16 %v5898
        %v6854 = vunpack.c.l.b16 %v5899
        %v6855 = vunpack.c.h.b16 %v5899
        %v6856 = vunpack.c.l.b16 %v5900
        %v6857 = vunpack.c.l.b16 %v5901
        %v6858 = vunpack.c.h.b16 %v5901
        %v6859 = vunpack.c.l.b16 %v5902
        %v6860 = vunpack.c.l.b16 %v5903
        %v6861 = vunpack.c.h.b16 %v5903
        %v6862 = vunpack.c.l.b16 %v5904
        %v6863 = vunpack.c.l.b16 %v5905
        %v6864 = vunpack.c.h.b16 %v5905
        %v6865 = vunpack.c.l.b16 %v5906
        %v6866 = vunpack.c.l.b16 %v5907
        %v6867 = vunpack.c.h.b16 %v5907
        %v6868 = vunpack.c.l.b16 %v5908
        %v6869 = vpack.c.b16 %v6296, %v6293
        %v6870 = vpack.c.b16 %v6297, %v6294
        %v6871 = vpack.c.b16 %v6298, %v6295
        %v6872 = vpack.c.b16 %v6302, %v6299
        %v6873 = vpack.c.b16 %v6303, %v6300
        %v6874 = vpack.c.b16 %v6304, %v6301
        %v6875 = vpack.c.b16 %v6308, %v6305
        %v6876 = vpack.c.b16 %v6309, %v6306
        %v6877 = vpack.c.b16 %v6310, %v6307
        %v6878 = vpack.c.b16 %v6314, %v6311
        %v6879 = vpack.c.b16 %v6315, %v6312
        %v6880 = vpack.c.b16 %v6316, %v6313
        %v6881 = vpack.c.b16 %v6320, %v6317
        %v6882 = vpack.c.b16 %v6321, %v6318
        %v6883 = vpack.c.b16 %v6322, %v6319
        %v6884 = vpack.c.b16 %v6326, %v6323
        %v6885 = vpack.c.b16 %v6327, %v6324
        %v6886 = vpack.c.b16 %v6328, %v6325
        %v6887 = vpack.c.b16 %v6332, %v6329
        %v6888 = vpack.c.b16 %v6333, %v6330
        %v6889 = vpack.c.b16 %v6334, %v6331
        %v6890 = vpack.c.b16 %v6338, %v6335
        %v6891 = vpack.c.b16 %v6339, %v6336
        %v6892 = vpack.c.b16 %v6340, %v6337
        %v6893 = vpack.c.b16 %v6344, %v6341
        %v6894 = vpack.c.b16 %v6345, %v6342
        %v6895 = vpack.c.b16 %v6346, %v6343
        %v6896 = vpack.c.b16 %v6350, %v6347
        %v6897 = vpack.c.b16 %v6351, %v6348
        %v6898 = vpack.c.b16 %v6352, %v6349
        %v6899 = vpack.c.b16 %v6356, %v6353
        %v6900 = vpack.c.b16 %v6357, %v6354
        %v6901 = vpack.c.b16 %v6358, %v6355
        %v6902 = vpack.c.b16 %v6362, %v6359
        %v6903 = vpack.c.b16 %v6363, %v6360
        %v6904 = vpack.c.b16 %v6364, %v6361
        %v6905 = vpack.c.b16 %v6368, %v6365
        %v6906 = vpack.c.b16 %v6369, %v6366
        %v6907 = vpack.c.b16 %v6370, %v6367
        %v6908 = vpack.c.b16 %v6374, %v6371
        %v6909 = vpack.c.b16 %v6375, %v6372
        %v6910 = vpack.c.b16 %v6376, %v6373
        %v6911 = vpack.c.b16 %v6380, %v6377
        %v6912 = vpack.c.b16 %v6381, %v6378
        %v6913 = vpack.c.b16 %v6382, %v6379
        %v6914 = vpack.c.b16 %v6386, %v6383
        %v6915 = vpack.c.b16 %v6387, %v6384
        %v6916 = vpack.c.b16 %v6388, %v6385
        %v6917 = vpack.c.b16 %v6392, %v6389
        %v6918 = vpack.c.b16 %v6393, %v6390
        %v6919 = vpack.c.b16 %v6394, %v6391
        %v6920 = vpack.c.b16 %v6398, %v6395
        %v6921 = vpack.c.b16 %v6399, %v6396
        %v6922 = vpack.c.b16 %v6400, %v6397
        %v6923 = vpack.c.b16 %v6404, %v6401
        %v6924 = vpack.c.b16 %v6405, %v6402
        %v6925 = vpack.c.b16 %v6406, %v6403
        %v6926 = vpack.c.b16 %v6410, %v6407
        %v6927 = vpack.c.b16 %v6411, %v6408
        %v6928 = vpack.c.b16 %v6412, %v6409
        %v6929 = vpack.c.b16 %v6416, %v6413
        %v6930 = vpack.c.b16 %v6417, %v6414
        %v6931 = vpack.c.b16 %v6418, %v6415
        %v6932 = vpack.c.b16 %v6422, %v6419
        %v6933 = vpack.c.b16 %v6423, %v6420
        %v6934 = vpack.c.b16 %v6424, %v6421
        %v6935 = vpack.c.b16 %v6428, %v6425
        %v6936 = vpack.c.b16 %v6429, %v6426
        %v6937 = vpack.c.b16 %v6430, %v6427
        %v6938 = vpack.c.b16 %v6434, %v6431
        %v6939 = vpack.c.b16 %v6435, %v6432
        %v6940 = vpack.c.b16 %v6436, %v6433
        %v6941 = vpack.c.b16 %v6440, %v6437
        %v6942 = vpack.c.b16 %v6441, %v6438
        %v6943 = vpack.c.b16 %v6442, %v6439
        %v6944 = vpack.c.b16 %v6446, %v6443
        %v6945 = vpack.c.b16 %v6447, %v6444
        %v6946 = vpack.c.b16 %v6448, %v6445
        %v6947 = vpack.c.b16 %v6452, %v6449
        %v6948 = vpack.c.b16 %v6453, %v6450
        %v6949 = vpack.c.b16 %v6454, %v6451
        %v6950 = vpack.c.b16 %v6458, %v6455
        %v6951 = vpack.c.b16 %v6459, %v6456
        %v6952 = vpack.c.b16 %v6460, %v6457
        %v6953 = vpack.c.b16 %v6464, %v6461
        %v6954 = vpack.c.b16 %v6465, %v6462
        %v6955 = vpack.c.b16 %v6466, %v6463
        %v6956 = vpack.c.b16 %v6470, %v6467
        %v6957 = vpack.c.b16 %v6471, %v6468
        %v6958 = vpack.c.b16 %v6472, %v6469
        %v6959 = vpack.c.b16 %v6476, %v6473
        %v6960 = vpack.c.b16 %v6477, %v6474
        %v6961 = vpack.c.b16 %v6478, %v6475
        %v6962 = vpack.c.b16 %v6482, %v6479
        %v6963 = vpack.c.b16 %v6483, %v6480
        %v6964 = vpack.c.b16 %v6484, %v6481
        %v6965 = vpack.c.b16 %v6488, %v6485
        %v6966 = vpack.c.b16 %v6489, %v6486
        %v6967 = vpack.c.b16 %v6490, %v6487
        %v6968 = vpack.c.b16 %v6494, %v6491
        %v6969 = vpack.c.b16 %v6495, %v6492
        %v6970 = vpack.c.b16 %v6496, %v6493
        %v6971 = vpack.c.b16 %v6500, %v6497
        %v6972 = vpack.c.b16 %v6501, %v6498
        %v6973 = vpack.c.b16 %v6502, %v6499
        %v6974 = vpack.c.b16 %v6506, %v6503
        %v6975 = vpack.c.b16 %v6507, %v6504
        %v6976 = vpack.c.b16 %v6508, %v6505
        %v6977 = vpack.c.b16 %v6512, %v6509
        %v6978 = vpack.c.b16 %v6513, %v6510
        %v6979 = vpack.c.b16 %v6514, %v6511
        %v6980 = vpack.c.b16 %v6518, %v6515
        %v6981 = vpack.c.b16 %v6519, %v6516
        %v6982 = vpack.c.b16 %v6520, %v6517
        %v6983 = vpack.c.b16 %v6524, %v6521
        %v6984 = vpack.c.b16 %v6525, %v6522
        %v6985 = vpack.c.b16 %v6526, %v6523
        %v6986 = vpack.c.b16 %v6530, %v6527
        %v6987 = vpack.c.b16 %v6531, %v6528
        %v6988 = vpack.c.b16 %v6532, %v6529
        %v6989 = vpack.c.b16 %v6536, %v6533
        %v6990 = vpack.c.b16 %v6537, %v6534
        %v6991 = vpack.c.b16 %v6538, %v6535
        %v6992 = vpack.c.b16 %v6542, %v6539
        %v6993 = vpack.c.b16 %v6543, %v6540
        %v6994 = vpack.c.b16 %v6544, %v6541
        %v6995 = vpack.c.b16 %v6548, %v6545
        %v6996 = vpack.c.b16 %v6549, %v6546
        %v6997 = vpack.c.b16 %v6550, %v6547
        %v6998 = vpack.c.b16 %v6554, %v6551
        %v6999 = vpack.c.b16 %v6555, %v6552
        %v7000 = vpack.c.b16 %v6556, %v6553
        %v7001 = vpack.c.b16 %v6560, %v6557
        %v7002 = vpack.c.b16 %v6561, %v6558
        %v7003 = vpack.c.b16 %v6562, %v6559
        %v7004 = vpack.c.b16 %v6566, %v6563
        %v7005 = vpack.c.b16 %v6567, %v6564
        %v7006 = vpack.c.b16 %v6568, %v6565
        %v7007 = vpack.c.b16 %v6572, %v6569
        %v7008 = vpack.c.b16 %v6573, %v6570
        %v7009 = vpack.c.b16 %v6574, %v6571
        %v7010 = vpack.c.b16 %v6578, %v6575
        %v7011 = vpack.c.b16 %v6579, %v6576
        %v7012 = vpack.c.b16 %v6580, %v6577
        %v7013 = vpack.c.b16 %v6584, %v6581
        %v7014 = vpack.c.b16 %v6585, %v6582
        %v7015 = vpack.c.b16 %v6586, %v6583
        %v7016 = vpack.c.b16 %v6590, %v6587
        %v7017 = vpack.c.b16 %v6591, %v6588
        %v7018 = vpack.c.b16 %v6592, %v6589
        %v7019 = vpack.c.b16 %v6596, %v6593
        %v7020 = vpack.c.b16 %v6597, %v6594
        %v7021 = vpack.c.b16 %v6598, %v6595
        %v7022 = vpack.c.b16 %v6602, %v6599
        %v7023 = vpack.c.b16 %v6603, %v6600
        %v7024 = vpack.c.b16 %v6604, %v6601
        %v7025 = vpack.c.b16 %v6608, %v6605
        %v7026 = vpack.c.b16 %v6609, %v6606
        %v7027 = vpack.c.b16 %v6610, %v6607
        %v7028 = vpack.c.b16 %v6614, %v6611
        %v7029 = vpack.c.b16 %v6615, %v6612
        %v7030 = vpack.c.b16 %v6616, %v6613
        %v7031 = vpack.c.b16 %v6620, %v6617
        %v7032 = vpack.c.b16 %v6621, %v6618
        %v7033 = vpack.c.b16 %v6622, %v6619
        %v7034 = vpack.c.b16 %v6626, %v6623
        %v7035 = vpack.c.b16 %v6627, %v6624
        %v7036 = vpack.c.b16 %v6628, %v6625
        %v7037 = vpack.c.b16 %v6632, %v6629
        %v7038 = vpack.c.b16 %v6633, %v6630
        %v7039 = vpack.c.b16 %v6634, %v6631
        %v7040 = vpack.c.b16 %v6638, %v6635
        %v7041 = vpack.c.b16 %v6639, %v6636
        %v7042 = vpack.c.b16 %v6640, %v6637
        %v7043 = vpack.c.b16 %v6644, %v6641
        %v7044 = vpack.c.b16 %v6645, %v6642
        %v7045 = vpack.c.b16 %v6646, %v6643
        %v7046 = vpack.c.b16 %v6650, %v6647
        %v7047 = vpack.c.b16 %v6651, %v6648
        %v7048 = vpack.c.b16 %v6652, %v6649
        %v7049 = vpack.c.b16 %v6656, %v6653
        %v7050 = vpack.c.b16 %v6657, %v6654
        %v7051 = vpack.c.b16 %v6658, %v6655
        %v7052 = vpack.c.b16 %v6662, %v6659
        %v7053 = vpack.c.b16 %v6663, %v6660
        %v7054 = vpack.c.b16 %v6664, %v6661
        %v7055 = vpack.c.b16 %v6668, %v6665
        %v7056 = vpack.c.b16 %v6669, %v6666
        %v7057 = vpack.c.b16 %v6670, %v6667
        %v7058 = vpack.c.b16 %v6674, %v6671
        %v7059 = vpack.c.b16 %v6675, %v6672
        %v7060 = vpack.c.b16 %v6676, %v6673
        %v7061 = vpack.c.b16 %v6680, %v6677
        %v7062 = vpack.c.b16 %v6681, %v6678
        %v7063 = vpack.c.b16 %v6682, %v6679
        %v7064 = vpack.c.b16 %v6686, %v6683
        %v7065 = vpack.c.b16 %v6687, %v6684
        %v7066 = vpack.c.b16 %v6688, %v6685
        %v7067 = vpack.c.b16 %v6692, %v6689
        %v7068 = vpack.c.b16 %v6693, %v6690
        %v7069 = vpack.c.b16 %v6694, %v6691
        %v7070 = vpack.c.b16 %v6698, %v6695
        %v7071 = vpack.c.b16 %v6699, %v6696
        %v7072 = vpack.c.b16 %v6700, %v6697
        %v7073 = vpack.c.b16 %v6704, %v6701
        %v7074 = vpack.c.b16 %v6705, %v6702
        %v7075 = vpack.c.b16 %v6706, %v6703
        %v7076 = vpack.c.b16 %v6710, %v6707
        %v7077 = vpack.c.b16 %v6711, %v6708
        %v7078 = vpack.c.b16 %v6712, %v6709
        %v7079 = vpack.c.b16 %v6716, %v6713
        %v7080 = vpack.c.b16 %v6717, %v6714
        %v7081 = vpack.c.b16 %v6718, %v6715
        %v7082 = vpack.c.b16 %v6722, %v6719
        %v7083 = vpack.c.b16 %v6723, %v6720
        %v7084 = vpack.c.b16 %v6724, %v6721
        %v7085 = vpack.c.b16 %v6728, %v6725
        %v7086 = vpack.c.b16 %v6729, %v6726
        %v7087 = vpack.c.b16 %v6730, %v6727
        %v7088 = vpack.c.b16 %v6734, %v6731
        %v7089 = vpack.c.b16 %v6735, %v6732
        %v7090 = vpack.c.b16 %v6736, %v6733
        %v7091 = vpack.c.b16 %v6740, %v6737
        %v7092 = vpack.c.b16 %v6741, %v6738
        %v7093 = vpack.c.b16 %v6742, %v6739
        %v7094 = vpack.c.b16 %v6746, %v6743
        %v7095 = vpack.c.b16 %v6747, %v6744
        %v7096 = vpack.c.b16 %v6748, %v6745
        %v7097 = vpack.c.b16 %v6752, %v6749
        %v7098 = vpack.c.b16 %v6753, %v6750
        %v7099 = vpack.c.b16 %v6754, %v6751
        %v7100 = vpack.c.b16 %v6758, %v6755
        %v7101 = vpack.c.b16 %v6759, %v6756
        %v7102 = vpack.c.b16 %v6760, %v6757
        %v7103 = vpack.c.b16 %v6764, %v6761
        %v7104 = vpack.c.b16 %v6765, %v6762
        %v7105 = vpack.c.b16 %v6766, %v6763
        %v7106 = vpack.c.b16 %v6770, %v6767
        %v7107 = vpack.c.b16 %v6771, %v6768
        %v7108 = vpack.c.b16 %v6772, %v6769
        %v7109 = vpack.c.b16 %v6776, %v6773
        %v7110 = vpack.c.b16 %v6777, %v6774
        %v7111 = vpack.c.b16 %v6778, %v6775
        %v7112 = vpack.c.b16 %v6782, %v6779
        %v7113 = vpack.c.b16 %v6783, %v6780
        %v7114 = vpack.c.b16 %v6784, %v6781
        %v7115 = vpack.c.b16 %v6788, %v6785
        %v7116 = vpack.c.b16 %v6789, %v6786
        %v7117 = vpack.c.b16 %v6790, %v6787
        %v7118 = vpack.c.b16 %v6794, %v6791
        %v7119 = vpack.c.b16 %v6795, %v6792
        %v7120 = vpack.c.b16 %v6796, %v6793
        %v7121 = vpack.c.b16 %v6800, %v6797
        %v7122 = vpack.c.b16 %v6801, %v6798
        %v7123 = vpack.c.b16 %v6802, %v6799
        %v7124 = vpack.c.b16 %v6806, %v6803
        %v7125 = vpack.c.b16 %v6807, %v6804
        %v7126 = vpack.c.b16 %v6808, %v6805
        %v7127 = vpack.c.b16 %v6812, %v6809
        %v7128 = vpack.c.b16 %v6813, %v6810
        %v7129 = vpack.c.b16 %v6814, %v6811
        %v7130 = vpack.c.b16 %v6818, %v6815
        %v7131 = vpack.c.b16 %v6819, %v6816
        %v7132 = vpack.c.b16 %v6820, %v6817
        %v7133 = vpack.c.b16 %v6824, %v6821
        %v7134 = vpack.c.b16 %v6825, %v6822
        %v7135 = vpack.c.b16 %v6826, %v6823
        %v7136 = vpack.c.b16 %v6830, %v6827
        %v7137 = vpack.c.b16 %v6831, %v6828
        %v7138 = vpack.c.b16 %v6832, %v6829
        %v7139 = vpack.c.b16 %v6836, %v6833
        %v7140 = vpack.c.b16 %v6837, %v6834
        %v7141 = vpack.c.b16 %v6838, %v6835
        %v7142 = vpack.c.b16 %v6842, %v6839
        %v7143 = vpack.c.b16 %v6843, %v6840
        %v7144 = vpack.c.b16 %v6844, %v6841
        %v7145 = vpack.c.b16 %v6848, %v6845
        %v7146 = vpack.c.b16 %v6849, %v6846
        %v7147 = vpack.c.b16 %v6850, %v6847
        %v7148 = vpack.c.b16 %v6854, %v6851
        %v7149 = vpack.c.b16 %v6855, %v6852
        %v7150 = vpack.c.b16 %v6856, %v6853
        %v7151 = vpack.c.b16 %v6860, %v6857
        %v7152 = vpack.c.b16 %v6861, %v6858
        %v7153 = vpack.c.b16 %v6862, %v6859
        %v7154 = vpack.c.b16 %v6866, %v6863
        %v7155 = vpack.c.b16 %v6867, %v6864
        %v7156 = vpack.c.b16 %v6868, %v6865
        %7445 = vmatprep.subr.bf16.mxu0 %v6891
        %7446 = vmatpush1.bf16.msra.mxu0 %v6890
        %7447 = vmatprep.subr.bf16.mxu0 %v6888
        %7448 = vmatpush1.bf16.msra.mxu0 %v6887
        %7449 = vmatprep.subr.bf16.mxu0 %v6885
        %7450 = vmatpush1.bf16.msra.mxu0 %v6884
        %7451 = vmatprep.subr.bf16.mxu0 %v6882
        %7452 = vmatpush1.bf16.msra.mxu0 %v6881
        %7453 = vmatprep.subr.bf16.mxu0 %v6879
        %7454 = vmatpush1.bf16.msra.mxu0 %v6878
        %7455 = vmatprep.subr.bf16.mxu0 %v6876
        %7456 = vmatpush1.bf16.msra.mxu0 %v6875
        %7457 = vmatprep.subr.bf16.mxu0 %v6873
        %7458 = vmatpush1.bf16.msra.mxu0 %v6872
        %7459 = vmatprep.subr.bf16.mxu0 %v6870
        %7460 = vmatpush1.bf16.msra.mxu0 %v6869
        %7461 = vmatprep.subr.bf16.mxu0 %v6915
        %7462 = vmatpush2.bf16.msra.mxu0 %v6914
        %7463 = vmatprep.subr.bf16.mxu0 %v6912
        %7464 = vmatpush2.bf16.msra.mxu0 %v6911
        %7465 = vmatprep.subr.bf16.mxu0 %v6909
        %7466 = vmatpush2.bf16.msra.mxu0 %v6908
        %7467 = vmatprep.subr.bf16.mxu0 %v6906
        %7468 = vmatpush2.bf16.msra.mxu0 %v6905
        %7469 = vmatprep.subr.bf16.mxu0 %v6903
        %7470 = vmatpush2.bf16.msra.mxu0 %v6902
        %7471 = vmatprep.subr.bf16.mxu0 %v6900
        %7472 = vmatpush2.bf16.msra.mxu0 %v6899
        %7473 = vmatprep.subr.bf16.mxu0 %v6897
        %7474 = vmatpush2.bf16.msra.mxu0 %v6896
        %7475 = vmatprep.subr.bf16.mxu0 %v6894
        %7476 = vmatpush2.bf16.msra.mxu0 %v6893
        %7477 = vmatprep.mubr.bf16.mxu0 %v5334
        %7478 = vmatmul.mubr.bf16.gmra.mxu0 %v5333
        %v7479 = vpop.f32.mrf.mxu0
        %v7480 = vadd.f32 0.0, %v7479
        %v7481 = vpop.f32.mrf.mxu0
        %v7482 = vadd.f32 0.0, %v7481
        %v7483 = vpop.f32.mrf.mxu0
        %v7484 = vadd.f32 0.0, %v7483
        %v7485 = vpop.f32.mrf.mxu0
        %v7486 = vadd.f32 0.0, %v7485
        %7487 = vmatprep.mubr.bf16.mxu0 %v5346
        %7488 = vmatmul.mubr.bf16.gmra.mxu0 %v5345
        %v7489 = vpop.f32.mrf.mxu0
        %v7490 = vadd.f32 0.0, %v7489
        %v7491 = vpop.f32.mrf.mxu0
        %v7492 = vadd.f32 0.0, %v7491
        %v7493 = vpop.f32.mrf.mxu0
        %v7494 = vadd.f32 0.0, %v7493
        %v7495 = vpop.f32.mrf.mxu0
        %v7496 = vadd.f32 0.0, %v7495
        %7497 = vmatprep.mubr.bf16.mxu0 %v5358
        %7498 = vmatmul.mubr.bf16.gmra.mxu0 %v5357
        %v7499 = vpop.f32.mrf.mxu0
        %v7500 = vadd.f32 0.0, %v7499
        %v7501 = vpop.f32.mrf.mxu0
        %v7502 = vadd.f32 0.0, %v7501
        %v7503 = vpop.f32.mrf.mxu0
        %v7504 = vadd.f32 0.0, %v7503
        %v7505 = vpop.f32.mrf.mxu0
        %v7506 = vadd.f32 0.0, %v7505
        %7507 = vmatprep.mubr.bf16.mxu0 %v5370
        %7508 = vmatmul.mubr.bf16.gmra.mxu0 %v5369
        %v7509 = vpop.f32.mrf.mxu0
        %v7510 = vadd.f32 0.0, %v7509
        %v7511 = vpop.f32.mrf.mxu0
        %v7512 = vadd.f32 0.0, %v7511
        %v7513 = vpop.f32.mrf.mxu0
        %v7514 = vadd.f32 0.0, %v7513
        %v7515 = vpop.f32.mrf.mxu0
        %v7516 = vadd.f32 0.0, %v7515
        %7517 = vmatprep.mubr.bf16.mxu0 %v5382
        %7518 = vmatmul.mubr.bf16.gmra.mxu0 %v5381
        %v7519 = vpop.f32.mrf.mxu0
        %v7520 = vadd.f32 0.0, %v7519
        %v7521 = vpop.f32.mrf.mxu0
        %v7522 = vadd.f32 0.0, %v7521
        %v7523 = vpop.f32.mrf.mxu0
        %v7524 = vadd.f32 0.0, %v7523
        %v7525 = vpop.f32.mrf.mxu0
        %v7526 = vadd.f32 0.0, %v7525
        %7527 = vmatprep.mubr.bf16.mxu0 %v5394
        %7528 = vmatmul.mubr.bf16.gmra.mxu0 %v5393
        %v7529 = vpop.f32.mrf.mxu0
        %v7530 = vadd.f32 0.0, %v7529
        %v7531 = vpop.f32.mrf.mxu0
        %v7532 = vadd.f32 0.0, %v7531
        %v7533 = vpop.f32.mrf.mxu0
        %v7534 = vadd.f32 0.0, %v7533
        %v7535 = vpop.f32.mrf.mxu0
        %v7536 = vadd.f32 0.0, %v7535
        %7537 = vmatprep.mubr.bf16.mxu0 %v5406
        %7538 = vmatmul.mubr.bf16.gmra.mxu0 %v5405
        %v7539 = vpop.f32.mrf.mxu0
        %v7540 = vadd.f32 0.0, %v7539
        %v7541 = vpop.f32.mrf.mxu0
        %v7542 = vadd.f32 0.0, %v7541
        %v7543 = vpop.f32.mrf.mxu0
        %v7544 = vadd.f32 0.0, %v7543
        %v7545 = vpop.f32.mrf.mxu0
        %v7546 = vadd.f32 0.0, %v7545
        %7547 = vmatprep.mubr.bf16.mxu0 %v5418
        %7548 = vmatmul.mubr.bf16.gmra.mxu0 %v5417
        %v7549 = vpop.f32.mrf.mxu0
        %v7550 = vadd.f32 0.0, %v7549
        %v7551 = vpop.f32.mrf.mxu0
        %v7552 = vadd.f32 0.0, %v7551
        %v7553 = vpop.f32.mrf.mxu0
        %v7554 = vadd.f32 0.0, %v7553
        %v7555 = vpop.f32.mrf.mxu0
        %v7556 = vadd.f32 0.0, %v7555
        %7557 = vmatprep.mubr.bf16.mxu0 %v5430
        %7558 = vmatmul.mubr.bf16.gmra.mxu0 %v5429
        %v7559 = vpop.f32.mrf.mxu0
        %v7560 = vadd.f32 0.0, %v7559
        %v7561 = vpop.f32.mrf.mxu0
        %v7562 = vadd.f32 0.0, %v7561
        %v7563 = vpop.f32.mrf.mxu0
        %v7564 = vadd.f32 0.0, %v7563
        %v7565 = vpop.f32.mrf.mxu0
        %v7566 = vadd.f32 0.0, %v7565
        %7567 = vmatprep.mubr.bf16.mxu0 %v5442
        %7568 = vmatmul.mubr.bf16.gmra.mxu0 %v5441
        %v7569 = vpop.f32.mrf.mxu0
        %v7570 = vadd.f32 0.0, %v7569
        %v7571 = vpop.f32.mrf.mxu0
        %v7572 = vadd.f32 0.0, %v7571
        %v7573 = vpop.f32.mrf.mxu0
        %v7574 = vadd.f32 0.0, %v7573
        %v7575 = vpop.f32.mrf.mxu0
        %v7576 = vadd.f32 0.0, %v7575
        %7577 = vmatprep.mubr.bf16.mxu0 %v5454
        %7578 = vmatmul.mubr.bf16.gmra.mxu0 %v5453
        %v7579 = vpop.f32.mrf.mxu0
        %v7580 = vadd.f32 0.0, %v7579
        %v7581 = vpop.f32.mrf.mxu0
        %v7582 = vadd.f32 0.0, %v7581
        %v7583 = vpop.f32.mrf.mxu0
        %v7584 = vadd.f32 0.0, %v7583
        %v7585 = vpop.f32.mrf.mxu0
        %v7586 = vadd.f32 0.0, %v7585
        %7587 = vmatprep.mubr.bf16.mxu0 %v5466
        %7588 = vmatmul.mubr.bf16.gmra.mxu0 %v5465
        %v7589 = vpop.f32.mrf.mxu0
        %v7590 = vadd.f32 0.0, %v7589
        %v7591 = vpop.f32.mrf.mxu0
        %v7592 = vadd.f32 0.0, %v7591
        %v7593 = vpop.f32.mrf.mxu0
        %v7594 = vadd.f32 0.0, %v7593
        %v7595 = vpop.f32.mrf.mxu0
        %v7596 = vadd.f32 0.0, %v7595
        %7597 = vmatprep.mubr.bf16.mxu0 %v5478
        %7598 = vmatmul.mubr.bf16.gmra.mxu0 %v5477
        %v7599 = vpop.f32.mrf.mxu0
        %v7600 = vadd.f32 0.0, %v7599
        %v7601 = vpop.f32.mrf.mxu0
        %v7602 = vadd.f32 0.0, %v7601
        %v7603 = vpop.f32.mrf.mxu0
        %v7604 = vadd.f32 0.0, %v7603
        %v7605 = vpop.f32.mrf.mxu0
        %v7606 = vadd.f32 0.0, %v7605
        %7607 = vmatprep.mubr.bf16.mxu0 %v5490
        %7608 = vmatmul.mubr.bf16.gmra.mxu0 %v5489
        %v7609 = vpop.f32.mrf.mxu0
        %v7610 = vadd.f32 0.0, %v7609
        %v7611 = vpop.f32.mrf.mxu0
        %v7612 = vadd.f32 0.0, %v7611
        %v7613 = vpop.f32.mrf.mxu0
        %v7614 = vadd.f32 0.0, %v7613
        %v7615 = vpop.f32.mrf.mxu0
        %v7616 = vadd.f32 0.0, %v7615
        %7617 = vmatprep.mubr.bf16.mxu0 %v5502
        %7618 = vmatmul.mubr.bf16.gmra.mxu0 %v5501
        %v7619 = vpop.f32.mrf.mxu0
        %v7620 = vadd.f32 0.0, %v7619
        %v7621 = vpop.f32.mrf.mxu0
        %v7622 = vadd.f32 0.0, %v7621
        %v7623 = vpop.f32.mrf.mxu0
        %v7624 = vadd.f32 0.0, %v7623
        %v7625 = vpop.f32.mrf.mxu0
        %v7626 = vadd.f32 0.0, %v7625
        %7627 = vmatprep.mubr.bf16.mxu0 %v5514
        %7628 = vmatmul.mubr.bf16.gmra.mxu0 %v5513
        %v7629 = vpop.f32.mrf.mxu0
        %v7630 = vadd.f32 0.0, %v7629
        %v7631 = vpop.f32.mrf.mxu0
        %v7632 = vadd.f32 0.0, %v7631
        %v7633 = vpop.f32.mrf.mxu0
        %v7634 = vadd.f32 0.0, %v7633
        %v7635 = vpop.f32.mrf.mxu0
        %v7636 = vadd.f32 0.0, %v7635
        %7637 = vdwg.mxu0
        %7638 = vmatprep.subr.bf16.mxu0 %v6939
        %7639 = vmatpush1.bf16.msra.mxu0 %v6938
        %7640 = vmatprep.subr.bf16.mxu0 %v6936
        %7641 = vmatpush1.bf16.msra.mxu0 %v6935
        %7642 = vmatprep.subr.bf16.mxu0 %v6933
        %7643 = vmatpush1.bf16.msra.mxu0 %v6932
        %7644 = vmatprep.subr.bf16.mxu0 %v6930
        %7645 = vmatpush1.bf16.msra.mxu0 %v6929
        %7646 = vmatprep.subr.bf16.mxu0 %v6927
        %7647 = vmatpush1.bf16.msra.mxu0 %v6926
        %7648 = vmatprep.subr.bf16.mxu0 %v6924
        %7649 = vmatpush1.bf16.msra.mxu0 %v6923
        %7650 = vmatprep.subr.bf16.mxu0 %v6921
        %7651 = vmatpush1.bf16.msra.mxu0 %v6920
        %7652 = vmatprep.subr.bf16.mxu0 %v6918
        %7653 = vmatpush1.bf16.msra.mxu0 %v6917
        %7654 = vmatprep.subr.bf16.mxu0 %v6963
        %7655 = vmatpush2.bf16.msra.mxu0 %v6962
        %7656 = vmatprep.subr.bf16.mxu0 %v6960
        %7657 = vmatpush2.bf16.msra.mxu0 %v6959
        %7658 = vmatprep.subr.bf16.mxu0 %v6957
        %7659 = vmatpush2.bf16.msra.mxu0 %v6956
        %7660 = vmatprep.subr.bf16.mxu0 %v6954
        %7661 = vmatpush2.bf16.msra.mxu0 %v6953
        %7662 = vmatprep.subr.bf16.mxu0 %v6951
        %7663 = vmatpush2.bf16.msra.mxu0 %v6950
        %7664 = vmatprep.subr.bf16.mxu0 %v6948
        %7665 = vmatpush2.bf16.msra.mxu0 %v6947
        %7666 = vmatprep.subr.bf16.mxu0 %v6945
        %7667 = vmatpush2.bf16.msra.mxu0 %v6944
        %7668 = vmatprep.subr.bf16.mxu0 %v6942
        %7669 = vmatpush2.bf16.msra.mxu0 %v6941
        %7670 = vmatprep.mubr.bf16.mxu0 %v5336
        %7671 = vmatmul.mubr.bf16.gmra.mxu0 %v5335
        %v7672 = vpop.f32.mrf.mxu0
        %v7673 = vadd.f32 %v7480, %v7672
        %v7674 = vpop.f32.mrf.mxu0
        %v7675 = vadd.f32 %v7482, %v7674
        %v7676 = vpop.f32.mrf.mxu0
        %v7677 = vadd.f32 %v7484, %v7676
        %v7678 = vpop.f32.mrf.mxu0
        %v7679 = vadd.f32 %v7486, %v7678
        %7680 = vmatprep.mubr.bf16.mxu0 %v5348
        %7681 = vmatmul.mubr.bf16.gmra.mxu0 %v5347
        %v7682 = vpop.f32.mrf.mxu0
        %v7683 = vadd.f32 %v7490, %v7682
        %v7684 = vpop.f32.mrf.mxu0
        %v7685 = vadd.f32 %v7492, %v7684
        %v7686 = vpop.f32.mrf.mxu0
        %v7687 = vadd.f32 %v7494, %v7686
        %v7688 = vpop.f32.mrf.mxu0
        %v7689 = vadd.f32 %v7496, %v7688
        %7690 = vmatprep.mubr.bf16.mxu0 %v5360
        %7691 = vmatmul.mubr.bf16.gmra.mxu0 %v5359
        %v7692 = vpop.f32.mrf.mxu0
        %v7693 = vadd.f32 %v7500, %v7692
        %v7694 = vpop.f32.mrf.mxu0
        %v7695 = vadd.f32 %v7502, %v7694
        %v7696 = vpop.f32.mrf.mxu0
        %v7697 = vadd.f32 %v7504, %v7696
        %v7698 = vpop.f32.mrf.mxu0
        %v7699 = vadd.f32 %v7506, %v7698
        %7700 = vmatprep.mubr.bf16.mxu0 %v5372
        %7701 = vmatmul.mubr.bf16.gmra.mxu0 %v5371
        %v7702 = vpop.f32.mrf.mxu0
        %v7703 = vadd.f32 %v7510, %v7702
        %v7704 = vpop.f32.mrf.mxu0
        %v7705 = vadd.f32 %v7512, %v7704
        %v7706 = vpop.f32.mrf.mxu0
        %v7707 = vadd.f32 %v7514, %v7706
        %v7708 = vpop.f32.mrf.mxu0
        %v7709 = vadd.f32 %v7516, %v7708
        %7710 = vmatprep.mubr.bf16.mxu0 %v5384
        %7711 = vmatmul.mubr.bf16.gmra.mxu0 %v5383
        %v7712 = vpop.f32.mrf.mxu0
        %v7713 = vadd.f32 %v7520, %v7712
        %v7714 = vpop.f32.mrf.mxu0
        %v7715 = vadd.f32 %v7522, %v7714
        %v7716 = vpop.f32.mrf.mxu0
        %v7717 = vadd.f32 %v7524, %v7716
        %v7718 = vpop.f32.mrf.mxu0
        %v7719 = vadd.f32 %v7526, %v7718
        %7720 = vmatprep.mubr.bf16.mxu0 %v5396
        %7721 = vmatmul.mubr.bf16.gmra.mxu0 %v5395
        %v7722 = vpop.f32.mrf.mxu0
        %v7723 = vadd.f32 %v7530, %v7722
        %v7724 = vpop.f32.mrf.mxu0
        %v7725 = vadd.f32 %v7532, %v7724
        %v7726 = vpop.f32.mrf.mxu0
        %v7727 = vadd.f32 %v7534, %v7726
        %v7728 = vpop.f32.mrf.mxu0
        %v7729 = vadd.f32 %v7536, %v7728
        %7730 = vmatprep.mubr.bf16.mxu0 %v5408
        %7731 = vmatmul.mubr.bf16.gmra.mxu0 %v5407
        %v7732 = vpop.f32.mrf.mxu0
        %v7733 = vadd.f32 %v7540, %v7732
        %v7734 = vpop.f32.mrf.mxu0
        %v7735 = vadd.f32 %v7542, %v7734
        %v7736 = vpop.f32.mrf.mxu0
        %v7737 = vadd.f32 %v7544, %v7736
        %v7738 = vpop.f32.mrf.mxu0
        %v7739 = vadd.f32 %v7546, %v7738
        %7740 = vmatprep.mubr.bf16.mxu0 %v5420
        %7741 = vmatmul.mubr.bf16.gmra.mxu0 %v5419
        %v7742 = vpop.f32.mrf.mxu0
        %v7743 = vadd.f32 %v7550, %v7742
        %v7744 = vpop.f32.mrf.mxu0
        %v7745 = vadd.f32 %v7552, %v7744
        %v7746 = vpop.f32.mrf.mxu0
        %v7747 = vadd.f32 %v7554, %v7746
        %v7748 = vpop.f32.mrf.mxu0
        %v7749 = vadd.f32 %v7556, %v7748
        %7750 = vmatprep.mubr.bf16.mxu0 %v5432
        %7751 = vmatmul.mubr.bf16.gmra.mxu0 %v5431
        %v7752 = vpop.f32.mrf.mxu0
        %v7753 = vadd.f32 %v7560, %v7752
        %v7754 = vpop.f32.mrf.mxu0
        %v7755 = vadd.f32 %v7562, %v7754
        %v7756 = vpop.f32.mrf.mxu0
        %v7757 = vadd.f32 %v7564, %v7756
        %v7758 = vpop.f32.mrf.mxu0
        %v7759 = vadd.f32 %v7566, %v7758
        %7760 = vmatprep.mubr.bf16.mxu0 %v5444
        %7761 = vmatmul.mubr.bf16.gmra.mxu0 %v5443
        %v7762 = vpop.f32.mrf.mxu0
        %v7763 = vadd.f32 %v7570, %v7762
        %v7764 = vpop.f32.mrf.mxu0
        %v7765 = vadd.f32 %v7572, %v7764
        %v7766 = vpop.f32.mrf.mxu0
        %v7767 = vadd.f32 %v7574, %v7766
        %v7768 = vpop.f32.mrf.mxu0
        %v7769 = vadd.f32 %v7576, %v7768
        %7770 = vmatprep.mubr.bf16.mxu0 %v5456
        %7771 = vmatmul.mubr.bf16.gmra.mxu0 %v5455
        %v7772 = vpop.f32.mrf.mxu0
        %v7773 = vadd.f32 %v7580, %v7772
        %v7774 = vpop.f32.mrf.mxu0
        %v7775 = vadd.f32 %v7582, %v7774
        %v7776 = vpop.f32.mrf.mxu0
        %v7777 = vadd.f32 %v7584, %v7776
        %v7778 = vpop.f32.mrf.mxu0
        %v7779 = vadd.f32 %v7586, %v7778
        %7780 = vmatprep.mubr.bf16.mxu0 %v5468
        %7781 = vmatmul.mubr.bf16.gmra.mxu0 %v5467
        %v7782 = vpop.f32.mrf.mxu0
        %v7783 = vadd.f32 %v7590, %v7782
        %v7784 = vpop.f32.mrf.mxu0
        %v7785 = vadd.f32 %v7592, %v7784
        %v7786 = vpop.f32.mrf.mxu0
        %v7787 = vadd.f32 %v7594, %v7786
        %v7788 = vpop.f32.mrf.mxu0
        %v7789 = vadd.f32 %v7596, %v7788
        %7790 = vmatprep.mubr.bf16.mxu0 %v5480
        %7791 = vmatmul.mubr.bf16.gmra.mxu0 %v5479
        %v7792 = vpop.f32.mrf.mxu0
        %v7793 = vadd.f32 %v7600, %v7792
        %v7794 = vpop.f32.mrf.mxu0
        %v7795 = vadd.f32 %v7602, %v7794
        %v7796 = vpop.f32.mrf.mxu0
        %v7797 = vadd.f32 %v7604, %v7796
        %v7798 = vpop.f32.mrf.mxu0
        %v7799 = vadd.f32 %v7606, %v7798
        %7800 = vmatprep.mubr.bf16.mxu0 %v5492
        %7801 = vmatmul.mubr.bf16.gmra.mxu0 %v5491
        %v7802 = vpop.f32.mrf.mxu0
        %v7803 = vadd.f32 %v7610, %v7802
        %v7804 = vpop.f32.mrf.mxu0
        %v7805 = vadd.f32 %v7612, %v7804
        %v7806 = vpop.f32.mrf.mxu0
        %v7807 = vadd.f32 %v7614, %v7806
        %v7808 = vpop.f32.mrf.mxu0
        %v7809 = vadd.f32 %v7616, %v7808
        %7810 = vmatprep.mubr.bf16.mxu0 %v5504
        %7811 = vmatmul.mubr.bf16.gmra.mxu0 %v5503
        %v7812 = vpop.f32.mrf.mxu0
        %v7813 = vadd.f32 %v7620, %v7812
        %v7814 = vpop.f32.mrf.mxu0
        %v7815 = vadd.f32 %v7622, %v7814
        %v7816 = vpop.f32.mrf.mxu0
        %v7817 = vadd.f32 %v7624, %v7816
        %v7818 = vpop.f32.mrf.mxu0
        %v7819 = vadd.f32 %v7626, %v7818
        %7820 = vmatprep.mubr.bf16.mxu0 %v5516
        %7821 = vmatmul.mubr.bf16.gmra.mxu0 %v5515
        %v7822 = vpop.f32.mrf.mxu0
        %v7823 = vadd.f32 %v7630, %v7822
        %v7824 = vpop.f32.mrf.mxu0
        %v7825 = vadd.f32 %v7632, %v7824
        %v7826 = vpop.f32.mrf.mxu0
        %v7827 = vadd.f32 %v7634, %v7826
        %v7828 = vpop.f32.mrf.mxu0
        %v7829 = vadd.f32 %v7636, %v7828
        %7830 = vdwg.mxu0
        %7831 = vmatprep.subr.bf16.mxu0 %v6987
        %7832 = vmatpush1.bf16.msra.mxu0 %v6986
        %7833 = vmatprep.subr.bf16.mxu0 %v6984
        %7834 = vmatpush1.bf16.msra.mxu0 %v6983
        %7835 = vmatprep.subr.bf16.mxu0 %v6981
        %7836 = vmatpush1.bf16.msra.mxu0 %v6980
        %7837 = vmatprep.subr.bf16.mxu0 %v6978
        %7838 = vmatpush1.bf16.msra.mxu0 %v6977
        %7839 = vmatprep.subr.bf16.mxu0 %v6975
        %7840 = vmatpush1.bf16.msra.mxu0 %v6974
        %7841 = vmatprep.subr.bf16.mxu0 %v6972
        %7842 = vmatpush1.bf16.msra.mxu0 %v6971
        %7843 = vmatprep.subr.bf16.mxu0 %v6969
        %7844 = vmatpush1.bf16.msra.mxu0 %v6968
        %7845 = vmatprep.subr.bf16.mxu0 %v6966
        %7846 = vmatpush1.bf16.msra.mxu0 %v6965
        %7847 = vmatprep.subr.bf16.mxu0 %v7011
        %7848 = vmatpush2.bf16.msra.mxu0 %v7010
        %7849 = vmatprep.subr.bf16.mxu0 %v7008
        %7850 = vmatpush2.bf16.msra.mxu0 %v7007
        %7851 = vmatprep.subr.bf16.mxu0 %v7005
        %7852 = vmatpush2.bf16.msra.mxu0 %v7004
        %7853 = vmatprep.subr.bf16.mxu0 %v7002
        %7854 = vmatpush2.bf16.msra.mxu0 %v7001
        %7855 = vmatprep.subr.bf16.mxu0 %v6999
        %7856 = vmatpush2.bf16.msra.mxu0 %v6998
        %7857 = vmatprep.subr.bf16.mxu0 %v6996
        %7858 = vmatpush2.bf16.msra.mxu0 %v6995
        %7859 = vmatprep.subr.bf16.mxu0 %v6993
        %7860 = vmatpush2.bf16.msra.mxu0 %v6992
        %7861 = vmatprep.subr.bf16.mxu0 %v6990
        %7862 = vmatpush2.bf16.msra.mxu0 %v6989
        %7863 = vmatprep.mubr.bf16.mxu0 %v5338
        %7864 = vmatmul.mubr.bf16.gmra.mxu0 %v5337
        %v7865 = vpop.f32.mrf.mxu0
        %v7866 = vadd.f32 %v7673, %v7865
        %v7867 = vpop.f32.mrf.mxu0
        %v7868 = vadd.f32 %v7675, %v7867
        %v7869 = vpop.f32.mrf.mxu0
        %v7870 = vadd.f32 %v7677, %v7869
        %v7871 = vpop.f32.mrf.mxu0
        %v7872 = vadd.f32 %v7679, %v7871
        %7873 = vmatprep.mubr.bf16.mxu0 %v5350
        %7874 = vmatmul.mubr.bf16.gmra.mxu0 %v5349
        %v7875 = vpop.f32.mrf.mxu0
        %v7876 = vadd.f32 %v7683, %v7875
        %v7877 = vpop.f32.mrf.mxu0
        %v7878 = vadd.f32 %v7685, %v7877
        %v7879 = vpop.f32.mrf.mxu0
        %v7880 = vadd.f32 %v7687, %v7879
        %v7881 = vpop.f32.mrf.mxu0
        %v7882 = vadd.f32 %v7689, %v7881
        %7883 = vmatprep.mubr.bf16.mxu0 %v5362
        %7884 = vmatmul.mubr.bf16.gmra.mxu0 %v5361
        %v7885 = vpop.f32.mrf.mxu0
        %v7886 = vadd.f32 %v7693, %v7885
        %v7887 = vpop.f32.mrf.mxu0
        %v7888 = vadd.f32 %v7695, %v7887
        %v7889 = vpop.f32.mrf.mxu0
        %v7890 = vadd.f32 %v7697, %v7889
        %v7891 = vpop.f32.mrf.mxu0
        %v7892 = vadd.f32 %v7699, %v7891
        %7893 = vmatprep.mubr.bf16.mxu0 %v5374
        %7894 = vmatmul.mubr.bf16.gmra.mxu0 %v5373
        %v7895 = vpop.f32.mrf.mxu0
        %v7896 = vadd.f32 %v7703, %v7895
        %v7897 = vpop.f32.mrf.mxu0
        %v7898 = vadd.f32 %v7705, %v7897
        %v7899 = vpop.f32.mrf.mxu0
        %v7900 = vadd.f32 %v7707, %v7899
        %v7901 = vpop.f32.mrf.mxu0
        %v7902 = vadd.f32 %v7709, %v7901
        %7903 = vmatprep.mubr.bf16.mxu0 %v5386
        %7904 = vmatmul.mubr.bf16.gmra.mxu0 %v5385
        %v7905 = vpop.f32.mrf.mxu0
        %v7906 = vadd.f32 %v7713, %v7905
        %v7907 = vpop.f32.mrf.mxu0
        %v7908 = vadd.f32 %v7715, %v7907
        %v7909 = vpop.f32.mrf.mxu0
        %v7910 = vadd.f32 %v7717, %v7909
        %v7911 = vpop.f32.mrf.mxu0
        %v7912 = vadd.f32 %v7719, %v7911
        %7913 = vmatprep.mubr.bf16.mxu0 %v5398
        %7914 = vmatmul.mubr.bf16.gmra.mxu0 %v5397
        %v7915 = vpop.f32.mrf.mxu0
        %v7916 = vadd.f32 %v7723, %v7915
        %v7917 = vpop.f32.mrf.mxu0
        %v7918 = vadd.f32 %v7725, %v7917
        %v7919 = vpop.f32.mrf.mxu0
        %v7920 = vadd.f32 %v7727, %v7919
        %v7921 = vpop.f32.mrf.mxu0
        %v7922 = vadd.f32 %v7729, %v7921
        %7923 = vmatprep.mubr.bf16.mxu0 %v5410
        %7924 = vmatmul.mubr.bf16.gmra.mxu0 %v5409
        %v7925 = vpop.f32.mrf.mxu0
        %v7926 = vadd.f32 %v7733, %v7925
        %v7927 = vpop.f32.mrf.mxu0
        %v7928 = vadd.f32 %v7735, %v7927
        %v7929 = vpop.f32.mrf.mxu0
        %v7930 = vadd.f32 %v7737, %v7929
        %v7931 = vpop.f32.mrf.mxu0
        %v7932 = vadd.f32 %v7739, %v7931
        %7933 = vmatprep.mubr.bf16.mxu0 %v5422
        %7934 = vmatmul.mubr.bf16.gmra.mxu0 %v5421
        %v7935 = vpop.f32.mrf.mxu0
        %v7936 = vadd.f32 %v7743, %v7935
        %v7937 = vpop.f32.mrf.mxu0
        %v7938 = vadd.f32 %v7745, %v7937
        %v7939 = vpop.f32.mrf.mxu0
        %v7940 = vadd.f32 %v7747, %v7939
        %v7941 = vpop.f32.mrf.mxu0
        %v7942 = vadd.f32 %v7749, %v7941
        %7943 = vmatprep.mubr.bf16.mxu0 %v5434
        %7944 = vmatmul.mubr.bf16.gmra.mxu0 %v5433
        %v7945 = vpop.f32.mrf.mxu0
        %v7946 = vadd.f32 %v7753, %v7945
        %v7947 = vpop.f32.mrf.mxu0
        %v7948 = vadd.f32 %v7755, %v7947
        %v7949 = vpop.f32.mrf.mxu0
        %v7950 = vadd.f32 %v7757, %v7949
        %v7951 = vpop.f32.mrf.mxu0
        %v7952 = vadd.f32 %v7759, %v7951
        %7953 = vmatprep.mubr.bf16.mxu0 %v5446
        %7954 = vmatmul.mubr.bf16.gmra.mxu0 %v5445
        %v7955 = vpop.f32.mrf.mxu0
        %v7956 = vadd.f32 %v7763, %v7955
        %v7957 = vpop.f32.mrf.mxu0
        %v7958 = vadd.f32 %v7765, %v7957
        %v7959 = vpop.f32.mrf.mxu0
        %v7960 = vadd.f32 %v7767, %v7959
        %v7961 = vpop.f32.mrf.mxu0
        %v7962 = vadd.f32 %v7769, %v7961
        %7963 = vmatprep.mubr.bf16.mxu0 %v5458
        %7964 = vmatmul.mubr.bf16.gmra.mxu0 %v5457
        %v7965 = vpop.f32.mrf.mxu0
        %v7966 = vadd.f32 %v7773, %v7965
        %v7967 = vpop.f32.mrf.mxu0
        %v7968 = vadd.f32 %v7775, %v7967
        %v7969 = vpop.f32.mrf.mxu0
        %v7970 = vadd.f32 %v7777, %v7969
        %v7971 = vpop.f32.mrf.mxu0
        %v7972 = vadd.f32 %v7779, %v7971
        %7973 = vmatprep.mubr.bf16.mxu0 %v5470
        %7974 = vmatmul.mubr.bf16.gmra.mxu0 %v5469
        %v7975 = vpop.f32.mrf.mxu0
        %v7976 = vadd.f32 %v7783, %v7975
        %v7977 = vpop.f32.mrf.mxu0
        %v7978 = vadd.f32 %v7785, %v7977
        %v7979 = vpop.f32.mrf.mxu0
        %v7980 = vadd.f32 %v7787, %v7979
        %v7981 = vpop.f32.mrf.mxu0
        %v7982 = vadd.f32 %v7789, %v7981
        %7983 = vmatprep.mubr.bf16.mxu0 %v5482
        %7984 = vmatmul.mubr.bf16.gmra.mxu0 %v5481
        %v7985 = vpop.f32.mrf.mxu0
        %v7986 = vadd.f32 %v7793, %v7985
        %v7987 = vpop.f32.mrf.mxu0
        %v7988 = vadd.f32 %v7795, %v7987
        %v7989 = vpop.f32.mrf.mxu0
        %v7990 = vadd.f32 %v7797, %v7989
        %v7991 = vpop.f32.mrf.mxu0
        %v7992 = vadd.f32 %v7799, %v7991
        %7993 = vmatprep.mubr.bf16.mxu0 %v5494
        %7994 = vmatmul.mubr.bf16.gmra.mxu0 %v5493
        %v7995 = vpop.f32.mrf.mxu0
        %v7996 = vadd.f32 %v7803, %v7995
        %v7997 = vpop.f32.mrf.mxu0
        %v7998 = vadd.f32 %v7805, %v7997
        %v7999 = vpop.f32.mrf.mxu0
        %v8000 = vadd.f32 %v7807, %v7999
        %v8001 = vpop.f32.mrf.mxu0
        %v8002 = vadd.f32 %v7809, %v8001
        %8003 = vmatprep.mubr.bf16.mxu0 %v5506
        %8004 = vmatmul.mubr.bf16.gmra.mxu0 %v5505
        %v8005 = vpop.f32.mrf.mxu0
        %v8006 = vadd.f32 %v7813, %v8005
        %v8007 = vpop.f32.mrf.mxu0
        %v8008 = vadd.f32 %v7815, %v8007
        %v8009 = vpop.f32.mrf.mxu0
        %v8010 = vadd.f32 %v7817, %v8009
        %v8011 = vpop.f32.mrf.mxu0
        %v8012 = vadd.f32 %v7819, %v8011
        %8013 = vmatprep.mubr.bf16.mxu0 %v5518
        %8014 = vmatmul.mubr.bf16.gmra.mxu0 %v5517
        %v8015 = vpop.f32.mrf.mxu0
        %v8016 = vadd.f32 %v7823, %v8015
        %v8017 = vpop.f32.mrf.mxu0
        %v8018 = vadd.f32 %v7825, %v8017
        %v8019 = vpop.f32.mrf.mxu0
        %v8020 = vadd.f32 %v7827, %v8019
        %v8021 = vpop.f32.mrf.mxu0
        %v8022 = vadd.f32 %v7829, %v8021
        %8023 = vdwg.mxu0
        %8024 = vmatprep.subr.bf16.mxu0 %v7035
        %8025 = vmatpush1.bf16.msra.mxu0 %v7034
        %8026 = vmatprep.subr.bf16.mxu0 %v7032
        %8027 = vmatpush1.bf16.msra.mxu0 %v7031
        %8028 = vmatprep.subr.bf16.mxu0 %v7029
        %8029 = vmatpush1.bf16.msra.mxu0 %v7028
        %8030 = vmatprep.subr.bf16.mxu0 %v7026
        %8031 = vmatpush1.bf16.msra.mxu0 %v7025
        %8032 = vmatprep.subr.bf16.mxu0 %v7023
        %8033 = vmatpush1.bf16.msra.mxu0 %v7022
        %8034 = vmatprep.subr.bf16.mxu0 %v7020
        %8035 = vmatpush1.bf16.msra.mxu0 %v7019
        %8036 = vmatprep.subr.bf16.mxu0 %v7017
        %8037 = vmatpush1.bf16.msra.mxu0 %v7016
        %8038 = vmatprep.subr.bf16.mxu0 %v7014
        %8039 = vmatpush1.bf16.msra.mxu0 %v7013
        %8040 = vmatprep.subr.bf16.mxu0 %v7059
        %8041 = vmatpush2.bf16.msra.mxu0 %v7058
        %8042 = vmatprep.subr.bf16.mxu0 %v7056
        %8043 = vmatpush2.bf16.msra.mxu0 %v7055
        %8044 = vmatprep.subr.bf16.mxu0 %v7053
        %8045 = vmatpush2.bf16.msra.mxu0 %v7052
        %8046 = vmatprep.subr.bf16.mxu0 %v7050
        %8047 = vmatpush2.bf16.msra.mxu0 %v7049
        %8048 = vmatprep.subr.bf16.mxu0 %v7047
        %8049 = vmatpush2.bf16.msra.mxu0 %v7046
        %8050 = vmatprep.subr.bf16.mxu0 %v7044
        %8051 = vmatpush2.bf16.msra.mxu0 %v7043
        %8052 = vmatprep.subr.bf16.mxu0 %v7041
        %8053 = vmatpush2.bf16.msra.mxu0 %v7040
        %8054 = vmatprep.subr.bf16.mxu0 %v7038
        %8055 = vmatpush2.bf16.msra.mxu0 %v7037
        %8056 = vmatprep.mubr.bf16.mxu0 %v5340
        %8057 = vmatmul.mubr.bf16.gmra.mxu0 %v5339
        %v8058 = vpop.f32.mrf.mxu0
        %v8059 = vadd.f32 %v7866, %v8058
        %v8060 = vpop.f32.mrf.mxu0
        %v8061 = vadd.f32 %v7868, %v8060
        %v8062 = vpop.f32.mrf.mxu0
        %v8063 = vadd.f32 %v7870, %v8062
        %v8064 = vpop.f32.mrf.mxu0
        %v8065 = vadd.f32 %v7872, %v8064
        %8066 = vmatprep.mubr.bf16.mxu0 %v5352
        %8067 = vmatmul.mubr.bf16.gmra.mxu0 %v5351
        %v8068 = vpop.f32.mrf.mxu0
        %v8069 = vadd.f32 %v7876, %v8068
        %v8070 = vpop.f32.mrf.mxu0
        %v8071 = vadd.f32 %v7878, %v8070
        %v8072 = vpop.f32.mrf.mxu0
        %v8073 = vadd.f32 %v7880, %v8072
        %v8074 = vpop.f32.mrf.mxu0
        %v8075 = vadd.f32 %v7882, %v8074
        %8076 = vmatprep.mubr.bf16.mxu0 %v5364
        %8077 = vmatmul.mubr.bf16.gmra.mxu0 %v5363
        %v8078 = vpop.f32.mrf.mxu0
        %v8079 = vadd.f32 %v7886, %v8078
        %v8080 = vpop.f32.mrf.mxu0
        %v8081 = vadd.f32 %v7888, %v8080
        %v8082 = vpop.f32.mrf.mxu0
        %v8083 = vadd.f32 %v7890, %v8082
        %v8084 = vpop.f32.mrf.mxu0
        %v8085 = vadd.f32 %v7892, %v8084
        %8086 = vmatprep.mubr.bf16.mxu0 %v5376
        %8087 = vmatmul.mubr.bf16.gmra.mxu0 %v5375
        %v8088 = vpop.f32.mrf.mxu0
        %v8089 = vadd.f32 %v7896, %v8088
        %v8090 = vpop.f32.mrf.mxu0
        %v8091 = vadd.f32 %v7898, %v8090
        %v8092 = vpop.f32.mrf.mxu0
        %v8093 = vadd.f32 %v7900, %v8092
        %v8094 = vpop.f32.mrf.mxu0
        %v8095 = vadd.f32 %v7902, %v8094
        %8096 = vmatprep.mubr.bf16.mxu0 %v5388
        %8097 = vmatmul.mubr.bf16.gmra.mxu0 %v5387
        %v8098 = vpop.f32.mrf.mxu0
        %v8099 = vadd.f32 %v7906, %v8098
        %v8100 = vpop.f32.mrf.mxu0
        %v8101 = vadd.f32 %v7908, %v8100
        %v8102 = vpop.f32.mrf.mxu0
        %v8103 = vadd.f32 %v7910, %v8102
        %v8104 = vpop.f32.mrf.mxu0
        %v8105 = vadd.f32 %v7912, %v8104
        %8106 = vmatprep.mubr.bf16.mxu0 %v5400
        %8107 = vmatmul.mubr.bf16.gmra.mxu0 %v5399
        %v8108 = vpop.f32.mrf.mxu0
        %v8109 = vadd.f32 %v7916, %v8108
        %v8110 = vpop.f32.mrf.mxu0
        %v8111 = vadd.f32 %v7918, %v8110
        %v8112 = vpop.f32.mrf.mxu0
        %v8113 = vadd.f32 %v7920, %v8112
        %v8114 = vpop.f32.mrf.mxu0
        %v8115 = vadd.f32 %v7922, %v8114
        %8116 = vmatprep.mubr.bf16.mxu0 %v5412
        %8117 = vmatmul.mubr.bf16.gmra.mxu0 %v5411
        %v8118 = vpop.f32.mrf.mxu0
        %v8119 = vadd.f32 %v7926, %v8118
        %v8120 = vpop.f32.mrf.mxu0
        %v8121 = vadd.f32 %v7928, %v8120
        %v8122 = vpop.f32.mrf.mxu0
        %v8123 = vadd.f32 %v7930, %v8122
        %v8124 = vpop.f32.mrf.mxu0
        %v8125 = vadd.f32 %v7932, %v8124
        %8126 = vmatprep.mubr.bf16.mxu0 %v5424
        %8127 = vmatmul.mubr.bf16.gmra.mxu0 %v5423
        %v8128 = vpop.f32.mrf.mxu0
        %v8129 = vadd.f32 %v7936, %v8128
        %v8130 = vpop.f32.mrf.mxu0
        %v8131 = vadd.f32 %v7938, %v8130
        %v8132 = vpop.f32.mrf.mxu0
        %v8133 = vadd.f32 %v7940, %v8132
        %v8134 = vpop.f32.mrf.mxu0
        %v8135 = vadd.f32 %v7942, %v8134
        %8136 = vmatprep.mubr.bf16.mxu0 %v5436
        %8137 = vmatmul.mubr.bf16.gmra.mxu0 %v5435
        %v8138 = vpop.f32.mrf.mxu0
        %v8139 = vadd.f32 %v7946, %v8138
        %v8140 = vpop.f32.mrf.mxu0
        %v8141 = vadd.f32 %v7948, %v8140
        %v8142 = vpop.f32.mrf.mxu0
        %v8143 = vadd.f32 %v7950, %v8142
        %v8144 = vpop.f32.mrf.mxu0
        %v8145 = vadd.f32 %v7952, %v8144
        %8146 = vmatprep.mubr.bf16.mxu0 %v5448
        %8147 = vmatmul.mubr.bf16.gmra.mxu0 %v5447
        %v8148 = vpop.f32.mrf.mxu0
        %v8149 = vadd.f32 %v7956, %v8148
        %v8150 = vpop.f32.mrf.mxu0
        %v8151 = vadd.f32 %v7958, %v8150
        %v8152 = vpop.f32.mrf.mxu0
        %v8153 = vadd.f32 %v7960, %v8152
        %v8154 = vpop.f32.mrf.mxu0
        %v8155 = vadd.f32 %v7962, %v8154
        %8156 = vmatprep.mubr.bf16.mxu0 %v5460
        %8157 = vmatmul.mubr.bf16.gmra.mxu0 %v5459
        %v8158 = vpop.f32.mrf.mxu0
        %v8159 = vadd.f32 %v7966, %v8158
        %v8160 = vpop.f32.mrf.mxu0
        %v8161 = vadd.f32 %v7968, %v8160
        %v8162 = vpop.f32.mrf.mxu0
        %v8163 = vadd.f32 %v7970, %v8162
        %v8164 = vpop.f32.mrf.mxu0
        %v8165 = vadd.f32 %v7972, %v8164
        %8166 = vmatprep.mubr.bf16.mxu0 %v5472
        %8167 = vmatmul.mubr.bf16.gmra.mxu0 %v5471
        %v8168 = vpop.f32.mrf.mxu0
        %v8169 = vadd.f32 %v7976, %v8168
        %v8170 = vpop.f32.mrf.mxu0
        %v8171 = vadd.f32 %v7978, %v8170
        %v8172 = vpop.f32.mrf.mxu0
        %v8173 = vadd.f32 %v7980, %v8172
        %v8174 = vpop.f32.mrf.mxu0
        %v8175 = vadd.f32 %v7982, %v8174
        %8176 = vmatprep.mubr.bf16.mxu0 %v5484
        %8177 = vmatmul.mubr.bf16.gmra.mxu0 %v5483
        %v8178 = vpop.f32.mrf.mxu0
        %v8179 = vadd.f32 %v7986, %v8178
        %v8180 = vpop.f32.mrf.mxu0
        %v8181 = vadd.f32 %v7988, %v8180
        %v8182 = vpop.f32.mrf.mxu0
        %v8183 = vadd.f32 %v7990, %v8182
        %v8184 = vpop.f32.mrf.mxu0
        %v8185 = vadd.f32 %v7992, %v8184
        %8186 = vmatprep.mubr.bf16.mxu0 %v5496
        %8187 = vmatmul.mubr.bf16.gmra.mxu0 %v5495
        %v8188 = vpop.f32.mrf.mxu0
        %v8189 = vadd.f32 %v7996, %v8188
        %v8190 = vpop.f32.mrf.mxu0
        %v8191 = vadd.f32 %v7998, %v8190
        %v8192 = vpop.f32.mrf.mxu0
        %v8193 = vadd.f32 %v8000, %v8192
        %v8194 = vpop.f32.mrf.mxu0
        %v8195 = vadd.f32 %v8002, %v8194
        %8196 = vmatprep.mubr.bf16.mxu0 %v5508
        %8197 = vmatmul.mubr.bf16.gmra.mxu0 %v5507
        %v8198 = vpop.f32.mrf.mxu0
        %v8199 = vadd.f32 %v8006, %v8198
        %v8200 = vpop.f32.mrf.mxu0
        %v8201 = vadd.f32 %v8008, %v8200
        %v8202 = vpop.f32.mrf.mxu0
        %v8203 = vadd.f32 %v8010, %v8202
        %v8204 = vpop.f32.mrf.mxu0
        %v8205 = vadd.f32 %v8012, %v8204
        %8206 = vmatprep.mubr.bf16.mxu0 %v5520
        %8207 = vmatmul.mubr.bf16.gmra.mxu0 %v5519
        %v8208 = vpop.f32.mrf.mxu0
        %v8209 = vadd.f32 %v8016, %v8208
        %v8210 = vpop.f32.mrf.mxu0
        %v8211 = vadd.f32 %v8018, %v8210
        %v8212 = vpop.f32.mrf.mxu0
        %v8213 = vadd.f32 %v8020, %v8212
        %v8214 = vpop.f32.mrf.mxu0
        %v8215 = vadd.f32 %v8022, %v8214
        %8216 = vdwg.mxu0
        %8217 = vmatprep.subr.bf16.mxu0 %v7083
        %8218 = vmatpush1.bf16.msra.mxu0 %v7082
        %8219 = vmatprep.subr.bf16.mxu0 %v7080
        %8220 = vmatpush1.bf16.msra.mxu0 %v7079
        %8221 = vmatprep.subr.bf16.mxu0 %v7077
        %8222 = vmatpush1.bf16.msra.mxu0 %v7076
        %8223 = vmatprep.subr.bf16.mxu0 %v7074
        %8224 = vmatpush1.bf16.msra.mxu0 %v7073
        %8225 = vmatprep.subr.bf16.mxu0 %v7071
        %8226 = vmatpush1.bf16.msra.mxu0 %v7070
        %8227 = vmatprep.subr.bf16.mxu0 %v7068
        %8228 = vmatpush1.bf16.msra.mxu0 %v7067
        %8229 = vmatprep.subr.bf16.mxu0 %v7065
        %8230 = vmatpush1.bf16.msra.mxu0 %v7064
        %8231 = vmatprep.subr.bf16.mxu0 %v7062
        %8232 = vmatpush1.bf16.msra.mxu0 %v7061
        %8233 = vmatprep.subr.bf16.mxu0 %v7107
        %8234 = vmatpush2.bf16.msra.mxu0 %v7106
        %8235 = vmatprep.subr.bf16.mxu0 %v7104
        %8236 = vmatpush2.bf16.msra.mxu0 %v7103
        %8237 = vmatprep.subr.bf16.mxu0 %v7101
        %8238 = vmatpush2.bf16.msra.mxu0 %v7100
        %8239 = vmatprep.subr.bf16.mxu0 %v7098
        %8240 = vmatpush2.bf16.msra.mxu0 %v7097
        %8241 = vmatprep.subr.bf16.mxu0 %v7095
        %8242 = vmatpush2.bf16.msra.mxu0 %v7094
        %8243 = vmatprep.subr.bf16.mxu0 %v7092
        %8244 = vmatpush2.bf16.msra.mxu0 %v7091
        %8245 = vmatprep.subr.bf16.mxu0 %v7089
        %8246 = vmatpush2.bf16.msra.mxu0 %v7088
        %8247 = vmatprep.subr.bf16.mxu0 %v7086
        %8248 = vmatpush2.bf16.msra.mxu0 %v7085
        %8249 = vmatprep.mubr.bf16.mxu0 %v5342
        %8250 = vmatmul.mubr.bf16.gmra.mxu0 %v5341
        %v8251 = vpop.f32.mrf.mxu0
        %v8252 = vadd.f32 %v8059, %v8251
        %v8253 = vpop.f32.mrf.mxu0
        %v8254 = vadd.f32 %v8061, %v8253
        %v8255 = vpop.f32.mrf.mxu0
        %v8256 = vadd.f32 %v8063, %v8255
        %v8257 = vpop.f32.mrf.mxu0
        %v8258 = vadd.f32 %v8065, %v8257
        %8259 = vmatprep.mubr.bf16.mxu0 %v5354
        %8260 = vmatmul.mubr.bf16.gmra.mxu0 %v5353
        %v8261 = vpop.f32.mrf.mxu0
        %v8262 = vadd.f32 %v8069, %v8261
        %v8263 = vpop.f32.mrf.mxu0
        %v8264 = vadd.f32 %v8071, %v8263
        %v8265 = vpop.f32.mrf.mxu0
        %v8266 = vadd.f32 %v8073, %v8265
        %v8267 = vpop.f32.mrf.mxu0
        %v8268 = vadd.f32 %v8075, %v8267
        %8269 = vmatprep.mubr.bf16.mxu0 %v5366
        %8270 = vmatmul.mubr.bf16.gmra.mxu0 %v5365
        %v8271 = vpop.f32.mrf.mxu0
        %v8272 = vadd.f32 %v8079, %v8271
        %v8273 = vpop.f32.mrf.mxu0
        %v8274 = vadd.f32 %v8081, %v8273
        %v8275 = vpop.f32.mrf.mxu0
        %v8276 = vadd.f32 %v8083, %v8275
        %v8277 = vpop.f32.mrf.mxu0
        %v8278 = vadd.f32 %v8085, %v8277
        %8279 = vmatprep.mubr.bf16.mxu0 %v5378
        %8280 = vmatmul.mubr.bf16.gmra.mxu0 %v5377
        %v8281 = vpop.f32.mrf.mxu0
        %v8282 = vadd.f32 %v8089, %v8281
        %v8283 = vpop.f32.mrf.mxu0
        %v8284 = vadd.f32 %v8091, %v8283
        %v8285 = vpop.f32.mrf.mxu0
        %v8286 = vadd.f32 %v8093, %v8285
        %v8287 = vpop.f32.mrf.mxu0
        %v8288 = vadd.f32 %v8095, %v8287
        %8289 = vmatprep.mubr.bf16.mxu0 %v5390
        %8290 = vmatmul.mubr.bf16.gmra.mxu0 %v5389
        %v8291 = vpop.f32.mrf.mxu0
        %v8292 = vadd.f32 %v8099, %v8291
        %v8293 = vpop.f32.mrf.mxu0
        %v8294 = vadd.f32 %v8101, %v8293
        %v8295 = vpop.f32.mrf.mxu0
        %v8296 = vadd.f32 %v8103, %v8295
        %v8297 = vpop.f32.mrf.mxu0
        %v8298 = vadd.f32 %v8105, %v8297
        %8299 = vmatprep.mubr.bf16.mxu0 %v5402
        %8300 = vmatmul.mubr.bf16.gmra.mxu0 %v5401
        %v8301 = vpop.f32.mrf.mxu0
        %v8302 = vadd.f32 %v8109, %v8301
        %v8303 = vpop.f32.mrf.mxu0
        %v8304 = vadd.f32 %v8111, %v8303
        %v8305 = vpop.f32.mrf.mxu0
        %v8306 = vadd.f32 %v8113, %v8305
        %v8307 = vpop.f32.mrf.mxu0
        %v8308 = vadd.f32 %v8115, %v8307
        %8309 = vmatprep.mubr.bf16.mxu0 %v5414
        %8310 = vmatmul.mubr.bf16.gmra.mxu0 %v5413
        %v8311 = vpop.f32.mrf.mxu0
        %v8312 = vadd.f32 %v8119, %v8311
        %v8313 = vpop.f32.mrf.mxu0
        %v8314 = vadd.f32 %v8121, %v8313
        %v8315 = vpop.f32.mrf.mxu0
        %v8316 = vadd.f32 %v8123, %v8315
        %v8317 = vpop.f32.mrf.mxu0
        %v8318 = vadd.f32 %v8125, %v8317
        %8319 = vmatprep.mubr.bf16.mxu0 %v5426
        %8320 = vmatmul.mubr.bf16.gmra.mxu0 %v5425
        %v8321 = vpop.f32.mrf.mxu0
        %v8322 = vadd.f32 %v8129, %v8321
        %v8323 = vpop.f32.mrf.mxu0
        %v8324 = vadd.f32 %v8131, %v8323
        %v8325 = vpop.f32.mrf.mxu0
        %v8326 = vadd.f32 %v8133, %v8325
        %v8327 = vpop.f32.mrf.mxu0
        %v8328 = vadd.f32 %v8135, %v8327
        %8329 = vmatprep.mubr.bf16.mxu0 %v5438
        %8330 = vmatmul.mubr.bf16.gmra.mxu0 %v5437
        %v8331 = vpop.f32.mrf.mxu0
        %v8332 = vadd.f32 %v8139, %v8331
        %v8333 = vpop.f32.mrf.mxu0
        %v8334 = vadd.f32 %v8141, %v8333
        %v8335 = vpop.f32.mrf.mxu0
        %v8336 = vadd.f32 %v8143, %v8335
        %v8337 = vpop.f32.mrf.mxu0
        %v8338 = vadd.f32 %v8145, %v8337
        %8339 = vmatprep.mubr.bf16.mxu0 %v5450
        %8340 = vmatmul.mubr.bf16.gmra.mxu0 %v5449
        %v8341 = vpop.f32.mrf.mxu0
        %v8342 = vadd.f32 %v8149, %v8341
        %v8343 = vpop.f32.mrf.mxu0
        %v8344 = vadd.f32 %v8151, %v8343
        %v8345 = vpop.f32.mrf.mxu0
        %v8346 = vadd.f32 %v8153, %v8345
        %v8347 = vpop.f32.mrf.mxu0
        %v8348 = vadd.f32 %v8155, %v8347
        %8349 = vmatprep.mubr.bf16.mxu0 %v5462
        %8350 = vmatmul.mubr.bf16.gmra.mxu0 %v5461
        %v8351 = vpop.f32.mrf.mxu0
        %v8352 = vadd.f32 %v8159, %v8351
        %v8353 = vpop.f32.mrf.mxu0
        %v8354 = vadd.f32 %v8161, %v8353
        %v8355 = vpop.f32.mrf.mxu0
        %v8356 = vadd.f32 %v8163, %v8355
        %v8357 = vpop.f32.mrf.mxu0
        %v8358 = vadd.f32 %v8165, %v8357
        %8359 = vmatprep.mubr.bf16.mxu0 %v5474
        %8360 = vmatmul.mubr.bf16.gmra.mxu0 %v5473
        %v8361 = vpop.f32.mrf.mxu0
        %v8362 = vadd.f32 %v8169, %v8361
        %v8363 = vpop.f32.mrf.mxu0
        %v8364 = vadd.f32 %v8171, %v8363
        %v8365 = vpop.f32.mrf.mxu0
        %v8366 = vadd.f32 %v8173, %v8365
        %v8367 = vpop.f32.mrf.mxu0
        %v8368 = vadd.f32 %v8175, %v8367
        %8369 = vmatprep.mubr.bf16.mxu0 %v5486
        %8370 = vmatmul.mubr.bf16.gmra.mxu0 %v5485
        %v8371 = vpop.f32.mrf.mxu0
        %v8372 = vadd.f32 %v8179, %v8371
        %v8373 = vpop.f32.mrf.mxu0
        %v8374 = vadd.f32 %v8181, %v8373
        %v8375 = vpop.f32.mrf.mxu0
        %v8376 = vadd.f32 %v8183, %v8375
        %v8377 = vpop.f32.mrf.mxu0
        %v8378 = vadd.f32 %v8185, %v8377
        %8379 = vmatprep.mubr.bf16.mxu0 %v5498
        %8380 = vmatmul.mubr.bf16.gmra.mxu0 %v5497
        %v8381 = vpop.f32.mrf.mxu0
        %v8382 = vadd.f32 %v8189, %v8381
        %v8383 = vpop.f32.mrf.mxu0
        %v8384 = vadd.f32 %v8191, %v8383
        %v8385 = vpop.f32.mrf.mxu0
        %v8386 = vadd.f32 %v8193, %v8385
        %v8387 = vpop.f32.mrf.mxu0
        %v8388 = vadd.f32 %v8195, %v8387
        %8389 = vmatprep.mubr.bf16.mxu0 %v5510
        %8390 = vmatmul.mubr.bf16.gmra.mxu0 %v5509
        %v8391 = vpop.f32.mrf.mxu0
        %v8392 = vadd.f32 %v8199, %v8391
        %v8393 = vpop.f32.mrf.mxu0
        %v8394 = vadd.f32 %v8201, %v8393
        %v8395 = vpop.f32.mrf.mxu0
        %v8396 = vadd.f32 %v8203, %v8395
        %v8397 = vpop.f32.mrf.mxu0
        %v8398 = vadd.f32 %v8205, %v8397
        %8399 = vmatprep.mubr.bf16.mxu0 %v5522
        %8400 = vmatmul.mubr.bf16.gmra.mxu0 %v5521
        %v8401 = vpop.f32.mrf.mxu0
        %v8402 = vadd.f32 %v8209, %v8401
        %v8403 = vpop.f32.mrf.mxu0
        %v8404 = vadd.f32 %v8211, %v8403
        %v8405 = vpop.f32.mrf.mxu0
        %v8406 = vadd.f32 %v8213, %v8405
        %v8407 = vpop.f32.mrf.mxu0
        %v8408 = vadd.f32 %v8215, %v8407
        %8409 = vdwg.mxu0
        %8410 = vmatprep.subr.bf16.mxu0 %v7131
        %8411 = vmatpush1.bf16.msra.mxu0 %v7130
        %8412 = vmatprep.subr.bf16.mxu0 %v7128
        %8413 = vmatpush1.bf16.msra.mxu0 %v7127
        %8414 = vmatprep.subr.bf16.mxu0 %v7125
        %8415 = vmatpush1.bf16.msra.mxu0 %v7124
        %8416 = vmatprep.subr.bf16.mxu0 %v7122
        %8417 = vmatpush1.bf16.msra.mxu0 %v7121
        %8418 = vmatprep.subr.bf16.mxu0 %v7119
        %8419 = vmatpush1.bf16.msra.mxu0 %v7118
        %8420 = vmatprep.subr.bf16.mxu0 %v7116
        %8421 = vmatpush1.bf16.msra.mxu0 %v7115
        %8422 = vmatprep.subr.bf16.mxu0 %v7113
        %8423 = vmatpush1.bf16.msra.mxu0 %v7112
        %8424 = vmatprep.subr.bf16.mxu0 %v7110
        %8425 = vmatpush1.bf16.msra.mxu0 %v7109
        %8426 = vmatprep.subr.bf16.mxu0 %v7155
        %8427 = vmatpush2.bf16.msra.mxu0 %v7154
        %8428 = vmatprep.subr.bf16.mxu0 %v7152
        %8429 = vmatpush2.bf16.msra.mxu0 %v7151
        %8430 = vmatprep.subr.bf16.mxu0 %v7149
        %8431 = vmatpush2.bf16.msra.mxu0 %v7148
        %8432 = vmatprep.subr.bf16.mxu0 %v7146
        %8433 = vmatpush2.bf16.msra.mxu0 %v7145
        %8434 = vmatprep.subr.bf16.mxu0 %v7143
        %8435 = vmatpush2.bf16.msra.mxu0 %v7142
        %8436 = vmatprep.subr.bf16.mxu0 %v7140
        %8437 = vmatpush2.bf16.msra.mxu0 %v7139
        %8438 = vmatprep.subr.bf16.mxu0 %v7137
        %8439 = vmatpush2.bf16.msra.mxu0 %v7136
        %8440 = vmatprep.subr.bf16.mxu0 %v7134
        %8441 = vmatpush2.bf16.msra.mxu0 %v7133
        %8442 = vmatprep.mubr.bf16.mxu0 %v5344
        %8443 = vmatmul.mubr.bf16.gmra.mxu0 %v5343
        %v8444 = vpop.f32.mrf.mxu0
        %v8445 = vadd.f32 %v8252, %v8444
        %v8446 = vpop.f32.mrf.mxu0
        %v8447 = vadd.f32 %v8254, %v8446
        %v8448 = vpop.f32.mrf.mxu0
        %v8449 = vadd.f32 %v8256, %v8448
        %v8450 = vpop.f32.mrf.mxu0
        %v8451 = vadd.f32 %v8258, %v8450
        %8452 = vmatprep.mubr.bf16.mxu0 %v5356
        %8453 = vmatmul.mubr.bf16.gmra.mxu0 %v5355
        %v8454 = vpop.f32.mrf.mxu0
        %v8455 = vadd.f32 %v8262, %v8454
        %v8456 = vpop.f32.mrf.mxu0
        %v8457 = vadd.f32 %v8264, %v8456
        %v8458 = vpop.f32.mrf.mxu0
        %v8459 = vadd.f32 %v8266, %v8458
        %v8460 = vpop.f32.mrf.mxu0
        %v8461 = vadd.f32 %v8268, %v8460
        %8462 = vmatprep.mubr.bf16.mxu0 %v5368
        %8463 = vmatmul.mubr.bf16.gmra.mxu0 %v5367
        %v8464 = vpop.f32.mrf.mxu0
        %v8465 = vadd.f32 %v8272, %v8464
        %v8466 = vpop.f32.mrf.mxu0
        %v8467 = vadd.f32 %v8274, %v8466
        %v8468 = vpop.f32.mrf.mxu0
        %v8469 = vadd.f32 %v8276, %v8468
        %v8470 = vpop.f32.mrf.mxu0
        %v8471 = vadd.f32 %v8278, %v8470
        %8472 = vmatprep.mubr.bf16.mxu0 %v5380
        %8473 = vmatmul.mubr.bf16.gmra.mxu0 %v5379
        %v8474 = vpop.f32.mrf.mxu0
        %v8475 = vadd.f32 %v8282, %v8474
        %v8476 = vpop.f32.mrf.mxu0
        %v8477 = vadd.f32 %v8284, %v8476
        %v8478 = vpop.f32.mrf.mxu0
        %v8479 = vadd.f32 %v8286, %v8478
        %v8480 = vpop.f32.mrf.mxu0
        %v8481 = vadd.f32 %v8288, %v8480
        %8482 = vmatprep.mubr.bf16.mxu0 %v5392
        %8483 = vmatmul.mubr.bf16.gmra.mxu0 %v5391
        %v8484 = vpop.f32.mrf.mxu0
        %v8485 = vadd.f32 %v8292, %v8484
        %v8486 = vpop.f32.mrf.mxu0
        %v8487 = vadd.f32 %v8294, %v8486
        %v8488 = vpop.f32.mrf.mxu0
        %v8489 = vadd.f32 %v8296, %v8488
        %v8490 = vpop.f32.mrf.mxu0
        %v8491 = vadd.f32 %v8298, %v8490
        %8492 = vmatprep.mubr.bf16.mxu0 %v5404
        %8493 = vmatmul.mubr.bf16.gmra.mxu0 %v5403
        %v8494 = vpop.f32.mrf.mxu0
        %v8495 = vadd.f32 %v8302, %v8494
        %v8496 = vpop.f32.mrf.mxu0
        %v8497 = vadd.f32 %v8304, %v8496
        %v8498 = vpop.f32.mrf.mxu0
        %v8499 = vadd.f32 %v8306, %v8498
        %v8500 = vpop.f32.mrf.mxu0
        %v8501 = vadd.f32 %v8308, %v8500
        %8502 = vmatprep.mubr.bf16.mxu0 %v5416
        %8503 = vmatmul.mubr.bf16.gmra.mxu0 %v5415
        %v8504 = vpop.f32.mrf.mxu0
        %v8505 = vadd.f32 %v8312, %v8504
        %v8506 = vpop.f32.mrf.mxu0
        %v8507 = vadd.f32 %v8314, %v8506
        %v8508 = vpop.f32.mrf.mxu0
        %v8509 = vadd.f32 %v8316, %v8508
        %v8510 = vpop.f32.mrf.mxu0
        %v8511 = vadd.f32 %v8318, %v8510
        %8512 = vmatprep.mubr.bf16.mxu0 %v5428
        %8513 = vmatmul.mubr.bf16.gmra.mxu0 %v5427
        %v8514 = vpop.f32.mrf.mxu0
        %v8515 = vadd.f32 %v8322, %v8514
        %v8516 = vpop.f32.mrf.mxu0
        %v8517 = vadd.f32 %v8324, %v8516
        %v8518 = vpop.f32.mrf.mxu0
        %v8519 = vadd.f32 %v8326, %v8518
        %v8520 = vpop.f32.mrf.mxu0
        %v8521 = vadd.f32 %v8328, %v8520
        %8522 = vmatprep.mubr.bf16.mxu0 %v5440
        %8523 = vmatmul.mubr.bf16.gmra.mxu0 %v5439
        %v8524 = vpop.f32.mrf.mxu0
        %v8525 = vadd.f32 %v8332, %v8524
        %v8526 = vpop.f32.mrf.mxu0
        %v8527 = vadd.f32 %v8334, %v8526
        %v8528 = vpop.f32.mrf.mxu0
        %v8529 = vadd.f32 %v8336, %v8528
        %v8530 = vpop.f32.mrf.mxu0
        %v8531 = vadd.f32 %v8338, %v8530
        %8532 = vmatprep.mubr.bf16.mxu0 %v5452
        %8533 = vmatmul.mubr.bf16.gmra.mxu0 %v5451
        %v8534 = vpop.f32.mrf.mxu0
        %v8535 = vadd.f32 %v8342, %v8534
        %v8536 = vpop.f32.mrf.mxu0
        %v8537 = vadd.f32 %v8344, %v8536
        %v8538 = vpop.f32.mrf.mxu0
        %v8539 = vadd.f32 %v8346, %v8538
        %v8540 = vpop.f32.mrf.mxu0
        %v8541 = vadd.f32 %v8348, %v8540
        %8542 = vmatprep.mubr.bf16.mxu0 %v5464
        %8543 = vmatmul.mubr.bf16.gmra.mxu0 %v5463
        %v8544 = vpop.f32.mrf.mxu0
        %v8545 = vadd.f32 %v8352, %v8544
        %v8546 = vpop.f32.mrf.mxu0
        %v8547 = vadd.f32 %v8354, %v8546
        %v8548 = vpop.f32.mrf.mxu0
        %v8549 = vadd.f32 %v8356, %v8548
        %v8550 = vpop.f32.mrf.mxu0
        %v8551 = vadd.f32 %v8358, %v8550
        %8552 = vmatprep.mubr.bf16.mxu0 %v5476
        %8553 = vmatmul.mubr.bf16.gmra.mxu0 %v5475
        %v8554 = vpop.f32.mrf.mxu0
        %v8555 = vadd.f32 %v8362, %v8554
        %v8556 = vpop.f32.mrf.mxu0
        %v8557 = vadd.f32 %v8364, %v8556
        %v8558 = vpop.f32.mrf.mxu0
        %v8559 = vadd.f32 %v8366, %v8558
        %v8560 = vpop.f32.mrf.mxu0
        %v8561 = vadd.f32 %v8368, %v8560
        %8562 = vmatprep.mubr.bf16.mxu0 %v5488
        %8563 = vmatmul.mubr.bf16.gmra.mxu0 %v5487
        %v8564 = vpop.f32.mrf.mxu0
        %v8565 = vadd.f32 %v8372, %v8564
        %v8566 = vpop.f32.mrf.mxu0
        %v8567 = vadd.f32 %v8374, %v8566
        %v8568 = vpop.f32.mrf.mxu0
        %v8569 = vadd.f32 %v8376, %v8568
        %v8570 = vpop.f32.mrf.mxu0
        %v8571 = vadd.f32 %v8378, %v8570
        %8572 = vmatprep.mubr.bf16.mxu0 %v5500
        %8573 = vmatmul.mubr.bf16.gmra.mxu0 %v5499
        %v8574 = vpop.f32.mrf.mxu0
        %v8575 = vadd.f32 %v8382, %v8574
        %v8576 = vpop.f32.mrf.mxu0
        %v8577 = vadd.f32 %v8384, %v8576
        %v8578 = vpop.f32.mrf.mxu0
        %v8579 = vadd.f32 %v8386, %v8578
        %v8580 = vpop.f32.mrf.mxu0
        %v8581 = vadd.f32 %v8388, %v8580
        %8582 = vmatprep.mubr.bf16.mxu0 %v5512
        %8583 = vmatmul.mubr.bf16.gmra.mxu0 %v5511
        %v8584 = vpop.f32.mrf.mxu0
        %v8585 = vadd.f32 %v8392, %v8584
        %v8586 = vpop.f32.mrf.mxu0
        %v8587 = vadd.f32 %v8394, %v8586
        %v8588 = vpop.f32.mrf.mxu0
        %v8589 = vadd.f32 %v8396, %v8588
        %v8590 = vpop.f32.mrf.mxu0
        %v8591 = vadd.f32 %v8398, %v8590
        %8592 = vmatprep.mubr.bf16.mxu0 %v5524
        %8593 = vmatmul.mubr.bf16.gmra.mxu0 %v5523
        %v8594 = vpop.f32.mrf.mxu0
        %v8595 = vadd.f32 %v8402, %v8594
        %v8596 = vpop.f32.mrf.mxu0
        %v8597 = vadd.f32 %v8404, %v8596
        %v8598 = vpop.f32.mrf.mxu0
        %v8599 = vadd.f32 %v8406, %v8598
        %v8600 = vpop.f32.mrf.mxu0
        %v8601 = vadd.f32 %v8408, %v8600
        %8602 = vdwg.mxu0
        %8603 = vmatprep.subr.bf16.mxu0 0
        %8604 = vmatpush1.bf16.msra.mxu0 %v6892
        %8605 = vmatprep.subr.bf16.mxu0 0
        %8606 = vmatpush1.bf16.msra.mxu0 %v6889
        %8607 = vmatprep.subr.bf16.mxu0 0
        %8608 = vmatpush1.bf16.msra.mxu0 %v6886
        %8609 = vmatprep.subr.bf16.mxu0 0
        %8610 = vmatpush1.bf16.msra.mxu0 %v6883
        %8611 = vmatprep.subr.bf16.mxu0 0
        %8612 = vmatpush1.bf16.msra.mxu0 %v6880
        %8613 = vmatprep.subr.bf16.mxu0 0
        %8614 = vmatpush1.bf16.msra.mxu0 %v6877
        %8615 = vmatprep.subr.bf16.mxu0 0
        %8616 = vmatpush1.bf16.msra.mxu0 %v6874
        %8617 = vmatprep.subr.bf16.mxu0 0
        %8618 = vmatpush1.bf16.msra.mxu0 %v6871
        %8619 = vmatprep.subr.bf16.mxu0 0
        %8620 = vmatpush2.bf16.msra.mxu0 %v6916
        %8621 = vmatprep.subr.bf16.mxu0 0
        %8622 = vmatpush2.bf16.msra.mxu0 %v6913
        %8623 = vmatprep.subr.bf16.mxu0 0
        %8624 = vmatpush2.bf16.msra.mxu0 %v6910
        %8625 = vmatprep.subr.bf16.mxu0 0
        %8626 = vmatpush2.bf16.msra.mxu0 %v6907
        %8627 = vmatprep.subr.bf16.mxu0 0
        %8628 = vmatpush2.bf16.msra.mxu0 %v6904
        %8629 = vmatprep.subr.bf16.mxu0 0
        %8630 = vmatpush2.bf16.msra.mxu0 %v6901
        %8631 = vmatprep.subr.bf16.mxu0 0
        %8632 = vmatpush2.bf16.msra.mxu0 %v6898
        %8633 = vmatprep.subr.bf16.mxu0 0
        %8634 = vmatpush2.bf16.msra.mxu0 %v6895
        %8635 = vmatprep.mubr.bf16.mxu0 %v5334
        %8636 = vmatmul.mubr.bf16.gmra.mxu0 %v5333
        %v8637 = vpop.f32.mrf.mxu0
        %v8638 = vadd.f32 0.0, %v8637
        %v8639 = vpop.f32.mrf.mxu0
        %v8640 = vpop.f32.mrf.mxu0
        %v8641 = vadd.f32 0.0, %v8640
        %v8642 = vpop.f32.mrf.mxu0
        %8643 = vmatprep.mubr.bf16.mxu0 %v5346
        %8644 = vmatmul.mubr.bf16.gmra.mxu0 %v5345
        %v8645 = vpop.f32.mrf.mxu0
        %v8646 = vadd.f32 0.0, %v8645
        %v8647 = vpop.f32.mrf.mxu0
        %v8648 = vpop.f32.mrf.mxu0
        %v8649 = vadd.f32 0.0, %v8648
        %v8650 = vpop.f32.mrf.mxu0
        %8651 = vmatprep.mubr.bf16.mxu0 %v5358
        %8652 = vmatmul.mubr.bf16.gmra.mxu0 %v5357
        %v8653 = vpop.f32.mrf.mxu0
        %v8654 = vadd.f32 0.0, %v8653
        %v8655 = vpop.f32.mrf.mxu0
        %v8656 = vpop.f32.mrf.mxu0
        %v8657 = vadd.f32 0.0, %v8656
        %v8658 = vpop.f32.mrf.mxu0
        %8659 = vmatprep.mubr.bf16.mxu0 %v5370
        %8660 = vmatmul.mubr.bf16.gmra.mxu0 %v5369
        %v8661 = vpop.f32.mrf.mxu0
        %v8662 = vadd.f32 0.0, %v8661
        %v8663 = vpop.f32.mrf.mxu0
        %v8664 = vpop.f32.mrf.mxu0
        %v8665 = vadd.f32 0.0, %v8664
        %v8666 = vpop.f32.mrf.mxu0
        %8667 = vmatprep.mubr.bf16.mxu0 %v5382
        %8668 = vmatmul.mubr.bf16.gmra.mxu0 %v5381
        %v8669 = vpop.f32.mrf.mxu0
        %v8670 = vadd.f32 0.0, %v8669
        %v8671 = vpop.f32.mrf.mxu0
        %v8672 = vpop.f32.mrf.mxu0
        %v8673 = vadd.f32 0.0, %v8672
        %v8674 = vpop.f32.mrf.mxu0
        %8675 = vmatprep.mubr.bf16.mxu0 %v5394
        %8676 = vmatmul.mubr.bf16.gmra.mxu0 %v5393
        %v8677 = vpop.f32.mrf.mxu0
        %v8678 = vadd.f32 0.0, %v8677
        %v8679 = vpop.f32.mrf.mxu0
        %v8680 = vpop.f32.mrf.mxu0
        %v8681 = vadd.f32 0.0, %v8680
        %v8682 = vpop.f32.mrf.mxu0
        %8683 = vmatprep.mubr.bf16.mxu0 %v5406
        %8684 = vmatmul.mubr.bf16.gmra.mxu0 %v5405
        %v8685 = vpop.f32.mrf.mxu0
        %v8686 = vadd.f32 0.0, %v8685
        %v8687 = vpop.f32.mrf.mxu0
        %v8688 = vpop.f32.mrf.mxu0
        %v8689 = vadd.f32 0.0, %v8688
        %v8690 = vpop.f32.mrf.mxu0
        %8691 = vmatprep.mubr.bf16.mxu0 %v5418
        %8692 = vmatmul.mubr.bf16.gmra.mxu0 %v5417
        %v8693 = vpop.f32.mrf.mxu0
        %v8694 = vadd.f32 0.0, %v8693
        %v8695 = vpop.f32.mrf.mxu0
        %v8696 = vpop.f32.mrf.mxu0
        %v8697 = vadd.f32 0.0, %v8696
        %v8698 = vpop.f32.mrf.mxu0
        %8699 = vmatprep.mubr.bf16.mxu0 %v5430
        %8700 = vmatmul.mubr.bf16.gmra.mxu0 %v5429
        %v8701 = vpop.f32.mrf.mxu0
        %v8702 = vadd.f32 0.0, %v8701
        %v8703 = vpop.f32.mrf.mxu0
        %v8704 = vpop.f32.mrf.mxu0
        %v8705 = vadd.f32 0.0, %v8704
        %v8706 = vpop.f32.mrf.mxu0
        %8707 = vmatprep.mubr.bf16.mxu0 %v5442
        %8708 = vmatmul.mubr.bf16.gmra.mxu0 %v5441
        %v8709 = vpop.f32.mrf.mxu0
        %v8710 = vadd.f32 0.0, %v8709
        %v8711 = vpop.f32.mrf.mxu0
        %v8712 = vpop.f32.mrf.mxu0
        %v8713 = vadd.f32 0.0, %v8712
        %v8714 = vpop.f32.mrf.mxu0
        %8715 = vmatprep.mubr.bf16.mxu0 %v5454
        %8716 = vmatmul.mubr.bf16.gmra.mxu0 %v5453
        %v8717 = vpop.f32.mrf.mxu0
        %v8718 = vadd.f32 0.0, %v8717
        %v8719 = vpop.f32.mrf.mxu0
        %v8720 = vpop.f32.mrf.mxu0
        %v8721 = vadd.f32 0.0, %v8720
        %v8722 = vpop.f32.mrf.mxu0
        %8723 = vmatprep.mubr.bf16.mxu0 %v5466
        %8724 = vmatmul.mubr.bf16.gmra.mxu0 %v5465
        %v8725 = vpop.f32.mrf.mxu0
        %v8726 = vadd.f32 0.0, %v8725
        %v8727 = vpop.f32.mrf.mxu0
        %v8728 = vpop.f32.mrf.mxu0
        %v8729 = vadd.f32 0.0, %v8728
        %v8730 = vpop.f32.mrf.mxu0
        %8731 = vmatprep.mubr.bf16.mxu0 %v5478
        %8732 = vmatmul.mubr.bf16.gmra.mxu0 %v5477
        %v8733 = vpop.f32.mrf.mxu0
        %v8734 = vadd.f32 0.0, %v8733
        %v8735 = vpop.f32.mrf.mxu0
        %v8736 = vpop.f32.mrf.mxu0
        %v8737 = vadd.f32 0.0, %v8736
        %v8738 = vpop.f32.mrf.mxu0
        %8739 = vmatprep.mubr.bf16.mxu0 %v5490
        %8740 = vmatmul.mubr.bf16.gmra.mxu0 %v5489
        %v8741 = vpop.f32.mrf.mxu0
        %v8742 = vadd.f32 0.0, %v8741
        %v8743 = vpop.f32.mrf.mxu0
        %v8744 = vpop.f32.mrf.mxu0
        %v8745 = vadd.f32 0.0, %v8744
        %v8746 = vpop.f32.mrf.mxu0
        %8747 = vmatprep.mubr.bf16.mxu0 %v5502
        %8748 = vmatmul.mubr.bf16.gmra.mxu0 %v5501
        %v8749 = vpop.f32.mrf.mxu0
        %v8750 = vadd.f32 0.0, %v8749
        %v8751 = vpop.f32.mrf.mxu0
        %v8752 = vpop.f32.mrf.mxu0
        %v8753 = vadd.f32 0.0, %v8752
        %v8754 = vpop.f32.mrf.mxu0
        %8755 = vmatprep.mubr.bf16.mxu0 %v5514
        %8756 = vmatmul.mubr.bf16.gmra.mxu0 %v5513
        %v8757 = vpop.f32.mrf.mxu0
        %v8758 = vadd.f32 0.0, %v8757
        %v8759 = vpop.f32.mrf.mxu0
        %v8760 = vpop.f32.mrf.mxu0
        %v8761 = vadd.f32 0.0, %v8760
        %v8762 = vpop.f32.mrf.mxu0
        %8763 = vdwg.mxu0
        %8764 = vmatprep.subr.bf16.mxu0 0
        %8765 = vmatpush1.bf16.msra.mxu0 %v6940
        %8766 = vmatprep.subr.bf16.mxu0 0
        %8767 = vmatpush1.bf16.msra.mxu0 %v6937
        %8768 = vmatprep.subr.bf16.mxu0 0
        %8769 = vmatpush1.bf16.msra.mxu0 %v6934
        %8770 = vmatprep.subr.bf16.mxu0 0
        %8771 = vmatpush1.bf16.msra.mxu0 %v6931
        %8772 = vmatprep.subr.bf16.mxu0 0
        %8773 = vmatpush1.bf16.msra.mxu0 %v6928
        %8774 = vmatprep.subr.bf16.mxu0 0
        %8775 = vmatpush1.bf16.msra.mxu0 %v6925
        %8776 = vmatprep.subr.bf16.mxu0 0
        %8777 = vmatpush1.bf16.msra.mxu0 %v6922
        %8778 = vmatprep.subr.bf16.mxu0 0
        %8779 = vmatpush1.bf16.msra.mxu0 %v6919
        %8780 = vmatprep.subr.bf16.mxu0 0
        %8781 = vmatpush2.bf16.msra.mxu0 %v6964
        %8782 = vmatprep.subr.bf16.mxu0 0
        %8783 = vmatpush2.bf16.msra.mxu0 %v6961
        %8784 = vmatprep.subr.bf16.mxu0 0
        %8785 = vmatpush2.bf16.msra.mxu0 %v6958
        %8786 = vmatprep.subr.bf16.mxu0 0
        %8787 = vmatpush2.bf16.msra.mxu0 %v6955
        %8788 = vmatprep.subr.bf16.mxu0 0
        %8789 = vmatpush2.bf16.msra.mxu0 %v6952
        %8790 = vmatprep.subr.bf16.mxu0 0
        %8791 = vmatpush2.bf16.msra.mxu0 %v6949
        %8792 = vmatprep.subr.bf16.mxu0 0
        %8793 = vmatpush2.bf16.msra.mxu0 %v6946
        %8794 = vmatprep.subr.bf16.mxu0 0
        %8795 = vmatpush2.bf16.msra.mxu0 %v6943
        %8796 = vmatprep.mubr.bf16.mxu0 %v5336
        %8797 = vmatmul.mubr.bf16.gmra.mxu0 %v5335
        %v8798 = vpop.f32.mrf.mxu0
        %v8799 = vadd.f32 %v8638, %v8798
        %v8800 = vpop.f32.mrf.mxu0
        %v8801 = vpop.f32.mrf.mxu0
        %v8802 = vadd.f32 %v8641, %v8801
        %v8803 = vpop.f32.mrf.mxu0
        %8804 = vmatprep.mubr.bf16.mxu0 %v5348
        %8805 = vmatmul.mubr.bf16.gmra.mxu0 %v5347
        %v8806 = vpop.f32.mrf.mxu0
        %v8807 = vadd.f32 %v8646, %v8806
        %v8808 = vpop.f32.mrf.mxu0
        %v8809 = vpop.f32.mrf.mxu0
        %v8810 = vadd.f32 %v8649, %v8809
        %v8811 = vpop.f32.mrf.mxu0
        %8812 = vmatprep.mubr.bf16.mxu0 %v5360
        %8813 = vmatmul.mubr.bf16.gmra.mxu0 %v5359
        %v8814 = vpop.f32.mrf.mxu0
        %v8815 = vadd.f32 %v8654, %v8814
        %v8816 = vpop.f32.mrf.mxu0
        %v8817 = vpop.f32.mrf.mxu0
        %v8818 = vadd.f32 %v8657, %v8817
        %v8819 = vpop.f32.mrf.mxu0
        %8820 = vmatprep.mubr.bf16.mxu0 %v5372
        %8821 = vmatmul.mubr.bf16.gmra.mxu0 %v5371
        %v8822 = vpop.f32.mrf.mxu0
        %v8823 = vadd.f32 %v8662, %v8822
        %v8824 = vpop.f32.mrf.mxu0
        %v8825 = vpop.f32.mrf.mxu0
        %v8826 = vadd.f32 %v8665, %v8825
        %v8827 = vpop.f32.mrf.mxu0
        %8828 = vmatprep.mubr.bf16.mxu0 %v5384
        %8829 = vmatmul.mubr.bf16.gmra.mxu0 %v5383
        %v8830 = vpop.f32.mrf.mxu0
        %v8831 = vadd.f32 %v8670, %v8830
        %v8832 = vpop.f32.mrf.mxu0
        %v8833 = vpop.f32.mrf.mxu0
        %v8834 = vadd.f32 %v8673, %v8833
        %v8835 = vpop.f32.mrf.mxu0
        %8836 = vmatprep.mubr.bf16.mxu0 %v5396
        %8837 = vmatmul.mubr.bf16.gmra.mxu0 %v5395
        %v8838 = vpop.f32.mrf.mxu0
        %v8839 = vadd.f32 %v8678, %v8838
        %v8840 = vpop.f32.mrf.mxu0
        %v8841 = vpop.f32.mrf.mxu0
        %v8842 = vadd.f32 %v8681, %v8841
        %v8843 = vpop.f32.mrf.mxu0
        %8844 = vmatprep.mubr.bf16.mxu0 %v5408
        %8845 = vmatmul.mubr.bf16.gmra.mxu0 %v5407
        %v8846 = vpop.f32.mrf.mxu0
        %v8847 = vadd.f32 %v8686, %v8846
        %v8848 = vpop.f32.mrf.mxu0
        %v8849 = vpop.f32.mrf.mxu0
        %v8850 = vadd.f32 %v8689, %v8849
        %v8851 = vpop.f32.mrf.mxu0
        %8852 = vmatprep.mubr.bf16.mxu0 %v5420
        %8853 = vmatmul.mubr.bf16.gmra.mxu0 %v5419
        %v8854 = vpop.f32.mrf.mxu0
        %v8855 = vadd.f32 %v8694, %v8854
        %v8856 = vpop.f32.mrf.mxu0
        %v8857 = vpop.f32.mrf.mxu0
        %v8858 = vadd.f32 %v8697, %v8857
        %v8859 = vpop.f32.mrf.mxu0
        %8860 = vmatprep.mubr.bf16.mxu0 %v5432
        %8861 = vmatmul.mubr.bf16.gmra.mxu0 %v5431
        %v8862 = vpop.f32.mrf.mxu0
        %v8863 = vadd.f32 %v8702, %v8862
        %v8864 = vpop.f32.mrf.mxu0
        %v8865 = vpop.f32.mrf.mxu0
        %v8866 = vadd.f32 %v8705, %v8865
        %v8867 = vpop.f32.mrf.mxu0
        %8868 = vmatprep.mubr.bf16.mxu0 %v5444
        %8869 = vmatmul.mubr.bf16.gmra.mxu0 %v5443
        %v8870 = vpop.f32.mrf.mxu0
        %v8871 = vadd.f32 %v8710, %v8870
        %v8872 = vpop.f32.mrf.mxu0
        %v8873 = vpop.f32.mrf.mxu0
        %v8874 = vadd.f32 %v8713, %v8873
        %v8875 = vpop.f32.mrf.mxu0
        %8876 = vmatprep.mubr.bf16.mxu0 %v5456
        %8877 = vmatmul.mubr.bf16.gmra.mxu0 %v5455
        %v8878 = vpop.f32.mrf.mxu0
        %v8879 = vadd.f32 %v8718, %v8878
        %v8880 = vpop.f32.mrf.mxu0
        %v8881 = vpop.f32.mrf.mxu0
        %v8882 = vadd.f32 %v8721, %v8881
        %v8883 = vpop.f32.mrf.mxu0
        %8884 = vmatprep.mubr.bf16.mxu0 %v5468
        %8885 = vmatmul.mubr.bf16.gmra.mxu0 %v5467
        %v8886 = vpop.f32.mrf.mxu0
        %v8887 = vadd.f32 %v8726, %v8886
        %v8888 = vpop.f32.mrf.mxu0
        %v8889 = vpop.f32.mrf.mxu0
        %v8890 = vadd.f32 %v8729, %v8889
        %v8891 = vpop.f32.mrf.mxu0
        %8892 = vmatprep.mubr.bf16.mxu0 %v5480
        %8893 = vmatmul.mubr.bf16.gmra.mxu0 %v5479
        %v8894 = vpop.f32.mrf.mxu0
        %v8895 = vadd.f32 %v8734, %v8894
        %v8896 = vpop.f32.mrf.mxu0
        %v8897 = vpop.f32.mrf.mxu0
        %v8898 = vadd.f32 %v8737, %v8897
        %v8899 = vpop.f32.mrf.mxu0
        %8900 = vmatprep.mubr.bf16.mxu0 %v5492
        %8901 = vmatmul.mubr.bf16.gmra.mxu0 %v5491
        %v8902 = vpop.f32.mrf.mxu0
        %v8903 = vadd.f32 %v8742, %v8902
        %v8904 = vpop.f32.mrf.mxu0
        %v8905 = vpop.f32.mrf.mxu0
        %v8906 = vadd.f32 %v8745, %v8905
        %v8907 = vpop.f32.mrf.mxu0
        %8908 = vmatprep.mubr.bf16.mxu0 %v5504
        %8909 = vmatmul.mubr.bf16.gmra.mxu0 %v5503
        %v8910 = vpop.f32.mrf.mxu0
        %v8911 = vadd.f32 %v8750, %v8910
        %v8912 = vpop.f32.mrf.mxu0
        %v8913 = vpop.f32.mrf.mxu0
        %v8914 = vadd.f32 %v8753, %v8913
        %v8915 = vpop.f32.mrf.mxu0
        %8916 = vmatprep.mubr.bf16.mxu0 %v5516
        %8917 = vmatmul.mubr.bf16.gmra.mxu0 %v5515
        %v8918 = vpop.f32.mrf.mxu0
        %v8919 = vadd.f32 %v8758, %v8918
        %v8920 = vpop.f32.mrf.mxu0
        %v8921 = vpop.f32.mrf.mxu0
        %v8922 = vadd.f32 %v8761, %v8921
        %v8923 = vpop.f32.mrf.mxu0
        %8924 = vdwg.mxu0
        %8925 = vmatprep.subr.bf16.mxu0 0
        %8926 = vmatpush1.bf16.msra.mxu0 %v6988
        %8927 = vmatprep.subr.bf16.mxu0 0
        %8928 = vmatpush1.bf16.msra.mxu0 %v6985
        %8929 = vmatprep.subr.bf16.mxu0 0
        %8930 = vmatpush1.bf16.msra.mxu0 %v6982
        %8931 = vmatprep.subr.bf16.mxu0 0
        %8932 = vmatpush1.bf16.msra.mxu0 %v6979
        %8933 = vmatprep.subr.bf16.mxu0 0
        %8934 = vmatpush1.bf16.msra.mxu0 %v6976
        %8935 = vmatprep.subr.bf16.mxu0 0
        %8936 = vmatpush1.bf16.msra.mxu0 %v6973
        %8937 = vmatprep.subr.bf16.mxu0 0
        %8938 = vmatpush1.bf16.msra.mxu0 %v6970
        %8939 = vmatprep.subr.bf16.mxu0 0
        %8940 = vmatpush1.bf16.msra.mxu0 %v6967
        %8941 = vmatprep.subr.bf16.mxu0 0
        %8942 = vmatpush2.bf16.msra.mxu0 %v7012
        %8943 = vmatprep.subr.bf16.mxu0 0
        %8944 = vmatpush2.bf16.msra.mxu0 %v7009
        %8945 = vmatprep.subr.bf16.mxu0 0
        %8946 = vmatpush2.bf16.msra.mxu0 %v7006
        %8947 = vmatprep.subr.bf16.mxu0 0
        %8948 = vmatpush2.bf16.msra.mxu0 %v7003
        %8949 = vmatprep.subr.bf16.mxu0 0
        %8950 = vmatpush2.bf16.msra.mxu0 %v7000
        %8951 = vmatprep.subr.bf16.mxu0 0
        %8952 = vmatpush2.bf16.msra.mxu0 %v6997
        %8953 = vmatprep.subr.bf16.mxu0 0
        %8954 = vmatpush2.bf16.msra.mxu0 %v6994
        %8955 = vmatprep.subr.bf16.mxu0 0
        %8956 = vmatpush2.bf16.msra.mxu0 %v6991
        %8957 = vmatprep.mubr.bf16.mxu0 %v5338
        %8958 = vmatmul.mubr.bf16.gmra.mxu0 %v5337
        %v8959 = vpop.f32.mrf.mxu0
        %v8960 = vadd.f32 %v8799, %v8959
        %v8961 = vpop.f32.mrf.mxu0
        %v8962 = vpop.f32.mrf.mxu0
        %v8963 = vadd.f32 %v8802, %v8962
        %v8964 = vpop.f32.mrf.mxu0
        %8965 = vmatprep.mubr.bf16.mxu0 %v5350
        %8966 = vmatmul.mubr.bf16.gmra.mxu0 %v5349
        %v8967 = vpop.f32.mrf.mxu0
        %v8968 = vadd.f32 %v8807, %v8967
        %v8969 = vpop.f32.mrf.mxu0
        %v8970 = vpop.f32.mrf.mxu0
        %v8971 = vadd.f32 %v8810, %v8970
        %v8972 = vpop.f32.mrf.mxu0
        %8973 = vmatprep.mubr.bf16.mxu0 %v5362
        %8974 = vmatmul.mubr.bf16.gmra.mxu0 %v5361
        %v8975 = vpop.f32.mrf.mxu0
        %v8976 = vadd.f32 %v8815, %v8975
        %v8977 = vpop.f32.mrf.mxu0
        %v8978 = vpop.f32.mrf.mxu0
        %v8979 = vadd.f32 %v8818, %v8978
        %v8980 = vpop.f32.mrf.mxu0
        %8981 = vmatprep.mubr.bf16.mxu0 %v5374
        %8982 = vmatmul.mubr.bf16.gmra.mxu0 %v5373
        %v8983 = vpop.f32.mrf.mxu0
        %v8984 = vadd.f32 %v8823, %v8983
        %v8985 = vpop.f32.mrf.mxu0
        %v8986 = vpop.f32.mrf.mxu0
        %v8987 = vadd.f32 %v8826, %v8986
        %v8988 = vpop.f32.mrf.mxu0
        %8989 = vmatprep.mubr.bf16.mxu0 %v5386
        %8990 = vmatmul.mubr.bf16.gmra.mxu0 %v5385
        %v8991 = vpop.f32.mrf.mxu0
        %v8992 = vadd.f32 %v8831, %v8991
        %v8993 = vpop.f32.mrf.mxu0
        %v8994 = vpop.f32.mrf.mxu0
        %v8995 = vadd.f32 %v8834, %v8994
        %v8996 = vpop.f32.mrf.mxu0
        %8997 = vmatprep.mubr.bf16.mxu0 %v5398
        %8998 = vmatmul.mubr.bf16.gmra.mxu0 %v5397
        %v8999 = vpop.f32.mrf.mxu0
        %v9000 = vadd.f32 %v8839, %v8999
        %v9001 = vpop.f32.mrf.mxu0
        %v9002 = vpop.f32.mrf.mxu0
        %v9003 = vadd.f32 %v8842, %v9002
        %v9004 = vpop.f32.mrf.mxu0
        %9005 = vmatprep.mubr.bf16.mxu0 %v5410
        %9006 = vmatmul.mubr.bf16.gmra.mxu0 %v5409
        %v9007 = vpop.f32.mrf.mxu0
        %v9008 = vadd.f32 %v8847, %v9007
        %v9009 = vpop.f32.mrf.mxu0
        %v9010 = vpop.f32.mrf.mxu0
        %v9011 = vadd.f32 %v8850, %v9010
        %v9012 = vpop.f32.mrf.mxu0
        %9013 = vmatprep.mubr.bf16.mxu0 %v5422
        %9014 = vmatmul.mubr.bf16.gmra.mxu0 %v5421
        %v9015 = vpop.f32.mrf.mxu0
        %v9016 = vadd.f32 %v8855, %v9015
        %v9017 = vpop.f32.mrf.mxu0
        %v9018 = vpop.f32.mrf.mxu0
        %v9019 = vadd.f32 %v8858, %v9018
        %v9020 = vpop.f32.mrf.mxu0
        %9021 = vmatprep.mubr.bf16.mxu0 %v5434
        %9022 = vmatmul.mubr.bf16.gmra.mxu0 %v5433
        %v9023 = vpop.f32.mrf.mxu0
        %v9024 = vadd.f32 %v8863, %v9023
        %v9025 = vpop.f32.mrf.mxu0
        %v9026 = vpop.f32.mrf.mxu0
        %v9027 = vadd.f32 %v8866, %v9026
        %v9028 = vpop.f32.mrf.mxu0
        %9029 = vmatprep.mubr.bf16.mxu0 %v5446
        %9030 = vmatmul.mubr.bf16.gmra.mxu0 %v5445
        %v9031 = vpop.f32.mrf.mxu0
        %v9032 = vadd.f32 %v8871, %v9031
        %v9033 = vpop.f32.mrf.mxu0
        %v9034 = vpop.f32.mrf.mxu0
        %v9035 = vadd.f32 %v8874, %v9034
        %v9036 = vpop.f32.mrf.mxu0
        %9037 = vmatprep.mubr.bf16.mxu0 %v5458
        %9038 = vmatmul.mubr.bf16.gmra.mxu0 %v5457
        %v9039 = vpop.f32.mrf.mxu0
        %v9040 = vadd.f32 %v8879, %v9039
        %v9041 = vpop.f32.mrf.mxu0
        %v9042 = vpop.f32.mrf.mxu0
        %v9043 = vadd.f32 %v8882, %v9042
        %v9044 = vpop.f32.mrf.mxu0
        %9045 = vmatprep.mubr.bf16.mxu0 %v5470
        %9046 = vmatmul.mubr.bf16.gmra.mxu0 %v5469
        %v9047 = vpop.f32.mrf.mxu0
        %v9048 = vadd.f32 %v8887, %v9047
        %v9049 = vpop.f32.mrf.mxu0
        %v9050 = vpop.f32.mrf.mxu0
        %v9051 = vadd.f32 %v8890, %v9050
        %v9052 = vpop.f32.mrf.mxu0
        %9053 = vmatprep.mubr.bf16.mxu0 %v5482
        %9054 = vmatmul.mubr.bf16.gmra.mxu0 %v5481
        %v9055 = vpop.f32.mrf.mxu0
        %v9056 = vadd.f32 %v8895, %v9055
        %v9057 = vpop.f32.mrf.mxu0
        %v9058 = vpop.f32.mrf.mxu0
        %v9059 = vadd.f32 %v8898, %v9058
        %v9060 = vpop.f32.mrf.mxu0
        %9061 = vmatprep.mubr.bf16.mxu0 %v5494
        %9062 = vmatmul.mubr.bf16.gmra.mxu0 %v5493
        %v9063 = vpop.f32.mrf.mxu0
        %v9064 = vadd.f32 %v8903, %v9063
        %v9065 = vpop.f32.mrf.mxu0
        %v9066 = vpop.f32.mrf.mxu0
        %v9067 = vadd.f32 %v8906, %v9066
        %v9068 = vpop.f32.mrf.mxu0
        %9069 = vmatprep.mubr.bf16.mxu0 %v5506
        %9070 = vmatmul.mubr.bf16.gmra.mxu0 %v5505
        %v9071 = vpop.f32.mrf.mxu0
        %v9072 = vadd.f32 %v8911, %v9071
        %v9073 = vpop.f32.mrf.mxu0
        %v9074 = vpop.f32.mrf.mxu0
        %v9075 = vadd.f32 %v8914, %v9074
        %v9076 = vpop.f32.mrf.mxu0
        %9077 = vmatprep.mubr.bf16.mxu0 %v5518
        %9078 = vmatmul.mubr.bf16.gmra.mxu0 %v5517
        %v9079 = vpop.f32.mrf.mxu0
        %v9080 = vadd.f32 %v8919, %v9079
        %v9081 = vpop.f32.mrf.mxu0
        %v9082 = vpop.f32.mrf.mxu0
        %v9083 = vadd.f32 %v8922, %v9082
        %v9084 = vpop.f32.mrf.mxu0
        %9085 = vdwg.mxu0
        %9086 = vmatprep.subr.bf16.mxu0 0
        %9087 = vmatpush1.bf16.msra.mxu0 %v7036
        %9088 = vmatprep.subr.bf16.mxu0 0
        %9089 = vmatpush1.bf16.msra.mxu0 %v7033
        %9090 = vmatprep.subr.bf16.mxu0 0
        %9091 = vmatpush1.bf16.msra.mxu0 %v7030
        %9092 = vmatprep.subr.bf16.mxu0 0
        %9093 = vmatpush1.bf16.msra.mxu0 %v7027
        %9094 = vmatprep.subr.bf16.mxu0 0
        %9095 = vmatpush1.bf16.msra.mxu0 %v7024
        %9096 = vmatprep.subr.bf16.mxu0 0
        %9097 = vmatpush1.bf16.msra.mxu0 %v7021
        %9098 = vmatprep.subr.bf16.mxu0 0
        %9099 = vmatpush1.bf16.msra.mxu0 %v7018
        %9100 = vmatprep.subr.bf16.mxu0 0
        %9101 = vmatpush1.bf16.msra.mxu0 %v7015
        %9102 = vmatprep.subr.bf16.mxu0 0
        %9103 = vmatpush2.bf16.msra.mxu0 %v7060
        %9104 = vmatprep.subr.bf16.mxu0 0
        %9105 = vmatpush2.bf16.msra.mxu0 %v7057
        %9106 = vmatprep.subr.bf16.mxu0 0
        %9107 = vmatpush2.bf16.msra.mxu0 %v7054
        %9108 = vmatprep.subr.bf16.mxu0 0
        %9109 = vmatpush2.bf16.msra.mxu0 %v7051
        %9110 = vmatprep.subr.bf16.mxu0 0
        %9111 = vmatpush2.bf16.msra.mxu0 %v7048
        %9112 = vmatprep.subr.bf16.mxu0 0
        %9113 = vmatpush2.bf16.msra.mxu0 %v7045
        %9114 = vmatprep.subr.bf16.mxu0 0
        %9115 = vmatpush2.bf16.msra.mxu0 %v7042
        %9116 = vmatprep.subr.bf16.mxu0 0
        %9117 = vmatpush2.bf16.msra.mxu0 %v7039
        %9118 = vmatprep.mubr.bf16.mxu0 %v5340
        %9119 = vmatmul.mubr.bf16.gmra.mxu0 %v5339
        %v9120 = vpop.f32.mrf.mxu0
        %v9121 = vadd.f32 %v8960, %v9120
        %v9122 = vpop.f32.mrf.mxu0
        %v9123 = vpop.f32.mrf.mxu0
        %v9124 = vadd.f32 %v8963, %v9123
        %v9125 = vpop.f32.mrf.mxu0
        %9126 = vmatprep.mubr.bf16.mxu0 %v5352
        %9127 = vmatmul.mubr.bf16.gmra.mxu0 %v5351
        %v9128 = vpop.f32.mrf.mxu0
        %v9129 = vadd.f32 %v8968, %v9128
        %v9130 = vpop.f32.mrf.mxu0
        %v9131 = vpop.f32.mrf.mxu0
        %v9132 = vadd.f32 %v8971, %v9131
        %v9133 = vpop.f32.mrf.mxu0
        %9134 = vmatprep.mubr.bf16.mxu0 %v5364
        %9135 = vmatmul.mubr.bf16.gmra.mxu0 %v5363
        %v9136 = vpop.f32.mrf.mxu0
        %v9137 = vadd.f32 %v8976, %v9136
        %v9138 = vpop.f32.mrf.mxu0
        %v9139 = vpop.f32.mrf.mxu0
        %v9140 = vadd.f32 %v8979, %v9139
        %v9141 = vpop.f32.mrf.mxu0
        %9142 = vmatprep.mubr.bf16.mxu0 %v5376
        %9143 = vmatmul.mubr.bf16.gmra.mxu0 %v5375
        %v9144 = vpop.f32.mrf.mxu0
        %v9145 = vadd.f32 %v8984, %v9144
        %v9146 = vpop.f32.mrf.mxu0
        %v9147 = vpop.f32.mrf.mxu0
        %v9148 = vadd.f32 %v8987, %v9147
        %v9149 = vpop.f32.mrf.mxu0
        %9150 = vmatprep.mubr.bf16.mxu0 %v5388
        %9151 = vmatmul.mubr.bf16.gmra.mxu0 %v5387
        %v9152 = vpop.f32.mrf.mxu0
        %v9153 = vadd.f32 %v8992, %v9152
        %v9154 = vpop.f32.mrf.mxu0
        %v9155 = vpop.f32.mrf.mxu0
        %v9156 = vadd.f32 %v8995, %v9155
        %v9157 = vpop.f32.mrf.mxu0
        %9158 = vmatprep.mubr.bf16.mxu0 %v5400
        %9159 = vmatmul.mubr.bf16.gmra.mxu0 %v5399
        %v9160 = vpop.f32.mrf.mxu0
        %v9161 = vadd.f32 %v9000, %v9160
        %v9162 = vpop.f32.mrf.mxu0
        %v9163 = vpop.f32.mrf.mxu0
        %v9164 = vadd.f32 %v9003, %v9163
        %v9165 = vpop.f32.mrf.mxu0
        %9166 = vmatprep.mubr.bf16.mxu0 %v5412
        %9167 = vmatmul.mubr.bf16.gmra.mxu0 %v5411
        %v9168 = vpop.f32.mrf.mxu0
        %v9169 = vadd.f32 %v9008, %v9168
        %v9170 = vpop.f32.mrf.mxu0
        %v9171 = vpop.f32.mrf.mxu0
        %v9172 = vadd.f32 %v9011, %v9171
        %v9173 = vpop.f32.mrf.mxu0
        %9174 = vmatprep.mubr.bf16.mxu0 %v5424
        %9175 = vmatmul.mubr.bf16.gmra.mxu0 %v5423
        %v9176 = vpop.f32.mrf.mxu0
        %v9177 = vadd.f32 %v9016, %v9176
        %v9178 = vpop.f32.mrf.mxu0
        %v9179 = vpop.f32.mrf.mxu0
        %v9180 = vadd.f32 %v9019, %v9179
        %v9181 = vpop.f32.mrf.mxu0
        %9182 = vmatprep.mubr.bf16.mxu0 %v5436
        %9183 = vmatmul.mubr.bf16.gmra.mxu0 %v5435
        %v9184 = vpop.f32.mrf.mxu0
        %v9185 = vadd.f32 %v9024, %v9184
        %v9186 = vpop.f32.mrf.mxu0
        %v9187 = vpop.f32.mrf.mxu0
        %v9188 = vadd.f32 %v9027, %v9187
        %v9189 = vpop.f32.mrf.mxu0
        %9190 = vmatprep.mubr.bf16.mxu0 %v5448
        %9191 = vmatmul.mubr.bf16.gmra.mxu0 %v5447
        %v9192 = vpop.f32.mrf.mxu0
        %v9193 = vadd.f32 %v9032, %v9192
        %v9194 = vpop.f32.mrf.mxu0
        %v9195 = vpop.f32.mrf.mxu0
        %v9196 = vadd.f32 %v9035, %v9195
        %v9197 = vpop.f32.mrf.mxu0
        %9198 = vmatprep.mubr.bf16.mxu0 %v5460
        %9199 = vmatmul.mubr.bf16.gmra.mxu0 %v5459
        %v9200 = vpop.f32.mrf.mxu0
        %v9201 = vadd.f32 %v9040, %v9200
        %v9202 = vpop.f32.mrf.mxu0
        %v9203 = vpop.f32.mrf.mxu0
        %v9204 = vadd.f32 %v9043, %v9203
        %v9205 = vpop.f32.mrf.mxu0
        %9206 = vmatprep.mubr.bf16.mxu0 %v5472
        %9207 = vmatmul.mubr.bf16.gmra.mxu0 %v5471
        %v9208 = vpop.f32.mrf.mxu0
        %v9209 = vadd.f32 %v9048, %v9208
        %v9210 = vpop.f32.mrf.mxu0
        %v9211 = vpop.f32.mrf.mxu0
        %v9212 = vadd.f32 %v9051, %v9211
        %v9213 = vpop.f32.mrf.mxu0
        %9214 = vmatprep.mubr.bf16.mxu0 %v5484
        %9215 = vmatmul.mubr.bf16.gmra.mxu0 %v5483
        %v9216 = vpop.f32.mrf.mxu0
        %v9217 = vadd.f32 %v9056, %v9216
        %v9218 = vpop.f32.mrf.mxu0
        %v9219 = vpop.f32.mrf.mxu0
        %v9220 = vadd.f32 %v9059, %v9219
        %v9221 = vpop.f32.mrf.mxu0
        %9222 = vmatprep.mubr.bf16.mxu0 %v5496
        %9223 = vmatmul.mubr.bf16.gmra.mxu0 %v5495
        %v9224 = vpop.f32.mrf.mxu0
        %v9225 = vadd.f32 %v9064, %v9224
        %v9226 = vpop.f32.mrf.mxu0
        %v9227 = vpop.f32.mrf.mxu0
        %v9228 = vadd.f32 %v9067, %v9227
        %v9229 = vpop.f32.mrf.mxu0
        %9230 = vmatprep.mubr.bf16.mxu0 %v5508
        %9231 = vmatmul.mubr.bf16.gmra.mxu0 %v5507
        %v9232 = vpop.f32.mrf.mxu0
        %v9233 = vadd.f32 %v9072, %v9232
        %v9234 = vpop.f32.mrf.mxu0
        %v9235 = vpop.f32.mrf.mxu0
        %v9236 = vadd.f32 %v9075, %v9235
        %v9237 = vpop.f32.mrf.mxu0
        %9238 = vmatprep.mubr.bf16.mxu0 %v5520
        %9239 = vmatmul.mubr.bf16.gmra.mxu0 %v5519
        %v9240 = vpop.f32.mrf.mxu0
        %v9241 = vadd.f32 %v9080, %v9240
        %v9242 = vpop.f32.mrf.mxu0
        %v9243 = vpop.f32.mrf.mxu0
        %v9244 = vadd.f32 %v9083, %v9243
        %v9245 = vpop.f32.mrf.mxu0
        %9246 = vdwg.mxu0
        %9247 = vmatprep.subr.bf16.mxu0 0
        %9248 = vmatpush1.bf16.msra.mxu0 %v7084
        %9249 = vmatprep.subr.bf16.mxu0 0
        %9250 = vmatpush1.bf16.msra.mxu0 %v7081
        %9251 = vmatprep.subr.bf16.mxu0 0
        %9252 = vmatpush1.bf16.msra.mxu0 %v7078
        %9253 = vmatprep.subr.bf16.mxu0 0
        %9254 = vmatpush1.bf16.msra.mxu0 %v7075
        %9255 = vmatprep.subr.bf16.mxu0 0
        %9256 = vmatpush1.bf16.msra.mxu0 %v7072
        %9257 = vmatprep.subr.bf16.mxu0 0
        %9258 = vmatpush1.bf16.msra.mxu0 %v7069
        %9259 = vmatprep.subr.bf16.mxu0 0
        %9260 = vmatpush1.bf16.msra.mxu0 %v7066
        %9261 = vmatprep.subr.bf16.mxu0 0
        %9262 = vmatpush1.bf16.msra.mxu0 %v7063
        %9263 = vmatprep.subr.bf16.mxu0 0
        %9264 = vmatpush2.bf16.msra.mxu0 %v7108
        %9265 = vmatprep.subr.bf16.mxu0 0
        %9266 = vmatpush2.bf16.msra.mxu0 %v7105
        %9267 = vmatprep.subr.bf16.mxu0 0
        %9268 = vmatpush2.bf16.msra.mxu0 %v7102
        %9269 = vmatprep.subr.bf16.mxu0 0
        %9270 = vmatpush2.bf16.msra.mxu0 %v7099
        %9271 = vmatprep.subr.bf16.mxu0 0
        %9272 = vmatpush2.bf16.msra.mxu0 %v7096
        %9273 = vmatprep.subr.bf16.mxu0 0
        %9274 = vmatpush2.bf16.msra.mxu0 %v7093
        %9275 = vmatprep.subr.bf16.mxu0 0
        %9276 = vmatpush2.bf16.msra.mxu0 %v7090
        %9277 = vmatprep.subr.bf16.mxu0 0
        %9278 = vmatpush2.bf16.msra.mxu0 %v7087
        %9279 = vmatprep.mubr.bf16.mxu0 %v5342
        %9280 = vmatmul.mubr.bf16.gmra.mxu0 %v5341
        %v9281 = vpop.f32.mrf.mxu0
        %v9282 = vadd.f32 %v9121, %v9281
        %v9283 = vpop.f32.mrf.mxu0
        %v9284 = vpop.f32.mrf.mxu0
        %v9285 = vadd.f32 %v9124, %v9284
        %v9286 = vpop.f32.mrf.mxu0
        %9287 = vmatprep.mubr.bf16.mxu0 %v5354
        %9288 = vmatmul.mubr.bf16.gmra.mxu0 %v5353
        %v9289 = vpop.f32.mrf.mxu0
        %v9290 = vadd.f32 %v9129, %v9289
        %v9291 = vpop.f32.mrf.mxu0
        %v9292 = vpop.f32.mrf.mxu0
        %v9293 = vadd.f32 %v9132, %v9292
        %v9294 = vpop.f32.mrf.mxu0
        %9295 = vmatprep.mubr.bf16.mxu0 %v5366
        %9296 = vmatmul.mubr.bf16.gmra.mxu0 %v5365
        %v9297 = vpop.f32.mrf.mxu0
        %v9298 = vadd.f32 %v9137, %v9297
        %v9299 = vpop.f32.mrf.mxu0
        %v9300 = vpop.f32.mrf.mxu0
        %v9301 = vadd.f32 %v9140, %v9300
        %v9302 = vpop.f32.mrf.mxu0
        %9303 = vmatprep.mubr.bf16.mxu0 %v5378
        %9304 = vmatmul.mubr.bf16.gmra.mxu0 %v5377
        %v9305 = vpop.f32.mrf.mxu0
        %v9306 = vadd.f32 %v9145, %v9305
        %v9307 = vpop.f32.mrf.mxu0
        %v9308 = vpop.f32.mrf.mxu0
        %v9309 = vadd.f32 %v9148, %v9308
        %v9310 = vpop.f32.mrf.mxu0
        %9311 = vmatprep.mubr.bf16.mxu0 %v5390
        %9312 = vmatmul.mubr.bf16.gmra.mxu0 %v5389
        %v9313 = vpop.f32.mrf.mxu0
        %v9314 = vadd.f32 %v9153, %v9313
        %v9315 = vpop.f32.mrf.mxu0
        %v9316 = vpop.f32.mrf.mxu0
        %v9317 = vadd.f32 %v9156, %v9316
        %v9318 = vpop.f32.mrf.mxu0
        %9319 = vmatprep.mubr.bf16.mxu0 %v5402
        %9320 = vmatmul.mubr.bf16.gmra.mxu0 %v5401
        %v9321 = vpop.f32.mrf.mxu0
        %v9322 = vadd.f32 %v9161, %v9321
        %v9323 = vpop.f32.mrf.mxu0
        %v9324 = vpop.f32.mrf.mxu0
        %v9325 = vadd.f32 %v9164, %v9324
        %v9326 = vpop.f32.mrf.mxu0
        %9327 = vmatprep.mubr.bf16.mxu0 %v5414
        %9328 = vmatmul.mubr.bf16.gmra.mxu0 %v5413
        %v9329 = vpop.f32.mrf.mxu0
        %v9330 = vadd.f32 %v9169, %v9329
        %v9331 = vpop.f32.mrf.mxu0
        %v9332 = vpop.f32.mrf.mxu0
        %v9333 = vadd.f32 %v9172, %v9332
        %v9334 = vpop.f32.mrf.mxu0
        %9335 = vmatprep.mubr.bf16.mxu0 %v5426
        %9336 = vmatmul.mubr.bf16.gmra.mxu0 %v5425
        %v9337 = vpop.f32.mrf.mxu0
        %v9338 = vadd.f32 %v9177, %v9337
        %v9339 = vpop.f32.mrf.mxu0
        %v9340 = vpop.f32.mrf.mxu0
        %v9341 = vadd.f32 %v9180, %v9340
        %v9342 = vpop.f32.mrf.mxu0
        %9343 = vmatprep.mubr.bf16.mxu0 %v5438
        %9344 = vmatmul.mubr.bf16.gmra.mxu0 %v5437
        %v9345 = vpop.f32.mrf.mxu0
        %v9346 = vadd.f32 %v9185, %v9345
        %v9347 = vpop.f32.mrf.mxu0
        %v9348 = vpop.f32.mrf.mxu0
        %v9349 = vadd.f32 %v9188, %v9348
        %v9350 = vpop.f32.mrf.mxu0
        %9351 = vmatprep.mubr.bf16.mxu0 %v5450
        %9352 = vmatmul.mubr.bf16.gmra.mxu0 %v5449
        %v9353 = vpop.f32.mrf.mxu0
        %v9354 = vadd.f32 %v9193, %v9353
        %v9355 = vpop.f32.mrf.mxu0
        %v9356 = vpop.f32.mrf.mxu0
        %v9357 = vadd.f32 %v9196, %v9356
        %v9358 = vpop.f32.mrf.mxu0
        %9359 = vmatprep.mubr.bf16.mxu0 %v5462
        %9360 = vmatmul.mubr.bf16.gmra.mxu0 %v5461
        %v9361 = vpop.f32.mrf.mxu0
        %v9362 = vadd.f32 %v9201, %v9361
        %v9363 = vpop.f32.mrf.mxu0
        %v9364 = vpop.f32.mrf.mxu0
        %v9365 = vadd.f32 %v9204, %v9364
        %v9366 = vpop.f32.mrf.mxu0
        %9367 = vmatprep.mubr.bf16.mxu0 %v5474
        %9368 = vmatmul.mubr.bf16.gmra.mxu0 %v5473
        %v9369 = vpop.f32.mrf.mxu0
        %v9370 = vadd.f32 %v9209, %v9369
        %v9371 = vpop.f32.mrf.mxu0
        %v9372 = vpop.f32.mrf.mxu0
        %v9373 = vadd.f32 %v9212, %v9372
        %v9374 = vpop.f32.mrf.mxu0
        %9375 = vmatprep.mubr.bf16.mxu0 %v5486
        %9376 = vmatmul.mubr.bf16.gmra.mxu0 %v5485
        %v9377 = vpop.f32.mrf.mxu0
        %v9378 = vadd.f32 %v9217, %v9377
        %v9379 = vpop.f32.mrf.mxu0
        %v9380 = vpop.f32.mrf.mxu0
        %v9381 = vadd.f32 %v9220, %v9380
        %v9382 = vpop.f32.mrf.mxu0
        %9383 = vmatprep.mubr.bf16.mxu0 %v5498
        %9384 = vmatmul.mubr.bf16.gmra.mxu0 %v5497
        %v9385 = vpop.f32.mrf.mxu0
        %v9386 = vadd.f32 %v9225, %v9385
        %v9387 = vpop.f32.mrf.mxu0
        %v9388 = vpop.f32.mrf.mxu0
        %v9389 = vadd.f32 %v9228, %v9388
        %v9390 = vpop.f32.mrf.mxu0
        %9391 = vmatprep.mubr.bf16.mxu0 %v5510
        %9392 = vmatmul.mubr.bf16.gmra.mxu0 %v5509
        %v9393 = vpop.f32.mrf.mxu0
        %v9394 = vadd.f32 %v9233, %v9393
        %v9395 = vpop.f32.mrf.mxu0
        %v9396 = vpop.f32.mrf.mxu0
        %v9397 = vadd.f32 %v9236, %v9396
        %v9398 = vpop.f32.mrf.mxu0
        %9399 = vmatprep.mubr.bf16.mxu0 %v5522
        %9400 = vmatmul.mubr.bf16.gmra.mxu0 %v5521
        %v9401 = vpop.f32.mrf.mxu0
        %v9402 = vadd.f32 %v9241, %v9401
        %v9403 = vpop.f32.mrf.mxu0
        %v9404 = vpop.f32.mrf.mxu0
        %v9405 = vadd.f32 %v9244, %v9404
        %v9406 = vpop.f32.mrf.mxu0
        %9407 = vdwg.mxu0
        %9408 = vmatprep.subr.bf16.mxu0 0
        %9409 = vmatpush1.bf16.msra.mxu0 %v7132
        %9410 = vmatprep.subr.bf16.mxu0 0
        %9411 = vmatpush1.bf16.msra.mxu0 %v7129
        %9412 = vmatprep.subr.bf16.mxu0 0
        %9413 = vmatpush1.bf16.msra.mxu0 %v7126
        %9414 = vmatprep.subr.bf16.mxu0 0
        %9415 = vmatpush1.bf16.msra.mxu0 %v7123
        %9416 = vmatprep.subr.bf16.mxu0 0
        %9417 = vmatpush1.bf16.msra.mxu0 %v7120
        %9418 = vmatprep.subr.bf16.mxu0 0
        %9419 = vmatpush1.bf16.msra.mxu0 %v7117
        %9420 = vmatprep.subr.bf16.mxu0 0
        %9421 = vmatpush1.bf16.msra.mxu0 %v7114
        %9422 = vmatprep.subr.bf16.mxu0 0
        %9423 = vmatpush1.bf16.msra.mxu0 %v7111
        %9424 = vmatprep.subr.bf16.mxu0 0
        %9425 = vmatpush2.bf16.msra.mxu0 %v7156
        %9426 = vmatprep.subr.bf16.mxu0 0
        %9427 = vmatpush2.bf16.msra.mxu0 %v7153
        %9428 = vmatprep.subr.bf16.mxu0 0
        %9429 = vmatpush2.bf16.msra.mxu0 %v7150
        %9430 = vmatprep.subr.bf16.mxu0 0
        %9431 = vmatpush2.bf16.msra.mxu0 %v7147
        %9432 = vmatprep.subr.bf16.mxu0 0
        %9433 = vmatpush2.bf16.msra.mxu0 %v7144
        %9434 = vmatprep.subr.bf16.mxu0 0
        %9435 = vmatpush2.bf16.msra.mxu0 %v7141
        %9436 = vmatprep.subr.bf16.mxu0 0
        %9437 = vmatpush2.bf16.msra.mxu0 %v7138
        %9438 = vmatprep.subr.bf16.mxu0 0
        %9439 = vmatpush2.bf16.msra.mxu0 %v7135
        %9440 = vmatprep.mubr.bf16.mxu0 %v5344
        %9441 = vmatmul.mubr.bf16.gmra.mxu0 %v5343
        %v9442 = vpop.f32.mrf.mxu0
        %v9443 = vadd.f32 %v9282, %v9442
        %v9444 = vpop.f32.mrf.mxu0
        %v9445 = vpop.f32.mrf.mxu0
        %v9446 = vadd.f32 %v9285, %v9445
        %v9447 = vpop.f32.mrf.mxu0
        %9448 = vmatprep.mubr.bf16.mxu0 %v5356
        %9449 = vmatmul.mubr.bf16.gmra.mxu0 %v5355
        %v9450 = vpop.f32.mrf.mxu0
        %v9451 = vadd.f32 %v9290, %v9450
        %v9452 = vpop.f32.mrf.mxu0
        %v9453 = vpop.f32.mrf.mxu0
        %v9454 = vadd.f32 %v9293, %v9453
        %v9455 = vpop.f32.mrf.mxu0
        %9456 = vmatprep.mubr.bf16.mxu0 %v5368
        %9457 = vmatmul.mubr.bf16.gmra.mxu0 %v5367
        %v9458 = vpop.f32.mrf.mxu0
        %v9459 = vadd.f32 %v9298, %v9458
        %v9460 = vpop.f32.mrf.mxu0
        %v9461 = vpop.f32.mrf.mxu0
        %v9462 = vadd.f32 %v9301, %v9461
        %v9463 = vpop.f32.mrf.mxu0
        %9464 = vmatprep.mubr.bf16.mxu0 %v5380
        %9465 = vmatmul.mubr.bf16.gmra.mxu0 %v5379
        %v9466 = vpop.f32.mrf.mxu0
        %v9467 = vadd.f32 %v9306, %v9466
        %v9468 = vpop.f32.mrf.mxu0
        %v9469 = vpop.f32.mrf.mxu0
        %v9470 = vadd.f32 %v9309, %v9469
        %v9471 = vpop.f32.mrf.mxu0
        %9472 = vmatprep.mubr.bf16.mxu0 %v5392
        %9473 = vmatmul.mubr.bf16.gmra.mxu0 %v5391
        %v9474 = vpop.f32.mrf.mxu0
        %v9475 = vadd.f32 %v9314, %v9474
        %v9476 = vpop.f32.mrf.mxu0
        %v9477 = vpop.f32.mrf.mxu0
        %v9478 = vadd.f32 %v9317, %v9477
        %v9479 = vpop.f32.mrf.mxu0
        %9480 = vmatprep.mubr.bf16.mxu0 %v5404
        %9481 = vmatmul.mubr.bf16.gmra.mxu0 %v5403
        %v9482 = vpop.f32.mrf.mxu0
        %v9483 = vadd.f32 %v9322, %v9482
        %v9484 = vpop.f32.mrf.mxu0
        %v9485 = vpop.f32.mrf.mxu0
        %v9486 = vadd.f32 %v9325, %v9485
        %v9487 = vpop.f32.mrf.mxu0
        %9488 = vmatprep.mubr.bf16.mxu0 %v5416
        %9489 = vmatmul.mubr.bf16.gmra.mxu0 %v5415
        %v9490 = vpop.f32.mrf.mxu0
        %v9491 = vadd.f32 %v9330, %v9490
        %v9492 = vpop.f32.mrf.mxu0
        %v9493 = vpop.f32.mrf.mxu0
        %v9494 = vadd.f32 %v9333, %v9493
        %v9495 = vpop.f32.mrf.mxu0
        %9496 = vmatprep.mubr.bf16.mxu0 %v5428
        %9497 = vmatmul.mubr.bf16.gmra.mxu0 %v5427
        %v9498 = vpop.f32.mrf.mxu0
        %v9499 = vadd.f32 %v9338, %v9498
        %v9500 = vpop.f32.mrf.mxu0
        %v9501 = vpop.f32.mrf.mxu0
        %v9502 = vadd.f32 %v9341, %v9501
        %v9503 = vpop.f32.mrf.mxu0
        %9504 = vmatprep.mubr.bf16.mxu0 %v5440
        %9505 = vmatmul.mubr.bf16.gmra.mxu0 %v5439
        %v9506 = vpop.f32.mrf.mxu0
        %v9507 = vadd.f32 %v9346, %v9506
        %v9508 = vpop.f32.mrf.mxu0
        %v9509 = vpop.f32.mrf.mxu0
        %v9510 = vadd.f32 %v9349, %v9509
        %v9511 = vpop.f32.mrf.mxu0
        %9512 = vmatprep.mubr.bf16.mxu0 %v5452
        %9513 = vmatmul.mubr.bf16.gmra.mxu0 %v5451
        %v9514 = vpop.f32.mrf.mxu0
        %v9515 = vadd.f32 %v9354, %v9514
        %v9516 = vpop.f32.mrf.mxu0
        %v9517 = vpop.f32.mrf.mxu0
        %v9518 = vadd.f32 %v9357, %v9517
        %v9519 = vpop.f32.mrf.mxu0
        %9520 = vmatprep.mubr.bf16.mxu0 %v5464
        %9521 = vmatmul.mubr.bf16.gmra.mxu0 %v5463
        %v9522 = vpop.f32.mrf.mxu0
        %v9523 = vadd.f32 %v9362, %v9522
        %v9524 = vpop.f32.mrf.mxu0
        %v9525 = vpop.f32.mrf.mxu0
        %v9526 = vadd.f32 %v9365, %v9525
        %v9527 = vpop.f32.mrf.mxu0
        %9528 = vmatprep.mubr.bf16.mxu0 %v5476
        %9529 = vmatmul.mubr.bf16.gmra.mxu0 %v5475
        %v9530 = vpop.f32.mrf.mxu0
        %v9531 = vadd.f32 %v9370, %v9530
        %v9532 = vpop.f32.mrf.mxu0
        %v9533 = vpop.f32.mrf.mxu0
        %v9534 = vadd.f32 %v9373, %v9533
        %v9535 = vpop.f32.mrf.mxu0
        %9536 = vmatprep.mubr.bf16.mxu0 %v5488
        %9537 = vmatmul.mubr.bf16.gmra.mxu0 %v5487
        %v9538 = vpop.f32.mrf.mxu0
        %v9539 = vadd.f32 %v9378, %v9538
        %v9540 = vpop.f32.mrf.mxu0
        %v9541 = vpop.f32.mrf.mxu0
        %v9542 = vadd.f32 %v9381, %v9541
        %v9543 = vpop.f32.mrf.mxu0
        %9544 = vmatprep.mubr.bf16.mxu0 %v5500
        %9545 = vmatmul.mubr.bf16.gmra.mxu0 %v5499
        %v9546 = vpop.f32.mrf.mxu0
        %v9547 = vadd.f32 %v9386, %v9546
        %v9548 = vpop.f32.mrf.mxu0
        %v9549 = vpop.f32.mrf.mxu0
        %v9550 = vadd.f32 %v9389, %v9549
        %v9551 = vpop.f32.mrf.mxu0
        %9552 = vmatprep.mubr.bf16.mxu0 %v5512
        %9553 = vmatmul.mubr.bf16.gmra.mxu0 %v5511
        %v9554 = vpop.f32.mrf.mxu0
        %v9555 = vadd.f32 %v9394, %v9554
        %v9556 = vpop.f32.mrf.mxu0
        %v9557 = vpop.f32.mrf.mxu0
        %v9558 = vadd.f32 %v9397, %v9557
        %v9559 = vpop.f32.mrf.mxu0
        %9560 = vmatprep.mubr.bf16.mxu0 %v5524
        %9561 = vmatmul.mubr.bf16.gmra.mxu0 %v5523
        %v9562 = vpop.f32.mrf.mxu0
        %v9563 = vadd.f32 %v9402, %v9562
        %v9564 = vpop.f32.mrf.mxu0
        %v9565 = vpop.f32.mrf.mxu0
        %v9566 = vadd.f32 %v9405, %v9565
        %v9567 = vpop.f32.mrf.mxu0
        %9568 = vdwg.mxu0
        %v9569 = vadd.f32 %v5237, %v8445
        %v9570 = vadd.f32 %v5238, %v8447
        %v9571 = vadd.f32 %v5239, %v9443
        %v9572 = vadd.f32 %v5240, %v8449
        %v9573 = vadd.f32 %v5241, %v8451
        %v9574 = vadd.f32 %v5242, %v9446
        %v9575 = vadd.f32 %v5243, %v8455
        %v9576 = vadd.f32 %v5244, %v8457
        %v9577 = vadd.f32 %v5245, %v9451
        %v9578 = vadd.f32 %v5246, %v8459
        %v9579 = vadd.f32 %v5247, %v8461
        %v9580 = vadd.f32 %v5248, %v9454
        %v9581 = vadd.f32 %v5249, %v8465
        %v9582 = vadd.f32 %v5250, %v8467
        %v9583 = vadd.f32 %v5251, %v9459
        %v9584 = vadd.f32 %v5252, %v8469
        %v9585 = vadd.f32 %v5253, %v8471
        %v9586 = vadd.f32 %v5254, %v9462
        %v9587 = vadd.f32 %v5255, %v8475
        %v9588 = vadd.f32 %v5256, %v8477
        %v9589 = vadd.f32 %v5257, %v9467
        %v9590 = vadd.f32 %v5258, %v8479
        %v9591 = vadd.f32 %v5259, %v8481
        %v9592 = vadd.f32 %v5260, %v9470
        %v9593 = vadd.f32 %v5261, %v8485
        %v9594 = vadd.f32 %v5262, %v8487
        %v9595 = vadd.f32 %v5263, %v9475
        %v9596 = vadd.f32 %v5264, %v8489
        %v9597 = vadd.f32 %v5265, %v8491
        %v9598 = vadd.f32 %v5266, %v9478
        %v9599 = vadd.f32 %v5267, %v8495
        %v9600 = vadd.f32 %v5268, %v8497
        %v9601 = vadd.f32 %v5269, %v9483
        %v9602 = vadd.f32 %v5270, %v8499
        %v9603 = vadd.f32 %v5271, %v8501
        %v9604 = vadd.f32 %v5272, %v9486
        %v9605 = vadd.f32 %v5273, %v8505
        %v9606 = vadd.f32 %v5274, %v8507
        %v9607 = vadd.f32 %v5275, %v9491
        %v9608 = vadd.f32 %v5276, %v8509
        %v9609 = vadd.f32 %v5277, %v8511
        %v9610 = vadd.f32 %v5278, %v9494
        %v9611 = vadd.f32 %v5279, %v8515
        %v9612 = vadd.f32 %v5280, %v8517
        %v9613 = vadd.f32 %v5281, %v9499
        %v9614 = vadd.f32 %v5282, %v8519
        %v9615 = vadd.f32 %v5283, %v8521
        %v9616 = vadd.f32 %v5284, %v9502
        %v9617 = vadd.f32 %v5285, %v8525
        %v9618 = vadd.f32 %v5286, %v8527
        %v9619 = vadd.f32 %v5287, %v9507
        %v9620 = vadd.f32 %v5288, %v8529
        %v9621 = vadd.f32 %v5289, %v8531
        %v9622 = vadd.f32 %v5290, %v9510
        %v9623 = vadd.f32 %v5291, %v8535
        %v9624 = vadd.f32 %v5292, %v8537
        %v9625 = vadd.f32 %v5293, %v9515
        %v9626 = vadd.f32 %v5294, %v8539
        %v9627 = vadd.f32 %v5295, %v8541
        %v9628 = vadd.f32 %v5296, %v9518
        %v9629 = vadd.f32 %v5297, %v8545
        %v9630 = vadd.f32 %v5298, %v8547
        %v9631 = vadd.f32 %v5299, %v9523
        %v9632 = vadd.f32 %v5300, %v8549
        %v9633 = vadd.f32 %v5301, %v8551
        %v9634 = vadd.f32 %v5302, %v9526
        %v9635 = vadd.f32 %v5303, %v8555
        %v9636 = vadd.f32 %v5304, %v8557
        %v9637 = vadd.f32 %v5305, %v9531
        %v9638 = vadd.f32 %v5306, %v8559
        %v9639 = vadd.f32 %v5307, %v8561
        %v9640 = vadd.f32 %v5308, %v9534
        %v9641 = vadd.f32 %v5309, %v8565
        %v9642 = vadd.f32 %v5310, %v8567
        %v9643 = vadd.f32 %v5311, %v9539
        %v9644 = vadd.f32 %v5312, %v8569
        %v9645 = vadd.f32 %v5313, %v8571
        %v9646 = vadd.f32 %v5314, %v9542
        %v9647 = vadd.f32 %v5315, %v8575
        %v9648 = vadd.f32 %v5316, %v8577
        %v9649 = vadd.f32 %v5317, %v9547
        %v9650 = vadd.f32 %v5318, %v8579
        %v9651 = vadd.f32 %v5319, %v8581
        %v9652 = vadd.f32 %v5320, %v9550
        %v9653 = vadd.f32 %v5321, %v8585
        %v9654 = vadd.f32 %v5322, %v8587
        %v9655 = vadd.f32 %v5323, %v9555
        %v9656 = vadd.f32 %v5324, %v8589
        %v9657 = vadd.f32 %v5325, %v8591
        %v9658 = vadd.f32 %v5326, %v9558
        %v9659 = vadd.f32 %v5327, %v8595
        %v9660 = vadd.f32 %v5328, %v8597
        %v9661 = vadd.f32 %v5329, %v9563
        %v9662 = vadd.f32 %v5330, %v8599
        %v9663 = vadd.f32 %v5331, %v8601
        %v9664 = vadd.f32 %v5332, %v9566
        %9665 = vst [vmem:[%s280] sm:$0xff] %v9569
        %9666 = vst [vmem:[%s280 + $0x8] sm:$0xff] %v9570
        %9667 = vst [vmem:[%s280 + $0x10] sm:$0xff] %v9571
        %9668 = vst [vmem:[%s280 + $0x18] sm:$0xff] %v9572
        %9669 = vst [vmem:[%s280 + $0x20] sm:$0xff] %v9573
        %9670 = vst [vmem:[%s280 + $0x28] sm:$0xff] %v9574
        %9671 = vst [vmem:[%s280 + $0x30] sm:$0xff] %v9575
        %9672 = vst [vmem:[%s280 + $0x38] sm:$0xff] %v9576
        %9673 = vst [vmem:[%s280 + $0x40] sm:$0xff] %v9577
        %9674 = vst [vmem:[%s280 + $0x48] sm:$0xff] %v9578
        %9675 = vst [vmem:[%s280 + $0x50] sm:$0xff] %v9579
        %9676 = vst [vmem:[%s280 + $0x58] sm:$0xff] %v9580
        %9677 = vst [vmem:[%s280 + $0x60] sm:$0xff] %v9581
        %9678 = vst [vmem:[%s280 + $0x68] sm:$0xff] %v9582
        %9679 = vst [vmem:[%s280 + $0x70] sm:$0xff] %v9583
        %9680 = vst [vmem:[%s280 + $0x78] sm:$0xff] %v9584
        %9681 = vst [vmem:[%s280 + $0x80] sm:$0xff] %v9585
        %9682 = vst [vmem:[%s280 + $0x88] sm:$0xff] %v9586
        %9683 = vst [vmem:[%s280 + $0x90] sm:$0xff] %v9587
        %9684 = vst [vmem:[%s280 + $0x98] sm:$0xff] %v9588
        %9685 = vst [vmem:[%s280 + $0xa0] sm:$0xff] %v9589
        %9686 = vst [vmem:[%s280 + $0xa8] sm:$0xff] %v9590
        %9687 = vst [vmem:[%s280 + $0xb0] sm:$0xff] %v9591
        %9688 = vst [vmem:[%s280 + $0xb8] sm:$0xff] %v9592
        %9689 = vst [vmem:[%s280 + $0xc0] sm:$0xff] %v9593
        %9690 = vst [vmem:[%s280 + $0xc8] sm:$0xff] %v9594
        %9691 = vst [vmem:[%s280 + $0xd0] sm:$0xff] %v9595
        %9692 = vst [vmem:[%s280 + $0xd8] sm:$0xff] %v9596
        %9693 = vst [vmem:[%s280 + $0xe0] sm:$0xff] %v9597
        %9694 = vst [vmem:[%s280 + $0xe8] sm:$0xff] %v9598
        %9695 = vst [vmem:[%s280 + $0xf0] sm:$0xff] %v9599
        %9696 = vst [vmem:[%s280 + $0xf8] sm:$0xff] %v9600
        %9697 = vst [vmem:[%s280 + $0x100] sm:$0xff] %v9601
        %9698 = vst [vmem:[%s280 + $0x108] sm:$0xff] %v9602
        %9699 = vst [vmem:[%s280 + $0x110] sm:$0xff] %v9603
        %9700 = vst [vmem:[%s280 + $0x118] sm:$0xff] %v9604
        %9701 = vst [vmem:[%s280 + $0x120] sm:$0xff] %v9605
        %9702 = vst [vmem:[%s280 + $0x128] sm:$0xff] %v9606
        %9703 = vst [vmem:[%s280 + $0x130] sm:$0xff] %v9607
        %9704 = vst [vmem:[%s280 + $0x138] sm:$0xff] %v9608
        %9705 = vst [vmem:[%s280 + $0x140] sm:$0xff] %v9609
        %9706 = vst [vmem:[%s280 + $0x148] sm:$0xff] %v9610
        %9707 = vst [vmem:[%s280 + $0x150] sm:$0xff] %v9611
        %9708 = vst [vmem:[%s280 + $0x158] sm:$0xff] %v9612
        %9709 = vst [vmem:[%s280 + $0x160] sm:$0xff] %v9613
        %9710 = vst [vmem:[%s280 + $0x168] sm:$0xff] %v9614
        %9711 = vst [vmem:[%s280 + $0x170] sm:$0xff] %v9615
        %9712 = vst [vmem:[%s280 + $0x178] sm:$0xff] %v9616
        %9713 = vst [vmem:[%s280 + $0x180] sm:$0xff] %v9617
        %9714 = vst [vmem:[%s280 + $0x188] sm:$0xff] %v9618
        %9715 = vst [vmem:[%s280 + $0x190] sm:$0xff] %v9619
        %9716 = vst [vmem:[%s280 + $0x198] sm:$0xff] %v9620
        %9717 = vst [vmem:[%s280 + $0x1a0] sm:$0xff] %v9621
        %9718 = vst [vmem:[%s280 + $0x1a8] sm:$0xff] %v9622
        %9719 = vst [vmem:[%s280 + $0x1b0] sm:$0xff] %v9623
        %9720 = vst [vmem:[%s280 + $0x1b8] sm:$0xff] %v9624
        %9721 = vst [vmem:[%s280 + $0x1c0] sm:$0xff] %v9625
        %9722 = vst [vmem:[%s280 + $0x1c8] sm:$0xff] %v9626
        %9723 = vst [vmem:[%s280 + $0x1d0] sm:$0xff] %v9627
        %9724 = vst [vmem:[%s280 + $0x1d8] sm:$0xff] %v9628
        %9725 = vst [vmem:[%s280 + $0x1e0] sm:$0xff] %v9629
        %9726 = vst [vmem:[%s280 + $0x1e8] sm:$0xff] %v9630
        %9727 = vst [vmem:[%s280 + $0x1f0] sm:$0xff] %v9631
        %9728 = vst [vmem:[%s280 + $0x1f8] sm:$0xff] %v9632
        %9729 = vst [vmem:[%s280 + $0x200] sm:$0xff] %v9633
        %9730 = vst [vmem:[%s280 + $0x208] sm:$0xff] %v9634
        %9731 = vst [vmem:[%s280 + $0x210] sm:$0xff] %v9635
        %9732 = vst [vmem:[%s280 + $0x218] sm:$0xff] %v9636
        %9733 = vst [vmem:[%s280 + $0x220] sm:$0xff] %v9637
        %9734 = vst [vmem:[%s280 + $0x228] sm:$0xff] %v9638
        %9735 = vst [vmem:[%s280 + $0x230] sm:$0xff] %v9639
        %9736 = vst [vmem:[%s280 + $0x238] sm:$0xff] %v9640
        %9737 = vst [vmem:[%s280 + $0x240] sm:$0xff] %v9641
        %9738 = vst [vmem:[%s280 + $0x248] sm:$0xff] %v9642
        %9739 = vst [vmem:[%s280 + $0x250] sm:$0xff] %v9643
        %9740 = vst [vmem:[%s280 + $0x258] sm:$0xff] %v9644
        %9741 = vst [vmem:[%s280 + $0x260] sm:$0xff] %v9645
        %9742 = vst [vmem:[%s280 + $0x268] sm:$0xff] %v9646
        %9743 = vst [vmem:[%s280 + $0x270] sm:$0xff] %v9647
        %9744 = vst [vmem:[%s280 + $0x278] sm:$0xff] %v9648
        %9745 = vst [vmem:[%s280 + $0x280] sm:$0xff] %v9649
        %9746 = vst [vmem:[%s280 + $0x288] sm:$0xff] %v9650
        %9747 = vst [vmem:[%s280 + $0x290] sm:$0xff] %v9651
        %9748 = vst [vmem:[%s280 + $0x298] sm:$0xff] %v9652
        %9749 = vst [vmem:[%s280 + $0x2a0] sm:$0xff] %v9653
        %9750 = vst [vmem:[%s280 + $0x2a8] sm:$0xff] %v9654
        %9751 = vst [vmem:[%s280 + $0x2b0] sm:$0xff] %v9655
        %9752 = vst [vmem:[%s280 + $0x2b8] sm:$0xff] %v9656
        %9753 = vst [vmem:[%s280 + $0x2c0] sm:$0xff] %v9657
        %9754 = vst [vmem:[%s280 + $0x2c8] sm:$0xff] %v9658
        %9755 = vst [vmem:[%s280 + $0x2d0] sm:$0xff] %v9659
        %9756 = vst [vmem:[%s280 + $0x2d8] sm:$0xff] %v9660
        %9757 = vst [vmem:[%s280 + $0x2e0] sm:$0xff] %v9661
        %9758 = vst [vmem:[%s280 + $0x2e8] sm:$0xff] %v9662
        %9759 = vst [vmem:[%s280 + $0x2f0] sm:$0xff] %v9663
        %9760 = vst [vmem:[%s280 + $0x2f8] sm:$0xff] %v9664
        %s9761 = sand.u32 %s164, 1
        %s9762 = scalar_lea.sflag [#allocation3], %s9761
        %s9763 = sand.u32 %s164, 1
        %s9764 = smul.addr %s9763, 768
        %s9765 = scalar_lea.vmem [#allocation2], %s9764
        // Predicated region
        $region45: #{feedforward.1} parent=39 // pred_check
          %p9766 = pneg %p174
        $region46: #{feedforward.1} parent=39 // pred_check_branch
          %9768 = sbr.rel (%p9766) target = $region48
        $region47: #{feedforward.1} parent=39 // pred_region
          %s9769 = smul.u32 32, %s23
          %s9771 = ssub.s32 12288, 12288
          %9772 = vsyncadd %s9762, %s9771
          %s9773 = smul.addr %s9769, 3
          %s9774 = smul.addr %s9773, 128
          %s9775 = scalar_lea.hbm %s5, %s9774
          %s9776 = sshll.u32 %s9765, 4
          %s9777 = int_to_ptr.vmem [resolvable:$true] %s9776
          %9782 = dma.vmem_to_hbm [thread:$0]  %s9777, 12288, %s9775, %s9762, 384, 384, 24
        $region48: #{feedforward.1} parent=39 // pred_fallthru
          _
      $region40: #{feedforward.1} parent=5 // pred_fallthru
        _
      %p9783 = scmp.le.s32.totalorder 2, %s14
      // Predicated region
      $region49: #{feedforward.1} parent=5 // pred_check
        %p9784 = pneg %p9783
      $region50: #{feedforward.1} parent=5 // pred_check_branch
        %9786 = sbr.rel (%p9784) target = $region52
      $region51: #{feedforward.1} parent=5 // pred_region
        %s9787 = ssub.s32 %s14, 2
        // Predicated region
        $region53: #{feedforward.1} parent=51 // pred_check
          %p9788 = pneg %p180
        $region54: #{feedforward.1} parent=51 // pred_check_branch
          %9790 = sbr.rel (%p9788) target = $region56
        $region55: #{feedforward.1} parent=51 // pred_region
          %s9791 = sand.u32 %s165, 1
          %s9792 = scalar_lea.sflag [#allocation3], %s9791
          %s9793 = sand.u32 %s165, 1
          %s9794 = smul.addr %s9793, 768
          %s9795 = scalar_lea.vmem [#allocation2], %s9794
          %9796 = dma.done %s9792, 12288
        $region56: #{feedforward.1} parent=51 // pred_fallthru
          _
      $region52: #{feedforward.1} parent=5 // pred_fallthru
        _
    $region6: #{feedforward.1} parent=1 // loop_footer
      %s18 = sadd.s32 1, %s14
    $region7: #{feedforward.1} parent=1 // loop_footer_branch
      %13 = sbr.rel target = $region3
    $region8: #{feedforward.1} parent=1 // loop_exit
      _
    %9797 = vsyncpa [#allocation3], 1
    %s9798 = scalar_lea.sflag [#allocation3], 1
    %9799 = vsyncpa %s9798, 1

</llo_original>
